<compile_context>
chip_gen: v7x
topology: tpu7x:2x2x1
jax: 0.10.0
libtpu: 0.0.40
codegen_flags: <defaults>
</compile_context>

<pallas_src>
import functools
import math
import jax
import jax.numpy as jnp
from jax.experimental import pallas as pl
from jax.experimental.pallas import tpu as pltpu

LN_EPS = 1e-5          # torch.nn.LayerNorm default
NEG_BIG = -1e30
OUT_PAD = 128          # lane-dense output width
S_PAD = 96             # 84 -> 96 (multiple of 8 sublanes)


# ----------------------------------------------------------------------------
# Pallas kernel: whole forward (post-embedding) for Bt sequences per grid step
# ----------------------------------------------------------------------------
def attention_fwd_kernel(x_ref, pe_ref, lnw_ref, lnb_ref,
                         wqkv_ref, bqkv_ref, wo_ref, bo_ref,
                         ow_ref, ob_ref, out_ref, *, s_valid):
    N, H = x_ref.shape                      # N = Bt * S_PAD (flattened sequences)
    L = wqkv_ref.shape[0]
    Bt = out_ref.shape[1]
    S = N // Bt                             # S_PAD

    lnw = lnw_ref[...]                      # (1, H)
    lnb = lnb_ref[...]                      # (1, H)

    def layer_norm(t):
        mu = jnp.mean(t, axis=-1, keepdims=True)
        var = jnp.mean((t - mu) ** 2, axis=-1, keepdims=True)
        return (t - mu) * jax.lax.rsqrt(var + LN_EPS) * lnw + lnb

    # shared LayerNorm, then positional encoding (padded+tiled to (N, H) on host)
    x = layer_norm(x_ref[...]) + pe_ref[...]                     # (N, H) f32

    # padding masks built in-kernel (no HBM mask operand), hoisted out of loops
    col_idx = jax.lax.broadcasted_iota(jnp.int32, (1, S), 1)
    kbias = jnp.where(col_idx < s_valid, 0.0, NEG_BIG)           # (1, S)  key-pad bias
    row_valid = jax.lax.broadcasted_iota(jnp.int32, (S, 1), 0) < s_valid   # (S, 1)

    for l in range(L):                                           # static unroll, L tiny
        # fused QKV projection: one (N, H) @ (H, 3H) bf16 matmul (scale folded in Wq)
        qkv = jnp.dot(x.astype(jnp.bfloat16), wqkv_ref[l],
                      preferred_element_type=jnp.float32) + bqkv_ref[l]
        qkv = qkv.astype(jnp.bfloat16)

        # per-sequence attention: linear (not quadratic) in Bt
        ctx_rows = []
        for i in range(Bt):
            r0 = i * S
            q = qkv[r0:r0 + S, 0:H]
            k = qkv[r0:r0 + S, H:2 * H]
            v = qkv[r0:r0 + S, 2 * H:3 * H]
            # contract last dims of q and k -> no explicit k.T / XLU transpose
            s = jax.lax.dot_general(q, k, (((1,), (1,)), ((), ())),
                                    preferred_element_type=jnp.float32)
            s = s + kbias                                        # kill padded key cols (f32)
            s = s - jnp.max(s, axis=-1, keepdims=True)
            e = jnp.exp(s)
            p = e * pl.reciprocal(jnp.sum(e, axis=-1, keepdims=True), approx=True)
            ctx_rows.append(jnp.dot(p.astype(jnp.bfloat16), v,
                                    preferred_element_type=jnp.float32))
        ctx = jnp.concatenate(ctx_rows, axis=0)                  # (N, H) f32

        ctx = jnp.dot(ctx.astype(jnp.bfloat16), wo_ref[l],
                      preferred_element_type=jnp.float32) + bo_ref[l]

        x = layer_norm(x + ctx)             # residual + shared LayerNorm
        # F.dropout(training=False) -> identity

    # per-sequence max over the valid rows (aligned (S, H) slices, masked pad rows)
    m_rows = []
    for i in range(Bt):
        xi = x[i * S:(i + 1) * S, :]
        m_rows.append(jnp.max(jnp.where(row_valid, xi, NEG_BIG),
                              axis=0, keepdims=True))
    m = jnp.concatenate(m_rows, axis=0)                          # (Bt, H)

    # output Linear (padded to 128 lanes; padded bias = -1e30, f32) + exact softmax
    logits = jnp.dot(m, ow_ref[...], preferred_element_type=jnp.float32) + ob_ref[...]
    logits = logits - jnp.max(logits, axis=-1, keepdims=True)
    e = jnp.exp(logits)
    out_ref[0] = e / jnp.sum(e, axis=-1, keepdims=True)          # (Bt, OUT_PAD)


# ----------------------------------------------------------------------------
# One-time parameter prep (hoisted out of the per-call path)
# ----------------------------------------------------------------------------
def prepare_params(params, block_batch=4):
    H = params["embedding"].shape[1]
    OUT = params["ow"].shape[-1]
    S = params["pe"].shape[0]                                    # 84

    scale = 1.0 / math.sqrt(H)
    # fold 1/sqrt(H) into Wq/bq, fuse Q/K/V along the output dim, cast weights bf16
    wqkv = jnp.concatenate(
        [params["wq"] * scale, params["wk"], params["wv"]], axis=-1
    ).astype(jnp.bfloat16)                                       # (L, H, 3H)
    bqkv = jnp.concatenate(
        [params["bq"] * scale, params["bk"], params["bv"]], axis=-1)   # (L, 1, 3H) f32
    wo = params["wo"].astype(jnp.bfloat16)                       # (L, H, H)
    bo = params["bo"]                                            # (L, 1, H) f32

    # positional encoding: pad S 84->96 with zeros, tile per sequence in the slab
    pe_pad = jnp.zeros((S_PAD, H), jnp.float32).at[:S].set(params["pe"])
    pe_tiled = jnp.tile(pe_pad, (block_batch, 1))                # (Bt*S_PAD, H)

    # pad output Linear to 128 lanes; padded bias = -1e30 so softmax ignores them
    ow_pad = jnp.zeros((H, OUT_PAD), jnp.float32).at[:, :OUT].set(params["ow"])
    ob_pad = jnp.full((1, OUT_PAD), NEG_BIG, jnp.float32).at[:, :OUT].set(params["ob"])

    return {
        "embedding": params["embedding"], "ln_w": params["ln_w"], "ln_b": params["ln_b"],
        "pe_tiled": pe_tiled, "wqkv": wqkv, "bqkv": bqkv, "wo": wo, "bo": bo,
        "ow_pad": ow_pad, "ob_pad": ob_pad,
        "s_valid": S, "block_batch": block_batch, "out_dim": OUT,
    }


# ----------------------------------------------------------------------------
# Wrapper
# ----------------------------------------------------------------------------
def attention_forward(x_idx, prep):
    """x_idx: int32 (B, S) token indices in [0, input_features)."""
    emb = jnp.take(prep["embedding"], x_idx, axis=0)             # (B, S, H) glue
    B, S, H = emb.shape
    Bt = prep["block_batch"]
    OUT = prep["out_dim"]

    num_blocks = (B + Bt - 1) // Bt
    B_pad = num_blocks * Bt
    emb = jnp.pad(emb, ((0, B_pad - B), (0, S_PAD - S), (0, 0)))  # zero pad rows/seqs
    x_flat = emb.reshape(B_pad * S_PAD, H)                       # (B_pad*S_PAD, H)
    N = Bt * S_PAD

    vmem = pl.BlockSpec(memory_space=pltpu.MemorySpace.VMEM)     # whole-array, single copy

    out = pl.pallas_call(
        functools.partial(attention_fwd_kernel, s_valid=prep["s_valid"]),
        out_shape=jax.ShapeDtypeStruct((num_blocks, Bt, OUT_PAD), jnp.float32),
        grid=(num_blocks,),
        in_specs=[
            pl.BlockSpec((N, H), lambda b: (b, 0)),              # x slab (Bt sequences)
            vmem,                                                # pe (padded + tiled)
            vmem, vmem,                                          # layer_norm w, b
            vmem, vmem,                                          # fused Wqkv (bf16), bqkv
            vmem, vmem,                                          # Wo (bf16), bo
            vmem, vmem,                                          # output Linear (padded, f32)
        ],
        out_specs=pl.BlockSpec((1, Bt, OUT_PAD), lambda b: (b, 0, 0)),
        compiler_params=pltpu.CompilerParams(
            dimension_semantics=("parallel",)),
    )(x_flat, prep["pe_tiled"], prep["ln_w"], prep["ln_b"],
      prep["wqkv"], prep["bqkv"], prep["wo"], prep["bo"],
      prep["ow_pad"], prep["ob_pad"])

    return out.reshape(num_blocks * Bt, OUT_PAD)[:B, :OUT]       # (B, OUT)


# ----------------------------------------------------------------------------
# Pure-JAX reference (same assumed AttentionLayer semantics) for validation
# ----------------------------------------------------------------------------
def attention_forward_ref(x_idx, params):
    emb = jnp.take(params["embedding"], x_idx, axis=0)           # (B, S, H)
    H = emb.shape[-1]

    def ln(t):
        mu = jnp.mean(t, axis=-1, keepdims=True)
        var = jnp.mean((t - mu) ** 2, axis=-1, keepdims=True)
        return (t - mu) * jax.lax.rsqrt(var + LN_EPS) * params["ln_w"] + params["ln_b"]

    x = ln(emb) + params["pe"]
    L = params["wq"].shape[0]
    scale = 1.0 / math.sqrt(H)
    for l in range(L):
        q = x @ params["wq"][l] + params["bq"][l]
        k = x @ params["wk"][l] + params["bk"][l]
        v = x @ params["wv"][l] + params["bv"][l]
        s = jnp.einsum("bqd,bkd->bqk", q, k) * scale
        p = jax.nn.softmax(s, axis=-1)
        ctx = jnp.einsum("bqk,bkd->bqd", p, v) @ params["wo"][l] + params["bo"][l]
        x = ln(x + ctx)
    m = jnp.max(x, axis=-2)
    logits = m @ params["ow"] + params["ob"]
    return jax.nn.softmax(logits, axis=-1)


# ----------------------------------------------------------------------------
# Deterministic parameter construction
# ----------------------------------------------------------------------------
def make_positional_encoding(hidden_dim, input_dim1=6, input_dim2=7):
    """Exact replica of Attention.make_positional_encoding (values are 0/1)."""
    import numpy as np
    enc1 = int(math.log(input_dim1, 2) + 1)
    enc2 = int(math.log(input_dim2, 2) + 1)
    pe = np.zeros((input_dim1 * input_dim2, hidden_dim), dtype=np.int64)
    for i in range(input_dim1):
        for ii, e in enumerate(bin(i)[2:].zfill(enc1)):
            rows = [x * input_dim1 + i for x in range(input_dim2)]
            pe[rows, ii] = int(e)
    for i in range(input_dim2):
        for ii, e in enumerate(bin(i)[2:].zfill(enc2)):
            rows = [x * input_dim2 + i for x in range(input_dim1)]
            pe[rows, ii + enc1] = int(e)
    pe = np.concatenate([pe, pe], axis=0)                        # (84, hidden)
    return jnp.asarray(pe, dtype=jnp.float32)


def init_params(key, hidden_dim, num_layers, out_dim, input_features=2):
    ks = jax.random.split(key, 6)
    scale = 0.1
    params = {
        "embedding": scale * jax.random.normal(ks[0], (input_features, hidden_dim), jnp.float32),
        "ln_w": jnp.ones((1, hidden_dim), jnp.float32),
        "ln_b": jnp.zeros((1, hidden_dim), jnp.float32),
        "pe": make_positional_encoding(hidden_dim),
        "wq": scale * jax.random.normal(ks[1], (num_layers, hidden_dim, hidden_dim), jnp.float32),
        "wk": scale * jax.random.normal(ks[2], (num_layers, hidden_dim, hidden_dim), jnp.float32),
        "wv": scale * jax.random.normal(ks[3], (num_layers, hidden_dim, hidden_dim), jnp.float32),
        "wo": scale * jax.random.normal(ks[4], (num_layers, hidden_dim, hidden_dim), jnp.float32),
        "bq": jnp.zeros((num_layers, 1, hidden_dim), jnp.float32),
        "bk": jnp.zeros((num_layers, 1, hidden_dim), jnp.float32),
        "bv": jnp.zeros((num_layers, 1, hidden_dim), jnp.float32),
        "bo": jnp.zeros((num_layers, 1, hidden_dim), jnp.float32),
        "ow": scale * jax.random.normal(ks[5], (hidden_dim, out_dim), jnp.float32),
        "ob": jnp.zeros((1, out_dim), jnp.float32),
    }
    return params


if __name__ == "__main__":
    B = 8
    S = 2 * 6 * 7          # 84, fixed by the positional encoding
    HIDDEN = 32
    LAYERS = 2
    OUT_DIM = 4

    key = jax.random.PRNGKey(0)
    k_idx, k_par = jax.random.split(key)

    params = init_params(k_par, HIDDEN, LAYERS, OUT_DIM)
    x_idx = jax.random.randint(k_idx, (B, S), 0, 2, dtype=jnp.int32)

    # block_batch=4 -> grid=(2,): both TensorCores on v7x. On single-TC
    # v5e/v6e, prepare_params(params, block_batch=B) collapses to grid=(1,).
    prep = prepare_params(params, block_batch=4)

    out = attention_forward(x_idx, prep)
    jax.block_until_ready(out)

    assert out.shape == (B, OUT_DIM)
    assert bool(jnp.all(jnp.isfinite(out)))
    # softmax rows sum to 1 (exact divide used for the final softmax)
    assert bool(jnp.allclose(jnp.sum(out, axis=-1), 1.0, atol=1e-5))

    # parity with the pure-JAX f32 reference (bf16 matmul operands + approx
    # reciprocal in the attention softmax introduce small deviations)
    ref = attention_forward_ref(x_idx, params)
    assert bool(jnp.allclose(out, ref, atol=2e-2)), float(jnp.max(jnp.abs(out - ref)))

    print("KERNEL_OK")
</pallas_src>

<mosaic_0001>
module attributes {stable_mosaic.version = 11 : i64} {
  func.func @attention_fwd_kernel(%arg0: i32, %arg1: memref<384x32xf32, #tpu.memory_space<vmem>>, %arg2: memref<384x32xf32, #tpu.memory_space<vmem>>, %arg3: memref<1x32xf32, #tpu.memory_space<vmem>>, %arg4: memref<1x32xf32, #tpu.memory_space<vmem>>, %arg5: memref<2x32x96xbf16, #tpu.memory_space<vmem>>, %arg6: memref<2x1x96xf32, #tpu.memory_space<vmem>>, %arg7: memref<2x32x32xbf16, #tpu.memory_space<vmem>>, %arg8: memref<2x1x32xf32, #tpu.memory_space<vmem>>, %arg9: memref<32x128xf32, #tpu.memory_space<vmem>>, %arg10: memref<1x128xf32, #tpu.memory_space<vmem>>, %arg11: memref<1x4x128xf32, #tpu.memory_space<vmem>>) attributes {dimension_semantics = [#tpu.dimension_semantics<parallel>], iteration_bounds = array<i64: 2>, scalar_prefetch = 0 : i64, scratch_operands = 0 : i64, tpu.core_type = #tpu.core_type<tc>, window_params = [{transform_indices = @transform_0, window_bounds = array<i64: 384, 32>}, {pipeline_mode = #tpu.pipeline_mode<synchronous>, transform_indices = @transform_1, window_bounds = array<i64: 384, 32>}, {pipeline_mode = #tpu.pipeline_mode<synchronous>, transform_indices = @transform_2, window_bounds = array<i64: 1, 32>}, {pipeline_mode = #tpu.pipeline_mode<synchronous>, transform_indices = @transform_3, window_bounds = array<i64: 1, 32>}, {pipeline_mode = #tpu.pipeline_mode<synchronous>, transform_indices = @transform_4, window_bounds = array<i64: 2, 32, 96>}, {pipeline_mode = #tpu.pipeline_mode<synchronous>, transform_indices = @transform_5, window_bounds = array<i64: 2, 1, 96>}, {pipeline_mode = #tpu.pipeline_mode<synchronous>, transform_indices = @transform_6, window_bounds = array<i64: 2, 32, 32>}, {pipeline_mode = #tpu.pipeline_mode<synchronous>, transform_indices = @transform_7, window_bounds = array<i64: 2, 1, 32>}, {pipeline_mode = #tpu.pipeline_mode<synchronous>, transform_indices = @transform_8, window_bounds = array<i64: 32, 128>}, {pipeline_mode = #tpu.pipeline_mode<synchronous>, transform_indices = @transform_9, window_bounds = array<i64: 1, 128>}, {transform_indices = @transform_10, window_bounds = array<i64: 1, 4, 128>}]} {
    %c0 = arith.constant 0 : index
    %c0_0 = arith.constant 0 : index
    %0 = vector.load %arg3[%c0, %c0_0] : memref<1x32xf32, #tpu.memory_space<vmem>>, vector<1x32xf32>
    %c0_1 = arith.constant 0 : index
    %c0_2 = arith.constant 0 : index
    %1 = vector.load %arg4[%c0_1, %c0_2] : memref<1x32xf32, #tpu.memory_space<vmem>>, vector<1x32xf32>
    %c0_3 = arith.constant 0 : index
    %c0_4 = arith.constant 0 : index
    %2 = vector.load %arg1[%c0_3, %c0_4] : memref<384x32xf32, #tpu.memory_space<vmem>>, vector<384x32xf32>
    %cst = arith.constant dense<0.000000e+00> : vector<384xf32>
    %3 = vector.multi_reduction <add>, %2, %cst [1] : vector<384x32xf32> to vector<384xf32>
    %4 = vector.shape_cast %3 : vector<384xf32> to vector<384x1xf32>
    %cst_5 = arith.constant 3.200000e+01 : f32
    %5 = vector.broadcast %cst_5 : f32 to vector<384x1xf32>
    %6 = arith.divf %4, %5 : vector<384x1xf32>
    %7 = vector.broadcast %6 : vector<384x1xf32> to vector<384x32xf32>
    %8 = arith.subf %2, %7 : vector<384x32xf32>
    %9 = arith.mulf %8, %8 : vector<384x32xf32>
    %cst_6 = arith.constant dense<0.000000e+00> : vector<384xf32>
    %10 = vector.multi_reduction <add>, %9, %cst_6 [1] : vector<384x32xf32> to vector<384xf32>
    %11 = vector.shape_cast %10 : vector<384xf32> to vector<384x1xf32>
    %cst_7 = arith.constant 3.200000e+01 : f32
    %12 = vector.broadcast %cst_7 : f32 to vector<384x1xf32>
    %13 = arith.divf %11, %12 : vector<384x1xf32>
    %14 = vector.broadcast %6 : vector<384x1xf32> to vector<384x32xf32>
    %15 = arith.subf %2, %14 : vector<384x32xf32>
    %cst_8 = arith.constant 9.99999974E-6 : f32
    %16 = vector.broadcast %cst_8 : f32 to vector<384x1xf32>
    %17 = arith.addf %13, %16 : vector<384x1xf32>
    %18 = math.rsqrt %17 : vector<384x1xf32>
    %19 = vector.broadcast %18 : vector<384x1xf32> to vector<384x32xf32>
    %20 = arith.mulf %15, %19 : vector<384x32xf32>
    %21 = vector.broadcast %0 : vector<1x32xf32> to vector<384x32xf32>
    %22 = arith.mulf %20, %21 : vector<384x32xf32>
    %23 = vector.broadcast %1 : vector<1x32xf32> to vector<384x32xf32>
    %24 = arith.addf %22, %23 : vector<384x32xf32>
    %c0_9 = arith.constant 0 : index
    %c0_10 = arith.constant 0 : index
    %25 = vector.load %arg2[%c0_9, %c0_10] : memref<384x32xf32, #tpu.memory_space<vmem>>, vector<384x32xf32>
    %26 = arith.addf %24, %25 : vector<384x32xf32>
    %27 = tpu.iota {dimensions = array<i32: 1>} : vector<1x96xi32>
    %c84_i32 = arith.constant 84 : i32
    %28 = vector.broadcast %c84_i32 : i32 to vector<1x96xi32>
    %29 = arith.cmpi slt, %27, %28 : vector<1x96xi32>
    %cst_11 = arith.constant 0.000000e+00 : f32
    %cst_12 = arith.constant -1.000000e+30 : f32
    %30 = vector.broadcast %cst_11 : f32 to vector<1x96xf32>
    %31 = vector.broadcast %cst_12 : f32 to vector<1x96xf32>
    %32 = arith.select %29, %30, %31 : vector<1x96xi1>, vector<1x96xf32>
    %33 = tpu.iota {dimensions = array<i32: 0>} : vector<96x1xi32>
    %c84_i32_13 = arith.constant 84 : i32
    %34 = vector.broadcast %c84_i32_13 : i32 to vector<96x1xi32>
    %35 = arith.cmpi slt, %33, %34 : vector<96x1xi32>
    %36 = arith.truncf %26 : vector<384x32xf32> to vector<384x32xbf16>
    %c0_14 = arith.constant 0 : index
    %c0_15 = arith.constant 0 : index
    %c0_16 = arith.constant 0 : index
    %37 = vector.load %arg5[%c0_14, %c0_15, %c0_16] : memref<2x32x96xbf16, #tpu.memory_space<vmem>>, vector<1x32x96xbf16>
    %38 = vector.shape_cast %37 : vector<1x32x96xbf16> to vector<32x96xbf16>
    %cst_17 = arith.constant dense<0.000000e+00> : vector<384x96xf32>
    %39 = tpu.matmul %36, %38, %cst_17 {dimension_numbers = #tpu.dot_dimension_numbers<[1], [0], [0], [1], [0, 0, 1, 1], [], []>} : vector<384x32xbf16>, vector<32x96xbf16>, vector<384x96xf32> -> vector<384x96xf32>
    %c0_18 = arith.constant 0 : index
    %c0_19 = arith.constant 0 : index
    %c0_20 = arith.constant 0 : index
    %40 = vector.load %arg6[%c0_18, %c0_19, %c0_20] : memref<2x1x96xf32, #tpu.memory_space<vmem>>, vector<1x1x96xf32>
    %41 = vector.shape_cast %40 : vector<1x1x96xf32> to vector<1x96xf32>
    %42 = vector.broadcast %41 : vector<1x96xf32> to vector<384x96xf32>
    %43 = arith.addf %39, %42 : vector<384x96xf32>
    %44 = arith.truncf %43 : vector<384x96xf32> to vector<384x96xbf16>
    %45 = vector.extract_strided_slice %44 {offsets = [0, 0], sizes = [96, 32], strides = [1, 1]} : vector<384x96xbf16> to vector<96x32xbf16>
    %46 = vector.extract_strided_slice %44 {offsets = [0, 32], sizes = [96, 32], strides = [1, 1]} : vector<384x96xbf16> to vector<96x32xbf16>
    %47 = vector.extract_strided_slice %44 {offsets = [0, 64], sizes = [96, 32], strides = [1, 1]} : vector<384x96xbf16> to vector<96x32xbf16>
    %cst_21 = arith.constant dense<0.000000e+00> : vector<96x96xf32>
    %48 = tpu.matmul %45, %46, %cst_21 {dimension_numbers = #tpu.dot_dimension_numbers<[1], [1], [0], [0], [0, 0, 1, 0], [], []>} : vector<96x32xbf16>, vector<96x32xbf16>, vector<96x96xf32> -> vector<96x96xf32>
    %49 = vector.broadcast %32 : vector<1x96xf32> to vector<96x96xf32>
    %50 = arith.addf %48, %49 : vector<96x96xf32>
    %cst_22 = arith.constant dense<0xFF800000> : vector<96xf32>
    %51 = vector.multi_reduction <maximumf>, %50, %cst_22 [1] : vector<96x96xf32> to vector<96xf32>
    %52 = vector.shape_cast %51 : vector<96xf32> to vector<96x1xf32>
    %53 = vector.broadcast %52 : vector<96x1xf32> to vector<96x96xf32>
    %54 = arith.subf %50, %53 : vector<96x96xf32>
    %55 = math.exp %54 : vector<96x96xf32>
    %cst_23 = arith.constant dense<0.000000e+00> : vector<96xf32>
    %56 = vector.multi_reduction <add>, %55, %cst_23 [1] : vector<96x96xf32> to vector<96xf32>
    %57 = vector.shape_cast %56 : vector<96xf32> to vector<96x1xf32>
    %58 = tpu.reciprocal %57 {approx = true} : vector<96x1xf32> -> vector<96x1xf32>
    %59 = vector.broadcast %58 : vector<96x1xf32> to vector<96x96xf32>
    %60 = arith.mulf %55, %59 : vector<96x96xf32>
    %61 = arith.truncf %60 : vector<96x96xf32> to vector<96x96xbf16>
    %cst_24 = arith.constant dense<0.000000e+00> : vector<96x32xf32>
    %62 = tpu.matmul %61, %47, %cst_24 {dimension_numbers = #tpu.dot_dimension_numbers<[1], [0], [0], [1], [0, 0, 1, 1], [], []>} : vector<96x96xbf16>, vector<96x32xbf16>, vector<96x32xf32> -> vector<96x32xf32>
    %63 = vector.extract_strided_slice %44 {offsets = [96, 0], sizes = [96, 32], strides = [1, 1]} : vector<384x96xbf16> to vector<96x32xbf16>
    %64 = vector.extract_strided_slice %44 {offsets = [96, 32], sizes = [96, 32], strides = [1, 1]} : vector<384x96xbf16> to vector<96x32xbf16>
    %65 = vector.extract_strided_slice %44 {offsets = [96, 64], sizes = [96, 32], strides = [1, 1]} : vector<384x96xbf16> to vector<96x32xbf16>
    %cst_25 = arith.constant dense<0.000000e+00> : vector<96x96xf32>
    %66 = tpu.matmul %63, %64, %cst_25 {dimension_numbers = #tpu.dot_dimension_numbers<[1], [1], [0], [0], [0, 0, 1, 0], [], []>} : vector<96x32xbf16>, vector<96x32xbf16>, vector<96x96xf32> -> vector<96x96xf32>
    %67 = vector.broadcast %32 : vector<1x96xf32> to vector<96x96xf32>
    %68 = arith.addf %66, %67 : vector<96x96xf32>
    %cst_26 = arith.constant dense<0xFF800000> : vector<96xf32>
    %69 = vector.multi_reduction <maximumf>, %68, %cst_26 [1] : vector<96x96xf32> to vector<96xf32>
    %70 = vector.shape_cast %69 : vector<96xf32> to vector<96x1xf32>
    %71 = vector.broadcast %70 : vector<96x1xf32> to vector<96x96xf32>
    %72 = arith.subf %68, %71 : vector<96x96xf32>
    %73 = math.exp %72 : vector<96x96xf32>
    %cst_27 = arith.constant dense<0.000000e+00> : vector<96xf32>
    %74 = vector.multi_reduction <add>, %73, %cst_27 [1] : vector<96x96xf32> to vector<96xf32>
    %75 = vector.shape_cast %74 : vector<96xf32> to vector<96x1xf32>
    %76 = tpu.reciprocal %75 {approx = true} : vector<96x1xf32> -> vector<96x1xf32>
    %77 = vector.broadcast %76 : vector<96x1xf32> to vector<96x96xf32>
    %78 = arith.mulf %73, %77 : vector<96x96xf32>
    %79 = arith.truncf %78 : vector<96x96xf32> to vector<96x96xbf16>
    %cst_28 = arith.constant dense<0.000000e+00> : vector<96x32xf32>
    %80 = tpu.matmul %79, %65, %cst_28 {dimension_numbers = #tpu.dot_dimension_numbers<[1], [0], [0], [1], [0, 0, 1, 1], [], []>} : vector<96x96xbf16>, vector<96x32xbf16>, vector<96x32xf32> -> vector<96x32xf32>
    %81 = vector.extract_strided_slice %44 {offsets = [192, 0], sizes = [96, 32], strides = [1, 1]} : vector<384x96xbf16> to vector<96x32xbf16>
    %82 = vector.extract_strided_slice %44 {offsets = [192, 32], sizes = [96, 32], strides = [1, 1]} : vector<384x96xbf16> to vector<96x32xbf16>
    %83 = vector.extract_strided_slice %44 {offsets = [192, 64], sizes = [96, 32], strides = [1, 1]} : vector<384x96xbf16> to vector<96x32xbf16>
    %cst_29 = arith.constant dense<0.000000e+00> : vector<96x96xf32>
    %84 = tpu.matmul %81, %82, %cst_29 {dimension_numbers = #tpu.dot_dimension_numbers<[1], [1], [0], [0], [0, 0, 1, 0], [], []>} : vector<96x32xbf16>, vector<96x32xbf16>, vector<96x96xf32> -> vector<96x96xf32>
    %85 = vector.broadcast %32 : vector<1x96xf32> to vector<96x96xf32>
    %86 = arith.addf %84, %85 : vector<96x96xf32>
    %cst_30 = arith.constant dense<0xFF800000> : vector<96xf32>
    %87 = vector.multi_reduction <maximumf>, %86, %cst_30 [1] : vector<96x96xf32> to vector<96xf32>
    %88 = vector.shape_cast %87 : vector<96xf32> to vector<96x1xf32>
    %89 = vector.broadcast %88 : vector<96x1xf32> to vector<96x96xf32>
    %90 = arith.subf %86, %89 : vector<96x96xf32>
    %91 = math.exp %90 : vector<96x96xf32>
    %cst_31 = arith.constant dense<0.000000e+00> : vector<96xf32>
    %92 = vector.multi_reduction <add>, %91, %cst_31 [1] : vector<96x96xf32> to vector<96xf32>
    %93 = vector.shape_cast %92 : vector<96xf32> to vector<96x1xf32>
    %94 = tpu.reciprocal %93 {approx = true} : vector<96x1xf32> -> vector<96x1xf32>
    %95 = vector.broadcast %94 : vector<96x1xf32> to vector<96x96xf32>
    %96 = arith.mulf %91, %95 : vector<96x96xf32>
    %97 = arith.truncf %96 : vector<96x96xf32> to vector<96x96xbf16>
    %cst_32 = arith.constant dense<0.000000e+00> : vector<96x32xf32>
    %98 = tpu.matmul %97, %83, %cst_32 {dimension_numbers = #tpu.dot_dimension_numbers<[1], [0], [0], [1], [0, 0, 1, 1], [], []>} : vector<96x96xbf16>, vector<96x32xbf16>, vector<96x32xf32> -> vector<96x32xf32>
    %99 = vector.extract_strided_slice %44 {offsets = [288, 0], sizes = [96, 32], strides = [1, 1]} : vector<384x96xbf16> to vector<96x32xbf16>
    %100 = vector.extract_strided_slice %44 {offsets = [288, 32], sizes = [96, 32], strides = [1, 1]} : vector<384x96xbf16> to vector<96x32xbf16>
    %101 = vector.extract_strided_slice %44 {offsets = [288, 64], sizes = [96, 32], strides = [1, 1]} : vector<384x96xbf16> to vector<96x32xbf16>
    %cst_33 = arith.constant dense<0.000000e+00> : vector<96x96xf32>
    %102 = tpu.matmul %99, %100, %cst_33 {dimension_numbers = #tpu.dot_dimension_numbers<[1], [1], [0], [0], [0, 0, 1, 0], [], []>} : vector<96x32xbf16>, vector<96x32xbf16>, vector<96x96xf32> -> vector<96x96xf32>
    %103 = vector.broadcast %32 : vector<1x96xf32> to vector<96x96xf32>
    %104 = arith.addf %102, %103 : vector<96x96xf32>
    %cst_34 = arith.constant dense<0xFF800000> : vector<96xf32>
    %105 = vector.multi_reduction <maximumf>, %104, %cst_34 [1] : vector<96x96xf32> to vector<96xf32>
    %106 = vector.shape_cast %105 : vector<96xf32> to vector<96x1xf32>
    %107 = vector.broadcast %106 : vector<96x1xf32> to vector<96x96xf32>
    %108 = arith.subf %104, %107 : vector<96x96xf32>
    %109 = math.exp %108 : vector<96x96xf32>
    %cst_35 = arith.constant dense<0.000000e+00> : vector<96xf32>
    %110 = vector.multi_reduction <add>, %109, %cst_35 [1] : vector<96x96xf32> to vector<96xf32>
    %111 = vector.shape_cast %110 : vector<96xf32> to vector<96x1xf32>
    %112 = tpu.reciprocal %111 {approx = true} : vector<96x1xf32> -> vector<96x1xf32>
    %113 = vector.broadcast %112 : vector<96x1xf32> to vector<96x96xf32>
    %114 = arith.mulf %109, %113 : vector<96x96xf32>
    %115 = arith.truncf %114 : vector<96x96xf32> to vector<96x96xbf16>
    %cst_36 = arith.constant dense<0.000000e+00> : vector<96x32xf32>
    %116 = tpu.matmul %115, %101, %cst_36 {dimension_numbers = #tpu.dot_dimension_numbers<[1], [0], [0], [1], [0, 0, 1, 1], [], []>} : vector<96x96xbf16>, vector<96x32xbf16>, vector<96x32xf32> -> vector<96x32xf32>
    %117 = tpu.concatenate %62, %80, %98, %116 in 0 : vector<96x32xf32>, vector<96x32xf32>, vector<96x32xf32>, vector<96x32xf32> -> vector<384x32xf32>
    %118 = arith.truncf %117 : vector<384x32xf32> to vector<384x32xbf16>
    %c0_37 = arith.constant 0 : index
    %c0_38 = arith.constant 0 : index
    %c0_39 = arith.constant 0 : index
    %119 = vector.load %arg7[%c0_37, %c0_38, %c0_39] : memref<2x32x32xbf16, #tpu.memory_space<vmem>>, vector<1x32x32xbf16>
    %120 = vector.shape_cast %119 : vector<1x32x32xbf16> to vector<32x32xbf16>
    %cst_40 = arith.constant dense<0.000000e+00> : vector<384x32xf32>
    %121 = tpu.matmul %118, %120, %cst_40 {dimension_numbers = #tpu.dot_dimension_numbers<[1], [0], [0], [1], [0, 0, 1, 1], [], []>} : vector<384x32xbf16>, vector<32x32xbf16>, vector<384x32xf32> -> vector<384x32xf32>
    %c0_41 = arith.constant 0 : index
    %c0_42 = arith.constant 0 : index
    %c0_43 = arith.constant 0 : index
    %122 = vector.load %arg8[%c0_41, %c0_42, %c0_43] : memref<2x1x32xf32, #tpu.memory_space<vmem>>, vector<1x1x32xf32>
    %123 = vector.shape_cast %122 : vector<1x1x32xf32> to vector<1x32xf32>
    %124 = vector.broadcast %123 : vector<1x32xf32> to vector<384x32xf32>
    %125 = arith.addf %121, %124 : vector<384x32xf32>
    %126 = arith.addf %26, %125 : vector<384x32xf32>
    %cst_44 = arith.constant dense<0.000000e+00> : vector<384xf32>
    %127 = vector.multi_reduction <add>, %126, %cst_44 [1] : vector<384x32xf32> to vector<384xf32>
    %128 = vector.shape_cast %127 : vector<384xf32> to vector<384x1xf32>
    %cst_45 = arith.constant 3.200000e+01 : f32
    %129 = vector.broadcast %cst_45 : f32 to vector<384x1xf32>
    %130 = arith.divf %128, %129 : vector<384x1xf32>
    %131 = vector.broadcast %130 : vector<384x1xf32> to vector<384x32xf32>
    %132 = arith.subf %126, %131 : vector<384x32xf32>
    %133 = arith.mulf %132, %132 : vector<384x32xf32>
    %cst_46 = arith.constant dense<0.000000e+00> : vector<384xf32>
    %134 = vector.multi_reduction <add>, %133, %cst_46 [1] : vector<384x32xf32> to vector<384xf32>
    %135 = vector.shape_cast %134 : vector<384xf32> to vector<384x1xf32>
    %cst_47 = arith.constant 3.200000e+01 : f32
    %136 = vector.broadcast %cst_47 : f32 to vector<384x1xf32>
    %137 = arith.divf %135, %136 : vector<384x1xf32>
    %138 = vector.broadcast %130 : vector<384x1xf32> to vector<384x32xf32>
    %139 = arith.subf %126, %138 : vector<384x32xf32>
    %cst_48 = arith.constant 9.99999974E-6 : f32
    %140 = vector.broadcast %cst_48 : f32 to vector<384x1xf32>
    %141 = arith.addf %137, %140 : vector<384x1xf32>
    %142 = math.rsqrt %141 : vector<384x1xf32>
    %143 = vector.broadcast %142 : vector<384x1xf32> to vector<384x32xf32>
    %144 = arith.mulf %139, %143 : vector<384x32xf32>
    %145 = vector.broadcast %0 : vector<1x32xf32> to vector<384x32xf32>
    %146 = arith.mulf %144, %145 : vector<384x32xf32>
    %147 = vector.broadcast %1 : vector<1x32xf32> to vector<384x32xf32>
    %148 = arith.addf %146, %147 : vector<384x32xf32>
    %149 = arith.truncf %148 : vector<384x32xf32> to vector<384x32xbf16>
    %c1 = arith.constant 1 : index
    %c0_49 = arith.constant 0 : index
    %c0_50 = arith.constant 0 : index
    %150 = vector.load %arg5[%c1, %c0_49, %c0_50] : memref<2x32x96xbf16, #tpu.memory_space<vmem>>, vector<1x32x96xbf16>
    %151 = vector.shape_cast %150 : vector<1x32x96xbf16> to vector<32x96xbf16>
    %cst_51 = arith.constant dense<0.000000e+00> : vector<384x96xf32>
    %152 = tpu.matmul %149, %151, %cst_51 {dimension_numbers = #tpu.dot_dimension_numbers<[1], [0], [0], [1], [0, 0, 1, 1], [], []>} : vector<384x32xbf16>, vector<32x96xbf16>, vector<384x96xf32> -> vector<384x96xf32>
    %c1_52 = arith.constant 1 : index
    %c0_53 = arith.constant 0 : index
    %c0_54 = arith.constant 0 : index
    %153 = vector.load %arg6[%c1_52, %c0_53, %c0_54] : memref<2x1x96xf32, #tpu.memory_space<vmem>>, vector<1x1x96xf32>
    %154 = vector.shape_cast %153 : vector<1x1x96xf32> to vector<1x96xf32>
    %155 = vector.broadcast %154 : vector<1x96xf32> to vector<384x96xf32>
    %156 = arith.addf %152, %155 : vector<384x96xf32>
    %157 = arith.truncf %156 : vector<384x96xf32> to vector<384x96xbf16>
    %158 = vector.extract_strided_slice %157 {offsets = [0, 0], sizes = [96, 32], strides = [1, 1]} : vector<384x96xbf16> to vector<96x32xbf16>
    %159 = vector.extract_strided_slice %157 {offsets = [0, 32], sizes = [96, 32], strides = [1, 1]} : vector<384x96xbf16> to vector<96x32xbf16>
    %160 = vector.extract_strided_slice %157 {offsets = [0, 64], sizes = [96, 32], strides = [1, 1]} : vector<384x96xbf16> to vector<96x32xbf16>
    %cst_55 = arith.constant dense<0.000000e+00> : vector<96x96xf32>
    %161 = tpu.matmul %158, %159, %cst_55 {dimension_numbers = #tpu.dot_dimension_numbers<[1], [1], [0], [0], [0, 0, 1, 0], [], []>} : vector<96x32xbf16>, vector<96x32xbf16>, vector<96x96xf32> -> vector<96x96xf32>
    %162 = vector.broadcast %32 : vector<1x96xf32> to vector<96x96xf32>
    %163 = arith.addf %161, %162 : vector<96x96xf32>
    %cst_56 = arith.constant dense<0xFF800000> : vector<96xf32>
    %164 = vector.multi_reduction <maximumf>, %163, %cst_56 [1] : vector<96x96xf32> to vector<96xf32>
    %165 = vector.shape_cast %164 : vector<96xf32> to vector<96x1xf32>
    %166 = vector.broadcast %165 : vector<96x1xf32> to vector<96x96xf32>
    %167 = arith.subf %163, %166 : vector<96x96xf32>
    %168 = math.exp %167 : vector<96x96xf32>
    %cst_57 = arith.constant dense<0.000000e+00> : vector<96xf32>
    %169 = vector.multi_reduction <add>, %168, %cst_57 [1] : vector<96x96xf32> to vector<96xf32>
    %170 = vector.shape_cast %169 : vector<96xf32> to vector<96x1xf32>
    %171 = tpu.reciprocal %170 {approx = true} : vector<96x1xf32> -> vector<96x1xf32>
    %172 = vector.broadcast %171 : vector<96x1xf32> to vector<96x96xf32>
    %173 = arith.mulf %168, %172 : vector<96x96xf32>
    %174 = arith.truncf %173 : vector<96x96xf32> to vector<96x96xbf16>
    %cst_58 = arith.constant dense<0.000000e+00> : vector<96x32xf32>
    %175 = tpu.matmul %174, %160, %cst_58 {dimension_numbers = #tpu.dot_dimension_numbers<[1], [0], [0], [1], [0, 0, 1, 1], [], []>} : vector<96x96xbf16>, vector<96x32xbf16>, vector<96x32xf32> -> vector<96x32xf32>
    %176 = vector.extract_strided_slice %157 {offsets = [96, 0], sizes = [96, 32], strides = [1, 1]} : vector<384x96xbf16> to vector<96x32xbf16>
    %177 = vector.extract_strided_slice %157 {offsets = [96, 32], sizes = [96, 32], strides = [1, 1]} : vector<384x96xbf16> to vector<96x32xbf16>
    %178 = vector.extract_strided_slice %157 {offsets = [96, 64], sizes = [96, 32], strides = [1, 1]} : vector<384x96xbf16> to vector<96x32xbf16>
    %cst_59 = arith.constant dense<0.000000e+00> : vector<96x96xf32>
    %179 = tpu.matmul %176, %177, %cst_59 {dimension_numbers = #tpu.dot_dimension_numbers<[1], [1], [0], [0], [0, 0, 1, 0], [], []>} : vector<96x32xbf16>, vector<96x32xbf16>, vector<96x96xf32> -> vector<96x96xf32>
    %180 = vector.broadcast %32 : vector<1x96xf32> to vector<96x96xf32>
    %181 = arith.addf %179, %180 : vector<96x96xf32>
    %cst_60 = arith.constant dense<0xFF800000> : vector<96xf32>
    %182 = vector.multi_reduction <maximumf>, %181, %cst_60 [1] : vector<96x96xf32> to vector<96xf32>
    %183 = vector.shape_cast %182 : vector<96xf32> to vector<96x1xf32>
    %184 = vector.broadcast %183 : vector<96x1xf32> to vector<96x96xf32>
    %185 = arith.subf %181, %184 : vector<96x96xf32>
    %186 = math.exp %185 : vector<96x96xf32>
    %cst_61 = arith.constant dense<0.000000e+00> : vector<96xf32>
    %187 = vector.multi_reduction <add>, %186, %cst_61 [1] : vector<96x96xf32> to vector<96xf32>
    %188 = vector.shape_cast %187 : vector<96xf32> to vector<96x1xf32>
    %189 = tpu.reciprocal %188 {approx = true} : vector<96x1xf32> -> vector<96x1xf32>
    %190 = vector.broadcast %189 : vector<96x1xf32> to vector<96x96xf32>
    %191 = arith.mulf %186, %190 : vector<96x96xf32>
    %192 = arith.truncf %191 : vector<96x96xf32> to vector<96x96xbf16>
    %cst_62 = arith.constant dense<0.000000e+00> : vector<96x32xf32>
    %193 = tpu.matmul %192, %178, %cst_62 {dimension_numbers = #tpu.dot_dimension_numbers<[1], [0], [0], [1], [0, 0, 1, 1], [], []>} : vector<96x96xbf16>, vector<96x32xbf16>, vector<96x32xf32> -> vector<96x32xf32>
    %194 = vector.extract_strided_slice %157 {offsets = [192, 0], sizes = [96, 32], strides = [1, 1]} : vector<384x96xbf16> to vector<96x32xbf16>
    %195 = vector.extract_strided_slice %157 {offsets = [192, 32], sizes = [96, 32], strides = [1, 1]} : vector<384x96xbf16> to vector<96x32xbf16>
    %196 = vector.extract_strided_slice %157 {offsets = [192, 64], sizes = [96, 32], strides = [1, 1]} : vector<384x96xbf16> to vector<96x32xbf16>
    %cst_63 = arith.constant dense<0.000000e+00> : vector<96x96xf32>
    %197 = tpu.matmul %194, %195, %cst_63 {dimension_numbers = #tpu.dot_dimension_numbers<[1], [1], [0], [0], [0, 0, 1, 0], [], []>} : vector<96x32xbf16>, vector<96x32xbf16>, vector<96x96xf32> -> vector<96x96xf32>
    %198 = vector.broadcast %32 : vector<1x96xf32> to vector<96x96xf32>
    %199 = arith.addf %197, %198 : vector<96x96xf32>
    %cst_64 = arith.constant dense<0xFF800000> : vector<96xf32>
    %200 = vector.multi_reduction <maximumf>, %199, %cst_64 [1] : vector<96x96xf32> to vector<96xf32>
    %201 = vector.shape_cast %200 : vector<96xf32> to vector<96x1xf32>
    %202 = vector.broadcast %201 : vector<96x1xf32> to vector<96x96xf32>
    %203 = arith.subf %199, %202 : vector<96x96xf32>
    %204 = math.exp %203 : vector<96x96xf32>
    %cst_65 = arith.constant dense<0.000000e+00> : vector<96xf32>
    %205 = vector.multi_reduction <add>, %204, %cst_65 [1] : vector<96x96xf32> to vector<96xf32>
    %206 = vector.shape_cast %205 : vector<96xf32> to vector<96x1xf32>
    %207 = tpu.reciprocal %206 {approx = true} : vector<96x1xf32> -> vector<96x1xf32>
    %208 = vector.broadcast %207 : vector<96x1xf32> to vector<96x96xf32>
    %209 = arith.mulf %204, %208 : vector<96x96xf32>
    %210 = arith.truncf %209 : vector<96x96xf32> to vector<96x96xbf16>
    %cst_66 = arith.constant dense<0.000000e+00> : vector<96x32xf32>
    %211 = tpu.matmul %210, %196, %cst_66 {dimension_numbers = #tpu.dot_dimension_numbers<[1], [0], [0], [1], [0, 0, 1, 1], [], []>} : vector<96x96xbf16>, vector<96x32xbf16>, vector<96x32xf32> -> vector<96x32xf32>
    %212 = vector.extract_strided_slice %157 {offsets = [288, 0], sizes = [96, 32], strides = [1, 1]} : vector<384x96xbf16> to vector<96x32xbf16>
    %213 = vector.extract_strided_slice %157 {offsets = [288, 32], sizes = [96, 32], strides = [1, 1]} : vector<384x96xbf16> to vector<96x32xbf16>
    %214 = vector.extract_strided_slice %157 {offsets = [288, 64], sizes = [96, 32], strides = [1, 1]} : vector<384x96xbf16> to vector<96x32xbf16>
    %cst_67 = arith.constant dense<0.000000e+00> : vector<96x96xf32>
    %215 = tpu.matmul %212, %213, %cst_67 {dimension_numbers = #tpu.dot_dimension_numbers<[1], [1], [0], [0], [0, 0, 1, 0], [], []>} : vector<96x32xbf16>, vector<96x32xbf16>, vector<96x96xf32> -> vector<96x96xf32>
    %216 = vector.broadcast %32 : vector<1x96xf32> to vector<96x96xf32>
    %217 = arith.addf %215, %216 : vector<96x96xf32>
    %cst_68 = arith.constant dense<0xFF800000> : vector<96xf32>
    %218 = vector.multi_reduction <maximumf>, %217, %cst_68 [1] : vector<96x96xf32> to vector<96xf32>
    %219 = vector.shape_cast %218 : vector<96xf32> to vector<96x1xf32>
    %220 = vector.broadcast %219 : vector<96x1xf32> to vector<96x96xf32>
    %221 = arith.subf %217, %220 : vector<96x96xf32>
    %222 = math.exp %221 : vector<96x96xf32>
    %cst_69 = arith.constant dense<0.000000e+00> : vector<96xf32>
    %223 = vector.multi_reduction <add>, %222, %cst_69 [1] : vector<96x96xf32> to vector<96xf32>
    %224 = vector.shape_cast %223 : vector<96xf32> to vector<96x1xf32>
    %225 = tpu.reciprocal %224 {approx = true} : vector<96x1xf32> -> vector<96x1xf32>
    %226 = vector.broadcast %225 : vector<96x1xf32> to vector<96x96xf32>
    %227 = arith.mulf %222, %226 : vector<96x96xf32>
    %228 = arith.truncf %227 : vector<96x96xf32> to vector<96x96xbf16>
    %cst_70 = arith.constant dense<0.000000e+00> : vector<96x32xf32>
    %229 = tpu.matmul %228, %214, %cst_70 {dimension_numbers = #tpu.dot_dimension_numbers<[1], [0], [0], [1], [0, 0, 1, 1], [], []>} : vector<96x96xbf16>, vector<96x32xbf16>, vector<96x32xf32> -> vector<96x32xf32>
    %230 = tpu.concatenate %175, %193, %211, %229 in 0 : vector<96x32xf32>, vector<96x32xf32>, vector<96x32xf32>, vector<96x32xf32> -> vector<384x32xf32>
    %231 = arith.truncf %230 : vector<384x32xf32> to vector<384x32xbf16>
    %c1_71 = arith.constant 1 : index
    %c0_72 = arith.constant 0 : index
    %c0_73 = arith.constant 0 : index
    %232 = vector.load %arg7[%c1_71, %c0_72, %c0_73] : memref<2x32x32xbf16, #tpu.memory_space<vmem>>, vector<1x32x32xbf16>
    %233 = vector.shape_cast %232 : vector<1x32x32xbf16> to vector<32x32xbf16>
    %cst_74 = arith.constant dense<0.000000e+00> : vector<384x32xf32>
    %234 = tpu.matmul %231, %233, %cst_74 {dimension_numbers = #tpu.dot_dimension_numbers<[1], [0], [0], [1], [0, 0, 1, 1], [], []>} : vector<384x32xbf16>, vector<32x32xbf16>, vector<384x32xf32> -> vector<384x32xf32>
    %c1_75 = arith.constant 1 : index
    %c0_76 = arith.constant 0 : index
    %c0_77 = arith.constant 0 : index
    %235 = vector.load %arg8[%c1_75, %c0_76, %c0_77] : memref<2x1x32xf32, #tpu.memory_space<vmem>>, vector<1x1x32xf32>
    %236 = vector.shape_cast %235 : vector<1x1x32xf32> to vector<1x32xf32>
    %237 = vector.broadcast %236 : vector<1x32xf32> to vector<384x32xf32>
    %238 = arith.addf %234, %237 : vector<384x32xf32>
    %239 = arith.addf %148, %238 : vector<384x32xf32>
    %cst_78 = arith.constant dense<0.000000e+00> : vector<384xf32>
    %240 = vector.multi_reduction <add>, %239, %cst_78 [1] : vector<384x32xf32> to vector<384xf32>
    %241 = vector.shape_cast %240 : vector<384xf32> to vector<384x1xf32>
    %cst_79 = arith.constant 3.200000e+01 : f32
    %242 = vector.broadcast %cst_79 : f32 to vector<384x1xf32>
    %243 = arith.divf %241, %242 : vector<384x1xf32>
    %244 = vector.broadcast %243 : vector<384x1xf32> to vector<384x32xf32>
    %245 = arith.subf %239, %244 : vector<384x32xf32>
    %246 = arith.mulf %245, %245 : vector<384x32xf32>
    %cst_80 = arith.constant dense<0.000000e+00> : vector<384xf32>
    %247 = vector.multi_reduction <add>, %246, %cst_80 [1] : vector<384x32xf32> to vector<384xf32>
    %248 = vector.shape_cast %247 : vector<384xf32> to vector<384x1xf32>
    %cst_81 = arith.constant 3.200000e+01 : f32
    %249 = vector.broadcast %cst_81 : f32 to vector<384x1xf32>
    %250 = arith.divf %248, %249 : vector<384x1xf32>
    %251 = vector.broadcast %243 : vector<384x1xf32> to vector<384x32xf32>
    %252 = arith.subf %239, %251 : vector<384x32xf32>
    %cst_82 = arith.constant 9.99999974E-6 : f32
    %253 = vector.broadcast %cst_82 : f32 to vector<384x1xf32>
    %254 = arith.addf %250, %253 : vector<384x1xf32>
    %255 = math.rsqrt %254 : vector<384x1xf32>
    %256 = vector.broadcast %255 : vector<384x1xf32> to vector<384x32xf32>
    %257 = arith.mulf %252, %256 : vector<384x32xf32>
    %258 = vector.broadcast %0 : vector<1x32xf32> to vector<384x32xf32>
    %259 = arith.mulf %257, %258 : vector<384x32xf32>
    %260 = vector.broadcast %1 : vector<1x32xf32> to vector<384x32xf32>
    %261 = arith.addf %259, %260 : vector<384x32xf32>
    %262 = vector.extract_strided_slice %261 {offsets = [0, 0], sizes = [96, 32], strides = [1, 1]} : vector<384x32xf32> to vector<96x32xf32>
    %cst_83 = arith.constant -1.000000e+30 : f32
    %263 = vector.shape_cast %35 : vector<96x1xi1> to vector<96x1xi1>
    %264 = vector.broadcast %263 : vector<96x1xi1> to vector<96x32xi1>
    %265 = vector.broadcast %cst_83 : f32 to vector<96x32xf32>
    %266 = arith.select %264, %262, %265 : vector<96x32xi1>, vector<96x32xf32>
    %cst_84 = arith.constant dense<0xFF800000> : vector<32xf32>
    %267 = vector.multi_reduction <maximumf>, %266, %cst_84 [0] : vector<96x32xf32> to vector<32xf32>
    %268 = vector.shape_cast %267 : vector<32xf32> to vector<1x32xf32>
    %269 = vector.extract_strided_slice %261 {offsets = [96, 0], sizes = [96, 32], strides = [1, 1]} : vector<384x32xf32> to vector<96x32xf32>
    %cst_85 = arith.constant -1.000000e+30 : f32
    %270 = vector.shape_cast %35 : vector<96x1xi1> to vector<96x1xi1>
    %271 = vector.broadcast %270 : vector<96x1xi1> to vector<96x32xi1>
    %272 = vector.broadcast %cst_85 : f32 to vector<96x32xf32>
    %273 = arith.select %271, %269, %272 : vector<96x32xi1>, vector<96x32xf32>
    %cst_86 = arith.constant dense<0xFF800000> : vector<32xf32>
    %274 = vector.multi_reduction <maximumf>, %273, %cst_86 [0] : vector<96x32xf32> to vector<32xf32>
    %275 = vector.shape_cast %274 : vector<32xf32> to vector<1x32xf32>
    %276 = vector.extract_strided_slice %261 {offsets = [192, 0], sizes = [96, 32], strides = [1, 1]} : vector<384x32xf32> to vector<96x32xf32>
    %cst_87 = arith.constant -1.000000e+30 : f32
    %277 = vector.shape_cast %35 : vector<96x1xi1> to vector<96x1xi1>
    %278 = vector.broadcast %277 : vector<96x1xi1> to vector<96x32xi1>
    %279 = vector.broadcast %cst_87 : f32 to vector<96x32xf32>
    %280 = arith.select %278, %276, %279 : vector<96x32xi1>, vector<96x32xf32>
    %cst_88 = arith.constant dense<0xFF800000> : vector<32xf32>
    %281 = vector.multi_reduction <maximumf>, %280, %cst_88 [0] : vector<96x32xf32> to vector<32xf32>
    %282 = vector.shape_cast %281 : vector<32xf32> to vector<1x32xf32>
    %283 = vector.extract_strided_slice %261 {offsets = [288, 0], sizes = [96, 32], strides = [1, 1]} : vector<384x32xf32> to vector<96x32xf32>
    %cst_89 = arith.constant -1.000000e+30 : f32
    %284 = vector.shape_cast %35 : vector<96x1xi1> to vector<96x1xi1>
    %285 = vector.broadcast %284 : vector<96x1xi1> to vector<96x32xi1>
    %286 = vector.broadcast %cst_89 : f32 to vector<96x32xf32>
    %287 = arith.select %285, %283, %286 : vector<96x32xi1>, vector<96x32xf32>
    %cst_90 = arith.constant dense<0xFF800000> : vector<32xf32>
    %288 = vector.multi_reduction <maximumf>, %287, %cst_90 [0] : vector<96x32xf32> to vector<32xf32>
    %289 = vector.shape_cast %288 : vector<32xf32> to vector<1x32xf32>
    %290 = tpu.concatenate %268, %275, %282, %289 in 0 : vector<1x32xf32>, vector<1x32xf32>, vector<1x32xf32>, vector<1x32xf32> -> vector<4x32xf32>
    %c0_91 = arith.constant 0 : index
    %c0_92 = arith.constant 0 : index
    %291 = vector.load %arg9[%c0_91, %c0_92] : memref<32x128xf32, #tpu.memory_space<vmem>>, vector<32x128xf32>
    %cst_93 = arith.constant dense<0.000000e+00> : vector<4x128xf32>
    %292 = tpu.matmul %290, %291, %cst_93 {dimension_numbers = #tpu.dot_dimension_numbers<[1], [0], [0], [1], [0, 0, 1, 1], [], []>} : vector<4x32xf32>, vector<32x128xf32>, vector<4x128xf32> -> vector<4x128xf32>
    %c0_94 = arith.constant 0 : index
    %c0_95 = arith.constant 0 : index
    %293 = vector.load %arg10[%c0_94, %c0_95] : memref<1x128xf32, #tpu.memory_space<vmem>>, vector<1x128xf32>
    %294 = vector.broadcast %293 : vector<1x128xf32> to vector<4x128xf32>
    %295 = arith.addf %292, %294 : vector<4x128xf32>
    %cst_96 = arith.constant dense<0xFF800000> : vector<4xf32>
    %296 = vector.multi_reduction <maximumf>, %295, %cst_96 [1] : vector<4x128xf32> to vector<4xf32>
    %297 = vector.shape_cast %296 : vector<4xf32> to vector<4x1xf32>
    %298 = vector.broadcast %297 : vector<4x1xf32> to vector<4x128xf32>
    %299 = arith.subf %295, %298 : vector<4x128xf32>
    %300 = math.exp %299 : vector<4x128xf32>
    %cst_97 = arith.constant dense<0.000000e+00> : vector<4xf32>
    %301 = vector.multi_reduction <add>, %300, %cst_97 [1] : vector<4x128xf32> to vector<4xf32>
    %302 = vector.shape_cast %301 : vector<4xf32> to vector<4x1xf32>
    %303 = vector.broadcast %302 : vector<4x1xf32> to vector<4x128xf32>
    %304 = arith.divf %300, %303 : vector<4x128xf32>
    %c0_98 = arith.constant 0 : index
    %c0_99 = arith.constant 0 : index
    %c0_100 = arith.constant 0 : index
    %305 = vector.load %arg11[%c0_98, %c0_99, %c0_100] : memref<1x4x128xf32, #tpu.memory_space<vmem>>, vector<1x4x128xf32>
    %306 = vector.shape_cast %305 : vector<1x4x128xf32> to vector<4x128xf32>
    %307 = vector.shape_cast %304 : vector<4x128xf32> to vector<1x4x128xf32>
    tpu.vector_store %arg11[%c0_98, %c0_99, %c0_100], %307 {strides = array<i32>} : memref<1x4x128xf32, #tpu.memory_space<vmem>>, vector<1x4x128xf32>,
    return
  }
  func.func @transform_0(%arg0: i32) -> (i32, i32) {
    %c0_i32 = arith.constant 0 : i32
    %c0_i32_0 = arith.constant 0 : i32
    return %arg0, %c0_i32 : i32, i32
  }
  func.func @transform_1(%arg0: i32) -> (i32, i32) {
    %c0_i32 = arith.constant 0 : i32
    %c0_i32_0 = arith.constant 0 : i32
    %c0_i32_1 = arith.constant 0 : i32
    return %c0_i32, %c0_i32_0 : i32, i32
  }
  func.func @transform_2(%arg0: i32) -> (i32, i32) {
    %c0_i32 = arith.constant 0 : i32
    %c0_i32_0 = arith.constant 0 : i32
    %c0_i32_1 = arith.constant 0 : i32
    return %c0_i32, %c0_i32_0 : i32, i32
  }
  func.func @transform_3(%arg0: i32) -> (i32, i32) {
    %c0_i32 = arith.constant 0 : i32
    %c0_i32_0 = arith.constant 0 : i32
    %c0_i32_1 = arith.constant 0 : i32
    return %c0_i32, %c0_i32_0 : i32, i32
  }
  func.func @transform_4(%arg0: i32) -> (i32, i32, i32) {
    %c0_i32 = arith.constant 0 : i32
    %c0_i32_0 = arith.constant 0 : i32
    %c0_i32_1 = arith.constant 0 : i32
    %c0_i32_2 = arith.constant 0 : i32
    return %c0_i32, %c0_i32_0, %c0_i32_1 : i32, i32, i32
  }
  func.func @transform_5(%arg0: i32) -> (i32, i32, i32) {
    %c0_i32 = arith.constant 0 : i32
    %c0_i32_0 = arith.constant 0 : i32
    %c0_i32_1 = arith.constant 0 : i32
    %c0_i32_2 = arith.constant 0 : i32
    return %c0_i32, %c0_i32_0, %c0_i32_1 : i32, i32, i32
  }
  func.func @transform_6(%arg0: i32) -> (i32, i32, i32) {
    %c0_i32 = arith.constant 0 : i32
    %c0_i32_0 = arith.constant 0 : i32
    %c0_i32_1 = arith.constant 0 : i32
    %c0_i32_2 = arith.constant 0 : i32
    return %c0_i32, %c0_i32_0, %c0_i32_1 : i32, i32, i32
  }
  func.func @transform_7(%arg0: i32) -> (i32, i32, i32) {
    %c0_i32 = arith.constant 0 : i32
    %c0_i32_0 = arith.constant 0 : i32
    %c0_i32_1 = arith.constant 0 : i32
    %c0_i32_2 = arith.constant 0 : i32
    return %c0_i32, %c0_i32_0, %c0_i32_1 : i32, i32, i32
  }
  func.func @transform_8(%arg0: i32) -> (i32, i32) {
    %c0_i32 = arith.constant 0 : i32
    %c0_i32_0 = arith.constant 0 : i32
    %c0_i32_1 = arith.constant 0 : i32
    return %c0_i32, %c0_i32_0 : i32, i32
  }
  func.func @transform_9(%arg0: i32) -> (i32, i32) {
    %c0_i32 = arith.constant 0 : i32
    %c0_i32_0 = arith.constant 0 : i32
    %c0_i32_1 = arith.constant 0 : i32
    return %c0_i32, %c0_i32_0 : i32, i32
  }
  func.func @transform_10(%arg0: i32) -> (i32, i32, i32) {
    %c0_i32 = arith.constant 0 : i32
    %c0_i32_0 = arith.constant 0 : i32
    %c0_i32_1 = arith.constant 0 : i32
    return %arg0, %c0_i32, %c0_i32_0 : i32, i32, i32
  }
}

</mosaic_0001>

<llo_original>
// kernel: tpu_custom_call.1
$region0: #{tpu_custom_call.1}
  #allocation0 [shape = 'u32[]', space=smem, size = 0x4, offset = 0x4, fixed_abs, tag = 'smem constant byte address 0x4 - core index']
  #allocation1 [shape = 'u32[144,128]{1,0:T(1,128)}', space=vmem, size = 0x12000, scoped, tag = 'internal scratch']
  %s0 = inlined_call_operand.vmem [shape: f32[768,32], index: 0, kind: input, shape index: {}]
  %s1 = inlined_call_operand.vmem [shape: f32[384,32], index: 1, kind: input, shape index: {}]
  %s2 = inlined_call_operand.vmem [shape: f32[1,32], index: 2, kind: input, shape index: {}]
  %s3 = inlined_call_operand.vmem [shape: f32[1,32], index: 3, kind: input, shape index: {}]
  %s4 = inlined_call_operand.vmem [shape: bf16[2,32,96], index: 4, kind: input, shape index: {}]
  %s5 = inlined_call_operand.vmem [shape: f32[2,1,96], index: 5, kind: input, shape index: {}]
  %s6 = inlined_call_operand.vmem [shape: bf16[2,32,32], index: 6, kind: input, shape index: {}]
  %s7 = inlined_call_operand.vmem [shape: f32[2,1,32], index: 7, kind: input, shape index: {}]
  %s8 = inlined_call_operand.vmem [shape: f32[32,128], index: 8, kind: input, shape index: {}]
  %s9 = inlined_call_operand.vmem [shape: f32[1,128], index: 9, kind: input, shape index: {}]
  %s10 = inlined_call_operand.hbm [shape: f32[2,4,128], index: 10, kind: output, shape index: {}]
  %s11 = sld [smem:[#allocation0]]
  $region73: #{tpu_custom_call.1} parent=0
    _
  %s13 = ssub.s32 1, %s11
  %s14 = scalar_select 0, %s13, %s11
  $region1: #{tpu_custom_call.1} parent=0
    #allocation2 [shape = 'u8[4096]{0}', space=vmem, size = 0x1000, scoped, tag = 'output window, operand 0']
    #allocation3 [shape = 's32[2]{0}', space=sflag, size = 0x8, scoped, tag = 'scoped memory for tpu_custom_call.1']
    %15 = vsyncpa [#allocation3], 0
    %s16 = scalar_lea.sflag [#allocation3], 1
    %17 = vsyncpa %s16, 0
    loop: start=0, step=1, limit=4
    $region2: #{tpu_custom_call.1} parent=1 // loop_pre_header
      _
    $region3: #{tpu_custom_call.1} parent=1 // loop_header
      %s19 = sphi 0, %s23
      %p20 = scmp.ge.s32.totalorder %s19, 4
      %s29 = sphi 0, %s31
      %s32 = sphi 0, %s29
      %s33 = sphi 0, %s32
      %s49 = sphi 0, %s33
      %s53 = sphi 0, %s53
      %s55 = sphi 0, %s53
      %s56 = sphi 0, %s55
      %s70 = sphi 0, %s56
      %s74 = sphi 0, %s74
      %s76 = sphi 0, %s74
      %s77 = sphi 0, %s76
      %s91 = sphi 0, %s77
      %s95 = sphi 0, %s95
      %s97 = sphi 0, %s95
      %s98 = sphi 0, %s97
      %s112 = sphi 0, %s98
      %s116 = sphi 0, %s116
      %s118 = sphi 0, %s116
      %s119 = sphi 0, %s118
      %s133 = sphi 0, %s119
      %s137 = sphi 0, %s137
      %s139 = sphi 0, %s137
      %s140 = sphi 0, %s139
      %s154 = sphi 0, %s140
      %s158 = sphi 0, %s158
      %s160 = sphi 0, %s158
      %s161 = sphi 0, %s160
      %s175 = sphi 0, %s161
      %s179 = sphi 0, %s179
      %s181 = sphi 0, %s179
      %s182 = sphi 0, %s181
      %s196 = sphi 0, %s182
      %s200 = sphi 0, %s200
      %s202 = sphi 0, %s200
      %s203 = sphi 0, %s202
      %s217 = sphi 0, %s203
      %s221 = sphi 0, %s221
      %s223 = sphi 0, %s221
      %s224 = sphi 0, %s223
      %s238 = sphi 0, %s224
      %s244 = sphi 0, %s246
      %s247 = sphi 0, %s244
      %s248 = sphi 0, %s247
      %s264 = sphi 0, %s248
    $region4: #{tpu_custom_call.1} parent=1 // loop_header_branch
      %22 = sbr.rel (%p20) target = $region8
    $region5: #{tpu_custom_call.1} parent=1 // loop_body
      %s24 = ssub.s32 %s19, 1
      %s25 = ssub.s32 %s19, 2
      %s26 = sadd.s32 %s19, 1
      %s27 = ssub.s32 %s19, %s26
      %p28 = scmp.eq.s32.totalorder %s27, 0
      %s30 = sadd.s32 %s29, 1
      %s31 = scalar_select %p28, %s29, %s30
      %p34 = pneg %p28
      %p35 = scmp.eq.s32.totalorder %s19, 1
      %p36 = por %p34, %p35
      %p37 = scmp.ne.s32.totalorder %s29, %s32
      %p38 = scmp.eq.s32.totalorder %s19, 0
      %p39 = por %p37, %p38
      %p40 = scmp.ne.s32.totalorder %s29, %s32
      %p41 = scmp.eq.s32.totalorder %s24, 1
      %p42 = por %p40, %p41
      %p43 = scmp.ne.s32.totalorder %s32, %s33
      %p44 = scmp.eq.s32.totalorder %s24, 0
      %p45 = por %p43, %p44
      %p46 = scmp.ne.s32.totalorder %s32, %s33
      %p47 = scmp.eq.s32.totalorder %s25, 1
      %p48 = por %p46, %p47
      %p50 = scmp.ne.s32.totalorder %s33, %s49
      %p51 = scmp.eq.s32.totalorder %s25, 0
      %p52 = por %p50, %p51
      %s54 = sadd.s32 %s53, 1
      %p57 = scmp.eq.s32.totalorder %s19, 1
      %p58 = scmp.ne.s32.totalorder %s53, %s55
      %p59 = scmp.eq.s32.totalorder %s19, 0
      %p60 = por %p58, %p59
      %p61 = scmp.ne.s32.totalorder %s53, %s55
      %p62 = scmp.eq.s32.totalorder %s24, 1
      %p63 = por %p61, %p62
      %p64 = scmp.ne.s32.totalorder %s55, %s56
      %p65 = scmp.eq.s32.totalorder %s24, 0
      %p66 = por %p64, %p65
      %p67 = scmp.ne.s32.totalorder %s55, %s56
      %p68 = scmp.eq.s32.totalorder %s25, 1
      %p69 = por %p67, %p68
      %p71 = scmp.ne.s32.totalorder %s56, %s70
      %p72 = scmp.eq.s32.totalorder %s25, 0
      %p73 = por %p71, %p72
      %s75 = sadd.s32 %s74, 1
      %p78 = scmp.eq.s32.totalorder %s19, 1
      %p79 = scmp.ne.s32.totalorder %s74, %s76
      %p80 = scmp.eq.s32.totalorder %s19, 0
      %p81 = por %p79, %p80
      %p82 = scmp.ne.s32.totalorder %s74, %s76
      %p83 = scmp.eq.s32.totalorder %s24, 1
      %p84 = por %p82, %p83
      %p85 = scmp.ne.s32.totalorder %s76, %s77
      %p86 = scmp.eq.s32.totalorder %s24, 0
      %p87 = por %p85, %p86
      %p88 = scmp.ne.s32.totalorder %s76, %s77
      %p89 = scmp.eq.s32.totalorder %s25, 1
      %p90 = por %p88, %p89
      %p92 = scmp.ne.s32.totalorder %s77, %s91
      %p93 = scmp.eq.s32.totalorder %s25, 0
      %p94 = por %p92, %p93
      %s96 = sadd.s32 %s95, 1
      %p99 = scmp.eq.s32.totalorder %s19, 1
      %p100 = scmp.ne.s32.totalorder %s95, %s97
      %p101 = scmp.eq.s32.totalorder %s19, 0
      %p102 = por %p100, %p101
      %p103 = scmp.ne.s32.totalorder %s95, %s97
      %p104 = scmp.eq.s32.totalorder %s24, 1
      %p105 = por %p103, %p104
      %p106 = scmp.ne.s32.totalorder %s97, %s98
      %p107 = scmp.eq.s32.totalorder %s24, 0
      %p108 = por %p106, %p107
      %p109 = scmp.ne.s32.totalorder %s97, %s98
      %p110 = scmp.eq.s32.totalorder %s25, 1
      %p111 = por %p109, %p110
      %p113 = scmp.ne.s32.totalorder %s98, %s112
      %p114 = scmp.eq.s32.totalorder %s25, 0
      %p115 = por %p113, %p114
      %s117 = sadd.s32 %s116, 1
      %p120 = scmp.eq.s32.totalorder %s19, 1
      %p121 = scmp.ne.s32.totalorder %s116, %s118
      %p122 = scmp.eq.s32.totalorder %s19, 0
      %p123 = por %p121, %p122
      %p124 = scmp.ne.s32.totalorder %s116, %s118
      %p125 = scmp.eq.s32.totalorder %s24, 1
      %p126 = por %p124, %p125
      %p127 = scmp.ne.s32.totalorder %s118, %s119
      %p128 = scmp.eq.s32.totalorder %s24, 0
      %p129 = por %p127, %p128
      %p130 = scmp.ne.s32.totalorder %s118, %s119
      %p131 = scmp.eq.s32.totalorder %s25, 1
      %p132 = por %p130, %p131
      %p134 = scmp.ne.s32.totalorder %s119, %s133
      %p135 = scmp.eq.s32.totalorder %s25, 0
      %p136 = por %p134, %p135
      %s138 = sadd.s32 %s137, 1
      %p141 = scmp.eq.s32.totalorder %s19, 1
      %p142 = scmp.ne.s32.totalorder %s137, %s139
      %p143 = scmp.eq.s32.totalorder %s19, 0
      %p144 = por %p142, %p143
      %p145 = scmp.ne.s32.totalorder %s137, %s139
      %p146 = scmp.eq.s32.totalorder %s24, 1
      %p147 = por %p145, %p146
      %p148 = scmp.ne.s32.totalorder %s139, %s140
      %p149 = scmp.eq.s32.totalorder %s24, 0
      %p150 = por %p148, %p149
      %p151 = scmp.ne.s32.totalorder %s139, %s140
      %p152 = scmp.eq.s32.totalorder %s25, 1
      %p153 = por %p151, %p152
      %p155 = scmp.ne.s32.totalorder %s140, %s154
      %p156 = scmp.eq.s32.totalorder %s25, 0
      %p157 = por %p155, %p156
      %s159 = sadd.s32 %s158, 1
      %p162 = scmp.eq.s32.totalorder %s19, 1
      %p163 = scmp.ne.s32.totalorder %s158, %s160
      %p164 = scmp.eq.s32.totalorder %s19, 0
      %p165 = por %p163, %p164
      %p166 = scmp.ne.s32.totalorder %s158, %s160
      %p167 = scmp.eq.s32.totalorder %s24, 1
      %p168 = por %p166, %p167
      %p169 = scmp.ne.s32.totalorder %s160, %s161
      %p170 = scmp.eq.s32.totalorder %s24, 0
      %p171 = por %p169, %p170
      %p172 = scmp.ne.s32.totalorder %s160, %s161
      %p173 = scmp.eq.s32.totalorder %s25, 1
      %p174 = por %p172, %p173
      %p176 = scmp.ne.s32.totalorder %s161, %s175
      %p177 = scmp.eq.s32.totalorder %s25, 0
      %p178 = por %p176, %p177
      %s180 = sadd.s32 %s179, 1
      %p183 = scmp.eq.s32.totalorder %s19, 1
      %p184 = scmp.ne.s32.totalorder %s179, %s181
      %p185 = scmp.eq.s32.totalorder %s19, 0
      %p186 = por %p184, %p185
      %p187 = scmp.ne.s32.totalorder %s179, %s181
      %p188 = scmp.eq.s32.totalorder %s24, 1
      %p189 = por %p187, %p188
      %p190 = scmp.ne.s32.totalorder %s181, %s182
      %p191 = scmp.eq.s32.totalorder %s24, 0
      %p192 = por %p190, %p191
      %p193 = scmp.ne.s32.totalorder %s181, %s182
      %p194 = scmp.eq.s32.totalorder %s25, 1
      %p195 = por %p193, %p194
      %p197 = scmp.ne.s32.totalorder %s182, %s196
      %p198 = scmp.eq.s32.totalorder %s25, 0
      %p199 = por %p197, %p198
      %s201 = sadd.s32 %s200, 1
      %p204 = scmp.eq.s32.totalorder %s19, 1
      %p205 = scmp.ne.s32.totalorder %s200, %s202
      %p206 = scmp.eq.s32.totalorder %s19, 0
      %p207 = por %p205, %p206
      %p208 = scmp.ne.s32.totalorder %s200, %s202
      %p209 = scmp.eq.s32.totalorder %s24, 1
      %p210 = por %p208, %p209
      %p211 = scmp.ne.s32.totalorder %s202, %s203
      %p212 = scmp.eq.s32.totalorder %s24, 0
      %p213 = por %p211, %p212
      %p214 = scmp.ne.s32.totalorder %s202, %s203
      %p215 = scmp.eq.s32.totalorder %s25, 1
      %p216 = por %p214, %p215
      %p218 = scmp.ne.s32.totalorder %s203, %s217
      %p219 = scmp.eq.s32.totalorder %s25, 0
      %p220 = por %p218, %p219
      %s222 = sadd.s32 %s221, 1
      %p225 = scmp.eq.s32.totalorder %s19, 1
      %p226 = scmp.ne.s32.totalorder %s221, %s223
      %p227 = scmp.eq.s32.totalorder %s19, 0
      %p228 = por %p226, %p227
      %p229 = scmp.ne.s32.totalorder %s221, %s223
      %p230 = scmp.eq.s32.totalorder %s24, 1
      %p231 = por %p229, %p230
      %p232 = scmp.ne.s32.totalorder %s223, %s224
      %p233 = scmp.eq.s32.totalorder %s24, 0
      %p234 = por %p232, %p233
      %p235 = scmp.ne.s32.totalorder %s223, %s224
      %p236 = scmp.eq.s32.totalorder %s25, 1
      %p237 = por %p235, %p236
      %p239 = scmp.ne.s32.totalorder %s224, %s238
      %p240 = scmp.eq.s32.totalorder %s25, 0
      %p241 = por %p239, %p240
      %s242 = ssub.s32 %s19, %s26
      %p243 = scmp.eq.s32.totalorder %s242, 0
      %s245 = sadd.s32 %s244, 1
      %s246 = scalar_select %p243, %s244, %s245
      %p249 = pneg %p243
      %p250 = scmp.eq.s32.totalorder %s19, 1
      %p251 = por %p249, %p250
      %p252 = scmp.ne.s32.totalorder %s244, %s247
      %p253 = scmp.eq.s32.totalorder %s19, 0
      %p254 = por %p252, %p253
      %p255 = scmp.ne.s32.totalorder %s244, %s247
      %p256 = scmp.eq.s32.totalorder %s24, 1
      %p257 = por %p255, %p256
      %p258 = scmp.ne.s32.totalorder %s247, %s248
      %p259 = scmp.eq.s32.totalorder %s24, 0
      %p260 = por %p258, %p259
      %p261 = scmp.ne.s32.totalorder %s247, %s248
      %p262 = scmp.eq.s32.totalorder %s25, 1
      %p263 = por %p261, %p262
      %p265 = scmp.ne.s32.totalorder %s248, %s264
      %p266 = scmp.eq.s32.totalorder %s25, 0
      %p267 = por %p265, %p266
      %p268 = scmp.le.s32.totalorder 1, %s19
      %p269 = scmp.lt.s32.totalorder %s19, 3
      %p270 = pnand %p268, %p269
      %p271 = pneg %p270
      // Predicated region
      $region9: #{tpu_custom_call.1} parent=5 // pred_check
        _
      $region10: #{tpu_custom_call.1} parent=5 // pred_check_branch
        %273 = sbr.rel (%p270) target = $region12
      $region11: #{tpu_custom_call.1} parent=5 // pred_region
        %s274 = ssub.s32 %s19, 1
        // Predicated region
        $region13: #{tpu_custom_call.1} parent=11 // pred_check
          %p275 = pneg %p66
        $region14: #{tpu_custom_call.1} parent=11 // pred_check_branch
          %277 = sbr.rel (%p275) target = $region16
        $region15: #{tpu_custom_call.1} parent=11 // pred_region
          _
        $region16: #{tpu_custom_call.1} parent=11 // pred_fallthru
          _
        // Predicated region
        $region17: #{tpu_custom_call.1} parent=11 // pred_check
          %p278 = pneg %p87
        $region18: #{tpu_custom_call.1} parent=11 // pred_check_branch
          %280 = sbr.rel (%p278) target = $region20
        $region19: #{tpu_custom_call.1} parent=11 // pred_region
          _
        $region20: #{tpu_custom_call.1} parent=11 // pred_fallthru
          _
        // Predicated region
        $region21: #{tpu_custom_call.1} parent=11 // pred_check
          %p281 = pneg %p108
        $region22: #{tpu_custom_call.1} parent=11 // pred_check_branch
          %283 = sbr.rel (%p281) target = $region24
        $region23: #{tpu_custom_call.1} parent=11 // pred_region
          _
        $region24: #{tpu_custom_call.1} parent=11 // pred_fallthru
          _
        // Predicated region
        $region25: #{tpu_custom_call.1} parent=11 // pred_check
          %p284 = pneg %p129
        $region26: #{tpu_custom_call.1} parent=11 // pred_check_branch
          %286 = sbr.rel (%p284) target = $region28
        $region27: #{tpu_custom_call.1} parent=11 // pred_region
          _
        $region28: #{tpu_custom_call.1} parent=11 // pred_fallthru
          _
        // Predicated region
        $region29: #{tpu_custom_call.1} parent=11 // pred_check
          %p287 = pneg %p150
        $region30: #{tpu_custom_call.1} parent=11 // pred_check_branch
          %289 = sbr.rel (%p287) target = $region32
        $region31: #{tpu_custom_call.1} parent=11 // pred_region
          _
        $region32: #{tpu_custom_call.1} parent=11 // pred_fallthru
          _
        // Predicated region
        $region33: #{tpu_custom_call.1} parent=11 // pred_check
          %p290 = pneg %p171
        $region34: #{tpu_custom_call.1} parent=11 // pred_check_branch
          %292 = sbr.rel (%p290) target = $region36
        $region35: #{tpu_custom_call.1} parent=11 // pred_region
          _
        $region36: #{tpu_custom_call.1} parent=11 // pred_fallthru
          _
        // Predicated region
        $region37: #{tpu_custom_call.1} parent=11 // pred_check
          %p293 = pneg %p192
        $region38: #{tpu_custom_call.1} parent=11 // pred_check_branch
          %295 = sbr.rel (%p293) target = $region40
        $region39: #{tpu_custom_call.1} parent=11 // pred_region
          _
        $region40: #{tpu_custom_call.1} parent=11 // pred_fallthru
          _
        // Predicated region
        $region41: #{tpu_custom_call.1} parent=11 // pred_check
          %p296 = pneg %p213
        $region42: #{tpu_custom_call.1} parent=11 // pred_check_branch
          %298 = sbr.rel (%p296) target = $region44
        $region43: #{tpu_custom_call.1} parent=11 // pred_region
          _
        $region44: #{tpu_custom_call.1} parent=11 // pred_fallthru
          _
        // Predicated region
        $region45: #{tpu_custom_call.1} parent=11 // pred_check
          %p299 = pneg %p234
        $region46: #{tpu_custom_call.1} parent=11 // pred_check_branch
          %301 = sbr.rel (%p299) target = $region48
        $region47: #{tpu_custom_call.1} parent=11 // pred_region
          _
        $region48: #{tpu_custom_call.1} parent=11 // pred_fallthru
          _
      $region12: #{tpu_custom_call.1} parent=5 // pred_fallthru
        _
      %p302 = scmp.lt.s32.totalorder %s19, 2
      // Predicated region
      $region49: #{tpu_custom_call.1} parent=5 // pred_check
        %p303 = pneg %p302
      $region50: #{tpu_custom_call.1} parent=5 // pred_check_branch
        %305 = sbr.rel (%p303) target = $region52
      $region51: #{tpu_custom_call.1} parent=5 // pred_region
        // Predicated region
        $region53: #{tpu_custom_call.1} parent=51 // pred_check
          %p306 = pneg %p39
        $region54: #{tpu_custom_call.1} parent=51 // pred_check_branch
          %308 = sbr.rel (%p306) target = $region56
        $region55: #{tpu_custom_call.1} parent=51 // pred_region
          %s309 = smul.u32 48, %s19
          %p310 = scmp.lt.s32.totalorder %s309, 95
          %s311 = scalar_select %p310, %s309, 95
          %s312 = smul.addr %s311, 8
          %s313 = scalar_lea.vmem %s0, %s312
          %s314 = smul.u32 48, %s19
        $region56: #{tpu_custom_call.1} parent=51 // pred_fallthru
          _
      $region52: #{tpu_custom_call.1} parent=5 // pred_fallthru
        _
      %p315 = scmp.le.s32.totalorder 1, %s19
      %p316 = scmp.lt.s32.totalorder %s19, 3
      %p317 = pnand %p315, %p316
      %p318 = pneg %p317
      // Predicated region
      $region57: #{tpu_custom_call.1} parent=5 // pred_check
        _
      $region58: #{tpu_custom_call.1} parent=5 // pred_check_branch
        %320 = sbr.rel (%p317) target = $region60
      $region59: #{tpu_custom_call.1} parent=5 // pred_region
        %s321 = ssub.s32 %s19, 1
        %s322 = smul.u32 48, %s24
        %p323 = scmp.lt.s32.totalorder %s322, 95
        %s324 = scalar_select %p323, %s322, 95
        %s325 = smul.addr %s324, 8
        %s326 = scalar_lea.vmem %s0, %s325
        %p327 = pneg %p45
        %p328 = pneg %p42
        %p329 = pneg %p66
        %p330 = pneg %p63
        %p331 = pneg %p87
        %p332 = pneg %p84
        %p333 = pneg %p108
        %p334 = pneg %p105
        %p335 = pneg %p129
        %p336 = pneg %p126
        %p337 = pneg %p150
        %p338 = pneg %p147
        %p339 = pneg %p171
        %p340 = pneg %p168
        %p341 = pneg %p192
        %p342 = pneg %p189
        %p343 = pneg %p213
        %p344 = pneg %p210
        %p345 = pneg %p234
        %p346 = pneg %p231
        %p347 = pneg %p260
        %p348 = pneg %p257
        %s349 = sand.u32 %s247, 1
        %s350 = scalar_lea.sflag [#allocation3], %s349
        %s351 = sand.u32 %s247, 1
        %s352 = smul.addr %s351, 4
        %s353 = scalar_lea.vmem [#allocation2], %s352
        %s354 = smul.u32 48, %s24
        %p355 = scmp.lt.s32.totalorder %s354, 95
        %s356 = scalar_select %p355, %s354, 95
        %s357 = smul.addr %s356, 8
        %s358 = scalar_lea.vmem %s0, %s357
        %s359 = smul.u32 48, %s24
        %v361 = vld [vmem:[%s2] sm:$0x1]
        %v362 = vld [vmem:[%s3] sm:$0x1]
        %v363 = vld [vmem:[%s358] sm:$0xff]
        %v364 = vld [vmem:[%s358 + $0x8] sm:$0xff]
        %v365 = vld [vmem:[%s358 + $0x10] sm:$0xff]
        %v366 = vld [vmem:[%s358 + $0x18] sm:$0xff]
        %v367 = vld [vmem:[%s358 + $0x20] sm:$0xff]
        %v368 = vld [vmem:[%s358 + $0x28] sm:$0xff]
        %v369 = vld [vmem:[%s358 + $0x30] sm:$0xff]
        %v370 = vld [vmem:[%s358 + $0x38] sm:$0xff]
        %v371 = vld [vmem:[%s358 + $0x40] sm:$0xff]
        %v372 = vld [vmem:[%s358 + $0x48] sm:$0xff]
        %v373 = vld [vmem:[%s358 + $0x50] sm:$0xff]
        %v374 = vld [vmem:[%s358 + $0x58] sm:$0xff]
        %v375 = vld [vmem:[%s358 + $0x60] sm:$0xff]
        %v376 = vld [vmem:[%s358 + $0x68] sm:$0xff]
        %v377 = vld [vmem:[%s358 + $0x70] sm:$0xff]
        %v378 = vld [vmem:[%s358 + $0x78] sm:$0xff]
        %v379 = vld [vmem:[%s358 + $0x80] sm:$0xff]
        %v380 = vld [vmem:[%s358 + $0x88] sm:$0xff]
        %v381 = vld [vmem:[%s358 + $0x90] sm:$0xff]
        %v382 = vld [vmem:[%s358 + $0x98] sm:$0xff]
        %v383 = vld [vmem:[%s358 + $0xa0] sm:$0xff]
        %v384 = vld [vmem:[%s358 + $0xa8] sm:$0xff]
        %v385 = vld [vmem:[%s358 + $0xb0] sm:$0xff]
        %v386 = vld [vmem:[%s358 + $0xb8] sm:$0xff]
        %v387 = vld [vmem:[%s358 + $0xc0] sm:$0xff]
        %v388 = vld [vmem:[%s358 + $0xc8] sm:$0xff]
        %v389 = vld [vmem:[%s358 + $0xd0] sm:$0xff]
        %v390 = vld [vmem:[%s358 + $0xd8] sm:$0xff]
        %v391 = vld [vmem:[%s358 + $0xe0] sm:$0xff]
        %v392 = vld [vmem:[%s358 + $0xe8] sm:$0xff]
        %v393 = vld [vmem:[%s358 + $0xf0] sm:$0xff]
        %v394 = vld [vmem:[%s358 + $0xf8] sm:$0xff]
        %v395 = vld [vmem:[%s358 + $0x100] sm:$0xff]
        %v396 = vld [vmem:[%s358 + $0x108] sm:$0xff]
        %v397 = vld [vmem:[%s358 + $0x110] sm:$0xff]
        %v398 = vld [vmem:[%s358 + $0x118] sm:$0xff]
        %v399 = vld [vmem:[%s358 + $0x120] sm:$0xff]
        %v400 = vld [vmem:[%s358 + $0x128] sm:$0xff]
        %v401 = vld [vmem:[%s358 + $0x130] sm:$0xff]
        %v402 = vld [vmem:[%s358 + $0x138] sm:$0xff]
        %v403 = vld [vmem:[%s358 + $0x140] sm:$0xff]
        %v404 = vld [vmem:[%s358 + $0x148] sm:$0xff]
        %v405 = vld [vmem:[%s358 + $0x150] sm:$0xff]
        %v406 = vld [vmem:[%s358 + $0x158] sm:$0xff]
        %v407 = vld [vmem:[%s358 + $0x160] sm:$0xff]
        %v408 = vld [vmem:[%s358 + $0x168] sm:$0xff]
        %v409 = vld [vmem:[%s358 + $0x170] sm:$0xff]
        %v410 = vld [vmem:[%s358 + $0x178] sm:$0xff]
        %vm411 = vcmask 261120
        %v412 = vsel %vm411, %v363, 0.0
        %413 = vadd.xlane.f32.xlu0 %v412
        %v414 = vpop.xlane.xlu0 %413
        %v415 = vsel %vm411, %v364, 0.0
        %416 = vadd.xlane.f32.xlu0 %v415
        %v417 = vpop.xlane.xlu0 %416
        %v418 = vsel %vm411, %v365, 0.0
        %419 = vadd.xlane.f32.xlu0 %v418
        %v420 = vpop.xlane.xlu0 %419
        %v421 = vsel %vm411, %v366, 0.0
        %422 = vadd.xlane.f32.xlu0 %v421
        %v423 = vpop.xlane.xlu0 %422
        %v424 = vsel %vm411, %v367, 0.0
        %425 = vadd.xlane.f32.xlu0 %v424
        %v426 = vpop.xlane.xlu0 %425
        %v427 = vsel %vm411, %v368, 0.0
        %428 = vadd.xlane.f32.xlu0 %v427
        %v429 = vpop.xlane.xlu0 %428
        %v430 = vsel %vm411, %v369, 0.0
        %431 = vadd.xlane.f32.xlu0 %v430
        %v432 = vpop.xlane.xlu0 %431
        %v433 = vsel %vm411, %v370, 0.0
        %434 = vadd.xlane.f32.xlu0 %v433
        %v435 = vpop.xlane.xlu0 %434
        %v436 = vsel %vm411, %v371, 0.0
        %437 = vadd.xlane.f32.xlu0 %v436
        %v438 = vpop.xlane.xlu0 %437
        %v439 = vsel %vm411, %v372, 0.0
        %440 = vadd.xlane.f32.xlu0 %v439
        %v441 = vpop.xlane.xlu0 %440
        %v442 = vsel %vm411, %v373, 0.0
        %443 = vadd.xlane.f32.xlu0 %v442
        %v444 = vpop.xlane.xlu0 %443
        %v445 = vsel %vm411, %v374, 0.0
        %446 = vadd.xlane.f32.xlu0 %v445
        %v447 = vpop.xlane.xlu0 %446
        %v448 = vsel %vm411, %v375, 0.0
        %449 = vadd.xlane.f32.xlu0 %v448
        %v450 = vpop.xlane.xlu0 %449
        %v451 = vsel %vm411, %v376, 0.0
        %452 = vadd.xlane.f32.xlu0 %v451
        %v453 = vpop.xlane.xlu0 %452
        %v454 = vsel %vm411, %v377, 0.0
        %455 = vadd.xlane.f32.xlu0 %v454
        %v456 = vpop.xlane.xlu0 %455
        %v457 = vsel %vm411, %v378, 0.0
        %458 = vadd.xlane.f32.xlu0 %v457
        %v459 = vpop.xlane.xlu0 %458
        %v460 = vsel %vm411, %v379, 0.0
        %461 = vadd.xlane.f32.xlu0 %v460
        %v462 = vpop.xlane.xlu0 %461
        %v463 = vsel %vm411, %v380, 0.0
        %464 = vadd.xlane.f32.xlu0 %v463
        %v465 = vpop.xlane.xlu0 %464
        %v466 = vsel %vm411, %v381, 0.0
        %467 = vadd.xlane.f32.xlu0 %v466
        %v468 = vpop.xlane.xlu0 %467
        %v469 = vsel %vm411, %v382, 0.0
        %470 = vadd.xlane.f32.xlu0 %v469
        %v471 = vpop.xlane.xlu0 %470
        %v472 = vsel %vm411, %v383, 0.0
        %473 = vadd.xlane.f32.xlu0 %v472
        %v474 = vpop.xlane.xlu0 %473
        %v475 = vsel %vm411, %v384, 0.0
        %476 = vadd.xlane.f32.xlu0 %v475
        %v477 = vpop.xlane.xlu0 %476
        %v478 = vsel %vm411, %v385, 0.0
        %479 = vadd.xlane.f32.xlu0 %v478
        %v480 = vpop.xlane.xlu0 %479
        %v481 = vsel %vm411, %v386, 0.0
        %482 = vadd.xlane.f32.xlu0 %v481
        %v483 = vpop.xlane.xlu0 %482
        %v484 = vsel %vm411, %v387, 0.0
        %485 = vadd.xlane.f32.xlu0 %v484
        %v486 = vpop.xlane.xlu0 %485
        %v487 = vsel %vm411, %v388, 0.0
        %488 = vadd.xlane.f32.xlu0 %v487
        %v489 = vpop.xlane.xlu0 %488
        %v490 = vsel %vm411, %v389, 0.0
        %491 = vadd.xlane.f32.xlu0 %v490
        %v492 = vpop.xlane.xlu0 %491
        %v493 = vsel %vm411, %v390, 0.0
        %494 = vadd.xlane.f32.xlu0 %v493
        %v495 = vpop.xlane.xlu0 %494
        %v496 = vsel %vm411, %v391, 0.0
        %497 = vadd.xlane.f32.xlu0 %v496
        %v498 = vpop.xlane.xlu0 %497
        %v499 = vsel %vm411, %v392, 0.0
        %500 = vadd.xlane.f32.xlu0 %v499
        %v501 = vpop.xlane.xlu0 %500
        %v502 = vsel %vm411, %v393, 0.0
        %503 = vadd.xlane.f32.xlu0 %v502
        %v504 = vpop.xlane.xlu0 %503
        %v505 = vsel %vm411, %v394, 0.0
        %506 = vadd.xlane.f32.xlu0 %v505
        %v507 = vpop.xlane.xlu0 %506
        %v508 = vsel %vm411, %v395, 0.0
        %509 = vadd.xlane.f32.xlu0 %v508
        %v510 = vpop.xlane.xlu0 %509
        %v511 = vsel %vm411, %v396, 0.0
        %512 = vadd.xlane.f32.xlu0 %v511
        %v513 = vpop.xlane.xlu0 %512
        %v514 = vsel %vm411, %v397, 0.0
        %515 = vadd.xlane.f32.xlu0 %v514
        %v516 = vpop.xlane.xlu0 %515
        %v517 = vsel %vm411, %v398, 0.0
        %518 = vadd.xlane.f32.xlu0 %v517
        %v519 = vpop.xlane.xlu0 %518
        %v520 = vsel %vm411, %v399, 0.0
        %521 = vadd.xlane.f32.xlu0 %v520
        %v522 = vpop.xlane.xlu0 %521
        %v523 = vsel %vm411, %v400, 0.0
        %524 = vadd.xlane.f32.xlu0 %v523
        %v525 = vpop.xlane.xlu0 %524
        %v526 = vsel %vm411, %v401, 0.0
        %527 = vadd.xlane.f32.xlu0 %v526
        %v528 = vpop.xlane.xlu0 %527
        %v529 = vsel %vm411, %v402, 0.0
        %530 = vadd.xlane.f32.xlu0 %v529
        %v531 = vpop.xlane.xlu0 %530
        %v532 = vsel %vm411, %v403, 0.0
        %533 = vadd.xlane.f32.xlu0 %v532
        %v534 = vpop.xlane.xlu0 %533
        %v535 = vsel %vm411, %v404, 0.0
        %536 = vadd.xlane.f32.xlu0 %v535
        %v537 = vpop.xlane.xlu0 %536
        %v538 = vsel %vm411, %v405, 0.0
        %539 = vadd.xlane.f32.xlu0 %v538
        %v540 = vpop.xlane.xlu0 %539
        %v541 = vsel %vm411, %v406, 0.0
        %542 = vadd.xlane.f32.xlu0 %v541
        %v543 = vpop.xlane.xlu0 %542
        %v544 = vsel %vm411, %v407, 0.0
        %545 = vadd.xlane.f32.xlu0 %v544
        %v546 = vpop.xlane.xlu0 %545
        %v547 = vsel %vm411, %v408, 0.0
        %548 = vadd.xlane.f32.xlu0 %v547
        %v549 = vpop.xlane.xlu0 %548
        %v550 = vsel %vm411, %v409, 0.0
        %551 = vadd.xlane.f32.xlu0 %v550
        %v552 = vpop.xlane.xlu0 %551
        %v553 = vsel %vm411, %v410, 0.0
        %554 = vadd.xlane.f32.xlu0 %v553
        %v555 = vpop.xlane.xlu0 %554
        %v556 = vrcp.pop 32.0
        %v557 = vmul.f32 %v414, %v556
        %v558 = vmul.f32 %v417, %v556
        %v559 = vmul.f32 %v420, %v556
        %v560 = vmul.f32 %v423, %v556
        %v561 = vmul.f32 %v426, %v556
        %v562 = vmul.f32 %v429, %v556
        %v563 = vmul.f32 %v432, %v556
        %v564 = vmul.f32 %v435, %v556
        %v565 = vmul.f32 %v438, %v556
        %v566 = vmul.f32 %v441, %v556
        %v567 = vmul.f32 %v444, %v556
        %v568 = vmul.f32 %v447, %v556
        %v569 = vmul.f32 %v450, %v556
        %v570 = vmul.f32 %v453, %v556
        %v571 = vmul.f32 %v456, %v556
        %v572 = vmul.f32 %v459, %v556
        %v573 = vmul.f32 %v462, %v556
        %v574 = vmul.f32 %v465, %v556
        %v575 = vmul.f32 %v468, %v556
        %v576 = vmul.f32 %v471, %v556
        %v577 = vmul.f32 %v474, %v556
        %v578 = vmul.f32 %v477, %v556
        %v579 = vmul.f32 %v480, %v556
        %v580 = vmul.f32 %v483, %v556
        %v581 = vmul.f32 %v486, %v556
        %v582 = vmul.f32 %v489, %v556
        %v583 = vmul.f32 %v492, %v556
        %v584 = vmul.f32 %v495, %v556
        %v585 = vmul.f32 %v498, %v556
        %v586 = vmul.f32 %v501, %v556
        %v587 = vmul.f32 %v504, %v556
        %v588 = vmul.f32 %v507, %v556
        %v589 = vmul.f32 %v510, %v556
        %v590 = vmul.f32 %v513, %v556
        %v591 = vmul.f32 %v516, %v556
        %v592 = vmul.f32 %v519, %v556
        %v593 = vmul.f32 %v522, %v556
        %v594 = vmul.f32 %v525, %v556
        %v595 = vmul.f32 %v528, %v556
        %v596 = vmul.f32 %v531, %v556
        %v597 = vmul.f32 %v534, %v556
        %v598 = vmul.f32 %v537, %v556
        %v599 = vmul.f32 %v540, %v556
        %v600 = vmul.f32 %v543, %v556
        %v601 = vmul.f32 %v546, %v556
        %v602 = vmul.f32 %v549, %v556
        %v603 = vmul.f32 %v552, %v556
        %v604 = vmul.f32 %v555, %v556
        %v605 = vsub.f32 %v363, %v557
        %v606 = vsub.f32 %v364, %v558
        %v607 = vsub.f32 %v365, %v559
        %v608 = vsub.f32 %v366, %v560
        %v609 = vsub.f32 %v367, %v561
        %v610 = vsub.f32 %v368, %v562
        %v611 = vsub.f32 %v369, %v563
        %v612 = vsub.f32 %v370, %v564
        %v613 = vsub.f32 %v371, %v565
        %v614 = vsub.f32 %v372, %v566
        %v615 = vsub.f32 %v373, %v567
        %v616 = vsub.f32 %v374, %v568
        %v617 = vsub.f32 %v375, %v569
        %v618 = vsub.f32 %v376, %v570
        %v619 = vsub.f32 %v377, %v571
        %v620 = vsub.f32 %v378, %v572
        %v621 = vsub.f32 %v379, %v573
        %v622 = vsub.f32 %v380, %v574
        %v623 = vsub.f32 %v381, %v575
        %v624 = vsub.f32 %v382, %v576
        %v625 = vsub.f32 %v383, %v577
        %v626 = vsub.f32 %v384, %v578
        %v627 = vsub.f32 %v385, %v579
        %v628 = vsub.f32 %v386, %v580
        %v629 = vsub.f32 %v387, %v581
        %v630 = vsub.f32 %v388, %v582
        %v631 = vsub.f32 %v389, %v583
        %v632 = vsub.f32 %v390, %v584
        %v633 = vsub.f32 %v391, %v585
        %v634 = vsub.f32 %v392, %v586
        %v635 = vsub.f32 %v393, %v587
        %v636 = vsub.f32 %v394, %v588
        %v637 = vsub.f32 %v395, %v589
        %v638 = vsub.f32 %v396, %v590
        %v639 = vsub.f32 %v397, %v591
        %v640 = vsub.f32 %v398, %v592
        %v641 = vsub.f32 %v399, %v593
        %v642 = vsub.f32 %v400, %v594
        %v643 = vsub.f32 %v401, %v595
        %v644 = vsub.f32 %v402, %v596
        %v645 = vsub.f32 %v403, %v597
        %v646 = vsub.f32 %v404, %v598
        %v647 = vsub.f32 %v405, %v599
        %v648 = vsub.f32 %v406, %v600
        %v649 = vsub.f32 %v407, %v601
        %v650 = vsub.f32 %v408, %v602
        %v651 = vsub.f32 %v409, %v603
        %v652 = vsub.f32 %v410, %v604
        %v653 = vmul.f32 %v605, %v605
        %v654 = vmul.f32 %v606, %v606
        %v655 = vmul.f32 %v607, %v607
        %v656 = vmul.f32 %v608, %v608
        %v657 = vmul.f32 %v609, %v609
        %v658 = vmul.f32 %v610, %v610
        %v659 = vmul.f32 %v611, %v611
        %v660 = vmul.f32 %v612, %v612
        %v661 = vmul.f32 %v613, %v613
        %v662 = vmul.f32 %v614, %v614
        %v663 = vmul.f32 %v615, %v615
        %v664 = vmul.f32 %v616, %v616
        %v665 = vmul.f32 %v617, %v617
        %v666 = vmul.f32 %v618, %v618
        %v667 = vmul.f32 %v619, %v619
        %v668 = vmul.f32 %v620, %v620
        %v669 = vmul.f32 %v621, %v621
        %v670 = vmul.f32 %v622, %v622
        %v671 = vmul.f32 %v623, %v623
        %v672 = vmul.f32 %v624, %v624
        %v673 = vmul.f32 %v625, %v625
        %v674 = vmul.f32 %v626, %v626
        %v675 = vmul.f32 %v627, %v627
        %v676 = vmul.f32 %v628, %v628
        %v677 = vmul.f32 %v629, %v629
        %v678 = vmul.f32 %v630, %v630
        %v679 = vmul.f32 %v631, %v631
        %v680 = vmul.f32 %v632, %v632
        %v681 = vmul.f32 %v633, %v633
        %v682 = vmul.f32 %v634, %v634
        %v683 = vmul.f32 %v635, %v635
        %v684 = vmul.f32 %v636, %v636
        %v685 = vmul.f32 %v637, %v637
        %v686 = vmul.f32 %v638, %v638
        %v687 = vmul.f32 %v639, %v639
        %v688 = vmul.f32 %v640, %v640
        %v689 = vmul.f32 %v641, %v641
        %v690 = vmul.f32 %v642, %v642
        %v691 = vmul.f32 %v643, %v643
        %v692 = vmul.f32 %v644, %v644
        %v693 = vmul.f32 %v645, %v645
        %v694 = vmul.f32 %v646, %v646
        %v695 = vmul.f32 %v647, %v647
        %v696 = vmul.f32 %v648, %v648
        %v697 = vmul.f32 %v649, %v649
        %v698 = vmul.f32 %v650, %v650
        %v699 = vmul.f32 %v651, %v651
        %v700 = vmul.f32 %v652, %v652
        %v701 = vsel %vm411, %v653, 0.0
        %702 = vadd.xlane.f32.xlu0 %v701
        %v703 = vpop.xlane.xlu0 %702
        %v704 = vsel %vm411, %v654, 0.0
        %705 = vadd.xlane.f32.xlu0 %v704
        %v706 = vpop.xlane.xlu0 %705
        %v707 = vsel %vm411, %v655, 0.0
        %708 = vadd.xlane.f32.xlu0 %v707
        %v709 = vpop.xlane.xlu0 %708
        %v710 = vsel %vm411, %v656, 0.0
        %711 = vadd.xlane.f32.xlu0 %v710
        %v712 = vpop.xlane.xlu0 %711
        %v713 = vsel %vm411, %v657, 0.0
        %714 = vadd.xlane.f32.xlu0 %v713
        %v715 = vpop.xlane.xlu0 %714
        %v716 = vsel %vm411, %v658, 0.0
        %717 = vadd.xlane.f32.xlu0 %v716
        %v718 = vpop.xlane.xlu0 %717
        %v719 = vsel %vm411, %v659, 0.0
        %720 = vadd.xlane.f32.xlu0 %v719
        %v721 = vpop.xlane.xlu0 %720
        %v722 = vsel %vm411, %v660, 0.0
        %723 = vadd.xlane.f32.xlu0 %v722
        %v724 = vpop.xlane.xlu0 %723
        %v725 = vsel %vm411, %v661, 0.0
        %726 = vadd.xlane.f32.xlu0 %v725
        %v727 = vpop.xlane.xlu0 %726
        %v728 = vsel %vm411, %v662, 0.0
        %729 = vadd.xlane.f32.xlu0 %v728
        %v730 = vpop.xlane.xlu0 %729
        %v731 = vsel %vm411, %v663, 0.0
        %732 = vadd.xlane.f32.xlu0 %v731
        %v733 = vpop.xlane.xlu0 %732
        %v734 = vsel %vm411, %v664, 0.0
        %735 = vadd.xlane.f32.xlu0 %v734
        %v736 = vpop.xlane.xlu0 %735
        %v737 = vsel %vm411, %v665, 0.0
        %738 = vadd.xlane.f32.xlu0 %v737
        %v739 = vpop.xlane.xlu0 %738
        %v740 = vsel %vm411, %v666, 0.0
        %741 = vadd.xlane.f32.xlu0 %v740
        %v742 = vpop.xlane.xlu0 %741
        %v743 = vsel %vm411, %v667, 0.0
        %744 = vadd.xlane.f32.xlu0 %v743
        %v745 = vpop.xlane.xlu0 %744
        %v746 = vsel %vm411, %v668, 0.0
        %747 = vadd.xlane.f32.xlu0 %v746
        %v748 = vpop.xlane.xlu0 %747
        %v749 = vsel %vm411, %v669, 0.0
        %750 = vadd.xlane.f32.xlu0 %v749
        %v751 = vpop.xlane.xlu0 %750
        %v752 = vsel %vm411, %v670, 0.0
        %753 = vadd.xlane.f32.xlu0 %v752
        %v754 = vpop.xlane.xlu0 %753
        %v755 = vsel %vm411, %v671, 0.0
        %756 = vadd.xlane.f32.xlu0 %v755
        %v757 = vpop.xlane.xlu0 %756
        %v758 = vsel %vm411, %v672, 0.0
        %759 = vadd.xlane.f32.xlu0 %v758
        %v760 = vpop.xlane.xlu0 %759
        %v761 = vsel %vm411, %v673, 0.0
        %762 = vadd.xlane.f32.xlu0 %v761
        %v763 = vpop.xlane.xlu0 %762
        %v764 = vsel %vm411, %v674, 0.0
        %765 = vadd.xlane.f32.xlu0 %v764
        %v766 = vpop.xlane.xlu0 %765
        %v767 = vsel %vm411, %v675, 0.0
        %768 = vadd.xlane.f32.xlu0 %v767
        %v769 = vpop.xlane.xlu0 %768
        %v770 = vsel %vm411, %v676, 0.0
        %771 = vadd.xlane.f32.xlu0 %v770
        %v772 = vpop.xlane.xlu0 %771
        %v773 = vsel %vm411, %v677, 0.0
        %774 = vadd.xlane.f32.xlu0 %v773
        %v775 = vpop.xlane.xlu0 %774
        %v776 = vsel %vm411, %v678, 0.0
        %777 = vadd.xlane.f32.xlu0 %v776
        %v778 = vpop.xlane.xlu0 %777
        %v779 = vsel %vm411, %v679, 0.0
        %780 = vadd.xlane.f32.xlu0 %v779
        %v781 = vpop.xlane.xlu0 %780
        %v782 = vsel %vm411, %v680, 0.0
        %783 = vadd.xlane.f32.xlu0 %v782
        %v784 = vpop.xlane.xlu0 %783
        %v785 = vsel %vm411, %v681, 0.0
        %786 = vadd.xlane.f32.xlu0 %v785
        %v787 = vpop.xlane.xlu0 %786
        %v788 = vsel %vm411, %v682, 0.0
        %789 = vadd.xlane.f32.xlu0 %v788
        %v790 = vpop.xlane.xlu0 %789
        %v791 = vsel %vm411, %v683, 0.0
        %792 = vadd.xlane.f32.xlu0 %v791
        %v793 = vpop.xlane.xlu0 %792
        %v794 = vsel %vm411, %v684, 0.0
        %795 = vadd.xlane.f32.xlu0 %v794
        %v796 = vpop.xlane.xlu0 %795
        %v797 = vsel %vm411, %v685, 0.0
        %798 = vadd.xlane.f32.xlu0 %v797
        %v799 = vpop.xlane.xlu0 %798
        %v800 = vsel %vm411, %v686, 0.0
        %801 = vadd.xlane.f32.xlu0 %v800
        %v802 = vpop.xlane.xlu0 %801
        %v803 = vsel %vm411, %v687, 0.0
        %804 = vadd.xlane.f32.xlu0 %v803
        %v805 = vpop.xlane.xlu0 %804
        %v806 = vsel %vm411, %v688, 0.0
        %807 = vadd.xlane.f32.xlu0 %v806
        %v808 = vpop.xlane.xlu0 %807
        %v809 = vsel %vm411, %v689, 0.0
        %810 = vadd.xlane.f32.xlu0 %v809
        %v811 = vpop.xlane.xlu0 %810
        %v812 = vsel %vm411, %v690, 0.0
        %813 = vadd.xlane.f32.xlu0 %v812
        %v814 = vpop.xlane.xlu0 %813
        %v815 = vsel %vm411, %v691, 0.0
        %816 = vadd.xlane.f32.xlu0 %v815
        %v817 = vpop.xlane.xlu0 %816
        %v818 = vsel %vm411, %v692, 0.0
        %819 = vadd.xlane.f32.xlu0 %v818
        %v820 = vpop.xlane.xlu0 %819
        %v821 = vsel %vm411, %v693, 0.0
        %822 = vadd.xlane.f32.xlu0 %v821
        %v823 = vpop.xlane.xlu0 %822
        %v824 = vsel %vm411, %v694, 0.0
        %825 = vadd.xlane.f32.xlu0 %v824
        %v826 = vpop.xlane.xlu0 %825
        %v827 = vsel %vm411, %v695, 0.0
        %828 = vadd.xlane.f32.xlu0 %v827
        %v829 = vpop.xlane.xlu0 %828
        %v830 = vsel %vm411, %v696, 0.0
        %831 = vadd.xlane.f32.xlu0 %v830
        %v832 = vpop.xlane.xlu0 %831
        %v833 = vsel %vm411, %v697, 0.0
        %834 = vadd.xlane.f32.xlu0 %v833
        %v835 = vpop.xlane.xlu0 %834
        %v836 = vsel %vm411, %v698, 0.0
        %837 = vadd.xlane.f32.xlu0 %v836
        %v838 = vpop.xlane.xlu0 %837
        %v839 = vsel %vm411, %v699, 0.0
        %840 = vadd.xlane.f32.xlu0 %v839
        %v841 = vpop.xlane.xlu0 %840
        %v842 = vsel %vm411, %v700, 0.0
        %843 = vadd.xlane.f32.xlu0 %v842
        %v844 = vpop.xlane.xlu0 %843
        %v845 = vmul.f32 %v703, %v556
        %v846 = vmul.f32 %v706, %v556
        %v847 = vmul.f32 %v709, %v556
        %v848 = vmul.f32 %v712, %v556
        %v849 = vmul.f32 %v715, %v556
        %v850 = vmul.f32 %v718, %v556
        %v851 = vmul.f32 %v721, %v556
        %v852 = vmul.f32 %v724, %v556
        %v853 = vmul.f32 %v727, %v556
        %v854 = vmul.f32 %v730, %v556
        %v855 = vmul.f32 %v733, %v556
        %v856 = vmul.f32 %v736, %v556
        %v857 = vmul.f32 %v739, %v556
        %v858 = vmul.f32 %v742, %v556
        %v859 = vmul.f32 %v745, %v556
        %v860 = vmul.f32 %v748, %v556
        %v861 = vmul.f32 %v751, %v556
        %v862 = vmul.f32 %v754, %v556
        %v863 = vmul.f32 %v757, %v556
        %v864 = vmul.f32 %v760, %v556
        %v865 = vmul.f32 %v763, %v556
        %v866 = vmul.f32 %v766, %v556
        %v867 = vmul.f32 %v769, %v556
        %v868 = vmul.f32 %v772, %v556
        %v869 = vmul.f32 %v775, %v556
        %v870 = vmul.f32 %v778, %v556
        %v871 = vmul.f32 %v781, %v556
        %v872 = vmul.f32 %v784, %v556
        %v873 = vmul.f32 %v787, %v556
        %v874 = vmul.f32 %v790, %v556
        %v875 = vmul.f32 %v793, %v556
        %v876 = vmul.f32 %v796, %v556
        %v877 = vmul.f32 %v799, %v556
        %v878 = vmul.f32 %v802, %v556
        %v879 = vmul.f32 %v805, %v556
        %v880 = vmul.f32 %v808, %v556
        %v881 = vmul.f32 %v811, %v556
        %v882 = vmul.f32 %v814, %v556
        %v883 = vmul.f32 %v817, %v556
        %v884 = vmul.f32 %v820, %v556
        %v885 = vmul.f32 %v823, %v556
        %v886 = vmul.f32 %v826, %v556
        %v887 = vmul.f32 %v829, %v556
        %v888 = vmul.f32 %v832, %v556
        %v889 = vmul.f32 %v835, %v556
        %v890 = vmul.f32 %v838, %v556
        %v891 = vmul.f32 %v841, %v556
        %v892 = vmul.f32 %v844, %v556
        %v893 = vadd.f32 %v845, 1e-05
        %v894 = vadd.f32 %v846, 1e-05
        %v895 = vadd.f32 %v847, 1e-05
        %v896 = vadd.f32 %v848, 1e-05
        %v897 = vadd.f32 %v849, 1e-05
        %v898 = vadd.f32 %v850, 1e-05
        %v899 = vadd.f32 %v851, 1e-05
        %v900 = vadd.f32 %v852, 1e-05
        %v901 = vadd.f32 %v853, 1e-05
        %v902 = vadd.f32 %v854, 1e-05
        %v903 = vadd.f32 %v855, 1e-05
        %v904 = vadd.f32 %v856, 1e-05
        %v905 = vadd.f32 %v857, 1e-05
        %v906 = vadd.f32 %v858, 1e-05
        %v907 = vadd.f32 %v859, 1e-05
        %v908 = vadd.f32 %v860, 1e-05
        %v909 = vadd.f32 %v861, 1e-05
        %v910 = vadd.f32 %v862, 1e-05
        %v911 = vadd.f32 %v863, 1e-05
        %v912 = vadd.f32 %v864, 1e-05
        %v913 = vadd.f32 %v865, 1e-05
        %v914 = vadd.f32 %v866, 1e-05
        %v915 = vadd.f32 %v867, 1e-05
        %v916 = vadd.f32 %v868, 1e-05
        %v917 = vadd.f32 %v869, 1e-05
        %v918 = vadd.f32 %v870, 1e-05
        %v919 = vadd.f32 %v871, 1e-05
        %v920 = vadd.f32 %v872, 1e-05
        %v921 = vadd.f32 %v873, 1e-05
        %v922 = vadd.f32 %v874, 1e-05
        %v923 = vadd.f32 %v875, 1e-05
        %v924 = vadd.f32 %v876, 1e-05
        %v925 = vadd.f32 %v877, 1e-05
        %v926 = vadd.f32 %v878, 1e-05
        %v927 = vadd.f32 %v879, 1e-05
        %v928 = vadd.f32 %v880, 1e-05
        %v929 = vadd.f32 %v881, 1e-05
        %v930 = vadd.f32 %v882, 1e-05
        %v931 = vadd.f32 %v883, 1e-05
        %v932 = vadd.f32 %v884, 1e-05
        %v933 = vadd.f32 %v885, 1e-05
        %v934 = vadd.f32 %v886, 1e-05
        %v935 = vadd.f32 %v887, 1e-05
        %v936 = vadd.f32 %v888, 1e-05
        %v937 = vadd.f32 %v889, 1e-05
        %v938 = vadd.f32 %v890, 1e-05
        %v939 = vadd.f32 %v891, 1e-05
        %v940 = vadd.f32 %v892, 1e-05
        %v941 = vrsqrt.pop %v893
        %v942 = vrsqrt.pop %v894
        %v943 = vrsqrt.pop %v895
        %v944 = vrsqrt.pop %v896
        %v945 = vrsqrt.pop %v897
        %v946 = vrsqrt.pop %v898
        %v947 = vrsqrt.pop %v899
        %v948 = vrsqrt.pop %v900
        %v949 = vrsqrt.pop %v901
        %v950 = vrsqrt.pop %v902
        %v951 = vrsqrt.pop %v903
        %v952 = vrsqrt.pop %v904
        %v953 = vrsqrt.pop %v905
        %v954 = vrsqrt.pop %v906
        %v955 = vrsqrt.pop %v907
        %v956 = vrsqrt.pop %v908
        %v957 = vrsqrt.pop %v909
        %v958 = vrsqrt.pop %v910
        %v959 = vrsqrt.pop %v911
        %v960 = vrsqrt.pop %v912
        %v961 = vrsqrt.pop %v913
        %v962 = vrsqrt.pop %v914
        %v963 = vrsqrt.pop %v915
        %v964 = vrsqrt.pop %v916
        %v965 = vrsqrt.pop %v917
        %v966 = vrsqrt.pop %v918
        %v967 = vrsqrt.pop %v919
        %v968 = vrsqrt.pop %v920
        %v969 = vrsqrt.pop %v921
        %v970 = vrsqrt.pop %v922
        %v971 = vrsqrt.pop %v923
        %v972 = vrsqrt.pop %v924
        %v973 = vrsqrt.pop %v925
        %v974 = vrsqrt.pop %v926
        %v975 = vrsqrt.pop %v927
        %v976 = vrsqrt.pop %v928
        %v977 = vrsqrt.pop %v929
        %v978 = vrsqrt.pop %v930
        %v979 = vrsqrt.pop %v931
        %v980 = vrsqrt.pop %v932
        %v981 = vrsqrt.pop %v933
        %v982 = vrsqrt.pop %v934
        %v983 = vrsqrt.pop %v935
        %v984 = vrsqrt.pop %v936
        %v985 = vrsqrt.pop %v937
        %v986 = vrsqrt.pop %v938
        %v987 = vrsqrt.pop %v939
        %v988 = vrsqrt.pop %v940
        %v989 = vmul.f32 %v605, %v941
        %v990 = vmul.f32 %v606, %v942
        %v991 = vmul.f32 %v607, %v943
        %v992 = vmul.f32 %v608, %v944
        %v993 = vmul.f32 %v609, %v945
        %v994 = vmul.f32 %v610, %v946
        %v995 = vmul.f32 %v611, %v947
        %v996 = vmul.f32 %v612, %v948
        %v997 = vmul.f32 %v613, %v949
        %v998 = vmul.f32 %v614, %v950
        %v999 = vmul.f32 %v615, %v951
        %v1000 = vmul.f32 %v616, %v952
        %v1001 = vmul.f32 %v617, %v953
        %v1002 = vmul.f32 %v618, %v954
        %v1003 = vmul.f32 %v619, %v955
        %v1004 = vmul.f32 %v620, %v956
        %v1005 = vmul.f32 %v621, %v957
        %v1006 = vmul.f32 %v622, %v958
        %v1007 = vmul.f32 %v623, %v959
        %v1008 = vmul.f32 %v624, %v960
        %v1009 = vmul.f32 %v625, %v961
        %v1010 = vmul.f32 %v626, %v962
        %v1011 = vmul.f32 %v627, %v963
        %v1012 = vmul.f32 %v628, %v964
        %v1013 = vmul.f32 %v629, %v965
        %v1014 = vmul.f32 %v630, %v966
        %v1015 = vmul.f32 %v631, %v967
        %v1016 = vmul.f32 %v632, %v968
        %v1017 = vmul.f32 %v633, %v969
        %v1018 = vmul.f32 %v634, %v970
        %v1019 = vmul.f32 %v635, %v971
        %v1020 = vmul.f32 %v636, %v972
        %v1021 = vmul.f32 %v637, %v973
        %v1022 = vmul.f32 %v638, %v974
        %v1023 = vmul.f32 %v639, %v975
        %v1024 = vmul.f32 %v640, %v976
        %v1025 = vmul.f32 %v641, %v977
        %v1026 = vmul.f32 %v642, %v978
        %v1027 = vmul.f32 %v643, %v979
        %v1028 = vmul.f32 %v644, %v980
        %v1029 = vmul.f32 %v645, %v981
        %v1030 = vmul.f32 %v646, %v982
        %v1031 = vmul.f32 %v647, %v983
        %v1032 = vmul.f32 %v648, %v984
        %v1033 = vmul.f32 %v649, %v985
        %v1034 = vmul.f32 %v650, %v986
        %v1035 = vmul.f32 %v651, %v987
        %v1036 = vmul.f32 %v652, %v988
        %v1038 = vlaneseq
        %v1039 = vshrl.u32 %v1038, 7
        %v1040 = vsub.s32 0, %v1039
        %v1041 = vrot.slane %v361, %v1040
        %v1043 = vmul.f32 %v989, %v1041
        %v1044 = vmul.f32 %v990, %v1041
        %v1045 = vmul.f32 %v991, %v1041
        %v1046 = vmul.f32 %v992, %v1041
        %v1047 = vmul.f32 %v993, %v1041
        %v1048 = vmul.f32 %v994, %v1041
        %v1049 = vmul.f32 %v995, %v1041
        %v1050 = vmul.f32 %v996, %v1041
        %v1051 = vmul.f32 %v997, %v1041
        %v1052 = vmul.f32 %v998, %v1041
        %v1053 = vmul.f32 %v999, %v1041
        %v1054 = vmul.f32 %v1000, %v1041
        %v1055 = vmul.f32 %v1001, %v1041
        %v1056 = vmul.f32 %v1002, %v1041
        %v1057 = vmul.f32 %v1003, %v1041
        %v1058 = vmul.f32 %v1004, %v1041
        %v1059 = vmul.f32 %v1005, %v1041
        %v1060 = vmul.f32 %v1006, %v1041
        %v1061 = vmul.f32 %v1007, %v1041
        %v1062 = vmul.f32 %v1008, %v1041
        %v1063 = vmul.f32 %v1009, %v1041
        %v1064 = vmul.f32 %v1010, %v1041
        %v1065 = vmul.f32 %v1011, %v1041
        %v1066 = vmul.f32 %v1012, %v1041
        %v1067 = vmul.f32 %v1013, %v1041
        %v1068 = vmul.f32 %v1014, %v1041
        %v1069 = vmul.f32 %v1015, %v1041
        %v1070 = vmul.f32 %v1016, %v1041
        %v1071 = vmul.f32 %v1017, %v1041
        %v1072 = vmul.f32 %v1018, %v1041
        %v1073 = vmul.f32 %v1019, %v1041
        %v1074 = vmul.f32 %v1020, %v1041
        %v1075 = vmul.f32 %v1021, %v1041
        %v1076 = vmul.f32 %v1022, %v1041
        %v1077 = vmul.f32 %v1023, %v1041
        %v1078 = vmul.f32 %v1024, %v1041
        %v1079 = vmul.f32 %v1025, %v1041
        %v1080 = vmul.f32 %v1026, %v1041
        %v1081 = vmul.f32 %v1027, %v1041
        %v1082 = vmul.f32 %v1028, %v1041
        %v1083 = vmul.f32 %v1029, %v1041
        %v1084 = vmul.f32 %v1030, %v1041
        %v1085 = vmul.f32 %v1031, %v1041
        %v1086 = vmul.f32 %v1032, %v1041
        %v1087 = vmul.f32 %v1033, %v1041
        %v1088 = vmul.f32 %v1034, %v1041
        %v1089 = vmul.f32 %v1035, %v1041
        %v1090 = vmul.f32 %v1036, %v1041
        %v1092 = vlaneseq
        %v1093 = vshrl.u32 %v1092, 7
        %v1094 = vsub.s32 0, %v1093
        %v1095 = vrot.slane %v362, %v1094
        %v1097 = vadd.f32 %v1043, %v1095
        %v1098 = vadd.f32 %v1044, %v1095
        %v1099 = vadd.f32 %v1045, %v1095
        %v1100 = vadd.f32 %v1046, %v1095
        %v1101 = vadd.f32 %v1047, %v1095
        %v1102 = vadd.f32 %v1048, %v1095
        %v1103 = vadd.f32 %v1049, %v1095
        %v1104 = vadd.f32 %v1050, %v1095
        %v1105 = vadd.f32 %v1051, %v1095
        %v1106 = vadd.f32 %v1052, %v1095
        %v1107 = vadd.f32 %v1053, %v1095
        %v1108 = vadd.f32 %v1054, %v1095
        %v1109 = vadd.f32 %v1055, %v1095
        %v1110 = vadd.f32 %v1056, %v1095
        %v1111 = vadd.f32 %v1057, %v1095
        %v1112 = vadd.f32 %v1058, %v1095
        %v1113 = vadd.f32 %v1059, %v1095
        %v1114 = vadd.f32 %v1060, %v1095
        %v1115 = vadd.f32 %v1061, %v1095
        %v1116 = vadd.f32 %v1062, %v1095
        %v1117 = vadd.f32 %v1063, %v1095
        %v1118 = vadd.f32 %v1064, %v1095
        %v1119 = vadd.f32 %v1065, %v1095
        %v1120 = vadd.f32 %v1066, %v1095
        %v1121 = vadd.f32 %v1067, %v1095
        %v1122 = vadd.f32 %v1068, %v1095
        %v1123 = vadd.f32 %v1069, %v1095
        %v1124 = vadd.f32 %v1070, %v1095
        %v1125 = vadd.f32 %v1071, %v1095
        %v1126 = vadd.f32 %v1072, %v1095
        %v1127 = vadd.f32 %v1073, %v1095
        %v1128 = vadd.f32 %v1074, %v1095
        %v1129 = vadd.f32 %v1075, %v1095
        %v1130 = vadd.f32 %v1076, %v1095
        %v1131 = vadd.f32 %v1077, %v1095
        %v1132 = vadd.f32 %v1078, %v1095
        %v1133 = vadd.f32 %v1079, %v1095
        %v1134 = vadd.f32 %v1080, %v1095
        %v1135 = vadd.f32 %v1081, %v1095
        %v1136 = vadd.f32 %v1082, %v1095
        %v1137 = vadd.f32 %v1083, %v1095
        %v1138 = vadd.f32 %v1084, %v1095
        %v1139 = vadd.f32 %v1085, %v1095
        %v1140 = vadd.f32 %v1086, %v1095
        %v1141 = vadd.f32 %v1087, %v1095
        %v1142 = vadd.f32 %v1088, %v1095
        %v1143 = vadd.f32 %v1089, %v1095
        %v1144 = vadd.f32 %v1090, %v1095
        %v1145 = vld [vmem:[%s1] sm:$0xff]
        %v1146 = vld [vmem:[%s1 + $0x8] sm:$0xff]
        %v1147 = vld [vmem:[%s1 + $0x10] sm:$0xff]
        %v1148 = vld [vmem:[%s1 + $0x18] sm:$0xff]
        %v1149 = vld [vmem:[%s1 + $0x20] sm:$0xff]
        %v1150 = vld [vmem:[%s1 + $0x28] sm:$0xff]
        %v1151 = vld [vmem:[%s1 + $0x30] sm:$0xff]
        %v1152 = vld [vmem:[%s1 + $0x38] sm:$0xff]
        %v1153 = vld [vmem:[%s1 + $0x40] sm:$0xff]
        %v1154 = vld [vmem:[%s1 + $0x48] sm:$0xff]
        %v1155 = vld [vmem:[%s1 + $0x50] sm:$0xff]
        %v1156 = vld [vmem:[%s1 + $0x58] sm:$0xff]
        %v1157 = vld [vmem:[%s1 + $0x60] sm:$0xff]
        %v1158 = vld [vmem:[%s1 + $0x68] sm:$0xff]
        %v1159 = vld [vmem:[%s1 + $0x70] sm:$0xff]
        %v1160 = vld [vmem:[%s1 + $0x78] sm:$0xff]
        %v1161 = vld [vmem:[%s1 + $0x80] sm:$0xff]
        %v1162 = vld [vmem:[%s1 + $0x88] sm:$0xff]
        %v1163 = vld [vmem:[%s1 + $0x90] sm:$0xff]
        %v1164 = vld [vmem:[%s1 + $0x98] sm:$0xff]
        %v1165 = vld [vmem:[%s1 + $0xa0] sm:$0xff]
        %v1166 = vld [vmem:[%s1 + $0xa8] sm:$0xff]
        %v1167 = vld [vmem:[%s1 + $0xb0] sm:$0xff]
        %v1168 = vld [vmem:[%s1 + $0xb8] sm:$0xff]
        %v1169 = vld [vmem:[%s1 + $0xc0] sm:$0xff]
        %v1170 = vld [vmem:[%s1 + $0xc8] sm:$0xff]
        %v1171 = vld [vmem:[%s1 + $0xd0] sm:$0xff]
        %v1172 = vld [vmem:[%s1 + $0xd8] sm:$0xff]
        %v1173 = vld [vmem:[%s1 + $0xe0] sm:$0xff]
        %v1174 = vld [vmem:[%s1 + $0xe8] sm:$0xff]
        %v1175 = vld [vmem:[%s1 + $0xf0] sm:$0xff]
        %v1176 = vld [vmem:[%s1 + $0xf8] sm:$0xff]
        %v1177 = vld [vmem:[%s1 + $0x100] sm:$0xff]
        %v1178 = vld [vmem:[%s1 + $0x108] sm:$0xff]
        %v1179 = vld [vmem:[%s1 + $0x110] sm:$0xff]
        %v1180 = vld [vmem:[%s1 + $0x118] sm:$0xff]
        %v1181 = vld [vmem:[%s1 + $0x120] sm:$0xff]
        %v1182 = vld [vmem:[%s1 + $0x128] sm:$0xff]
        %v1183 = vld [vmem:[%s1 + $0x130] sm:$0xff]
        %v1184 = vld [vmem:[%s1 + $0x138] sm:$0xff]
        %v1185 = vld [vmem:[%s1 + $0x140] sm:$0xff]
        %v1186 = vld [vmem:[%s1 + $0x148] sm:$0xff]
        %v1187 = vld [vmem:[%s1 + $0x150] sm:$0xff]
        %v1188 = vld [vmem:[%s1 + $0x158] sm:$0xff]
        %v1189 = vld [vmem:[%s1 + $0x160] sm:$0xff]
        %v1190 = vld [vmem:[%s1 + $0x168] sm:$0xff]
        %v1191 = vld [vmem:[%s1 + $0x170] sm:$0xff]
        %v1192 = vld [vmem:[%s1 + $0x178] sm:$0xff]
        %v1193 = vadd.f32 %v1097, %v1145
        %v1194 = vadd.f32 %v1098, %v1146
        %v1195 = vadd.f32 %v1099, %v1147
        %v1196 = vadd.f32 %v1100, %v1148
        %v1197 = vadd.f32 %v1101, %v1149
        %v1198 = vadd.f32 %v1102, %v1150
        %v1199 = vadd.f32 %v1103, %v1151
        %v1200 = vadd.f32 %v1104, %v1152
        %v1201 = vadd.f32 %v1105, %v1153
        %v1202 = vadd.f32 %v1106, %v1154
        %v1203 = vadd.f32 %v1107, %v1155
        %v1204 = vadd.f32 %v1108, %v1156
        %v1205 = vadd.f32 %v1109, %v1157
        %v1206 = vadd.f32 %v1110, %v1158
        %v1207 = vadd.f32 %v1111, %v1159
        %v1208 = vadd.f32 %v1112, %v1160
        %v1209 = vadd.f32 %v1113, %v1161
        %v1210 = vadd.f32 %v1114, %v1162
        %v1211 = vadd.f32 %v1115, %v1163
        %v1212 = vadd.f32 %v1116, %v1164
        %v1213 = vadd.f32 %v1117, %v1165
        %v1214 = vadd.f32 %v1118, %v1166
        %v1215 = vadd.f32 %v1119, %v1167
        %v1216 = vadd.f32 %v1120, %v1168
        %v1217 = vadd.f32 %v1121, %v1169
        %v1218 = vadd.f32 %v1122, %v1170
        %v1219 = vadd.f32 %v1123, %v1171
        %v1220 = vadd.f32 %v1124, %v1172
        %v1221 = vadd.f32 %v1125, %v1173
        %v1222 = vadd.f32 %v1126, %v1174
        %v1223 = vadd.f32 %v1127, %v1175
        %v1224 = vadd.f32 %v1128, %v1176
        %v1225 = vadd.f32 %v1129, %v1177
        %v1226 = vadd.f32 %v1130, %v1178
        %v1227 = vadd.f32 %v1131, %v1179
        %v1228 = vadd.f32 %v1132, %v1180
        %v1229 = vadd.f32 %v1133, %v1181
        %v1230 = vadd.f32 %v1134, %v1182
        %v1231 = vadd.f32 %v1135, %v1183
        %v1232 = vadd.f32 %v1136, %v1184
        %v1233 = vadd.f32 %v1137, %v1185
        %v1234 = vadd.f32 %v1138, %v1186
        %v1235 = vadd.f32 %v1139, %v1187
        %v1236 = vadd.f32 %v1140, %v1188
        %v1237 = vadd.f32 %v1141, %v1189
        %v1238 = vadd.f32 %v1142, %v1190
        %v1239 = vadd.f32 %v1143, %v1191
        %v1240 = vadd.f32 %v1144, %v1192
        %v1241 = vlaneseq
        %v1242 = vand.u32 %v1241, 127
        %vm1243 = vcmp.lt.s32.totalorder %v1242, 84
        %v1244 = vsel %vm1243, 0.0, -1e+30
        %v1245 = vlaneseq
        %v1246 = vshrl.u32 %v1245, 7
        %v1247 = vadd.s32 %v1246, 8
        %v1248 = vadd.s32 %v1246, 16
        %v1249 = vadd.s32 %v1246, 24
        %v1250 = vadd.s32 %v1246, 32
        %v1251 = vadd.s32 %v1246, 40
        %v1252 = vadd.s32 %v1246, 48
        %v1253 = vadd.s32 %v1246, 56
        %v1254 = vadd.s32 %v1246, 64
        %v1255 = vadd.s32 %v1246, 72
        %v1256 = vadd.s32 %v1246, 80
        %v1257 = vadd.s32 %v1246, 88
        %vm1258 = vcmp.lt.s32.totalorder %v1246, 84
        %vm1259 = vcmp.lt.s32.totalorder %v1247, 84
        %vm1260 = vcmp.lt.s32.totalorder %v1248, 84
        %vm1261 = vcmp.lt.s32.totalorder %v1249, 84
        %vm1262 = vcmp.lt.s32.totalorder %v1250, 84
        %vm1263 = vcmp.lt.s32.totalorder %v1251, 84
        %vm1264 = vcmp.lt.s32.totalorder %v1252, 84
        %vm1265 = vcmp.lt.s32.totalorder %v1253, 84
        %vm1266 = vcmp.lt.s32.totalorder %v1254, 84
        %vm1267 = vcmp.lt.s32.totalorder %v1255, 84
        %vm1268 = vcmp.lt.s32.totalorder %v1256, 84
        %vm1269 = vcmp.lt.s32.totalorder %v1257, 84
        %v1270 = vpack.c.bf16 %v1194, %v1193
        %v1271 = vpack.c.bf16 %v1196, %v1195
        %v1272 = vpack.c.bf16 %v1198, %v1197
        %v1273 = vpack.c.bf16 %v1200, %v1199
        %v1274 = vpack.c.bf16 %v1202, %v1201
        %v1275 = vpack.c.bf16 %v1204, %v1203
        %v1276 = vpack.c.bf16 %v1206, %v1205
        %v1277 = vpack.c.bf16 %v1208, %v1207
        %v1278 = vpack.c.bf16 %v1210, %v1209
        %v1279 = vpack.c.bf16 %v1212, %v1211
        %v1280 = vpack.c.bf16 %v1214, %v1213
        %v1281 = vpack.c.bf16 %v1216, %v1215
        %v1282 = vpack.c.bf16 %v1218, %v1217
        %v1283 = vpack.c.bf16 %v1220, %v1219
        %v1284 = vpack.c.bf16 %v1222, %v1221
        %v1285 = vpack.c.bf16 %v1224, %v1223
        %v1286 = vpack.c.bf16 %v1226, %v1225
        %v1287 = vpack.c.bf16 %v1228, %v1227
        %v1288 = vpack.c.bf16 %v1230, %v1229
        %v1289 = vpack.c.bf16 %v1232, %v1231
        %v1290 = vpack.c.bf16 %v1234, %v1233
        %v1291 = vpack.c.bf16 %v1236, %v1235
        %v1292 = vpack.c.bf16 %v1238, %v1237
        %v1293 = vpack.c.bf16 %v1240, %v1239
        %v1294 = vld [vmem:[%s4] sm:$0xf]
        %v1295 = vld [vmem:[%s4 + $0x4] sm:$0xf]
        %v1296 = vld [vmem:[%s4 + $0x8] sm:$0xf]
        %v1297 = vld [vmem:[%s4 + $0xc] sm:$0xf]
        %v1298 = vld [vmem:[%s5] sm:$0x1]
        %v1300 = vlaneseq
        %v1301 = vshrl.u32 %v1300, 7
        %v1302 = vsub.s32 0, %v1301
        %v1303 = vrot.slane %v1298, %v1302
        %v1309 = vunpack.c.l.b16 %v1294
        %v1310 = vunpack.c.l.b16 %v1295
        %v1311 = vunpack.c.l.b16 %v1296
        %v1312 = vunpack.c.l.b16 %v1297
        %v1313 = vpack.c.b16 %v1310, %v1309
        %v1314 = vpack.c.b16 %v1312, %v1311
        %v1318 = vsel %vm411, %v1270, 0
        %v1321 = vsel %vm411, %v1271, 0
        %v1324 = vsel %vm411, %v1272, 0
        %v1327 = vsel %vm411, %v1273, 0
        %v1330 = vsel %vm411, %v1274, 0
        %v1333 = vsel %vm411, %v1275, 0
        %v1336 = vsel %vm411, %v1276, 0
        %v1339 = vsel %vm411, %v1277, 0
        %v1342 = vsel %vm411, %v1278, 0
        %v1345 = vsel %vm411, %v1279, 0
        %v1348 = vsel %vm411, %v1280, 0
        %v1351 = vsel %vm411, %v1281, 0
        %v1354 = vsel %vm411, %v1282, 0
        %v1357 = vsel %vm411, %v1283, 0
        %v1360 = vsel %vm411, %v1284, 0
        %v1363 = vsel %vm411, %v1285, 0
        %v1366 = vsel %vm411, %v1286, 0
        %v1369 = vsel %vm411, %v1287, 0
        %v1372 = vsel %vm411, %v1288, 0
        %v1375 = vsel %vm411, %v1289, 0
        %v1378 = vsel %vm411, %v1290, 0
        %v1381 = vsel %vm411, %v1291, 0
        %v1384 = vsel %vm411, %v1292, 0
        %v1387 = vsel %vm411, %v1293, 0
        %1389 = vmatprep.subr.bf16.mxu0 0
        %1390 = vmatpush1.bf16.msra.mxu0 %v1313
        %1391 = vmatprep.subr.bf16.mxu0 0
        %1392 = vmatpush1.bf16.msra.mxu0 %v1314
        %1393 = vmatprep.subr.bf16.mxu0 0
        %1394 = vmatpush1.bf16.msra.mxu0 0
        %1395 = vmatprep.subr.bf16.mxu0 0
        %1396 = vmatpush1.bf16.msra.mxu0 0
        %1397 = vmatprep.subr.bf16.mxu0 0
        %1398 = vmatpush1.bf16.msra.mxu0 0
        %1399 = vmatprep.subr.bf16.mxu0 0
        %1400 = vmatpush1.bf16.msra.mxu0 0
        %1401 = vmatprep.subr.bf16.mxu0 0
        %1402 = vmatpush1.bf16.msra.mxu0 0
        %1403 = vmatprep.subr.bf16.mxu0 0
        %1404 = vmatpush1.bf16.msra.mxu0 0
        %1405 = vmatprep.subr.bf16.mxu0 0
        %1406 = vmatpush1.bf16.msra.mxu0 0
        %1407 = vmatprep.subr.bf16.mxu0 0
        %1408 = vmatpush1.bf16.msra.mxu0 0
        %1409 = vmatprep.subr.bf16.mxu0 0
        %1410 = vmatpush1.bf16.msra.mxu0 0
        %1411 = vmatprep.subr.bf16.mxu0 0
        %1412 = vmatpush1.bf16.msra.mxu0 0
        %1413 = vmatprep.subr.bf16.mxu0 0
        %1414 = vmatpush1.bf16.msra.mxu0 0
        %1415 = vmatprep.subr.bf16.mxu0 0
        %1416 = vmatpush1.bf16.msra.mxu0 0
        %1417 = vmatprep.subr.bf16.mxu0 0
        %1418 = vmatpush1.bf16.msra.mxu0 0
        %1419 = vmatprep.subr.bf16.mxu0 0
        %1420 = vmatpush1.bf16.msra.mxu0 0
        %1421 = vmatprep.mubr.bf16.mxu0 0
        %1422 = vmatmul.mubr.bf16.gmra.mrb[0].mxu0 %v1318
        %v1423 = vpop.f32.mrb[0].mxu0
        %v1424 = vadd.f32 %v1303, %v1423
        %v1425 = vpop.f32.mrb[0].mxu0
        %v1426 = vpop.f32.mrb[0].mxu0
        %v1427 = vadd.f32 %v1303, %v1426
        %v1428 = vpop.f32.mrb[0].mxu0
        %1429 = vmatprep.mubr.bf16.mxu0 0
        %1430 = vmatmul.mubr.bf16.gmra.mrb[0].mxu0 %v1321
        %v1431 = vpop.f32.mrb[0].mxu0
        %v1432 = vadd.f32 %v1303, %v1431
        %v1433 = vpop.f32.mrb[0].mxu0
        %v1434 = vpop.f32.mrb[0].mxu0
        %v1435 = vadd.f32 %v1303, %v1434
        %v1436 = vpop.f32.mrb[0].mxu0
        %1437 = vmatprep.mubr.bf16.mxu0 0
        %1438 = vmatmul.mubr.bf16.gmra.mrb[0].mxu0 %v1324
        %v1439 = vpop.f32.mrb[0].mxu0
        %v1440 = vadd.f32 %v1303, %v1439
        %v1441 = vpop.f32.mrb[0].mxu0
        %v1442 = vpop.f32.mrb[0].mxu0
        %v1443 = vadd.f32 %v1303, %v1442
        %v1444 = vpop.f32.mrb[0].mxu0
        %1445 = vmatprep.mubr.bf16.mxu0 0
        %1446 = vmatmul.mubr.bf16.gmra.mrb[0].mxu0 %v1327
        %v1447 = vpop.f32.mrb[0].mxu0
        %v1448 = vadd.f32 %v1303, %v1447
        %v1449 = vpop.f32.mrb[0].mxu0
        %v1450 = vpop.f32.mrb[0].mxu0
        %v1451 = vadd.f32 %v1303, %v1450
        %v1452 = vpop.f32.mrb[0].mxu0
        %1453 = vmatprep.mubr.bf16.mxu0 0
        %1454 = vmatmul.mubr.bf16.gmra.mrb[0].mxu0 %v1330
        %v1455 = vpop.f32.mrb[0].mxu0
        %v1456 = vadd.f32 %v1303, %v1455
        %v1457 = vpop.f32.mrb[0].mxu0
        %v1458 = vpop.f32.mrb[0].mxu0
        %v1459 = vadd.f32 %v1303, %v1458
        %v1460 = vpop.f32.mrb[0].mxu0
        %1461 = vmatprep.mubr.bf16.mxu0 0
        %1462 = vmatmul.mubr.bf16.gmra.mrb[0].mxu0 %v1333
        %v1463 = vpop.f32.mrb[0].mxu0
        %v1464 = vadd.f32 %v1303, %v1463
        %v1465 = vpop.f32.mrb[0].mxu0
        %v1466 = vpop.f32.mrb[0].mxu0
        %v1467 = vadd.f32 %v1303, %v1466
        %v1468 = vpop.f32.mrb[0].mxu0
        %1469 = vmatprep.mubr.bf16.mxu0 0
        %1470 = vmatmul.mubr.bf16.gmra.mrb[0].mxu0 %v1336
        %v1471 = vpop.f32.mrb[0].mxu0
        %v1472 = vadd.f32 %v1303, %v1471
        %v1473 = vpop.f32.mrb[0].mxu0
        %v1474 = vpop.f32.mrb[0].mxu0
        %v1475 = vadd.f32 %v1303, %v1474
        %v1476 = vpop.f32.mrb[0].mxu0
        %1477 = vmatprep.mubr.bf16.mxu0 0
        %1478 = vmatmul.mubr.bf16.gmra.mrb[0].mxu0 %v1339
        %v1479 = vpop.f32.mrb[0].mxu0
        %v1480 = vadd.f32 %v1303, %v1479
        %v1481 = vpop.f32.mrb[0].mxu0
        %v1482 = vpop.f32.mrb[0].mxu0
        %v1483 = vadd.f32 %v1303, %v1482
        %v1484 = vpop.f32.mrb[0].mxu0
        %1485 = vmatprep.mubr.bf16.mxu0 0
        %1486 = vmatmul.mubr.bf16.gmra.mrb[0].mxu0 %v1342
        %v1487 = vpop.f32.mrb[0].mxu0
        %v1488 = vadd.f32 %v1303, %v1487
        %v1489 = vpop.f32.mrb[0].mxu0
        %v1490 = vpop.f32.mrb[0].mxu0
        %v1491 = vadd.f32 %v1303, %v1490
        %v1492 = vpop.f32.mrb[0].mxu0
        %1493 = vmatprep.mubr.bf16.mxu0 0
        %1494 = vmatmul.mubr.bf16.gmra.mrb[0].mxu0 %v1345
        %v1495 = vpop.f32.mrb[0].mxu0
        %v1496 = vadd.f32 %v1303, %v1495
        %v1497 = vpop.f32.mrb[0].mxu0
        %v1498 = vpop.f32.mrb[0].mxu0
        %v1499 = vadd.f32 %v1303, %v1498
        %v1500 = vpop.f32.mrb[0].mxu0
        %1501 = vmatprep.mubr.bf16.mxu0 0
        %1502 = vmatmul.mubr.bf16.gmra.mrb[0].mxu0 %v1348
        %v1503 = vpop.f32.mrb[0].mxu0
        %v1504 = vadd.f32 %v1303, %v1503
        %v1505 = vpop.f32.mrb[0].mxu0
        %v1506 = vpop.f32.mrb[0].mxu0
        %v1507 = vadd.f32 %v1303, %v1506
        %v1508 = vpop.f32.mrb[0].mxu0
        %1509 = vmatprep.mubr.bf16.mxu0 0
        %1510 = vmatmul.mubr.bf16.gmra.mrb[0].mxu0 %v1351
        %v1511 = vpop.f32.mrb[0].mxu0
        %v1512 = vadd.f32 %v1303, %v1511
        %v1513 = vpop.f32.mrb[0].mxu0
        %v1514 = vpop.f32.mrb[0].mxu0
        %v1515 = vadd.f32 %v1303, %v1514
        %v1516 = vpop.f32.mrb[0].mxu0
        %1517 = vmatprep.mubr.bf16.mxu0 0
        %1518 = vmatmul.mubr.bf16.gmra.mrb[0].mxu0 %v1354
        %v1519 = vpop.f32.mrb[0].mxu0
        %v1520 = vadd.f32 %v1303, %v1519
        %v1521 = vpop.f32.mrb[0].mxu0
        %v1522 = vpop.f32.mrb[0].mxu0
        %v1523 = vadd.f32 %v1303, %v1522
        %v1524 = vpop.f32.mrb[0].mxu0
        %1525 = vmatprep.mubr.bf16.mxu0 0
        %1526 = vmatmul.mubr.bf16.gmra.mrb[0].mxu0 %v1357
        %v1527 = vpop.f32.mrb[0].mxu0
        %v1528 = vadd.f32 %v1303, %v1527
        %v1529 = vpop.f32.mrb[0].mxu0
        %v1530 = vpop.f32.mrb[0].mxu0
        %v1531 = vadd.f32 %v1303, %v1530
        %v1532 = vpop.f32.mrb[0].mxu0
        %1533 = vmatprep.mubr.bf16.mxu0 0
        %1534 = vmatmul.mubr.bf16.gmra.mrb[0].mxu0 %v1360
        %v1535 = vpop.f32.mrb[0].mxu0
        %v1536 = vadd.f32 %v1303, %v1535
        %v1537 = vpop.f32.mrb[0].mxu0
        %v1538 = vpop.f32.mrb[0].mxu0
        %v1539 = vadd.f32 %v1303, %v1538
        %v1540 = vpop.f32.mrb[0].mxu0
        %1541 = vmatprep.mubr.bf16.mxu0 0
        %1542 = vmatmul.mubr.bf16.gmra.mrb[0].mxu0 %v1363
        %v1543 = vpop.f32.mrb[0].mxu0
        %v1544 = vadd.f32 %v1303, %v1543
        %v1545 = vpop.f32.mrb[0].mxu0
        %v1546 = vpop.f32.mrb[0].mxu0
        %v1547 = vadd.f32 %v1303, %v1546
        %v1548 = vpop.f32.mrb[0].mxu0
        %1549 = vmatprep.mubr.bf16.mxu0 0
        %1550 = vmatmul.mubr.bf16.gmra.mrb[0].mxu0 %v1366
        %v1551 = vpop.f32.mrb[0].mxu0
        %v1552 = vadd.f32 %v1303, %v1551
        %v1553 = vpop.f32.mrb[0].mxu0
        %v1554 = vpop.f32.mrb[0].mxu0
        %v1555 = vadd.f32 %v1303, %v1554
        %v1556 = vpop.f32.mrb[0].mxu0
        %1557 = vmatprep.mubr.bf16.mxu0 0
        %1558 = vmatmul.mubr.bf16.gmra.mrb[0].mxu0 %v1369
        %v1559 = vpop.f32.mrb[0].mxu0
        %v1560 = vadd.f32 %v1303, %v1559
        %v1561 = vpop.f32.mrb[0].mxu0
        %v1562 = vpop.f32.mrb[0].mxu0
        %v1563 = vadd.f32 %v1303, %v1562
        %v1564 = vpop.f32.mrb[0].mxu0
        %1565 = vmatprep.mubr.bf16.mxu0 0
        %1566 = vmatmul.mubr.bf16.gmra.mrb[0].mxu0 %v1372
        %v1567 = vpop.f32.mrb[0].mxu0
        %v1568 = vadd.f32 %v1303, %v1567
        %v1569 = vpop.f32.mrb[0].mxu0
        %v1570 = vpop.f32.mrb[0].mxu0
        %v1571 = vadd.f32 %v1303, %v1570
        %v1572 = vpop.f32.mrb[0].mxu0
        %1573 = vmatprep.mubr.bf16.mxu0 0
        %1574 = vmatmul.mubr.bf16.gmra.mrb[0].mxu0 %v1375
        %v1575 = vpop.f32.mrb[0].mxu0
        %v1576 = vadd.f32 %v1303, %v1575
        %v1577 = vpop.f32.mrb[0].mxu0
        %v1578 = vpop.f32.mrb[0].mxu0
        %v1579 = vadd.f32 %v1303, %v1578
        %v1580 = vpop.f32.mrb[0].mxu0
        %1581 = vmatprep.mubr.bf16.mxu0 0
        %1582 = vmatmul.mubr.bf16.gmra.mrb[0].mxu0 %v1378
        %v1583 = vpop.f32.mrb[0].mxu0
        %v1584 = vadd.f32 %v1303, %v1583
        %v1585 = vpop.f32.mrb[0].mxu0
        %v1586 = vpop.f32.mrb[0].mxu0
        %v1587 = vadd.f32 %v1303, %v1586
        %v1588 = vpop.f32.mrb[0].mxu0
        %1589 = vmatprep.mubr.bf16.mxu0 0
        %1590 = vmatmul.mubr.bf16.gmra.mrb[0].mxu0 %v1381
        %v1591 = vpop.f32.mrb[0].mxu0
        %v1592 = vadd.f32 %v1303, %v1591
        %v1593 = vpop.f32.mrb[0].mxu0
        %v1594 = vpop.f32.mrb[0].mxu0
        %v1595 = vadd.f32 %v1303, %v1594
        %v1596 = vpop.f32.mrb[0].mxu0
        %1597 = vmatprep.mubr.bf16.mxu0 0
        %1598 = vmatmul.mubr.bf16.gmra.mrb[0].mxu0 %v1384
        %v1599 = vpop.f32.mrb[0].mxu0
        %v1600 = vadd.f32 %v1303, %v1599
        %v1601 = vpop.f32.mrb[0].mxu0
        %v1602 = vpop.f32.mrb[0].mxu0
        %v1603 = vadd.f32 %v1303, %v1602
        %v1604 = vpop.f32.mrb[0].mxu0
        %1605 = vmatprep.mubr.bf16.mxu0 0
        %1606 = vmatmul.mubr.bf16.gmra.mrb[0].mxu0 %v1387
        %v1607 = vpop.f32.mrb[0].mxu0
        %v1608 = vadd.f32 %v1303, %v1607
        %v1609 = vpop.f32.mrb[0].mxu0
        %v1610 = vpop.f32.mrb[0].mxu0
        %v1611 = vadd.f32 %v1303, %v1610
        %v1612 = vpop.f32.mrb[0].mxu0
        %1613 = vdwg.mxu0
        %v1614 = vpack.c.bf16 %v1427, %v1424
        %v1615 = vpack.c.bf16 %v1435, %v1432
        %v1616 = vpack.c.bf16 %v1443, %v1440
        %v1617 = vpack.c.bf16 %v1451, %v1448
        %v1618 = vpack.c.bf16 %v1459, %v1456
        %v1619 = vpack.c.bf16 %v1467, %v1464
        %v1620 = vpack.c.bf16 %v1475, %v1472
        %v1621 = vpack.c.bf16 %v1483, %v1480
        %v1622 = vpack.c.bf16 %v1491, %v1488
        %v1623 = vpack.c.bf16 %v1499, %v1496
        %v1624 = vpack.c.bf16 %v1507, %v1504
        %v1625 = vpack.c.bf16 %v1515, %v1512
        %v1626 = vpack.c.bf16 %v1523, %v1520
        %v1627 = vpack.c.bf16 %v1531, %v1528
        %v1628 = vpack.c.bf16 %v1539, %v1536
        %v1629 = vpack.c.bf16 %v1547, %v1544
        %v1630 = vpack.c.bf16 %v1555, %v1552
        %v1631 = vpack.c.bf16 %v1563, %v1560
        %v1632 = vpack.c.bf16 %v1571, %v1568
        %v1633 = vpack.c.bf16 %v1579, %v1576
        %v1634 = vpack.c.bf16 %v1587, %v1584
        %v1635 = vpack.c.bf16 %v1595, %v1592
        %v1636 = vpack.c.bf16 %v1603, %v1600
        %v1637 = vpack.c.bf16 %v1611, %v1608
        %1644 = vrot.lane.b32.xlu0 %v1614, 96
        %v1645 = vpop.permute.xlu0 %1644
        %1646 = vrot.lane.b32.xlu0 %v1615, 96
        %v1647 = vpop.permute.xlu0 %1646
        %1648 = vrot.lane.b32.xlu0 %v1616, 96
        %v1649 = vpop.permute.xlu0 %1648
        %1650 = vrot.lane.b32.xlu0 %v1617, 96
        %v1651 = vpop.permute.xlu0 %1650
        %1652 = vrot.lane.b32.xlu0 %v1618, 96
        %v1653 = vpop.permute.xlu0 %1652
        %1654 = vrot.lane.b32.xlu0 %v1619, 96
        %v1655 = vpop.permute.xlu0 %1654
        %v1657 = vsel %vm411, %v1614, 0
        %v1660 = vsel %vm411, %v1615, 0
        %v1663 = vsel %vm411, %v1616, 0
        %v1666 = vsel %vm411, %v1617, 0
        %v1669 = vsel %vm411, %v1618, 0
        %v1672 = vsel %vm411, %v1619, 0
        %v1675 = vsel %vm411, %v1645, 0
        %v1678 = vsel %vm411, %v1647, 0
        %v1681 = vsel %vm411, %v1649, 0
        %v1684 = vsel %vm411, %v1651, 0
        %v1687 = vsel %vm411, %v1653, 0
        %v1690 = vsel %vm411, %v1655, 0
        %1692 = vmatprep.subr.bf16.mxu0 0
        %1693 = vmatpush1.bf16.xpose.msra.mxu0 %v1675
        %1694 = vmatprep.subr.bf16.mxu0 0
        %1695 = vmatpush1.bf16.xpose.msra.mxu0 %v1678
        %1696 = vmatprep.subr.bf16.mxu0 0
        %1697 = vmatpush1.bf16.xpose.msra.mxu0 %v1681
        %1698 = vmatprep.subr.bf16.mxu0 0
        %1699 = vmatpush1.bf16.xpose.msra.mxu0 %v1684
        %1700 = vmatprep.subr.bf16.mxu0 0
        %1701 = vmatpush1.bf16.xpose.msra.mxu0 %v1687
        %1702 = vmatprep.subr.bf16.mxu0 0
        %1703 = vmatpush1.bf16.xpose.msra.mxu0 %v1690
        %1704 = vmatprep.subr.bf16.mxu0 0
        %1705 = vmatpush1.bf16.xpose.msra.mxu0 0
        %1706 = vmatprep.subr.bf16.mxu0 0
        %1707 = vmatpush1.bf16.xpose.msra.mxu0 0
        %1708 = vmatprep.subr.bf16.mxu0 0
        %1709 = vmatpush1.bf16.xpose.msra.mxu0 0
        %1710 = vmatprep.subr.bf16.mxu0 0
        %1711 = vmatpush1.bf16.xpose.msra.mxu0 0
        %1712 = vmatprep.subr.bf16.mxu0 0
        %1713 = vmatpush1.bf16.xpose.msra.mxu0 0
        %1714 = vmatprep.subr.bf16.mxu0 0
        %1715 = vmatpush1.bf16.xpose.msra.mxu0 0
        %1716 = vmatprep.subr.bf16.mxu0 0
        %1717 = vmatpush1.bf16.xpose.msra.mxu0 0
        %1718 = vmatprep.subr.bf16.mxu0 0
        %1719 = vmatpush1.bf16.xpose.msra.mxu0 0
        %1720 = vmatprep.subr.bf16.mxu0 0
        %1721 = vmatpush1.bf16.xpose.msra.mxu0 0
        %1722 = vmatprep.subr.bf16.mxu0 0
        %1723 = vmatpush1.bf16.xpose.msra.mxu0 0
        %1724 = vmatprep.mubr.bf16.mxu0 0
        %1725 = vmatmul.mubr.bf16.gmra.mrb[0].mxu0 %v1657
        %v1726 = vpop.f32.mrb[0].mxu0
        %v1727 = vadd.f32 %v1244, %v1726
        %v1728 = vpop.f32.mrb[0].mxu0
        %v1729 = vpop.f32.mrb[0].mxu0
        %v1730 = vadd.f32 %v1244, %v1729
        %v1731 = vpop.f32.mrb[0].mxu0
        %1732 = vmatprep.mubr.bf16.mxu0 0
        %1733 = vmatmul.mubr.bf16.gmra.mrb[0].mxu0 %v1660
        %v1734 = vpop.f32.mrb[0].mxu0
        %v1735 = vadd.f32 %v1244, %v1734
        %v1736 = vpop.f32.mrb[0].mxu0
        %v1737 = vpop.f32.mrb[0].mxu0
        %v1738 = vadd.f32 %v1244, %v1737
        %v1739 = vpop.f32.mrb[0].mxu0
        %1740 = vmatprep.mubr.bf16.mxu0 0
        %1741 = vmatmul.mubr.bf16.gmra.mrb[0].mxu0 %v1663
        %v1742 = vpop.f32.mrb[0].mxu0
        %v1743 = vadd.f32 %v1244, %v1742
        %v1744 = vpop.f32.mrb[0].mxu0
        %v1745 = vpop.f32.mrb[0].mxu0
        %v1746 = vadd.f32 %v1244, %v1745
        %v1747 = vpop.f32.mrb[0].mxu0
        %1748 = vmatprep.mubr.bf16.mxu0 0
        %1749 = vmatmul.mubr.bf16.gmra.mrb[0].mxu0 %v1666
        %v1750 = vpop.f32.mrb[0].mxu0
        %v1751 = vadd.f32 %v1244, %v1750
        %v1752 = vpop.f32.mrb[0].mxu0
        %v1753 = vpop.f32.mrb[0].mxu0
        %v1754 = vadd.f32 %v1244, %v1753
        %v1755 = vpop.f32.mrb[0].mxu0
        %1756 = vmatprep.mubr.bf16.mxu0 0
        %1757 = vmatmul.mubr.bf16.gmra.mrb[0].mxu0 %v1669
        %v1758 = vpop.f32.mrb[0].mxu0
        %v1759 = vadd.f32 %v1244, %v1758
        %v1760 = vpop.f32.mrb[0].mxu0
        %v1761 = vpop.f32.mrb[0].mxu0
        %v1762 = vadd.f32 %v1244, %v1761
        %v1763 = vpop.f32.mrb[0].mxu0
        %1764 = vmatprep.mubr.bf16.mxu0 0
        %1765 = vmatmul.mubr.bf16.gmra.mrb[0].mxu0 %v1672
        %v1766 = vpop.f32.mrb[0].mxu0
        %v1767 = vadd.f32 %v1244, %v1766
        %v1768 = vpop.f32.mrb[0].mxu0
        %v1769 = vpop.f32.mrb[0].mxu0
        %v1770 = vadd.f32 %v1244, %v1769
        %v1771 = vpop.f32.mrb[0].mxu0
        %1772 = vdwg.mxu0
        %vm1773 = vcmask 785408
        %v1774 = vsel %vm1773, %v1727, -inf
        %1775 = vmax.xlane.f32.xlu0 %v1774
        %v1776 = vpop.xlane.xlu0 %1775
        %v1777 = vsel %vm1773, %v1730, -inf
        %1778 = vmax.xlane.f32.xlu0 %v1777
        %v1779 = vpop.xlane.xlu0 %1778
        %v1780 = vsel %vm1773, %v1735, -inf
        %1781 = vmax.xlane.f32.xlu0 %v1780
        %v1782 = vpop.xlane.xlu0 %1781
        %v1783 = vsel %vm1773, %v1738, -inf
        %1784 = vmax.xlane.f32.xlu0 %v1783
        %v1785 = vpop.xlane.xlu0 %1784
        %v1786 = vsel %vm1773, %v1743, -inf
        %1787 = vmax.xlane.f32.xlu0 %v1786
        %v1788 = vpop.xlane.xlu0 %1787
        %v1789 = vsel %vm1773, %v1746, -inf
        %1790 = vmax.xlane.f32.xlu0 %v1789
        %v1791 = vpop.xlane.xlu0 %1790
        %v1792 = vsel %vm1773, %v1751, -inf
        %1793 = vmax.xlane.f32.xlu0 %v1792
        %v1794 = vpop.xlane.xlu0 %1793
        %v1795 = vsel %vm1773, %v1754, -inf
        %1796 = vmax.xlane.f32.xlu0 %v1795
        %v1797 = vpop.xlane.xlu0 %1796
        %v1798 = vsel %vm1773, %v1759, -inf
        %1799 = vmax.xlane.f32.xlu0 %v1798
        %v1800 = vpop.xlane.xlu0 %1799
        %v1801 = vsel %vm1773, %v1762, -inf
        %1802 = vmax.xlane.f32.xlu0 %v1801
        %v1803 = vpop.xlane.xlu0 %1802
        %v1804 = vsel %vm1773, %v1767, -inf
        %1805 = vmax.xlane.f32.xlu0 %v1804
        %v1806 = vpop.xlane.xlu0 %1805
        %v1807 = vsel %vm1773, %v1770, -inf
        %1808 = vmax.xlane.f32.xlu0 %v1807
        %v1809 = vpop.xlane.xlu0 %1808
        %v1810 = vsub.f32 %v1727, %v1776
        %v1811 = vsub.f32 %v1730, %v1779
        %v1812 = vsub.f32 %v1735, %v1782
        %v1813 = vsub.f32 %v1738, %v1785
        %v1814 = vsub.f32 %v1743, %v1788
        %v1815 = vsub.f32 %v1746, %v1791
        %v1816 = vsub.f32 %v1751, %v1794
        %v1817 = vsub.f32 %v1754, %v1797
        %v1818 = vsub.f32 %v1759, %v1800
        %v1819 = vsub.f32 %v1762, %v1803
        %v1820 = vsub.f32 %v1767, %v1806
        %v1821 = vsub.f32 %v1770, %v1809
        %v1822 = vmul.f32 %v1810, 1.442695
        %v1823 = vpow.pop %v1822
        %v1824 = vmul.f32 %v1811, 1.442695
        %v1825 = vpow.pop %v1824
        %v1826 = vmul.f32 %v1812, 1.442695
        %v1827 = vpow.pop %v1826
        %v1828 = vmul.f32 %v1813, 1.442695
        %v1829 = vpow.pop %v1828
        %v1830 = vmul.f32 %v1814, 1.442695
        %v1831 = vpow.pop %v1830
        %v1832 = vmul.f32 %v1815, 1.442695
        %v1833 = vpow.pop %v1832
        %v1834 = vmul.f32 %v1816, 1.442695
        %v1835 = vpow.pop %v1834
        %v1836 = vmul.f32 %v1817, 1.442695
        %v1837 = vpow.pop %v1836
        %v1838 = vmul.f32 %v1818, 1.442695
        %v1839 = vpow.pop %v1838
        %v1840 = vmul.f32 %v1819, 1.442695
        %v1841 = vpow.pop %v1840
        %v1842 = vmul.f32 %v1820, 1.442695
        %v1843 = vpow.pop %v1842
        %v1844 = vmul.f32 %v1821, 1.442695
        %v1845 = vpow.pop %v1844
        %v1846 = vsel %vm1773, %v1823, 0.0
        %1847 = vadd.xlane.f32.xlu0 %v1846
        %v1848 = vpop.xlane.xlu0 %1847
        %v1849 = vsel %vm1773, %v1825, 0.0
        %1850 = vadd.xlane.f32.xlu0 %v1849
        %v1851 = vpop.xlane.xlu0 %1850
        %v1852 = vsel %vm1773, %v1827, 0.0
        %1853 = vadd.xlane.f32.xlu0 %v1852
        %v1854 = vpop.xlane.xlu0 %1853
        %v1855 = vsel %vm1773, %v1829, 0.0
        %1856 = vadd.xlane.f32.xlu0 %v1855
        %v1857 = vpop.xlane.xlu0 %1856
        %v1858 = vsel %vm1773, %v1831, 0.0
        %1859 = vadd.xlane.f32.xlu0 %v1858
        %v1860 = vpop.xlane.xlu0 %1859
        %v1861 = vsel %vm1773, %v1833, 0.0
        %1862 = vadd.xlane.f32.xlu0 %v1861
        %v1863 = vpop.xlane.xlu0 %1862
        %v1864 = vsel %vm1773, %v1835, 0.0
        %1865 = vadd.xlane.f32.xlu0 %v1864
        %v1866 = vpop.xlane.xlu0 %1865
        %v1867 = vsel %vm1773, %v1837, 0.0
        %1868 = vadd.xlane.f32.xlu0 %v1867
        %v1869 = vpop.xlane.xlu0 %1868
        %v1870 = vsel %vm1773, %v1839, 0.0
        %1871 = vadd.xlane.f32.xlu0 %v1870
        %v1872 = vpop.xlane.xlu0 %1871
        %v1873 = vsel %vm1773, %v1841, 0.0
        %1874 = vadd.xlane.f32.xlu0 %v1873
        %v1875 = vpop.xlane.xlu0 %1874
        %v1876 = vsel %vm1773, %v1843, 0.0
        %1877 = vadd.xlane.f32.xlu0 %v1876
        %v1878 = vpop.xlane.xlu0 %1877
        %v1879 = vsel %vm1773, %v1845, 0.0
        %1880 = vadd.xlane.f32.xlu0 %v1879
        %v1881 = vpop.xlane.xlu0 %1880
        %v1882 = vrcp.pop %v1848
        %v1883 = vrcp.pop %v1851
        %v1884 = vrcp.pop %v1854
        %v1885 = vrcp.pop %v1857
        %v1886 = vrcp.pop %v1860
        %v1887 = vrcp.pop %v1863
        %v1888 = vrcp.pop %v1866
        %v1889 = vrcp.pop %v1869
        %v1890 = vrcp.pop %v1872
        %v1891 = vrcp.pop %v1875
        %v1892 = vrcp.pop %v1878
        %v1893 = vrcp.pop %v1881
        %v1894 = vmul.f32 %v1823, %v1882
        %v1895 = vmul.f32 %v1825, %v1883
        %v1896 = vmul.f32 %v1827, %v1884
        %v1897 = vmul.f32 %v1829, %v1885
        %v1898 = vmul.f32 %v1831, %v1886
        %v1899 = vmul.f32 %v1833, %v1887
        %v1900 = vmul.f32 %v1835, %v1888
        %v1901 = vmul.f32 %v1837, %v1889
        %v1902 = vmul.f32 %v1839, %v1890
        %v1903 = vmul.f32 %v1841, %v1891
        %v1904 = vmul.f32 %v1843, %v1892
        %v1905 = vmul.f32 %v1845, %v1893
        %v1906 = vpack.c.bf16 %v1895, %v1894
        %v1907 = vpack.c.bf16 %v1897, %v1896
        %v1908 = vpack.c.bf16 %v1899, %v1898
        %v1909 = vpack.c.bf16 %v1901, %v1900
        %v1910 = vpack.c.bf16 %v1903, %v1902
        %v1911 = vpack.c.bf16 %v1905, %v1904
        %1912 = vrot.lane.b32.xlu0 %v1614, 64
        %v1913 = vpop.permute.xlu0 %1912
        %1914 = vrot.lane.b32.xlu0 %v1615, 64
        %v1915 = vpop.permute.xlu0 %1914
        %1916 = vrot.lane.b32.xlu0 %v1616, 64
        %v1917 = vpop.permute.xlu0 %1916
        %1918 = vrot.lane.b32.xlu0 %v1617, 64
        %v1919 = vpop.permute.xlu0 %1918
        %1920 = vrot.lane.b32.xlu0 %v1618, 64
        %v1921 = vpop.permute.xlu0 %1920
        %1922 = vrot.lane.b32.xlu0 %v1619, 64
        %v1923 = vpop.permute.xlu0 %1922
        %v1931 = vsel %vm1773, %v1906, 0
        %v1934 = vsel %vm1773, %v1907, 0
        %v1937 = vsel %vm1773, %v1908, 0
        %v1940 = vsel %vm1773, %v1909, 0
        %v1943 = vsel %vm1773, %v1910, 0
        %v1946 = vsel %vm1773, %v1911, 0
        %1948 = vmatprep.subr.bf16.mxu0 0
        %1949 = vmatpush1.bf16.msra.mxu0 %v1913
        %1950 = vmatprep.subr.bf16.mxu0 0
        %1951 = vmatpush1.bf16.msra.mxu0 %v1915
        %1952 = vmatprep.subr.bf16.mxu0 0
        %1953 = vmatpush1.bf16.msra.mxu0 %v1917
        %1954 = vmatprep.subr.bf16.mxu0 0
        %1955 = vmatpush1.bf16.msra.mxu0 %v1919
        %1956 = vmatprep.subr.bf16.mxu0 0
        %1957 = vmatpush1.bf16.msra.mxu0 %v1921
        %1958 = vmatprep.subr.bf16.mxu0 0
        %1959 = vmatpush1.bf16.msra.mxu0 %v1923
        %1960 = vmatprep.subr.bf16.mxu0 0
        %1961 = vmatpush1.bf16.msra.mxu0 0
        %1962 = vmatprep.subr.bf16.mxu0 0
        %1963 = vmatpush1.bf16.msra.mxu0 0
        %1964 = vmatprep.subr.bf16.mxu0 0
        %1965 = vmatpush1.bf16.msra.mxu0 0
        %1966 = vmatprep.subr.bf16.mxu0 0
        %1967 = vmatpush1.bf16.msra.mxu0 0
        %1968 = vmatprep.subr.bf16.mxu0 0
        %1969 = vmatpush1.bf16.msra.mxu0 0
        %1970 = vmatprep.subr.bf16.mxu0 0
        %1971 = vmatpush1.bf16.msra.mxu0 0
        %1972 = vmatprep.subr.bf16.mxu0 0
        %1973 = vmatpush1.bf16.msra.mxu0 0
        %1974 = vmatprep.subr.bf16.mxu0 0
        %1975 = vmatpush1.bf16.msra.mxu0 0
        %1976 = vmatprep.subr.bf16.mxu0 0
        %1977 = vmatpush1.bf16.msra.mxu0 0
        %1978 = vmatprep.subr.bf16.mxu0 0
        %1979 = vmatpush1.bf16.msra.mxu0 0
        %1980 = vmatprep.mubr.bf16.mxu0 0
        %1981 = vmatmul.mubr.bf16.gmra.mrb[0].mxu0 %v1931
        %v1982 = vpop.f32.mrb[0].mxu0
        %v1983 = vadd.f32 0.0, %v1982
        %v1984 = vpop.f32.mrb[0].mxu0
        %v1985 = vpop.f32.mrb[0].mxu0
        %v1986 = vadd.f32 0.0, %v1985
        %v1987 = vpop.f32.mrb[0].mxu0
        %1988 = vmatprep.mubr.bf16.mxu0 0
        %1989 = vmatmul.mubr.bf16.gmra.mrb[0].mxu0 %v1934
        %v1990 = vpop.f32.mrb[0].mxu0
        %v1991 = vadd.f32 0.0, %v1990
        %v1992 = vpop.f32.mrb[0].mxu0
        %v1993 = vpop.f32.mrb[0].mxu0
        %v1994 = vadd.f32 0.0, %v1993
        %v1995 = vpop.f32.mrb[0].mxu0
        %1996 = vmatprep.mubr.bf16.mxu0 0
        %1997 = vmatmul.mubr.bf16.gmra.mrb[0].mxu0 %v1937
        %v1998 = vpop.f32.mrb[0].mxu0
        %v1999 = vadd.f32 0.0, %v1998
        %v2000 = vpop.f32.mrb[0].mxu0
        %v2001 = vpop.f32.mrb[0].mxu0
        %v2002 = vadd.f32 0.0, %v2001
        %v2003 = vpop.f32.mrb[0].mxu0
        %2004 = vmatprep.mubr.bf16.mxu0 0
        %2005 = vmatmul.mubr.bf16.gmra.mrb[0].mxu0 %v1940
        %v2006 = vpop.f32.mrb[0].mxu0
        %v2007 = vadd.f32 0.0, %v2006
        %v2008 = vpop.f32.mrb[0].mxu0
        %v2009 = vpop.f32.mrb[0].mxu0
        %v2010 = vadd.f32 0.0, %v2009
        %v2011 = vpop.f32.mrb[0].mxu0
        %2012 = vmatprep.mubr.bf16.mxu0 0
        %2013 = vmatmul.mubr.bf16.gmra.mrb[0].mxu0 %v1943
        %v2014 = vpop.f32.mrb[0].mxu0
        %v2015 = vadd.f32 0.0, %v2014
        %v2016 = vpop.f32.mrb[0].mxu0
        %v2017 = vpop.f32.mrb[0].mxu0
        %v2018 = vadd.f32 0.0, %v2017
        %v2019 = vpop.f32.mrb[0].mxu0
        %2020 = vmatprep.mubr.bf16.mxu0 0
        %2021 = vmatmul.mubr.bf16.gmra.mrb[0].mxu0 %v1946
        %v2022 = vpop.f32.mrb[0].mxu0
        %v2023 = vadd.f32 0.0, %v2022
        %v2024 = vpop.f32.mrb[0].mxu0
        %v2025 = vpop.f32.mrb[0].mxu0
        %v2026 = vadd.f32 0.0, %v2025
        %v2027 = vpop.f32.mrb[0].mxu0
        %2028 = vdwg.mxu0
        %2035 = vrot.lane.b32.xlu0 %v1620, 96
        %v2036 = vpop.permute.xlu0 %2035
        %2037 = vrot.lane.b32.xlu0 %v1621, 96
        %v2038 = vpop.permute.xlu0 %2037
        %2039 = vrot.lane.b32.xlu0 %v1622, 96
        %v2040 = vpop.permute.xlu0 %2039
        %2041 = vrot.lane.b32.xlu0 %v1623, 96
        %v2042 = vpop.permute.xlu0 %2041
        %2043 = vrot.lane.b32.xlu0 %v1624, 96
        %v2044 = vpop.permute.xlu0 %2043
        %2045 = vrot.lane.b32.xlu0 %v1625, 96
        %v2046 = vpop.permute.xlu0 %2045
        %v2048 = vsel %vm411, %v1620, 0
        %v2051 = vsel %vm411, %v1621, 0
        %v2054 = vsel %vm411, %v1622, 0
        %v2057 = vsel %vm411, %v1623, 0
        %v2060 = vsel %vm411, %v1624, 0
        %v2063 = vsel %vm411, %v1625, 0
        %v2066 = vsel %vm411, %v2036, 0
        %v2069 = vsel %vm411, %v2038, 0
        %v2072 = vsel %vm411, %v2040, 0
        %v2075 = vsel %vm411, %v2042, 0
        %v2078 = vsel %vm411, %v2044, 0
        %v2081 = vsel %vm411, %v2046, 0
        %2083 = vmatprep.subr.bf16.mxu0 0
        %2084 = vmatpush1.bf16.xpose.msra.mxu0 %v2066
        %2085 = vmatprep.subr.bf16.mxu0 0
        %2086 = vmatpush1.bf16.xpose.msra.mxu0 %v2069
        %2087 = vmatprep.subr.bf16.mxu0 0
        %2088 = vmatpush1.bf16.xpose.msra.mxu0 %v2072
        %2089 = vmatprep.subr.bf16.mxu0 0
        %2090 = vmatpush1.bf16.xpose.msra.mxu0 %v2075
        %2091 = vmatprep.subr.bf16.mxu0 0
        %2092 = vmatpush1.bf16.xpose.msra.mxu0 %v2078
        %2093 = vmatprep.subr.bf16.mxu0 0
        %2094 = vmatpush1.bf16.xpose.msra.mxu0 %v2081
        %2095 = vmatprep.subr.bf16.mxu0 0
        %2096 = vmatpush1.bf16.xpose.msra.mxu0 0
        %2097 = vmatprep.subr.bf16.mxu0 0
        %2098 = vmatpush1.bf16.xpose.msra.mxu0 0
        %2099 = vmatprep.subr.bf16.mxu0 0
        %2100 = vmatpush1.bf16.xpose.msra.mxu0 0
        %2101 = vmatprep.subr.bf16.mxu0 0
        %2102 = vmatpush1.bf16.xpose.msra.mxu0 0
        %2103 = vmatprep.subr.bf16.mxu0 0
        %2104 = vmatpush1.bf16.xpose.msra.mxu0 0
        %2105 = vmatprep.subr.bf16.mxu0 0
        %2106 = vmatpush1.bf16.xpose.msra.mxu0 0
        %2107 = vmatprep.subr.bf16.mxu0 0
        %2108 = vmatpush1.bf16.xpose.msra.mxu0 0
        %2109 = vmatprep.subr.bf16.mxu0 0
        %2110 = vmatpush1.bf16.xpose.msra.mxu0 0
        %2111 = vmatprep.subr.bf16.mxu0 0
        %2112 = vmatpush1.bf16.xpose.msra.mxu0 0
        %2113 = vmatprep.subr.bf16.mxu0 0
        %2114 = vmatpush1.bf16.xpose.msra.mxu0 0
        %2115 = vmatprep.mubr.bf16.mxu0 0
        %2116 = vmatmul.mubr.bf16.gmra.mrb[0].mxu0 %v2048
        %v2117 = vpop.f32.mrb[0].mxu0
        %v2118 = vadd.f32 %v1244, %v2117
        %v2119 = vpop.f32.mrb[0].mxu0
        %v2120 = vpop.f32.mrb[0].mxu0
        %v2121 = vadd.f32 %v1244, %v2120
        %v2122 = vpop.f32.mrb[0].mxu0
        %2123 = vmatprep.mubr.bf16.mxu0 0
        %2124 = vmatmul.mubr.bf16.gmra.mrb[0].mxu0 %v2051
        %v2125 = vpop.f32.mrb[0].mxu0
        %v2126 = vadd.f32 %v1244, %v2125
        %v2127 = vpop.f32.mrb[0].mxu0
        %v2128 = vpop.f32.mrb[0].mxu0
        %v2129 = vadd.f32 %v1244, %v2128
        %v2130 = vpop.f32.mrb[0].mxu0
        %2131 = vmatprep.mubr.bf16.mxu0 0
        %2132 = vmatmul.mubr.bf16.gmra.mrb[0].mxu0 %v2054
        %v2133 = vpop.f32.mrb[0].mxu0
        %v2134 = vadd.f32 %v1244, %v2133
        %v2135 = vpop.f32.mrb[0].mxu0
        %v2136 = vpop.f32.mrb[0].mxu0
        %v2137 = vadd.f32 %v1244, %v2136
        %v2138 = vpop.f32.mrb[0].mxu0
        %2139 = vmatprep.mubr.bf16.mxu0 0
        %2140 = vmatmul.mubr.bf16.gmra.mrb[0].mxu0 %v2057
        %v2141 = vpop.f32.mrb[0].mxu0
        %v2142 = vadd.f32 %v1244, %v2141
        %v2143 = vpop.f32.mrb[0].mxu0
        %v2144 = vpop.f32.mrb[0].mxu0
        %v2145 = vadd.f32 %v1244, %v2144
        %v2146 = vpop.f32.mrb[0].mxu0
        %2147 = vmatprep.mubr.bf16.mxu0 0
        %2148 = vmatmul.mubr.bf16.gmra.mrb[0].mxu0 %v2060
        %v2149 = vpop.f32.mrb[0].mxu0
        %v2150 = vadd.f32 %v1244, %v2149
        %v2151 = vpop.f32.mrb[0].mxu0
        %v2152 = vpop.f32.mrb[0].mxu0
        %v2153 = vadd.f32 %v1244, %v2152
        %v2154 = vpop.f32.mrb[0].mxu0
        %2155 = vmatprep.mubr.bf16.mxu0 0
        %2156 = vmatmul.mubr.bf16.gmra.mrb[0].mxu0 %v2063
        %v2157 = vpop.f32.mrb[0].mxu0
        %v2158 = vadd.f32 %v1244, %v2157
        %v2159 = vpop.f32.mrb[0].mxu0
        %v2160 = vpop.f32.mrb[0].mxu0
        %v2161 = vadd.f32 %v1244, %v2160
        %v2162 = vpop.f32.mrb[0].mxu0
        %2163 = vdwg.mxu0
        %v2164 = vsel %vm1773, %v2118, -inf
        %2165 = vmax.xlane.f32.xlu0 %v2164
        %v2166 = vpop.xlane.xlu0 %2165
        %v2167 = vsel %vm1773, %v2121, -inf
        %2168 = vmax.xlane.f32.xlu0 %v2167
        %v2169 = vpop.xlane.xlu0 %2168
        %v2170 = vsel %vm1773, %v2126, -inf
        %2171 = vmax.xlane.f32.xlu0 %v2170
        %v2172 = vpop.xlane.xlu0 %2171
        %v2173 = vsel %vm1773, %v2129, -inf
        %2174 = vmax.xlane.f32.xlu0 %v2173
        %v2175 = vpop.xlane.xlu0 %2174
        %v2176 = vsel %vm1773, %v2134, -inf
        %2177 = vmax.xlane.f32.xlu0 %v2176
        %v2178 = vpop.xlane.xlu0 %2177
        %v2179 = vsel %vm1773, %v2137, -inf
        %2180 = vmax.xlane.f32.xlu0 %v2179
        %v2181 = vpop.xlane.xlu0 %2180
        %v2182 = vsel %vm1773, %v2142, -inf
        %2183 = vmax.xlane.f32.xlu0 %v2182
        %v2184 = vpop.xlane.xlu0 %2183
        %v2185 = vsel %vm1773, %v2145, -inf
        %2186 = vmax.xlane.f32.xlu0 %v2185
        %v2187 = vpop.xlane.xlu0 %2186
        %v2188 = vsel %vm1773, %v2150, -inf
        %2189 = vmax.xlane.f32.xlu0 %v2188
        %v2190 = vpop.xlane.xlu0 %2189
        %v2191 = vsel %vm1773, %v2153, -inf
        %2192 = vmax.xlane.f32.xlu0 %v2191
        %v2193 = vpop.xlane.xlu0 %2192
        %v2194 = vsel %vm1773, %v2158, -inf
        %2195 = vmax.xlane.f32.xlu0 %v2194
        %v2196 = vpop.xlane.xlu0 %2195
        %v2197 = vsel %vm1773, %v2161, -inf
        %2198 = vmax.xlane.f32.xlu0 %v2197
        %v2199 = vpop.xlane.xlu0 %2198
        %v2200 = vsub.f32 %v2118, %v2166
        %v2201 = vsub.f32 %v2121, %v2169
        %v2202 = vsub.f32 %v2126, %v2172
        %v2203 = vsub.f32 %v2129, %v2175
        %v2204 = vsub.f32 %v2134, %v2178
        %v2205 = vsub.f32 %v2137, %v2181
        %v2206 = vsub.f32 %v2142, %v2184
        %v2207 = vsub.f32 %v2145, %v2187
        %v2208 = vsub.f32 %v2150, %v2190
        %v2209 = vsub.f32 %v2153, %v2193
        %v2210 = vsub.f32 %v2158, %v2196
        %v2211 = vsub.f32 %v2161, %v2199
        %v2212 = vmul.f32 %v2200, 1.442695
        %v2213 = vpow.pop %v2212
        %v2214 = vmul.f32 %v2201, 1.442695
        %v2215 = vpow.pop %v2214
        %v2216 = vmul.f32 %v2202, 1.442695
        %v2217 = vpow.pop %v2216
        %v2218 = vmul.f32 %v2203, 1.442695
        %v2219 = vpow.pop %v2218
        %v2220 = vmul.f32 %v2204, 1.442695
        %v2221 = vpow.pop %v2220
        %v2222 = vmul.f32 %v2205, 1.442695
        %v2223 = vpow.pop %v2222
        %v2224 = vmul.f32 %v2206, 1.442695
        %v2225 = vpow.pop %v2224
        %v2226 = vmul.f32 %v2207, 1.442695
        %v2227 = vpow.pop %v2226
        %v2228 = vmul.f32 %v2208, 1.442695
        %v2229 = vpow.pop %v2228
        %v2230 = vmul.f32 %v2209, 1.442695
        %v2231 = vpow.pop %v2230
        %v2232 = vmul.f32 %v2210, 1.442695
        %v2233 = vpow.pop %v2232
        %v2234 = vmul.f32 %v2211, 1.442695
        %v2235 = vpow.pop %v2234
        %v2236 = vsel %vm1773, %v2213, 0.0
        %2237 = vadd.xlane.f32.xlu0 %v2236
        %v2238 = vpop.xlane.xlu0 %2237
        %v2239 = vsel %vm1773, %v2215, 0.0
        %2240 = vadd.xlane.f32.xlu0 %v2239
        %v2241 = vpop.xlane.xlu0 %2240
        %v2242 = vsel %vm1773, %v2217, 0.0
        %2243 = vadd.xlane.f32.xlu0 %v2242
        %v2244 = vpop.xlane.xlu0 %2243
        %v2245 = vsel %vm1773, %v2219, 0.0
        %2246 = vadd.xlane.f32.xlu0 %v2245
        %v2247 = vpop.xlane.xlu0 %2246
        %v2248 = vsel %vm1773, %v2221, 0.0
        %2249 = vadd.xlane.f32.xlu0 %v2248
        %v2250 = vpop.xlane.xlu0 %2249
        %v2251 = vsel %vm1773, %v2223, 0.0
        %2252 = vadd.xlane.f32.xlu0 %v2251
        %v2253 = vpop.xlane.xlu0 %2252
        %v2254 = vsel %vm1773, %v2225, 0.0
        %2255 = vadd.xlane.f32.xlu0 %v2254
        %v2256 = vpop.xlane.xlu0 %2255
        %v2257 = vsel %vm1773, %v2227, 0.0
        %2258 = vadd.xlane.f32.xlu0 %v2257
        %v2259 = vpop.xlane.xlu0 %2258
        %v2260 = vsel %vm1773, %v2229, 0.0
        %2261 = vadd.xlane.f32.xlu0 %v2260
        %v2262 = vpop.xlane.xlu0 %2261
        %v2263 = vsel %vm1773, %v2231, 0.0
        %2264 = vadd.xlane.f32.xlu0 %v2263
        %v2265 = vpop.xlane.xlu0 %2264
        %v2266 = vsel %vm1773, %v2233, 0.0
        %2267 = vadd.xlane.f32.xlu0 %v2266
        %v2268 = vpop.xlane.xlu0 %2267
        %v2269 = vsel %vm1773, %v2235, 0.0
        %2270 = vadd.xlane.f32.xlu0 %v2269
        %v2271 = vpop.xlane.xlu0 %2270
        %v2272 = vrcp.pop %v2238
        %v2273 = vrcp.pop %v2241
        %v2274 = vrcp.pop %v2244
        %v2275 = vrcp.pop %v2247
        %v2276 = vrcp.pop %v2250
        %v2277 = vrcp.pop %v2253
        %v2278 = vrcp.pop %v2256
        %v2279 = vrcp.pop %v2259
        %v2280 = vrcp.pop %v2262
        %v2281 = vrcp.pop %v2265
        %v2282 = vrcp.pop %v2268
        %v2283 = vrcp.pop %v2271
        %v2284 = vmul.f32 %v2213, %v2272
        %v2285 = vmul.f32 %v2215, %v2273
        %v2286 = vmul.f32 %v2217, %v2274
        %v2287 = vmul.f32 %v2219, %v2275
        %v2288 = vmul.f32 %v2221, %v2276
        %v2289 = vmul.f32 %v2223, %v2277
        %v2290 = vmul.f32 %v2225, %v2278
        %v2291 = vmul.f32 %v2227, %v2279
        %v2292 = vmul.f32 %v2229, %v2280
        %v2293 = vmul.f32 %v2231, %v2281
        %v2294 = vmul.f32 %v2233, %v2282
        %v2295 = vmul.f32 %v2235, %v2283
        %v2296 = vpack.c.bf16 %v2285, %v2284
        %v2297 = vpack.c.bf16 %v2287, %v2286
        %v2298 = vpack.c.bf16 %v2289, %v2288
        %v2299 = vpack.c.bf16 %v2291, %v2290
        %v2300 = vpack.c.bf16 %v2293, %v2292
        %v2301 = vpack.c.bf16 %v2295, %v2294
        %2302 = vrot.lane.b32.xlu0 %v1620, 64
        %v2303 = vpop.permute.xlu0 %2302
        %2304 = vrot.lane.b32.xlu0 %v1621, 64
        %v2305 = vpop.permute.xlu0 %2304
        %2306 = vrot.lane.b32.xlu0 %v1622, 64
        %v2307 = vpop.permute.xlu0 %2306
        %2308 = vrot.lane.b32.xlu0 %v1623, 64
        %v2309 = vpop.permute.xlu0 %2308
        %2310 = vrot.lane.b32.xlu0 %v1624, 64
        %v2311 = vpop.permute.xlu0 %2310
        %2312 = vrot.lane.b32.xlu0 %v1625, 64
        %v2313 = vpop.permute.xlu0 %2312
        %v2321 = vsel %vm1773, %v2296, 0
        %v2324 = vsel %vm1773, %v2297, 0
        %v2327 = vsel %vm1773, %v2298, 0
        %v2330 = vsel %vm1773, %v2299, 0
        %v2333 = vsel %vm1773, %v2300, 0
        %v2336 = vsel %vm1773, %v2301, 0
        %2338 = vmatprep.subr.bf16.mxu0 0
        %2339 = vmatpush1.bf16.msra.mxu0 %v2303
        %2340 = vmatprep.subr.bf16.mxu0 0
        %2341 = vmatpush1.bf16.msra.mxu0 %v2305
        %2342 = vmatprep.subr.bf16.mxu0 0
        %2343 = vmatpush1.bf16.msra.mxu0 %v2307
        %2344 = vmatprep.subr.bf16.mxu0 0
        %2345 = vmatpush1.bf16.msra.mxu0 %v2309
        %2346 = vmatprep.subr.bf16.mxu0 0
        %2347 = vmatpush1.bf16.msra.mxu0 %v2311
        %2348 = vmatprep.subr.bf16.mxu0 0
        %2349 = vmatpush1.bf16.msra.mxu0 %v2313
        %2350 = vmatprep.subr.bf16.mxu0 0
        %2351 = vmatpush1.bf16.msra.mxu0 0
        %2352 = vmatprep.subr.bf16.mxu0 0
        %2353 = vmatpush1.bf16.msra.mxu0 0
        %2354 = vmatprep.subr.bf16.mxu0 0
        %2355 = vmatpush1.bf16.msra.mxu0 0
        %2356 = vmatprep.subr.bf16.mxu0 0
        %2357 = vmatpush1.bf16.msra.mxu0 0
        %2358 = vmatprep.subr.bf16.mxu0 0
        %2359 = vmatpush1.bf16.msra.mxu0 0
        %2360 = vmatprep.subr.bf16.mxu0 0
        %2361 = vmatpush1.bf16.msra.mxu0 0
        %2362 = vmatprep.subr.bf16.mxu0 0
        %2363 = vmatpush1.bf16.msra.mxu0 0
        %2364 = vmatprep.subr.bf16.mxu0 0
        %2365 = vmatpush1.bf16.msra.mxu0 0
        %2366 = vmatprep.subr.bf16.mxu0 0
        %2367 = vmatpush1.bf16.msra.mxu0 0
        %2368 = vmatprep.subr.bf16.mxu0 0
        %2369 = vmatpush1.bf16.msra.mxu0 0
        %2370 = vmatprep.mubr.bf16.mxu0 0
        %2371 = vmatmul.mubr.bf16.gmra.mrb[0].mxu0 %v2321
        %v2372 = vpop.f32.mrb[0].mxu0
        %v2373 = vadd.f32 0.0, %v2372
        %v2374 = vpop.f32.mrb[0].mxu0
        %v2375 = vpop.f32.mrb[0].mxu0
        %v2376 = vadd.f32 0.0, %v2375
        %v2377 = vpop.f32.mrb[0].mxu0
        %2378 = vmatprep.mubr.bf16.mxu0 0
        %2379 = vmatmul.mubr.bf16.gmra.mrb[0].mxu0 %v2324
        %v2380 = vpop.f32.mrb[0].mxu0
        %v2381 = vadd.f32 0.0, %v2380
        %v2382 = vpop.f32.mrb[0].mxu0
        %v2383 = vpop.f32.mrb[0].mxu0
        %v2384 = vadd.f32 0.0, %v2383
        %v2385 = vpop.f32.mrb[0].mxu0
        %2386 = vmatprep.mubr.bf16.mxu0 0
        %2387 = vmatmul.mubr.bf16.gmra.mrb[0].mxu0 %v2327
        %v2388 = vpop.f32.mrb[0].mxu0
        %v2389 = vadd.f32 0.0, %v2388
        %v2390 = vpop.f32.mrb[0].mxu0
        %v2391 = vpop.f32.mrb[0].mxu0
        %v2392 = vadd.f32 0.0, %v2391
        %v2393 = vpop.f32.mrb[0].mxu0
        %2394 = vmatprep.mubr.bf16.mxu0 0
        %2395 = vmatmul.mubr.bf16.gmra.mrb[0].mxu0 %v2330
        %v2396 = vpop.f32.mrb[0].mxu0
        %v2397 = vadd.f32 0.0, %v2396
        %v2398 = vpop.f32.mrb[0].mxu0
        %v2399 = vpop.f32.mrb[0].mxu0
        %v2400 = vadd.f32 0.0, %v2399
        %v2401 = vpop.f32.mrb[0].mxu0
        %2402 = vmatprep.mubr.bf16.mxu0 0
        %2403 = vmatmul.mubr.bf16.gmra.mrb[0].mxu0 %v2333
        %v2404 = vpop.f32.mrb[0].mxu0
        %v2405 = vadd.f32 0.0, %v2404
        %v2406 = vpop.f32.mrb[0].mxu0
        %v2407 = vpop.f32.mrb[0].mxu0
        %v2408 = vadd.f32 0.0, %v2407
        %v2409 = vpop.f32.mrb[0].mxu0
        %2410 = vmatprep.mubr.bf16.mxu0 0
        %2411 = vmatmul.mubr.bf16.gmra.mrb[0].mxu0 %v2336
        %v2412 = vpop.f32.mrb[0].mxu0
        %v2413 = vadd.f32 0.0, %v2412
        %v2414 = vpop.f32.mrb[0].mxu0
        %v2415 = vpop.f32.mrb[0].mxu0
        %v2416 = vadd.f32 0.0, %v2415
        %v2417 = vpop.f32.mrb[0].mxu0
        %2418 = vdwg.mxu0
        %2425 = vrot.lane.b32.xlu0 %v1626, 96
        %v2426 = vpop.permute.xlu0 %2425
        %2427 = vrot.lane.b32.xlu0 %v1627, 96
        %v2428 = vpop.permute.xlu0 %2427
        %2429 = vrot.lane.b32.xlu0 %v1628, 96
        %v2430 = vpop.permute.xlu0 %2429
        %2431 = vrot.lane.b32.xlu0 %v1629, 96
        %v2432 = vpop.permute.xlu0 %2431
        %2433 = vrot.lane.b32.xlu0 %v1630, 96
        %v2434 = vpop.permute.xlu0 %2433
        %2435 = vrot.lane.b32.xlu0 %v1631, 96
        %v2436 = vpop.permute.xlu0 %2435
        %v2438 = vsel %vm411, %v1626, 0
        %v2441 = vsel %vm411, %v1627, 0
        %v2444 = vsel %vm411, %v1628, 0
        %v2447 = vsel %vm411, %v1629, 0
        %v2450 = vsel %vm411, %v1630, 0
        %v2453 = vsel %vm411, %v1631, 0
        %v2456 = vsel %vm411, %v2426, 0
        %v2459 = vsel %vm411, %v2428, 0
        %v2462 = vsel %vm411, %v2430, 0
        %v2465 = vsel %vm411, %v2432, 0
        %v2468 = vsel %vm411, %v2434, 0
        %v2471 = vsel %vm411, %v2436, 0
        %2473 = vmatprep.subr.bf16.mxu0 0
        %2474 = vmatpush1.bf16.xpose.msra.mxu0 %v2456
        %2475 = vmatprep.subr.bf16.mxu0 0
        %2476 = vmatpush1.bf16.xpose.msra.mxu0 %v2459
        %2477 = vmatprep.subr.bf16.mxu0 0
        %2478 = vmatpush1.bf16.xpose.msra.mxu0 %v2462
        %2479 = vmatprep.subr.bf16.mxu0 0
        %2480 = vmatpush1.bf16.xpose.msra.mxu0 %v2465
        %2481 = vmatprep.subr.bf16.mxu0 0
        %2482 = vmatpush1.bf16.xpose.msra.mxu0 %v2468
        %2483 = vmatprep.subr.bf16.mxu0 0
        %2484 = vmatpush1.bf16.xpose.msra.mxu0 %v2471
        %2485 = vmatprep.subr.bf16.mxu0 0
        %2486 = vmatpush1.bf16.xpose.msra.mxu0 0
        %2487 = vmatprep.subr.bf16.mxu0 0
        %2488 = vmatpush1.bf16.xpose.msra.mxu0 0
        %2489 = vmatprep.subr.bf16.mxu0 0
        %2490 = vmatpush1.bf16.xpose.msra.mxu0 0
        %2491 = vmatprep.subr.bf16.mxu0 0
        %2492 = vmatpush1.bf16.xpose.msra.mxu0 0
        %2493 = vmatprep.subr.bf16.mxu0 0
        %2494 = vmatpush1.bf16.xpose.msra.mxu0 0
        %2495 = vmatprep.subr.bf16.mxu0 0
        %2496 = vmatpush1.bf16.xpose.msra.mxu0 0
        %2497 = vmatprep.subr.bf16.mxu0 0
        %2498 = vmatpush1.bf16.xpose.msra.mxu0 0
        %2499 = vmatprep.subr.bf16.mxu0 0
        %2500 = vmatpush1.bf16.xpose.msra.mxu0 0
        %2501 = vmatprep.subr.bf16.mxu0 0
        %2502 = vmatpush1.bf16.xpose.msra.mxu0 0
        %2503 = vmatprep.subr.bf16.mxu0 0
        %2504 = vmatpush1.bf16.xpose.msra.mxu0 0
        %2505 = vmatprep.mubr.bf16.mxu0 0
        %2506 = vmatmul.mubr.bf16.gmra.mrb[0].mxu0 %v2438
        %v2507 = vpop.f32.mrb[0].mxu0
        %v2508 = vadd.f32 %v1244, %v2507
        %v2509 = vpop.f32.mrb[0].mxu0
        %v2510 = vpop.f32.mrb[0].mxu0
        %v2511 = vadd.f32 %v1244, %v2510
        %v2512 = vpop.f32.mrb[0].mxu0
        %2513 = vmatprep.mubr.bf16.mxu0 0
        %2514 = vmatmul.mubr.bf16.gmra.mrb[0].mxu0 %v2441
        %v2515 = vpop.f32.mrb[0].mxu0
        %v2516 = vadd.f32 %v1244, %v2515
        %v2517 = vpop.f32.mrb[0].mxu0
        %v2518 = vpop.f32.mrb[0].mxu0
        %v2519 = vadd.f32 %v1244, %v2518
        %v2520 = vpop.f32.mrb[0].mxu0
        %2521 = vmatprep.mubr.bf16.mxu0 0
        %2522 = vmatmul.mubr.bf16.gmra.mrb[0].mxu0 %v2444
        %v2523 = vpop.f32.mrb[0].mxu0
        %v2524 = vadd.f32 %v1244, %v2523
        %v2525 = vpop.f32.mrb[0].mxu0
        %v2526 = vpop.f32.mrb[0].mxu0
        %v2527 = vadd.f32 %v1244, %v2526
        %v2528 = vpop.f32.mrb[0].mxu0
        %2529 = vmatprep.mubr.bf16.mxu0 0
        %2530 = vmatmul.mubr.bf16.gmra.mrb[0].mxu0 %v2447
        %v2531 = vpop.f32.mrb[0].mxu0
        %v2532 = vadd.f32 %v1244, %v2531
        %v2533 = vpop.f32.mrb[0].mxu0
        %v2534 = vpop.f32.mrb[0].mxu0
        %v2535 = vadd.f32 %v1244, %v2534
        %v2536 = vpop.f32.mrb[0].mxu0
        %2537 = vmatprep.mubr.bf16.mxu0 0
        %2538 = vmatmul.mubr.bf16.gmra.mrb[0].mxu0 %v2450
        %v2539 = vpop.f32.mrb[0].mxu0
        %v2540 = vadd.f32 %v1244, %v2539
        %v2541 = vpop.f32.mrb[0].mxu0
        %v2542 = vpop.f32.mrb[0].mxu0
        %v2543 = vadd.f32 %v1244, %v2542
        %v2544 = vpop.f32.mrb[0].mxu0
        %2545 = vmatprep.mubr.bf16.mxu0 0
        %2546 = vmatmul.mubr.bf16.gmra.mrb[0].mxu0 %v2453
        %v2547 = vpop.f32.mrb[0].mxu0
        %v2548 = vadd.f32 %v1244, %v2547
        %v2549 = vpop.f32.mrb[0].mxu0
        %v2550 = vpop.f32.mrb[0].mxu0
        %v2551 = vadd.f32 %v1244, %v2550
        %v2552 = vpop.f32.mrb[0].mxu0
        %2553 = vdwg.mxu0
        %v2554 = vsel %vm1773, %v2508, -inf
        %2555 = vmax.xlane.f32.xlu0 %v2554
        %v2556 = vpop.xlane.xlu0 %2555
        %v2557 = vsel %vm1773, %v2511, -inf
        %2558 = vmax.xlane.f32.xlu0 %v2557
        %v2559 = vpop.xlane.xlu0 %2558
        %v2560 = vsel %vm1773, %v2516, -inf
        %2561 = vmax.xlane.f32.xlu0 %v2560
        %v2562 = vpop.xlane.xlu0 %2561
        %v2563 = vsel %vm1773, %v2519, -inf
        %2564 = vmax.xlane.f32.xlu0 %v2563
        %v2565 = vpop.xlane.xlu0 %2564
        %v2566 = vsel %vm1773, %v2524, -inf
        %2567 = vmax.xlane.f32.xlu0 %v2566
        %v2568 = vpop.xlane.xlu0 %2567
        %v2569 = vsel %vm1773, %v2527, -inf
        %2570 = vmax.xlane.f32.xlu0 %v2569
        %v2571 = vpop.xlane.xlu0 %2570
        %v2572 = vsel %vm1773, %v2532, -inf
        %2573 = vmax.xlane.f32.xlu0 %v2572
        %v2574 = vpop.xlane.xlu0 %2573
        %v2575 = vsel %vm1773, %v2535, -inf
        %2576 = vmax.xlane.f32.xlu0 %v2575
        %v2577 = vpop.xlane.xlu0 %2576
        %v2578 = vsel %vm1773, %v2540, -inf
        %2579 = vmax.xlane.f32.xlu0 %v2578
        %v2580 = vpop.xlane.xlu0 %2579
        %v2581 = vsel %vm1773, %v2543, -inf
        %2582 = vmax.xlane.f32.xlu0 %v2581
        %v2583 = vpop.xlane.xlu0 %2582
        %v2584 = vsel %vm1773, %v2548, -inf
        %2585 = vmax.xlane.f32.xlu0 %v2584
        %v2586 = vpop.xlane.xlu0 %2585
        %v2587 = vsel %vm1773, %v2551, -inf
        %2588 = vmax.xlane.f32.xlu0 %v2587
        %v2589 = vpop.xlane.xlu0 %2588
        %v2590 = vsub.f32 %v2508, %v2556
        %v2591 = vsub.f32 %v2511, %v2559
        %v2592 = vsub.f32 %v2516, %v2562
        %v2593 = vsub.f32 %v2519, %v2565
        %v2594 = vsub.f32 %v2524, %v2568
        %v2595 = vsub.f32 %v2527, %v2571
        %v2596 = vsub.f32 %v2532, %v2574
        %v2597 = vsub.f32 %v2535, %v2577
        %v2598 = vsub.f32 %v2540, %v2580
        %v2599 = vsub.f32 %v2543, %v2583
        %v2600 = vsub.f32 %v2548, %v2586
        %v2601 = vsub.f32 %v2551, %v2589
        %v2602 = vmul.f32 %v2590, 1.442695
        %v2603 = vpow.pop %v2602
        %v2604 = vmul.f32 %v2591, 1.442695
        %v2605 = vpow.pop %v2604
        %v2606 = vmul.f32 %v2592, 1.442695
        %v2607 = vpow.pop %v2606
        %v2608 = vmul.f32 %v2593, 1.442695
        %v2609 = vpow.pop %v2608
        %v2610 = vmul.f32 %v2594, 1.442695
        %v2611 = vpow.pop %v2610
        %v2612 = vmul.f32 %v2595, 1.442695
        %v2613 = vpow.pop %v2612
        %v2614 = vmul.f32 %v2596, 1.442695
        %v2615 = vpow.pop %v2614
        %v2616 = vmul.f32 %v2597, 1.442695
        %v2617 = vpow.pop %v2616
        %v2618 = vmul.f32 %v2598, 1.442695
        %v2619 = vpow.pop %v2618
        %v2620 = vmul.f32 %v2599, 1.442695
        %v2621 = vpow.pop %v2620
        %v2622 = vmul.f32 %v2600, 1.442695
        %v2623 = vpow.pop %v2622
        %v2624 = vmul.f32 %v2601, 1.442695
        %v2625 = vpow.pop %v2624
        %v2626 = vsel %vm1773, %v2603, 0.0
        %2627 = vadd.xlane.f32.xlu0 %v2626
        %v2628 = vpop.xlane.xlu0 %2627
        %v2629 = vsel %vm1773, %v2605, 0.0
        %2630 = vadd.xlane.f32.xlu0 %v2629
        %v2631 = vpop.xlane.xlu0 %2630
        %v2632 = vsel %vm1773, %v2607, 0.0
        %2633 = vadd.xlane.f32.xlu0 %v2632
        %v2634 = vpop.xlane.xlu0 %2633
        %v2635 = vsel %vm1773, %v2609, 0.0
        %2636 = vadd.xlane.f32.xlu0 %v2635
        %v2637 = vpop.xlane.xlu0 %2636
        %v2638 = vsel %vm1773, %v2611, 0.0
        %2639 = vadd.xlane.f32.xlu0 %v2638
        %v2640 = vpop.xlane.xlu0 %2639
        %v2641 = vsel %vm1773, %v2613, 0.0
        %2642 = vadd.xlane.f32.xlu0 %v2641
        %v2643 = vpop.xlane.xlu0 %2642
        %v2644 = vsel %vm1773, %v2615, 0.0
        %2645 = vadd.xlane.f32.xlu0 %v2644
        %v2646 = vpop.xlane.xlu0 %2645
        %v2647 = vsel %vm1773, %v2617, 0.0
        %2648 = vadd.xlane.f32.xlu0 %v2647
        %v2649 = vpop.xlane.xlu0 %2648
        %v2650 = vsel %vm1773, %v2619, 0.0
        %2651 = vadd.xlane.f32.xlu0 %v2650
        %v2652 = vpop.xlane.xlu0 %2651
        %v2653 = vsel %vm1773, %v2621, 0.0
        %2654 = vadd.xlane.f32.xlu0 %v2653
        %v2655 = vpop.xlane.xlu0 %2654
        %v2656 = vsel %vm1773, %v2623, 0.0
        %2657 = vadd.xlane.f32.xlu0 %v2656
        %v2658 = vpop.xlane.xlu0 %2657
        %v2659 = vsel %vm1773, %v2625, 0.0
        %2660 = vadd.xlane.f32.xlu0 %v2659
        %v2661 = vpop.xlane.xlu0 %2660
        %v2662 = vrcp.pop %v2628
        %v2663 = vrcp.pop %v2631
        %v2664 = vrcp.pop %v2634
        %v2665 = vrcp.pop %v2637
        %v2666 = vrcp.pop %v2640
        %v2667 = vrcp.pop %v2643
        %v2668 = vrcp.pop %v2646
        %v2669 = vrcp.pop %v2649
        %v2670 = vrcp.pop %v2652
        %v2671 = vrcp.pop %v2655
        %v2672 = vrcp.pop %v2658
        %v2673 = vrcp.pop %v2661
        %v2674 = vmul.f32 %v2603, %v2662
        %v2675 = vmul.f32 %v2605, %v2663
        %v2676 = vmul.f32 %v2607, %v2664
        %v2677 = vmul.f32 %v2609, %v2665
        %v2678 = vmul.f32 %v2611, %v2666
        %v2679 = vmul.f32 %v2613, %v2667
        %v2680 = vmul.f32 %v2615, %v2668
        %v2681 = vmul.f32 %v2617, %v2669
        %v2682 = vmul.f32 %v2619, %v2670
        %v2683 = vmul.f32 %v2621, %v2671
        %v2684 = vmul.f32 %v2623, %v2672
        %v2685 = vmul.f32 %v2625, %v2673
        %v2686 = vpack.c.bf16 %v2675, %v2674
        %v2687 = vpack.c.bf16 %v2677, %v2676
        %v2688 = vpack.c.bf16 %v2679, %v2678
        %v2689 = vpack.c.bf16 %v2681, %v2680
        %v2690 = vpack.c.bf16 %v2683, %v2682
        %v2691 = vpack.c.bf16 %v2685, %v2684
        %2692 = vrot.lane.b32.xlu0 %v1626, 64
        %v2693 = vpop.permute.xlu0 %2692
        %2694 = vrot.lane.b32.xlu0 %v1627, 64
        %v2695 = vpop.permute.xlu0 %2694
        %2696 = vrot.lane.b32.xlu0 %v1628, 64
        %v2697 = vpop.permute.xlu0 %2696
        %2698 = vrot.lane.b32.xlu0 %v1629, 64
        %v2699 = vpop.permute.xlu0 %2698
        %2700 = vrot.lane.b32.xlu0 %v1630, 64
        %v2701 = vpop.permute.xlu0 %2700
        %2702 = vrot.lane.b32.xlu0 %v1631, 64
        %v2703 = vpop.permute.xlu0 %2702
        %v2711 = vsel %vm1773, %v2686, 0
        %v2714 = vsel %vm1773, %v2687, 0
        %v2717 = vsel %vm1773, %v2688, 0
        %v2720 = vsel %vm1773, %v2689, 0
        %v2723 = vsel %vm1773, %v2690, 0
        %v2726 = vsel %vm1773, %v2691, 0
        %2728 = vmatprep.subr.bf16.mxu0 0
        %2729 = vmatpush1.bf16.msra.mxu0 %v2693
        %2730 = vmatprep.subr.bf16.mxu0 0
        %2731 = vmatpush1.bf16.msra.mxu0 %v2695
        %2732 = vmatprep.subr.bf16.mxu0 0
        %2733 = vmatpush1.bf16.msra.mxu0 %v2697
        %2734 = vmatprep.subr.bf16.mxu0 0
        %2735 = vmatpush1.bf16.msra.mxu0 %v2699
        %2736 = vmatprep.subr.bf16.mxu0 0
        %2737 = vmatpush1.bf16.msra.mxu0 %v2701
        %2738 = vmatprep.subr.bf16.mxu0 0
        %2739 = vmatpush1.bf16.msra.mxu0 %v2703
        %2740 = vmatprep.subr.bf16.mxu0 0
        %2741 = vmatpush1.bf16.msra.mxu0 0
        %2742 = vmatprep.subr.bf16.mxu0 0
        %2743 = vmatpush1.bf16.msra.mxu0 0
        %2744 = vmatprep.subr.bf16.mxu0 0
        %2745 = vmatpush1.bf16.msra.mxu0 0
        %2746 = vmatprep.subr.bf16.mxu0 0
        %2747 = vmatpush1.bf16.msra.mxu0 0
        %2748 = vmatprep.subr.bf16.mxu0 0
        %2749 = vmatpush1.bf16.msra.mxu0 0
        %2750 = vmatprep.subr.bf16.mxu0 0
        %2751 = vmatpush1.bf16.msra.mxu0 0
        %2752 = vmatprep.subr.bf16.mxu0 0
        %2753 = vmatpush1.bf16.msra.mxu0 0
        %2754 = vmatprep.subr.bf16.mxu0 0
        %2755 = vmatpush1.bf16.msra.mxu0 0
        %2756 = vmatprep.subr.bf16.mxu0 0
        %2757 = vmatpush1.bf16.msra.mxu0 0
        %2758 = vmatprep.subr.bf16.mxu0 0
        %2759 = vmatpush1.bf16.msra.mxu0 0
        %2760 = vmatprep.mubr.bf16.mxu0 0
        %2761 = vmatmul.mubr.bf16.gmra.mrb[0].mxu0 %v2711
        %v2762 = vpop.f32.mrb[0].mxu0
        %v2763 = vadd.f32 0.0, %v2762
        %v2764 = vpop.f32.mrb[0].mxu0
        %v2765 = vpop.f32.mrb[0].mxu0
        %v2766 = vadd.f32 0.0, %v2765
        %v2767 = vpop.f32.mrb[0].mxu0
        %2768 = vmatprep.mubr.bf16.mxu0 0
        %2769 = vmatmul.mubr.bf16.gmra.mrb[0].mxu0 %v2714
        %v2770 = vpop.f32.mrb[0].mxu0
        %v2771 = vadd.f32 0.0, %v2770
        %v2772 = vpop.f32.mrb[0].mxu0
        %v2773 = vpop.f32.mrb[0].mxu0
        %v2774 = vadd.f32 0.0, %v2773
        %v2775 = vpop.f32.mrb[0].mxu0
        %2776 = vmatprep.mubr.bf16.mxu0 0
        %2777 = vmatmul.mubr.bf16.gmra.mrb[0].mxu0 %v2717
        %v2778 = vpop.f32.mrb[0].mxu0
        %v2779 = vadd.f32 0.0, %v2778
        %v2780 = vpop.f32.mrb[0].mxu0
        %v2781 = vpop.f32.mrb[0].mxu0
        %v2782 = vadd.f32 0.0, %v2781
        %v2783 = vpop.f32.mrb[0].mxu0
        %2784 = vmatprep.mubr.bf16.mxu0 0
        %2785 = vmatmul.mubr.bf16.gmra.mrb[0].mxu0 %v2720
        %v2786 = vpop.f32.mrb[0].mxu0
        %v2787 = vadd.f32 0.0, %v2786
        %v2788 = vpop.f32.mrb[0].mxu0
        %v2789 = vpop.f32.mrb[0].mxu0
        %v2790 = vadd.f32 0.0, %v2789
        %v2791 = vpop.f32.mrb[0].mxu0
        %2792 = vmatprep.mubr.bf16.mxu0 0
        %2793 = vmatmul.mubr.bf16.gmra.mrb[0].mxu0 %v2723
        %v2794 = vpop.f32.mrb[0].mxu0
        %v2795 = vadd.f32 0.0, %v2794
        %v2796 = vpop.f32.mrb[0].mxu0
        %v2797 = vpop.f32.mrb[0].mxu0
        %v2798 = vadd.f32 0.0, %v2797
        %v2799 = vpop.f32.mrb[0].mxu0
        %2800 = vmatprep.mubr.bf16.mxu0 0
        %2801 = vmatmul.mubr.bf16.gmra.mrb[0].mxu0 %v2726
        %v2802 = vpop.f32.mrb[0].mxu0
        %v2803 = vadd.f32 0.0, %v2802
        %v2804 = vpop.f32.mrb[0].mxu0
        %v2805 = vpop.f32.mrb[0].mxu0
        %v2806 = vadd.f32 0.0, %v2805
        %v2807 = vpop.f32.mrb[0].mxu0
        %2808 = vdwg.mxu0
        %2815 = vrot.lane.b32.xlu0 %v1632, 96
        %v2816 = vpop.permute.xlu0 %2815
        %2817 = vrot.lane.b32.xlu0 %v1633, 96
        %v2818 = vpop.permute.xlu0 %2817
        %2819 = vrot.lane.b32.xlu0 %v1634, 96
        %v2820 = vpop.permute.xlu0 %2819
        %2821 = vrot.lane.b32.xlu0 %v1635, 96
        %v2822 = vpop.permute.xlu0 %2821
        %2823 = vrot.lane.b32.xlu0 %v1636, 96
        %v2824 = vpop.permute.xlu0 %2823
        %2825 = vrot.lane.b32.xlu0 %v1637, 96
        %v2826 = vpop.permute.xlu0 %2825
        %v2828 = vsel %vm411, %v1632, 0
        %v2831 = vsel %vm411, %v1633, 0
        %v2834 = vsel %vm411, %v1634, 0
        %v2837 = vsel %vm411, %v1635, 0
        %v2840 = vsel %vm411, %v1636, 0
        %v2843 = vsel %vm411, %v1637, 0
        %v2846 = vsel %vm411, %v2816, 0
        %v2849 = vsel %vm411, %v2818, 0
        %v2852 = vsel %vm411, %v2820, 0
        %v2855 = vsel %vm411, %v2822, 0
        %v2858 = vsel %vm411, %v2824, 0
        %v2861 = vsel %vm411, %v2826, 0
        %2863 = vmatprep.subr.bf16.mxu0 0
        %2864 = vmatpush1.bf16.xpose.msra.mxu0 %v2846
        %2865 = vmatprep.subr.bf16.mxu0 0
        %2866 = vmatpush1.bf16.xpose.msra.mxu0 %v2849
        %2867 = vmatprep.subr.bf16.mxu0 0
        %2868 = vmatpush1.bf16.xpose.msra.mxu0 %v2852
        %2869 = vmatprep.subr.bf16.mxu0 0
        %2870 = vmatpush1.bf16.xpose.msra.mxu0 %v2855
        %2871 = vmatprep.subr.bf16.mxu0 0
        %2872 = vmatpush1.bf16.xpose.msra.mxu0 %v2858
        %2873 = vmatprep.subr.bf16.mxu0 0
        %2874 = vmatpush1.bf16.xpose.msra.mxu0 %v2861
        %2875 = vmatprep.subr.bf16.mxu0 0
        %2876 = vmatpush1.bf16.xpose.msra.mxu0 0
        %2877 = vmatprep.subr.bf16.mxu0 0
        %2878 = vmatpush1.bf16.xpose.msra.mxu0 0
        %2879 = vmatprep.subr.bf16.mxu0 0
        %2880 = vmatpush1.bf16.xpose.msra.mxu0 0
        %2881 = vmatprep.subr.bf16.mxu0 0
        %2882 = vmatpush1.bf16.xpose.msra.mxu0 0
        %2883 = vmatprep.subr.bf16.mxu0 0
        %2884 = vmatpush1.bf16.xpose.msra.mxu0 0
        %2885 = vmatprep.subr.bf16.mxu0 0
        %2886 = vmatpush1.bf16.xpose.msra.mxu0 0
        %2887 = vmatprep.subr.bf16.mxu0 0
        %2888 = vmatpush1.bf16.xpose.msra.mxu0 0
        %2889 = vmatprep.subr.bf16.mxu0 0
        %2890 = vmatpush1.bf16.xpose.msra.mxu0 0
        %2891 = vmatprep.subr.bf16.mxu0 0
        %2892 = vmatpush1.bf16.xpose.msra.mxu0 0
        %2893 = vmatprep.subr.bf16.mxu0 0
        %2894 = vmatpush1.bf16.xpose.msra.mxu0 0
        %2895 = vmatprep.mubr.bf16.mxu0 0
        %2896 = vmatmul.mubr.bf16.gmra.mrb[0].mxu0 %v2828
        %v2897 = vpop.f32.mrb[0].mxu0
        %v2898 = vadd.f32 %v1244, %v2897
        %v2899 = vpop.f32.mrb[0].mxu0
        %v2900 = vpop.f32.mrb[0].mxu0
        %v2901 = vadd.f32 %v1244, %v2900
        %v2902 = vpop.f32.mrb[0].mxu0
        %2903 = vmatprep.mubr.bf16.mxu0 0
        %2904 = vmatmul.mubr.bf16.gmra.mrb[0].mxu0 %v2831
        %v2905 = vpop.f32.mrb[0].mxu0
        %v2906 = vadd.f32 %v1244, %v2905
        %v2907 = vpop.f32.mrb[0].mxu0
        %v2908 = vpop.f32.mrb[0].mxu0
        %v2909 = vadd.f32 %v1244, %v2908
        %v2910 = vpop.f32.mrb[0].mxu0
        %2911 = vmatprep.mubr.bf16.mxu0 0
        %2912 = vmatmul.mubr.bf16.gmra.mrb[0].mxu0 %v2834
        %v2913 = vpop.f32.mrb[0].mxu0
        %v2914 = vadd.f32 %v1244, %v2913
        %v2915 = vpop.f32.mrb[0].mxu0
        %v2916 = vpop.f32.mrb[0].mxu0
        %v2917 = vadd.f32 %v1244, %v2916
        %v2918 = vpop.f32.mrb[0].mxu0
        %2919 = vmatprep.mubr.bf16.mxu0 0
        %2920 = vmatmul.mubr.bf16.gmra.mrb[0].mxu0 %v2837
        %v2921 = vpop.f32.mrb[0].mxu0
        %v2922 = vadd.f32 %v1244, %v2921
        %v2923 = vpop.f32.mrb[0].mxu0
        %v2924 = vpop.f32.mrb[0].mxu0
        %v2925 = vadd.f32 %v1244, %v2924
        %v2926 = vpop.f32.mrb[0].mxu0
        %2927 = vmatprep.mubr.bf16.mxu0 0
        %2928 = vmatmul.mubr.bf16.gmra.mrb[0].mxu0 %v2840
        %v2929 = vpop.f32.mrb[0].mxu0
        %v2930 = vadd.f32 %v1244, %v2929
        %v2931 = vpop.f32.mrb[0].mxu0
        %v2932 = vpop.f32.mrb[0].mxu0
        %v2933 = vadd.f32 %v1244, %v2932
        %v2934 = vpop.f32.mrb[0].mxu0
        %2935 = vmatprep.mubr.bf16.mxu0 0
        %2936 = vmatmul.mubr.bf16.gmra.mrb[0].mxu0 %v2843
        %v2937 = vpop.f32.mrb[0].mxu0
        %v2938 = vadd.f32 %v1244, %v2937
        %v2939 = vpop.f32.mrb[0].mxu0
        %v2940 = vpop.f32.mrb[0].mxu0
        %v2941 = vadd.f32 %v1244, %v2940
        %v2942 = vpop.f32.mrb[0].mxu0
        %2943 = vdwg.mxu0
        %v2944 = vsel %vm1773, %v2898, -inf
        %2945 = vmax.xlane.f32.xlu0 %v2944
        %v2946 = vpop.xlane.xlu0 %2945
        %v2947 = vsel %vm1773, %v2901, -inf
        %2948 = vmax.xlane.f32.xlu0 %v2947
        %v2949 = vpop.xlane.xlu0 %2948
        %v2950 = vsel %vm1773, %v2906, -inf
        %2951 = vmax.xlane.f32.xlu0 %v2950
        %v2952 = vpop.xlane.xlu0 %2951
        %v2953 = vsel %vm1773, %v2909, -inf
        %2954 = vmax.xlane.f32.xlu0 %v2953
        %v2955 = vpop.xlane.xlu0 %2954
        %v2956 = vsel %vm1773, %v2914, -inf
        %2957 = vmax.xlane.f32.xlu0 %v2956
        %v2958 = vpop.xlane.xlu0 %2957
        %v2959 = vsel %vm1773, %v2917, -inf
        %2960 = vmax.xlane.f32.xlu0 %v2959
        %v2961 = vpop.xlane.xlu0 %2960
        %v2962 = vsel %vm1773, %v2922, -inf
        %2963 = vmax.xlane.f32.xlu0 %v2962
        %v2964 = vpop.xlane.xlu0 %2963
        %v2965 = vsel %vm1773, %v2925, -inf
        %2966 = vmax.xlane.f32.xlu0 %v2965
        %v2967 = vpop.xlane.xlu0 %2966
        %v2968 = vsel %vm1773, %v2930, -inf
        %2969 = vmax.xlane.f32.xlu0 %v2968
        %v2970 = vpop.xlane.xlu0 %2969
        %v2971 = vsel %vm1773, %v2933, -inf
        %2972 = vmax.xlane.f32.xlu0 %v2971
        %v2973 = vpop.xlane.xlu0 %2972
        %v2974 = vsel %vm1773, %v2938, -inf
        %2975 = vmax.xlane.f32.xlu0 %v2974
        %v2976 = vpop.xlane.xlu0 %2975
        %v2977 = vsel %vm1773, %v2941, -inf
        %2978 = vmax.xlane.f32.xlu0 %v2977
        %v2979 = vpop.xlane.xlu0 %2978
        %v2980 = vsub.f32 %v2898, %v2946
        %v2981 = vsub.f32 %v2901, %v2949
        %v2982 = vsub.f32 %v2906, %v2952
        %v2983 = vsub.f32 %v2909, %v2955
        %v2984 = vsub.f32 %v2914, %v2958
        %v2985 = vsub.f32 %v2917, %v2961
        %v2986 = vsub.f32 %v2922, %v2964
        %v2987 = vsub.f32 %v2925, %v2967
        %v2988 = vsub.f32 %v2930, %v2970
        %v2989 = vsub.f32 %v2933, %v2973
        %v2990 = vsub.f32 %v2938, %v2976
        %v2991 = vsub.f32 %v2941, %v2979
        %v2992 = vmul.f32 %v2980, 1.442695
        %v2993 = vpow.pop %v2992
        %v2994 = vmul.f32 %v2981, 1.442695
        %v2995 = vpow.pop %v2994
        %v2996 = vmul.f32 %v2982, 1.442695
        %v2997 = vpow.pop %v2996
        %v2998 = vmul.f32 %v2983, 1.442695
        %v2999 = vpow.pop %v2998
        %v3000 = vmul.f32 %v2984, 1.442695
        %v3001 = vpow.pop %v3000
        %v3002 = vmul.f32 %v2985, 1.442695
        %v3003 = vpow.pop %v3002
        %v3004 = vmul.f32 %v2986, 1.442695
        %v3005 = vpow.pop %v3004
        %v3006 = vmul.f32 %v2987, 1.442695
        %v3007 = vpow.pop %v3006
        %v3008 = vmul.f32 %v2988, 1.442695
        %v3009 = vpow.pop %v3008
        %v3010 = vmul.f32 %v2989, 1.442695
        %v3011 = vpow.pop %v3010
        %v3012 = vmul.f32 %v2990, 1.442695
        %v3013 = vpow.pop %v3012
        %v3014 = vmul.f32 %v2991, 1.442695
        %v3015 = vpow.pop %v3014
        %v3016 = vsel %vm1773, %v2993, 0.0
        %3017 = vadd.xlane.f32.xlu0 %v3016
        %v3018 = vpop.xlane.xlu0 %3017
        %v3019 = vsel %vm1773, %v2995, 0.0
        %3020 = vadd.xlane.f32.xlu0 %v3019
        %v3021 = vpop.xlane.xlu0 %3020
        %v3022 = vsel %vm1773, %v2997, 0.0
        %3023 = vadd.xlane.f32.xlu0 %v3022
        %v3024 = vpop.xlane.xlu0 %3023
        %v3025 = vsel %vm1773, %v2999, 0.0
        %3026 = vadd.xlane.f32.xlu0 %v3025
        %v3027 = vpop.xlane.xlu0 %3026
        %v3028 = vsel %vm1773, %v3001, 0.0
        %3029 = vadd.xlane.f32.xlu0 %v3028
        %v3030 = vpop.xlane.xlu0 %3029
        %v3031 = vsel %vm1773, %v3003, 0.0
        %3032 = vadd.xlane.f32.xlu0 %v3031
        %v3033 = vpop.xlane.xlu0 %3032
        %v3034 = vsel %vm1773, %v3005, 0.0
        %3035 = vadd.xlane.f32.xlu0 %v3034
        %v3036 = vpop.xlane.xlu0 %3035
        %v3037 = vsel %vm1773, %v3007, 0.0
        %3038 = vadd.xlane.f32.xlu0 %v3037
        %v3039 = vpop.xlane.xlu0 %3038
        %v3040 = vsel %vm1773, %v3009, 0.0
        %3041 = vadd.xlane.f32.xlu0 %v3040
        %v3042 = vpop.xlane.xlu0 %3041
        %v3043 = vsel %vm1773, %v3011, 0.0
        %3044 = vadd.xlane.f32.xlu0 %v3043
        %v3045 = vpop.xlane.xlu0 %3044
        %v3046 = vsel %vm1773, %v3013, 0.0
        %3047 = vadd.xlane.f32.xlu0 %v3046
        %v3048 = vpop.xlane.xlu0 %3047
        %v3049 = vsel %vm1773, %v3015, 0.0
        %3050 = vadd.xlane.f32.xlu0 %v3049
        %v3051 = vpop.xlane.xlu0 %3050
        %v3052 = vrcp.pop %v3018
        %v3053 = vrcp.pop %v3021
        %v3054 = vrcp.pop %v3024
        %v3055 = vrcp.pop %v3027
        %v3056 = vrcp.pop %v3030
        %v3057 = vrcp.pop %v3033
        %v3058 = vrcp.pop %v3036
        %v3059 = vrcp.pop %v3039
        %v3060 = vrcp.pop %v3042
        %v3061 = vrcp.pop %v3045
        %v3062 = vrcp.pop %v3048
        %v3063 = vrcp.pop %v3051
        %v3064 = vmul.f32 %v2993, %v3052
        %v3065 = vmul.f32 %v2995, %v3053
        %v3066 = vmul.f32 %v2997, %v3054
        %v3067 = vmul.f32 %v2999, %v3055
        %v3068 = vmul.f32 %v3001, %v3056
        %v3069 = vmul.f32 %v3003, %v3057
        %v3070 = vmul.f32 %v3005, %v3058
        %v3071 = vmul.f32 %v3007, %v3059
        %v3072 = vmul.f32 %v3009, %v3060
        %v3073 = vmul.f32 %v3011, %v3061
        %v3074 = vmul.f32 %v3013, %v3062
        %v3075 = vmul.f32 %v3015, %v3063
        %v3076 = vpack.c.bf16 %v3065, %v3064
        %v3077 = vpack.c.bf16 %v3067, %v3066
        %v3078 = vpack.c.bf16 %v3069, %v3068
        %v3079 = vpack.c.bf16 %v3071, %v3070
        %v3080 = vpack.c.bf16 %v3073, %v3072
        %v3081 = vpack.c.bf16 %v3075, %v3074
        %3082 = vrot.lane.b32.xlu0 %v1632, 64
        %v3083 = vpop.permute.xlu0 %3082
        %3084 = vrot.lane.b32.xlu0 %v1633, 64
        %v3085 = vpop.permute.xlu0 %3084
        %3086 = vrot.lane.b32.xlu0 %v1634, 64
        %v3087 = vpop.permute.xlu0 %3086
        %3088 = vrot.lane.b32.xlu0 %v1635, 64
        %v3089 = vpop.permute.xlu0 %3088
        %3090 = vrot.lane.b32.xlu0 %v1636, 64
        %v3091 = vpop.permute.xlu0 %3090
        %3092 = vrot.lane.b32.xlu0 %v1637, 64
        %v3093 = vpop.permute.xlu0 %3092
        %v3101 = vsel %vm1773, %v3076, 0
        %v3104 = vsel %vm1773, %v3077, 0
        %v3107 = vsel %vm1773, %v3078, 0
        %v3110 = vsel %vm1773, %v3079, 0
        %v3113 = vsel %vm1773, %v3080, 0
        %v3116 = vsel %vm1773, %v3081, 0
        %3118 = vmatprep.subr.bf16.mxu0 0
        %3119 = vmatpush1.bf16.msra.mxu0 %v3083
        %3120 = vmatprep.subr.bf16.mxu0 0
        %3121 = vmatpush1.bf16.msra.mxu0 %v3085
        %3122 = vmatprep.subr.bf16.mxu0 0
        %3123 = vmatpush1.bf16.msra.mxu0 %v3087
        %3124 = vmatprep.subr.bf16.mxu0 0
        %3125 = vmatpush1.bf16.msra.mxu0 %v3089
        %3126 = vmatprep.subr.bf16.mxu0 0
        %3127 = vmatpush1.bf16.msra.mxu0 %v3091
        %3128 = vmatprep.subr.bf16.mxu0 0
        %3129 = vmatpush1.bf16.msra.mxu0 %v3093
        %3130 = vmatprep.subr.bf16.mxu0 0
        %3131 = vmatpush1.bf16.msra.mxu0 0
        %3132 = vmatprep.subr.bf16.mxu0 0
        %3133 = vmatpush1.bf16.msra.mxu0 0
        %3134 = vmatprep.subr.bf16.mxu0 0
        %3135 = vmatpush1.bf16.msra.mxu0 0
        %3136 = vmatprep.subr.bf16.mxu0 0
        %3137 = vmatpush1.bf16.msra.mxu0 0
        %3138 = vmatprep.subr.bf16.mxu0 0
        %3139 = vmatpush1.bf16.msra.mxu0 0
        %3140 = vmatprep.subr.bf16.mxu0 0
        %3141 = vmatpush1.bf16.msra.mxu0 0
        %3142 = vmatprep.subr.bf16.mxu0 0
        %3143 = vmatpush1.bf16.msra.mxu0 0
        %3144 = vmatprep.subr.bf16.mxu0 0
        %3145 = vmatpush1.bf16.msra.mxu0 0
        %3146 = vmatprep.subr.bf16.mxu0 0
        %3147 = vmatpush1.bf16.msra.mxu0 0
        %3148 = vmatprep.subr.bf16.mxu0 0
        %3149 = vmatpush1.bf16.msra.mxu0 0
        %3150 = vmatprep.mubr.bf16.mxu0 0
        %3151 = vmatmul.mubr.bf16.gmra.mrb[0].mxu0 %v3101
        %v3152 = vpop.f32.mrb[0].mxu0
        %v3153 = vadd.f32 0.0, %v3152
        %v3154 = vpop.f32.mrb[0].mxu0
        %v3155 = vpop.f32.mrb[0].mxu0
        %v3156 = vadd.f32 0.0, %v3155
        %v3157 = vpop.f32.mrb[0].mxu0
        %3158 = vmatprep.mubr.bf16.mxu0 0
        %3159 = vmatmul.mubr.bf16.gmra.mrb[0].mxu0 %v3104
        %v3160 = vpop.f32.mrb[0].mxu0
        %v3161 = vadd.f32 0.0, %v3160
        %v3162 = vpop.f32.mrb[0].mxu0
        %v3163 = vpop.f32.mrb[0].mxu0
        %v3164 = vadd.f32 0.0, %v3163
        %v3165 = vpop.f32.mrb[0].mxu0
        %3166 = vmatprep.mubr.bf16.mxu0 0
        %3167 = vmatmul.mubr.bf16.gmra.mrb[0].mxu0 %v3107
        %v3168 = vpop.f32.mrb[0].mxu0
        %v3169 = vadd.f32 0.0, %v3168
        %v3170 = vpop.f32.mrb[0].mxu0
        %v3171 = vpop.f32.mrb[0].mxu0
        %v3172 = vadd.f32 0.0, %v3171
        %v3173 = vpop.f32.mrb[0].mxu0
        %3174 = vmatprep.mubr.bf16.mxu0 0
        %3175 = vmatmul.mubr.bf16.gmra.mrb[0].mxu0 %v3110
        %v3176 = vpop.f32.mrb[0].mxu0
        %v3177 = vadd.f32 0.0, %v3176
        %v3178 = vpop.f32.mrb[0].mxu0
        %v3179 = vpop.f32.mrb[0].mxu0
        %v3180 = vadd.f32 0.0, %v3179
        %v3181 = vpop.f32.mrb[0].mxu0
        %3182 = vmatprep.mubr.bf16.mxu0 0
        %3183 = vmatmul.mubr.bf16.gmra.mrb[0].mxu0 %v3113
        %v3184 = vpop.f32.mrb[0].mxu0
        %v3185 = vadd.f32 0.0, %v3184
        %v3186 = vpop.f32.mrb[0].mxu0
        %v3187 = vpop.f32.mrb[0].mxu0
        %v3188 = vadd.f32 0.0, %v3187
        %v3189 = vpop.f32.mrb[0].mxu0
        %3190 = vmatprep.mubr.bf16.mxu0 0
        %3191 = vmatmul.mubr.bf16.gmra.mrb[0].mxu0 %v3116
        %v3192 = vpop.f32.mrb[0].mxu0
        %v3193 = vadd.f32 0.0, %v3192
        %v3194 = vpop.f32.mrb[0].mxu0
        %v3195 = vpop.f32.mrb[0].mxu0
        %v3196 = vadd.f32 0.0, %v3195
        %v3197 = vpop.f32.mrb[0].mxu0
        %3198 = vdwg.mxu0
        %v3199 = vpack.c.bf16 %v1986, %v1983
        %v3200 = vpack.c.bf16 %v1994, %v1991
        %v3201 = vpack.c.bf16 %v2002, %v1999
        %v3202 = vpack.c.bf16 %v2010, %v2007
        %v3203 = vpack.c.bf16 %v2018, %v2015
        %v3204 = vpack.c.bf16 %v2026, %v2023
        %v3205 = vpack.c.bf16 %v2376, %v2373
        %v3206 = vpack.c.bf16 %v2384, %v2381
        %v3207 = vpack.c.bf16 %v2392, %v2389
        %v3208 = vpack.c.bf16 %v2400, %v2397
        %v3209 = vpack.c.bf16 %v2408, %v2405
        %v3210 = vpack.c.bf16 %v2416, %v2413
        %v3211 = vpack.c.bf16 %v2766, %v2763
        %v3212 = vpack.c.bf16 %v2774, %v2771
        %v3213 = vpack.c.bf16 %v2782, %v2779
        %v3214 = vpack.c.bf16 %v2790, %v2787
        %v3215 = vpack.c.bf16 %v2798, %v2795
        %v3216 = vpack.c.bf16 %v2806, %v2803
        %v3217 = vpack.c.bf16 %v3156, %v3153
        %v3218 = vpack.c.bf16 %v3164, %v3161
        %v3219 = vpack.c.bf16 %v3172, %v3169
        %v3220 = vpack.c.bf16 %v3180, %v3177
        %v3221 = vpack.c.bf16 %v3188, %v3185
        %v3222 = vpack.c.bf16 %v3196, %v3193
        %v3223 = vld [vmem:[%s6] sm:$0xf]
        %v3224 = vld [vmem:[%s6 + $0x4] sm:$0xf]
        %v3225 = vld [vmem:[%s6 + $0x8] sm:$0xf]
        %v3226 = vld [vmem:[%s6 + $0xc] sm:$0xf]
        %v3227 = vld [vmem:[%s7] sm:$0x1]
        %v3229 = vlaneseq
        %v3230 = vshrl.u32 %v3229, 7
        %v3231 = vsub.s32 0, %v3230
        %v3232 = vrot.slane %v3227, %v3231
        %v3238 = vunpack.c.l.b16 %v3223
        %v3239 = vunpack.c.l.b16 %v3224
        %v3240 = vunpack.c.l.b16 %v3225
        %v3241 = vunpack.c.l.b16 %v3226
        %v3242 = vpack.c.b16 %v3239, %v3238
        %v3243 = vpack.c.b16 %v3241, %v3240
        %v3247 = vsel %vm411, %v3199, 0
        %v3250 = vsel %vm411, %v3200, 0
        %v3253 = vsel %vm411, %v3201, 0
        %v3256 = vsel %vm411, %v3202, 0
        %v3259 = vsel %vm411, %v3203, 0
        %v3262 = vsel %vm411, %v3204, 0
        %v3265 = vsel %vm411, %v3205, 0
        %v3268 = vsel %vm411, %v3206, 0
        %v3271 = vsel %vm411, %v3207, 0
        %v3274 = vsel %vm411, %v3208, 0
        %v3277 = vsel %vm411, %v3209, 0
        %v3280 = vsel %vm411, %v3210, 0
        %v3283 = vsel %vm411, %v3211, 0
        %v3286 = vsel %vm411, %v3212, 0
        %v3289 = vsel %vm411, %v3213, 0
        %v3292 = vsel %vm411, %v3214, 0
        %v3295 = vsel %vm411, %v3215, 0
        %v3298 = vsel %vm411, %v3216, 0
        %v3301 = vsel %vm411, %v3217, 0
        %v3304 = vsel %vm411, %v3218, 0
        %v3307 = vsel %vm411, %v3219, 0
        %v3310 = vsel %vm411, %v3220, 0
        %v3313 = vsel %vm411, %v3221, 0
        %v3316 = vsel %vm411, %v3222, 0
        %3318 = vmatprep.subr.bf16.mxu0 0
        %3319 = vmatpush1.bf16.msra.mxu0 %v3242
        %3320 = vmatprep.subr.bf16.mxu0 0
        %3321 = vmatpush1.bf16.msra.mxu0 %v3243
        %3322 = vmatprep.subr.bf16.mxu0 0
        %3323 = vmatpush1.bf16.msra.mxu0 0
        %3324 = vmatprep.subr.bf16.mxu0 0
        %3325 = vmatpush1.bf16.msra.mxu0 0
        %3326 = vmatprep.subr.bf16.mxu0 0
        %3327 = vmatpush1.bf16.msra.mxu0 0
        %3328 = vmatprep.subr.bf16.mxu0 0
        %3329 = vmatpush1.bf16.msra.mxu0 0
        %3330 = vmatprep.subr.bf16.mxu0 0
        %3331 = vmatpush1.bf16.msra.mxu0 0
        %3332 = vmatprep.subr.bf16.mxu0 0
        %3333 = vmatpush1.bf16.msra.mxu0 0
        %3334 = vmatprep.subr.bf16.mxu0 0
        %3335 = vmatpush1.bf16.msra.mxu0 0
        %3336 = vmatprep.subr.bf16.mxu0 0
        %3337 = vmatpush1.bf16.msra.mxu0 0
        %3338 = vmatprep.subr.bf16.mxu0 0
        %3339 = vmatpush1.bf16.msra.mxu0 0
        %3340 = vmatprep.subr.bf16.mxu0 0
        %3341 = vmatpush1.bf16.msra.mxu0 0
        %3342 = vmatprep.subr.bf16.mxu0 0
        %3343 = vmatpush1.bf16.msra.mxu0 0
        %3344 = vmatprep.subr.bf16.mxu0 0
        %3345 = vmatpush1.bf16.msra.mxu0 0
        %3346 = vmatprep.subr.bf16.mxu0 0
        %3347 = vmatpush1.bf16.msra.mxu0 0
        %3348 = vmatprep.subr.bf16.mxu0 0
        %3349 = vmatpush1.bf16.msra.mxu0 0
        %3350 = vmatprep.mubr.bf16.mxu0 0
        %3351 = vmatmul.mubr.bf16.gmra.mrb[0].mxu0 %v3247
        %v3352 = vpop.f32.mrb[0].mxu0
        %v3353 = vadd.f32 %v3232, %v3352
        %v3354 = vpop.f32.mrb[0].mxu0
        %v3355 = vpop.f32.mrb[0].mxu0
        %v3356 = vadd.f32 %v3232, %v3355
        %v3357 = vpop.f32.mrb[0].mxu0
        %3358 = vmatprep.mubr.bf16.mxu0 0
        %3359 = vmatmul.mubr.bf16.gmra.mrb[0].mxu0 %v3250
        %v3360 = vpop.f32.mrb[0].mxu0
        %v3361 = vadd.f32 %v3232, %v3360
        %v3362 = vpop.f32.mrb[0].mxu0
        %v3363 = vpop.f32.mrb[0].mxu0
        %v3364 = vadd.f32 %v3232, %v3363
        %v3365 = vpop.f32.mrb[0].mxu0
        %3366 = vmatprep.mubr.bf16.mxu0 0
        %3367 = vmatmul.mubr.bf16.gmra.mrb[0].mxu0 %v3253
        %v3368 = vpop.f32.mrb[0].mxu0
        %v3369 = vadd.f32 %v3232, %v3368
        %v3370 = vpop.f32.mrb[0].mxu0
        %v3371 = vpop.f32.mrb[0].mxu0
        %v3372 = vadd.f32 %v3232, %v3371
        %v3373 = vpop.f32.mrb[0].mxu0
        %3374 = vmatprep.mubr.bf16.mxu0 0
        %3375 = vmatmul.mubr.bf16.gmra.mrb[0].mxu0 %v3256
        %v3376 = vpop.f32.mrb[0].mxu0
        %v3377 = vadd.f32 %v3232, %v3376
        %v3378 = vpop.f32.mrb[0].mxu0
        %v3379 = vpop.f32.mrb[0].mxu0
        %v3380 = vadd.f32 %v3232, %v3379
        %v3381 = vpop.f32.mrb[0].mxu0
        %3382 = vmatprep.mubr.bf16.mxu0 0
        %3383 = vmatmul.mubr.bf16.gmra.mrb[0].mxu0 %v3259
        %v3384 = vpop.f32.mrb[0].mxu0
        %v3385 = vadd.f32 %v3232, %v3384
        %v3386 = vpop.f32.mrb[0].mxu0
        %v3387 = vpop.f32.mrb[0].mxu0
        %v3388 = vadd.f32 %v3232, %v3387
        %v3389 = vpop.f32.mrb[0].mxu0
        %3390 = vmatprep.mubr.bf16.mxu0 0
        %3391 = vmatmul.mubr.bf16.gmra.mrb[0].mxu0 %v3262
        %v3392 = vpop.f32.mrb[0].mxu0
        %v3393 = vadd.f32 %v3232, %v3392
        %v3394 = vpop.f32.mrb[0].mxu0
        %v3395 = vpop.f32.mrb[0].mxu0
        %v3396 = vadd.f32 %v3232, %v3395
        %v3397 = vpop.f32.mrb[0].mxu0
        %3398 = vmatprep.mubr.bf16.mxu0 0
        %3399 = vmatmul.mubr.bf16.gmra.mrb[0].mxu0 %v3265
        %v3400 = vpop.f32.mrb[0].mxu0
        %v3401 = vadd.f32 %v3232, %v3400
        %v3402 = vpop.f32.mrb[0].mxu0
        %v3403 = vpop.f32.mrb[0].mxu0
        %v3404 = vadd.f32 %v3232, %v3403
        %v3405 = vpop.f32.mrb[0].mxu0
        %3406 = vmatprep.mubr.bf16.mxu0 0
        %3407 = vmatmul.mubr.bf16.gmra.mrb[0].mxu0 %v3268
        %v3408 = vpop.f32.mrb[0].mxu0
        %v3409 = vadd.f32 %v3232, %v3408
        %v3410 = vpop.f32.mrb[0].mxu0
        %v3411 = vpop.f32.mrb[0].mxu0
        %v3412 = vadd.f32 %v3232, %v3411
        %v3413 = vpop.f32.mrb[0].mxu0
        %3414 = vmatprep.mubr.bf16.mxu0 0
        %3415 = vmatmul.mubr.bf16.gmra.mrb[0].mxu0 %v3271
        %v3416 = vpop.f32.mrb[0].mxu0
        %v3417 = vadd.f32 %v3232, %v3416
        %v3418 = vpop.f32.mrb[0].mxu0
        %v3419 = vpop.f32.mrb[0].mxu0
        %v3420 = vadd.f32 %v3232, %v3419
        %v3421 = vpop.f32.mrb[0].mxu0
        %3422 = vmatprep.mubr.bf16.mxu0 0
        %3423 = vmatmul.mubr.bf16.gmra.mrb[0].mxu0 %v3274
        %v3424 = vpop.f32.mrb[0].mxu0
        %v3425 = vadd.f32 %v3232, %v3424
        %v3426 = vpop.f32.mrb[0].mxu0
        %v3427 = vpop.f32.mrb[0].mxu0
        %v3428 = vadd.f32 %v3232, %v3427
        %v3429 = vpop.f32.mrb[0].mxu0
        %3430 = vmatprep.mubr.bf16.mxu0 0
        %3431 = vmatmul.mubr.bf16.gmra.mrb[0].mxu0 %v3277
        %v3432 = vpop.f32.mrb[0].mxu0
        %v3433 = vadd.f32 %v3232, %v3432
        %v3434 = vpop.f32.mrb[0].mxu0
        %v3435 = vpop.f32.mrb[0].mxu0
        %v3436 = vadd.f32 %v3232, %v3435
        %v3437 = vpop.f32.mrb[0].mxu0
        %3438 = vmatprep.mubr.bf16.mxu0 0
        %3439 = vmatmul.mubr.bf16.gmra.mrb[0].mxu0 %v3280
        %v3440 = vpop.f32.mrb[0].mxu0
        %v3441 = vadd.f32 %v3232, %v3440
        %v3442 = vpop.f32.mrb[0].mxu0
        %v3443 = vpop.f32.mrb[0].mxu0
        %v3444 = vadd.f32 %v3232, %v3443
        %v3445 = vpop.f32.mrb[0].mxu0
        %3446 = vmatprep.mubr.bf16.mxu0 0
        %3447 = vmatmul.mubr.bf16.gmra.mrb[0].mxu0 %v3283
        %v3448 = vpop.f32.mrb[0].mxu0
        %v3449 = vadd.f32 %v3232, %v3448
        %v3450 = vpop.f32.mrb[0].mxu0
        %v3451 = vpop.f32.mrb[0].mxu0
        %v3452 = vadd.f32 %v3232, %v3451
        %v3453 = vpop.f32.mrb[0].mxu0
        %3454 = vmatprep.mubr.bf16.mxu0 0
        %3455 = vmatmul.mubr.bf16.gmra.mrb[0].mxu0 %v3286
        %v3456 = vpop.f32.mrb[0].mxu0
        %v3457 = vadd.f32 %v3232, %v3456
        %v3458 = vpop.f32.mrb[0].mxu0
        %v3459 = vpop.f32.mrb[0].mxu0
        %v3460 = vadd.f32 %v3232, %v3459
        %v3461 = vpop.f32.mrb[0].mxu0
        %3462 = vmatprep.mubr.bf16.mxu0 0
        %3463 = vmatmul.mubr.bf16.gmra.mrb[0].mxu0 %v3289
        %v3464 = vpop.f32.mrb[0].mxu0
        %v3465 = vadd.f32 %v3232, %v3464
        %v3466 = vpop.f32.mrb[0].mxu0
        %v3467 = vpop.f32.mrb[0].mxu0
        %v3468 = vadd.f32 %v3232, %v3467
        %v3469 = vpop.f32.mrb[0].mxu0
        %3470 = vmatprep.mubr.bf16.mxu0 0
        %3471 = vmatmul.mubr.bf16.gmra.mrb[0].mxu0 %v3292
        %v3472 = vpop.f32.mrb[0].mxu0
        %v3473 = vadd.f32 %v3232, %v3472
        %v3474 = vpop.f32.mrb[0].mxu0
        %v3475 = vpop.f32.mrb[0].mxu0
        %v3476 = vadd.f32 %v3232, %v3475
        %v3477 = vpop.f32.mrb[0].mxu0
        %3478 = vmatprep.mubr.bf16.mxu0 0
        %3479 = vmatmul.mubr.bf16.gmra.mrb[0].mxu0 %v3295
        %v3480 = vpop.f32.mrb[0].mxu0
        %v3481 = vadd.f32 %v3232, %v3480
        %v3482 = vpop.f32.mrb[0].mxu0
        %v3483 = vpop.f32.mrb[0].mxu0
        %v3484 = vadd.f32 %v3232, %v3483
        %v3485 = vpop.f32.mrb[0].mxu0
        %3486 = vmatprep.mubr.bf16.mxu0 0
        %3487 = vmatmul.mubr.bf16.gmra.mrb[0].mxu0 %v3298
        %v3488 = vpop.f32.mrb[0].mxu0
        %v3489 = vadd.f32 %v3232, %v3488
        %v3490 = vpop.f32.mrb[0].mxu0
        %v3491 = vpop.f32.mrb[0].mxu0
        %v3492 = vadd.f32 %v3232, %v3491
        %v3493 = vpop.f32.mrb[0].mxu0
        %3494 = vmatprep.mubr.bf16.mxu0 0
        %3495 = vmatmul.mubr.bf16.gmra.mrb[0].mxu0 %v3301
        %v3496 = vpop.f32.mrb[0].mxu0
        %v3497 = vadd.f32 %v3232, %v3496
        %v3498 = vpop.f32.mrb[0].mxu0
        %v3499 = vpop.f32.mrb[0].mxu0
        %v3500 = vadd.f32 %v3232, %v3499
        %v3501 = vpop.f32.mrb[0].mxu0
        %3502 = vmatprep.mubr.bf16.mxu0 0
        %3503 = vmatmul.mubr.bf16.gmra.mrb[0].mxu0 %v3304
        %v3504 = vpop.f32.mrb[0].mxu0
        %v3505 = vadd.f32 %v3232, %v3504
        %v3506 = vpop.f32.mrb[0].mxu0
        %v3507 = vpop.f32.mrb[0].mxu0
        %v3508 = vadd.f32 %v3232, %v3507
        %v3509 = vpop.f32.mrb[0].mxu0
        %3510 = vmatprep.mubr.bf16.mxu0 0
        %3511 = vmatmul.mubr.bf16.gmra.mrb[0].mxu0 %v3307
        %v3512 = vpop.f32.mrb[0].mxu0
        %v3513 = vadd.f32 %v3232, %v3512
        %v3514 = vpop.f32.mrb[0].mxu0
        %v3515 = vpop.f32.mrb[0].mxu0
        %v3516 = vadd.f32 %v3232, %v3515
        %v3517 = vpop.f32.mrb[0].mxu0
        %3518 = vmatprep.mubr.bf16.mxu0 0
        %3519 = vmatmul.mubr.bf16.gmra.mrb[0].mxu0 %v3310
        %v3520 = vpop.f32.mrb[0].mxu0
        %v3521 = vadd.f32 %v3232, %v3520
        %v3522 = vpop.f32.mrb[0].mxu0
        %v3523 = vpop.f32.mrb[0].mxu0
        %v3524 = vadd.f32 %v3232, %v3523
        %v3525 = vpop.f32.mrb[0].mxu0
        %3526 = vmatprep.mubr.bf16.mxu0 0
        %3527 = vmatmul.mubr.bf16.gmra.mrb[0].mxu0 %v3313
        %v3528 = vpop.f32.mrb[0].mxu0
        %v3529 = vadd.f32 %v3232, %v3528
        %v3530 = vpop.f32.mrb[0].mxu0
        %v3531 = vpop.f32.mrb[0].mxu0
        %v3532 = vadd.f32 %v3232, %v3531
        %v3533 = vpop.f32.mrb[0].mxu0
        %3534 = vmatprep.mubr.bf16.mxu0 0
        %3535 = vmatmul.mubr.bf16.gmra.mrb[0].mxu0 %v3316
        %v3536 = vpop.f32.mrb[0].mxu0
        %v3537 = vadd.f32 %v3232, %v3536
        %v3538 = vpop.f32.mrb[0].mxu0
        %v3539 = vpop.f32.mrb[0].mxu0
        %v3540 = vadd.f32 %v3232, %v3539
        %v3541 = vpop.f32.mrb[0].mxu0
        %3542 = vdwg.mxu0
        %v3543 = vadd.f32 %v1193, %v3353
        %v3544 = vadd.f32 %v1194, %v3356
        %v3545 = vadd.f32 %v1195, %v3361
        %v3546 = vadd.f32 %v1196, %v3364
        %v3547 = vadd.f32 %v1197, %v3369
        %v3548 = vadd.f32 %v1198, %v3372
        %v3549 = vadd.f32 %v1199, %v3377
        %v3550 = vadd.f32 %v1200, %v3380
        %v3551 = vadd.f32 %v1201, %v3385
        %v3552 = vadd.f32 %v1202, %v3388
        %v3553 = vadd.f32 %v1203, %v3393
        %v3554 = vadd.f32 %v1204, %v3396
        %v3555 = vadd.f32 %v1205, %v3401
        %v3556 = vadd.f32 %v1206, %v3404
        %v3557 = vadd.f32 %v1207, %v3409
        %v3558 = vadd.f32 %v1208, %v3412
        %v3559 = vadd.f32 %v1209, %v3417
        %v3560 = vadd.f32 %v1210, %v3420
        %v3561 = vadd.f32 %v1211, %v3425
        %v3562 = vadd.f32 %v1212, %v3428
        %v3563 = vadd.f32 %v1213, %v3433
        %v3564 = vadd.f32 %v1214, %v3436
        %v3565 = vadd.f32 %v1215, %v3441
        %v3566 = vadd.f32 %v1216, %v3444
        %v3567 = vadd.f32 %v1217, %v3449
        %v3568 = vadd.f32 %v1218, %v3452
        %v3569 = vadd.f32 %v1219, %v3457
        %v3570 = vadd.f32 %v1220, %v3460
        %v3571 = vadd.f32 %v1221, %v3465
        %v3572 = vadd.f32 %v1222, %v3468
        %v3573 = vadd.f32 %v1223, %v3473
        %v3574 = vadd.f32 %v1224, %v3476
        %v3575 = vadd.f32 %v1225, %v3481
        %v3576 = vadd.f32 %v1226, %v3484
        %v3577 = vadd.f32 %v1227, %v3489
        %v3578 = vadd.f32 %v1228, %v3492
        %v3579 = vadd.f32 %v1229, %v3497
        %v3580 = vadd.f32 %v1230, %v3500
        %v3581 = vadd.f32 %v1231, %v3505
        %v3582 = vadd.f32 %v1232, %v3508
        %v3583 = vadd.f32 %v1233, %v3513
        %v3584 = vadd.f32 %v1234, %v3516
        %v3585 = vadd.f32 %v1235, %v3521
        %v3586 = vadd.f32 %v1236, %v3524
        %v3587 = vadd.f32 %v1237, %v3529
        %v3588 = vadd.f32 %v1238, %v3532
        %v3589 = vadd.f32 %v1239, %v3537
        %v3590 = vadd.f32 %v1240, %v3540
        %v3591 = vsel %vm411, %v3543, 0.0
        %3592 = vadd.xlane.f32.xlu0 %v3591
        %v3593 = vpop.xlane.xlu0 %3592
        %v3594 = vsel %vm411, %v3544, 0.0
        %3595 = vadd.xlane.f32.xlu0 %v3594
        %v3596 = vpop.xlane.xlu0 %3595
        %v3597 = vsel %vm411, %v3545, 0.0
        %3598 = vadd.xlane.f32.xlu0 %v3597
        %v3599 = vpop.xlane.xlu0 %3598
        %v3600 = vsel %vm411, %v3546, 0.0
        %3601 = vadd.xlane.f32.xlu0 %v3600
        %v3602 = vpop.xlane.xlu0 %3601
        %v3603 = vsel %vm411, %v3547, 0.0
        %3604 = vadd.xlane.f32.xlu0 %v3603
        %v3605 = vpop.xlane.xlu0 %3604
        %v3606 = vsel %vm411, %v3548, 0.0
        %3607 = vadd.xlane.f32.xlu0 %v3606
        %v3608 = vpop.xlane.xlu0 %3607
        %v3609 = vsel %vm411, %v3549, 0.0
        %3610 = vadd.xlane.f32.xlu0 %v3609
        %v3611 = vpop.xlane.xlu0 %3610
        %v3612 = vsel %vm411, %v3550, 0.0
        %3613 = vadd.xlane.f32.xlu0 %v3612
        %v3614 = vpop.xlane.xlu0 %3613
        %v3615 = vsel %vm411, %v3551, 0.0
        %3616 = vadd.xlane.f32.xlu0 %v3615
        %v3617 = vpop.xlane.xlu0 %3616
        %v3618 = vsel %vm411, %v3552, 0.0
        %3619 = vadd.xlane.f32.xlu0 %v3618
        %v3620 = vpop.xlane.xlu0 %3619
        %v3621 = vsel %vm411, %v3553, 0.0
        %3622 = vadd.xlane.f32.xlu0 %v3621
        %v3623 = vpop.xlane.xlu0 %3622
        %v3624 = vsel %vm411, %v3554, 0.0
        %3625 = vadd.xlane.f32.xlu0 %v3624
        %v3626 = vpop.xlane.xlu0 %3625
        %v3627 = vsel %vm411, %v3555, 0.0
        %3628 = vadd.xlane.f32.xlu0 %v3627
        %v3629 = vpop.xlane.xlu0 %3628
        %v3630 = vsel %vm411, %v3556, 0.0
        %3631 = vadd.xlane.f32.xlu0 %v3630
        %v3632 = vpop.xlane.xlu0 %3631
        %v3633 = vsel %vm411, %v3557, 0.0
        %3634 = vadd.xlane.f32.xlu0 %v3633
        %v3635 = vpop.xlane.xlu0 %3634
        %v3636 = vsel %vm411, %v3558, 0.0
        %3637 = vadd.xlane.f32.xlu0 %v3636
        %v3638 = vpop.xlane.xlu0 %3637
        %v3639 = vsel %vm411, %v3559, 0.0
        %3640 = vadd.xlane.f32.xlu0 %v3639
        %v3641 = vpop.xlane.xlu0 %3640
        %v3642 = vsel %vm411, %v3560, 0.0
        %3643 = vadd.xlane.f32.xlu0 %v3642
        %v3644 = vpop.xlane.xlu0 %3643
        %v3645 = vsel %vm411, %v3561, 0.0
        %3646 = vadd.xlane.f32.xlu0 %v3645
        %v3647 = vpop.xlane.xlu0 %3646
        %v3648 = vsel %vm411, %v3562, 0.0
        %3649 = vadd.xlane.f32.xlu0 %v3648
        %v3650 = vpop.xlane.xlu0 %3649
        %v3651 = vsel %vm411, %v3563, 0.0
        %3652 = vadd.xlane.f32.xlu0 %v3651
        %v3653 = vpop.xlane.xlu0 %3652
        %v3654 = vsel %vm411, %v3564, 0.0
        %3655 = vadd.xlane.f32.xlu0 %v3654
        %v3656 = vpop.xlane.xlu0 %3655
        %v3657 = vsel %vm411, %v3565, 0.0
        %3658 = vadd.xlane.f32.xlu0 %v3657
        %v3659 = vpop.xlane.xlu0 %3658
        %v3660 = vsel %vm411, %v3566, 0.0
        %3661 = vadd.xlane.f32.xlu0 %v3660
        %v3662 = vpop.xlane.xlu0 %3661
        %v3663 = vsel %vm411, %v3567, 0.0
        %3664 = vadd.xlane.f32.xlu0 %v3663
        %v3665 = vpop.xlane.xlu0 %3664
        %v3666 = vsel %vm411, %v3568, 0.0
        %3667 = vadd.xlane.f32.xlu0 %v3666
        %v3668 = vpop.xlane.xlu0 %3667
        %v3669 = vsel %vm411, %v3569, 0.0
        %3670 = vadd.xlane.f32.xlu0 %v3669
        %v3671 = vpop.xlane.xlu0 %3670
        %v3672 = vsel %vm411, %v3570, 0.0
        %3673 = vadd.xlane.f32.xlu0 %v3672
        %v3674 = vpop.xlane.xlu0 %3673
        %v3675 = vsel %vm411, %v3571, 0.0
        %3676 = vadd.xlane.f32.xlu0 %v3675
        %v3677 = vpop.xlane.xlu0 %3676
        %v3678 = vsel %vm411, %v3572, 0.0
        %3679 = vadd.xlane.f32.xlu0 %v3678
        %v3680 = vpop.xlane.xlu0 %3679
        %v3681 = vsel %vm411, %v3573, 0.0
        %3682 = vadd.xlane.f32.xlu0 %v3681
        %v3683 = vpop.xlane.xlu0 %3682
        %v3684 = vsel %vm411, %v3574, 0.0
        %3685 = vadd.xlane.f32.xlu0 %v3684
        %v3686 = vpop.xlane.xlu0 %3685
        %v3687 = vsel %vm411, %v3575, 0.0
        %3688 = vadd.xlane.f32.xlu0 %v3687
        %v3689 = vpop.xlane.xlu0 %3688
        %v3690 = vsel %vm411, %v3576, 0.0
        %3691 = vadd.xlane.f32.xlu0 %v3690
        %v3692 = vpop.xlane.xlu0 %3691
        %v3693 = vsel %vm411, %v3577, 0.0
        %3694 = vadd.xlane.f32.xlu0 %v3693
        %v3695 = vpop.xlane.xlu0 %3694
        %v3696 = vsel %vm411, %v3578, 0.0
        %3697 = vadd.xlane.f32.xlu0 %v3696
        %v3698 = vpop.xlane.xlu0 %3697
        %v3699 = vsel %vm411, %v3579, 0.0
        %3700 = vadd.xlane.f32.xlu0 %v3699
        %v3701 = vpop.xlane.xlu0 %3700
        %v3702 = vsel %vm411, %v3580, 0.0
        %3703 = vadd.xlane.f32.xlu0 %v3702
        %v3704 = vpop.xlane.xlu0 %3703
        %v3705 = vsel %vm411, %v3581, 0.0
        %3706 = vadd.xlane.f32.xlu0 %v3705
        %v3707 = vpop.xlane.xlu0 %3706
        %v3708 = vsel %vm411, %v3582, 0.0
        %3709 = vadd.xlane.f32.xlu0 %v3708
        %v3710 = vpop.xlane.xlu0 %3709
        %v3711 = vsel %vm411, %v3583, 0.0
        %3712 = vadd.xlane.f32.xlu0 %v3711
        %v3713 = vpop.xlane.xlu0 %3712
        %v3714 = vsel %vm411, %v3584, 0.0
        %3715 = vadd.xlane.f32.xlu0 %v3714
        %v3716 = vpop.xlane.xlu0 %3715
        %v3717 = vsel %vm411, %v3585, 0.0
        %3718 = vadd.xlane.f32.xlu0 %v3717
        %v3719 = vpop.xlane.xlu0 %3718
        %v3720 = vsel %vm411, %v3586, 0.0
        %3721 = vadd.xlane.f32.xlu0 %v3720
        %v3722 = vpop.xlane.xlu0 %3721
        %v3723 = vsel %vm411, %v3587, 0.0
        %3724 = vadd.xlane.f32.xlu0 %v3723
        %v3725 = vpop.xlane.xlu0 %3724
        %v3726 = vsel %vm411, %v3588, 0.0
        %3727 = vadd.xlane.f32.xlu0 %v3726
        %v3728 = vpop.xlane.xlu0 %3727
        %v3729 = vsel %vm411, %v3589, 0.0
        %3730 = vadd.xlane.f32.xlu0 %v3729
        %v3731 = vpop.xlane.xlu0 %3730
        %v3732 = vsel %vm411, %v3590, 0.0
        %3733 = vadd.xlane.f32.xlu0 %v3732
        %v3734 = vpop.xlane.xlu0 %3733
        %v3735 = vmul.f32 %v3593, %v556
        %v3736 = vmul.f32 %v3596, %v556
        %v3737 = vmul.f32 %v3599, %v556
        %v3738 = vmul.f32 %v3602, %v556
        %v3739 = vmul.f32 %v3605, %v556
        %v3740 = vmul.f32 %v3608, %v556
        %v3741 = vmul.f32 %v3611, %v556
        %v3742 = vmul.f32 %v3614, %v556
        %v3743 = vmul.f32 %v3617, %v556
        %v3744 = vmul.f32 %v3620, %v556
        %v3745 = vmul.f32 %v3623, %v556
        %v3746 = vmul.f32 %v3626, %v556
        %v3747 = vmul.f32 %v3629, %v556
        %v3748 = vmul.f32 %v3632, %v556
        %v3749 = vmul.f32 %v3635, %v556
        %v3750 = vmul.f32 %v3638, %v556
        %v3751 = vmul.f32 %v3641, %v556
        %v3752 = vmul.f32 %v3644, %v556
        %v3753 = vmul.f32 %v3647, %v556
        %v3754 = vmul.f32 %v3650, %v556
        %v3755 = vmul.f32 %v3653, %v556
        %v3756 = vmul.f32 %v3656, %v556
        %v3757 = vmul.f32 %v3659, %v556
        %v3758 = vmul.f32 %v3662, %v556
        %v3759 = vmul.f32 %v3665, %v556
        %v3760 = vmul.f32 %v3668, %v556
        %v3761 = vmul.f32 %v3671, %v556
        %v3762 = vmul.f32 %v3674, %v556
        %v3763 = vmul.f32 %v3677, %v556
        %v3764 = vmul.f32 %v3680, %v556
        %v3765 = vmul.f32 %v3683, %v556
        %v3766 = vmul.f32 %v3686, %v556
        %v3767 = vmul.f32 %v3689, %v556
        %v3768 = vmul.f32 %v3692, %v556
        %v3769 = vmul.f32 %v3695, %v556
        %v3770 = vmul.f32 %v3698, %v556
        %v3771 = vmul.f32 %v3701, %v556
        %v3772 = vmul.f32 %v3704, %v556
        %v3773 = vmul.f32 %v3707, %v556
        %v3774 = vmul.f32 %v3710, %v556
        %v3775 = vmul.f32 %v3713, %v556
        %v3776 = vmul.f32 %v3716, %v556
        %v3777 = vmul.f32 %v3719, %v556
        %v3778 = vmul.f32 %v3722, %v556
        %v3779 = vmul.f32 %v3725, %v556
        %v3780 = vmul.f32 %v3728, %v556
        %v3781 = vmul.f32 %v3731, %v556
        %v3782 = vmul.f32 %v3734, %v556
        %v3783 = vsub.f32 %v3543, %v3735
        %v3784 = vsub.f32 %v3544, %v3736
        %v3785 = vsub.f32 %v3545, %v3737
        %v3786 = vsub.f32 %v3546, %v3738
        %v3787 = vsub.f32 %v3547, %v3739
        %v3788 = vsub.f32 %v3548, %v3740
        %v3789 = vsub.f32 %v3549, %v3741
        %v3790 = vsub.f32 %v3550, %v3742
        %v3791 = vsub.f32 %v3551, %v3743
        %v3792 = vsub.f32 %v3552, %v3744
        %v3793 = vsub.f32 %v3553, %v3745
        %v3794 = vsub.f32 %v3554, %v3746
        %v3795 = vsub.f32 %v3555, %v3747
        %v3796 = vsub.f32 %v3556, %v3748
        %v3797 = vsub.f32 %v3557, %v3749
        %v3798 = vsub.f32 %v3558, %v3750
        %v3799 = vsub.f32 %v3559, %v3751
        %v3800 = vsub.f32 %v3560, %v3752
        %v3801 = vsub.f32 %v3561, %v3753
        %v3802 = vsub.f32 %v3562, %v3754
        %v3803 = vsub.f32 %v3563, %v3755
        %v3804 = vsub.f32 %v3564, %v3756
        %v3805 = vsub.f32 %v3565, %v3757
        %v3806 = vsub.f32 %v3566, %v3758
        %v3807 = vsub.f32 %v3567, %v3759
        %v3808 = vsub.f32 %v3568, %v3760
        %v3809 = vsub.f32 %v3569, %v3761
        %v3810 = vsub.f32 %v3570, %v3762
        %v3811 = vsub.f32 %v3571, %v3763
        %v3812 = vsub.f32 %v3572, %v3764
        %v3813 = vsub.f32 %v3573, %v3765
        %v3814 = vsub.f32 %v3574, %v3766
        %v3815 = vsub.f32 %v3575, %v3767
        %v3816 = vsub.f32 %v3576, %v3768
        %v3817 = vsub.f32 %v3577, %v3769
        %v3818 = vsub.f32 %v3578, %v3770
        %v3819 = vsub.f32 %v3579, %v3771
        %v3820 = vsub.f32 %v3580, %v3772
        %v3821 = vsub.f32 %v3581, %v3773
        %v3822 = vsub.f32 %v3582, %v3774
        %v3823 = vsub.f32 %v3583, %v3775
        %v3824 = vsub.f32 %v3584, %v3776
        %v3825 = vsub.f32 %v3585, %v3777
        %v3826 = vsub.f32 %v3586, %v3778
        %v3827 = vsub.f32 %v3587, %v3779
        %v3828 = vsub.f32 %v3588, %v3780
        %v3829 = vsub.f32 %v3589, %v3781
        %v3830 = vsub.f32 %v3590, %v3782
        %v3831 = vmul.f32 %v3783, %v3783
        %v3832 = vmul.f32 %v3784, %v3784
        %v3833 = vmul.f32 %v3785, %v3785
        %v3834 = vmul.f32 %v3786, %v3786
        %v3835 = vmul.f32 %v3787, %v3787
        %v3836 = vmul.f32 %v3788, %v3788
        %v3837 = vmul.f32 %v3789, %v3789
        %v3838 = vmul.f32 %v3790, %v3790
        %v3839 = vmul.f32 %v3791, %v3791
        %v3840 = vmul.f32 %v3792, %v3792
        %v3841 = vmul.f32 %v3793, %v3793
        %v3842 = vmul.f32 %v3794, %v3794
        %v3843 = vmul.f32 %v3795, %v3795
        %v3844 = vmul.f32 %v3796, %v3796
        %v3845 = vmul.f32 %v3797, %v3797
        %v3846 = vmul.f32 %v3798, %v3798
        %v3847 = vmul.f32 %v3799, %v3799
        %v3848 = vmul.f32 %v3800, %v3800
        %v3849 = vmul.f32 %v3801, %v3801
        %v3850 = vmul.f32 %v3802, %v3802
        %v3851 = vmul.f32 %v3803, %v3803
        %v3852 = vmul.f32 %v3804, %v3804
        %v3853 = vmul.f32 %v3805, %v3805
        %v3854 = vmul.f32 %v3806, %v3806
        %v3855 = vmul.f32 %v3807, %v3807
        %v3856 = vmul.f32 %v3808, %v3808
        %v3857 = vmul.f32 %v3809, %v3809
        %v3858 = vmul.f32 %v3810, %v3810
        %v3859 = vmul.f32 %v3811, %v3811
        %v3860 = vmul.f32 %v3812, %v3812
        %v3861 = vmul.f32 %v3813, %v3813
        %v3862 = vmul.f32 %v3814, %v3814
        %v3863 = vmul.f32 %v3815, %v3815
        %v3864 = vmul.f32 %v3816, %v3816
        %v3865 = vmul.f32 %v3817, %v3817
        %v3866 = vmul.f32 %v3818, %v3818
        %v3867 = vmul.f32 %v3819, %v3819
        %v3868 = vmul.f32 %v3820, %v3820
        %v3869 = vmul.f32 %v3821, %v3821
        %v3870 = vmul.f32 %v3822, %v3822
        %v3871 = vmul.f32 %v3823, %v3823
        %v3872 = vmul.f32 %v3824, %v3824
        %v3873 = vmul.f32 %v3825, %v3825
        %v3874 = vmul.f32 %v3826, %v3826
        %v3875 = vmul.f32 %v3827, %v3827
        %v3876 = vmul.f32 %v3828, %v3828
        %v3877 = vmul.f32 %v3829, %v3829
        %v3878 = vmul.f32 %v3830, %v3830
        %v3879 = vsel %vm411, %v3831, 0.0
        %3880 = vadd.xlane.f32.xlu0 %v3879
        %v3881 = vpop.xlane.xlu0 %3880
        %v3882 = vsel %vm411, %v3832, 0.0
        %3883 = vadd.xlane.f32.xlu0 %v3882
        %v3884 = vpop.xlane.xlu0 %3883
        %v3885 = vsel %vm411, %v3833, 0.0
        %3886 = vadd.xlane.f32.xlu0 %v3885
        %v3887 = vpop.xlane.xlu0 %3886
        %v3888 = vsel %vm411, %v3834, 0.0
        %3889 = vadd.xlane.f32.xlu0 %v3888
        %v3890 = vpop.xlane.xlu0 %3889
        %v3891 = vsel %vm411, %v3835, 0.0
        %3892 = vadd.xlane.f32.xlu0 %v3891
        %v3893 = vpop.xlane.xlu0 %3892
        %v3894 = vsel %vm411, %v3836, 0.0
        %3895 = vadd.xlane.f32.xlu0 %v3894
        %v3896 = vpop.xlane.xlu0 %3895
        %v3897 = vsel %vm411, %v3837, 0.0
        %3898 = vadd.xlane.f32.xlu0 %v3897
        %v3899 = vpop.xlane.xlu0 %3898
        %v3900 = vsel %vm411, %v3838, 0.0
        %3901 = vadd.xlane.f32.xlu0 %v3900
        %v3902 = vpop.xlane.xlu0 %3901
        %v3903 = vsel %vm411, %v3839, 0.0
        %3904 = vadd.xlane.f32.xlu0 %v3903
        %v3905 = vpop.xlane.xlu0 %3904
        %v3906 = vsel %vm411, %v3840, 0.0
        %3907 = vadd.xlane.f32.xlu0 %v3906
        %v3908 = vpop.xlane.xlu0 %3907
        %v3909 = vsel %vm411, %v3841, 0.0
        %3910 = vadd.xlane.f32.xlu0 %v3909
        %v3911 = vpop.xlane.xlu0 %3910
        %v3912 = vsel %vm411, %v3842, 0.0
        %3913 = vadd.xlane.f32.xlu0 %v3912
        %v3914 = vpop.xlane.xlu0 %3913
        %v3915 = vsel %vm411, %v3843, 0.0
        %3916 = vadd.xlane.f32.xlu0 %v3915
        %v3917 = vpop.xlane.xlu0 %3916
        %v3918 = vsel %vm411, %v3844, 0.0
        %3919 = vadd.xlane.f32.xlu0 %v3918
        %v3920 = vpop.xlane.xlu0 %3919
        %v3921 = vsel %vm411, %v3845, 0.0
        %3922 = vadd.xlane.f32.xlu0 %v3921
        %v3923 = vpop.xlane.xlu0 %3922
        %v3924 = vsel %vm411, %v3846, 0.0
        %3925 = vadd.xlane.f32.xlu0 %v3924
        %v3926 = vpop.xlane.xlu0 %3925
        %v3927 = vsel %vm411, %v3847, 0.0
        %3928 = vadd.xlane.f32.xlu0 %v3927
        %v3929 = vpop.xlane.xlu0 %3928
        %v3930 = vsel %vm411, %v3848, 0.0
        %3931 = vadd.xlane.f32.xlu0 %v3930
        %v3932 = vpop.xlane.xlu0 %3931
        %v3933 = vsel %vm411, %v3849, 0.0
        %3934 = vadd.xlane.f32.xlu0 %v3933
        %v3935 = vpop.xlane.xlu0 %3934
        %v3936 = vsel %vm411, %v3850, 0.0
        %3937 = vadd.xlane.f32.xlu0 %v3936
        %v3938 = vpop.xlane.xlu0 %3937
        %v3939 = vsel %vm411, %v3851, 0.0
        %3940 = vadd.xlane.f32.xlu0 %v3939
        %v3941 = vpop.xlane.xlu0 %3940
        %v3942 = vsel %vm411, %v3852, 0.0
        %3943 = vadd.xlane.f32.xlu0 %v3942
        %v3944 = vpop.xlane.xlu0 %3943
        %v3945 = vsel %vm411, %v3853, 0.0
        %3946 = vadd.xlane.f32.xlu0 %v3945
        %v3947 = vpop.xlane.xlu0 %3946
        %v3948 = vsel %vm411, %v3854, 0.0
        %3949 = vadd.xlane.f32.xlu0 %v3948
        %v3950 = vpop.xlane.xlu0 %3949
        %v3951 = vsel %vm411, %v3855, 0.0
        %3952 = vadd.xlane.f32.xlu0 %v3951
        %v3953 = vpop.xlane.xlu0 %3952
        %v3954 = vsel %vm411, %v3856, 0.0
        %3955 = vadd.xlane.f32.xlu0 %v3954
        %v3956 = vpop.xlane.xlu0 %3955
        %v3957 = vsel %vm411, %v3857, 0.0
        %3958 = vadd.xlane.f32.xlu0 %v3957
        %v3959 = vpop.xlane.xlu0 %3958
        %v3960 = vsel %vm411, %v3858, 0.0
        %3961 = vadd.xlane.f32.xlu0 %v3960
        %v3962 = vpop.xlane.xlu0 %3961
        %v3963 = vsel %vm411, %v3859, 0.0
        %3964 = vadd.xlane.f32.xlu0 %v3963
        %v3965 = vpop.xlane.xlu0 %3964
        %v3966 = vsel %vm411, %v3860, 0.0
        %3967 = vadd.xlane.f32.xlu0 %v3966
        %v3968 = vpop.xlane.xlu0 %3967
        %v3969 = vsel %vm411, %v3861, 0.0
        %3970 = vadd.xlane.f32.xlu0 %v3969
        %v3971 = vpop.xlane.xlu0 %3970
        %v3972 = vsel %vm411, %v3862, 0.0
        %3973 = vadd.xlane.f32.xlu0 %v3972
        %v3974 = vpop.xlane.xlu0 %3973
        %v3975 = vsel %vm411, %v3863, 0.0
        %3976 = vadd.xlane.f32.xlu0 %v3975
        %v3977 = vpop.xlane.xlu0 %3976
        %v3978 = vsel %vm411, %v3864, 0.0
        %3979 = vadd.xlane.f32.xlu0 %v3978
        %v3980 = vpop.xlane.xlu0 %3979
        %v3981 = vsel %vm411, %v3865, 0.0
        %3982 = vadd.xlane.f32.xlu0 %v3981
        %v3983 = vpop.xlane.xlu0 %3982
        %v3984 = vsel %vm411, %v3866, 0.0
        %3985 = vadd.xlane.f32.xlu0 %v3984
        %v3986 = vpop.xlane.xlu0 %3985
        %v3987 = vsel %vm411, %v3867, 0.0
        %3988 = vadd.xlane.f32.xlu0 %v3987
        %v3989 = vpop.xlane.xlu0 %3988
        %v3990 = vsel %vm411, %v3868, 0.0
        %3991 = vadd.xlane.f32.xlu0 %v3990
        %v3992 = vpop.xlane.xlu0 %3991
        %v3993 = vsel %vm411, %v3869, 0.0
        %3994 = vadd.xlane.f32.xlu0 %v3993
        %v3995 = vpop.xlane.xlu0 %3994
        %v3996 = vsel %vm411, %v3870, 0.0
        %3997 = vadd.xlane.f32.xlu0 %v3996
        %v3998 = vpop.xlane.xlu0 %3997
        %v3999 = vsel %vm411, %v3871, 0.0
        %4000 = vadd.xlane.f32.xlu0 %v3999
        %v4001 = vpop.xlane.xlu0 %4000
        %v4002 = vsel %vm411, %v3872, 0.0
        %4003 = vadd.xlane.f32.xlu0 %v4002
        %v4004 = vpop.xlane.xlu0 %4003
        %v4005 = vsel %vm411, %v3873, 0.0
        %4006 = vadd.xlane.f32.xlu0 %v4005
        %v4007 = vpop.xlane.xlu0 %4006
        %v4008 = vsel %vm411, %v3874, 0.0
        %4009 = vadd.xlane.f32.xlu0 %v4008
        %v4010 = vpop.xlane.xlu0 %4009
        %v4011 = vsel %vm411, %v3875, 0.0
        %4012 = vadd.xlane.f32.xlu0 %v4011
        %v4013 = vpop.xlane.xlu0 %4012
        %v4014 = vsel %vm411, %v3876, 0.0
        %4015 = vadd.xlane.f32.xlu0 %v4014
        %v4016 = vpop.xlane.xlu0 %4015
        %v4017 = vsel %vm411, %v3877, 0.0
        %4018 = vadd.xlane.f32.xlu0 %v4017
        %v4019 = vpop.xlane.xlu0 %4018
        %v4020 = vsel %vm411, %v3878, 0.0
        %4021 = vadd.xlane.f32.xlu0 %v4020
        %v4022 = vpop.xlane.xlu0 %4021
        %v4023 = vmul.f32 %v3881, %v556
        %v4024 = vmul.f32 %v3884, %v556
        %v4025 = vmul.f32 %v3887, %v556
        %v4026 = vmul.f32 %v3890, %v556
        %v4027 = vmul.f32 %v3893, %v556
        %v4028 = vmul.f32 %v3896, %v556
        %v4029 = vmul.f32 %v3899, %v556
        %v4030 = vmul.f32 %v3902, %v556
        %v4031 = vmul.f32 %v3905, %v556
        %v4032 = vmul.f32 %v3908, %v556
        %v4033 = vmul.f32 %v3911, %v556
        %v4034 = vmul.f32 %v3914, %v556
        %v4035 = vmul.f32 %v3917, %v556
        %v4036 = vmul.f32 %v3920, %v556
        %v4037 = vmul.f32 %v3923, %v556
        %v4038 = vmul.f32 %v3926, %v556
        %v4039 = vmul.f32 %v3929, %v556
        %v4040 = vmul.f32 %v3932, %v556
        %v4041 = vmul.f32 %v3935, %v556
        %v4042 = vmul.f32 %v3938, %v556
        %v4043 = vmul.f32 %v3941, %v556
        %v4044 = vmul.f32 %v3944, %v556
        %v4045 = vmul.f32 %v3947, %v556
        %v4046 = vmul.f32 %v3950, %v556
        %v4047 = vmul.f32 %v3953, %v556
        %v4048 = vmul.f32 %v3956, %v556
        %v4049 = vmul.f32 %v3959, %v556
        %v4050 = vmul.f32 %v3962, %v556
        %v4051 = vmul.f32 %v3965, %v556
        %v4052 = vmul.f32 %v3968, %v556
        %v4053 = vmul.f32 %v3971, %v556
        %v4054 = vmul.f32 %v3974, %v556
        %v4055 = vmul.f32 %v3977, %v556
        %v4056 = vmul.f32 %v3980, %v556
        %v4057 = vmul.f32 %v3983, %v556
        %v4058 = vmul.f32 %v3986, %v556
        %v4059 = vmul.f32 %v3989, %v556
        %v4060 = vmul.f32 %v3992, %v556
        %v4061 = vmul.f32 %v3995, %v556
        %v4062 = vmul.f32 %v3998, %v556
        %v4063 = vmul.f32 %v4001, %v556
        %v4064 = vmul.f32 %v4004, %v556
        %v4065 = vmul.f32 %v4007, %v556
        %v4066 = vmul.f32 %v4010, %v556
        %v4067 = vmul.f32 %v4013, %v556
        %v4068 = vmul.f32 %v4016, %v556
        %v4069 = vmul.f32 %v4019, %v556
        %v4070 = vmul.f32 %v4022, %v556
        %v4071 = vadd.f32 %v4023, 1e-05
        %v4072 = vadd.f32 %v4024, 1e-05
        %v4073 = vadd.f32 %v4025, 1e-05
        %v4074 = vadd.f32 %v4026, 1e-05
        %v4075 = vadd.f32 %v4027, 1e-05
        %v4076 = vadd.f32 %v4028, 1e-05
        %v4077 = vadd.f32 %v4029, 1e-05
        %v4078 = vadd.f32 %v4030, 1e-05
        %v4079 = vadd.f32 %v4031, 1e-05
        %v4080 = vadd.f32 %v4032, 1e-05
        %v4081 = vadd.f32 %v4033, 1e-05
        %v4082 = vadd.f32 %v4034, 1e-05
        %v4083 = vadd.f32 %v4035, 1e-05
        %v4084 = vadd.f32 %v4036, 1e-05
        %v4085 = vadd.f32 %v4037, 1e-05
        %v4086 = vadd.f32 %v4038, 1e-05
        %v4087 = vadd.f32 %v4039, 1e-05
        %v4088 = vadd.f32 %v4040, 1e-05
        %v4089 = vadd.f32 %v4041, 1e-05
        %v4090 = vadd.f32 %v4042, 1e-05
        %v4091 = vadd.f32 %v4043, 1e-05
        %v4092 = vadd.f32 %v4044, 1e-05
        %v4093 = vadd.f32 %v4045, 1e-05
        %v4094 = vadd.f32 %v4046, 1e-05
        %v4095 = vadd.f32 %v4047, 1e-05
        %v4096 = vadd.f32 %v4048, 1e-05
        %v4097 = vadd.f32 %v4049, 1e-05
        %v4098 = vadd.f32 %v4050, 1e-05
        %v4099 = vadd.f32 %v4051, 1e-05
        %v4100 = vadd.f32 %v4052, 1e-05
        %v4101 = vadd.f32 %v4053, 1e-05
        %v4102 = vadd.f32 %v4054, 1e-05
        %v4103 = vadd.f32 %v4055, 1e-05
        %v4104 = vadd.f32 %v4056, 1e-05
        %v4105 = vadd.f32 %v4057, 1e-05
        %v4106 = vadd.f32 %v4058, 1e-05
        %v4107 = vadd.f32 %v4059, 1e-05
        %v4108 = vadd.f32 %v4060, 1e-05
        %v4109 = vadd.f32 %v4061, 1e-05
        %v4110 = vadd.f32 %v4062, 1e-05
        %v4111 = vadd.f32 %v4063, 1e-05
        %v4112 = vadd.f32 %v4064, 1e-05
        %v4113 = vadd.f32 %v4065, 1e-05
        %v4114 = vadd.f32 %v4066, 1e-05
        %v4115 = vadd.f32 %v4067, 1e-05
        %v4116 = vadd.f32 %v4068, 1e-05
        %v4117 = vadd.f32 %v4069, 1e-05
        %v4118 = vadd.f32 %v4070, 1e-05
        %v4119 = vrsqrt.pop %v4071
        %v4120 = vrsqrt.pop %v4072
        %v4121 = vrsqrt.pop %v4073
        %v4122 = vrsqrt.pop %v4074
        %v4123 = vrsqrt.pop %v4075
        %v4124 = vrsqrt.pop %v4076
        %v4125 = vrsqrt.pop %v4077
        %v4126 = vrsqrt.pop %v4078
        %v4127 = vrsqrt.pop %v4079
        %v4128 = vrsqrt.pop %v4080
        %v4129 = vrsqrt.pop %v4081
        %v4130 = vrsqrt.pop %v4082
        %v4131 = vrsqrt.pop %v4083
        %v4132 = vrsqrt.pop %v4084
        %v4133 = vrsqrt.pop %v4085
        %v4134 = vrsqrt.pop %v4086
        %v4135 = vrsqrt.pop %v4087
        %v4136 = vrsqrt.pop %v4088
        %v4137 = vrsqrt.pop %v4089
        %v4138 = vrsqrt.pop %v4090
        %v4139 = vrsqrt.pop %v4091
        %v4140 = vrsqrt.pop %v4092
        %v4141 = vrsqrt.pop %v4093
        %v4142 = vrsqrt.pop %v4094
        %v4143 = vrsqrt.pop %v4095
        %v4144 = vrsqrt.pop %v4096
        %v4145 = vrsqrt.pop %v4097
        %v4146 = vrsqrt.pop %v4098
        %v4147 = vrsqrt.pop %v4099
        %v4148 = vrsqrt.pop %v4100
        %v4149 = vrsqrt.pop %v4101
        %v4150 = vrsqrt.pop %v4102
        %v4151 = vrsqrt.pop %v4103
        %v4152 = vrsqrt.pop %v4104
        %v4153 = vrsqrt.pop %v4105
        %v4154 = vrsqrt.pop %v4106
        %v4155 = vrsqrt.pop %v4107
        %v4156 = vrsqrt.pop %v4108
        %v4157 = vrsqrt.pop %v4109
        %v4158 = vrsqrt.pop %v4110
        %v4159 = vrsqrt.pop %v4111
        %v4160 = vrsqrt.pop %v4112
        %v4161 = vrsqrt.pop %v4113
        %v4162 = vrsqrt.pop %v4114
        %v4163 = vrsqrt.pop %v4115
        %v4164 = vrsqrt.pop %v4116
        %v4165 = vrsqrt.pop %v4117
        %v4166 = vrsqrt.pop %v4118
        %v4167 = vmul.f32 %v3783, %v4119
        %v4168 = vmul.f32 %v3784, %v4120
        %v4169 = vmul.f32 %v3785, %v4121
        %v4170 = vmul.f32 %v3786, %v4122
        %v4171 = vmul.f32 %v3787, %v4123
        %v4172 = vmul.f32 %v3788, %v4124
        %v4173 = vmul.f32 %v3789, %v4125
        %v4174 = vmul.f32 %v3790, %v4126
        %v4175 = vmul.f32 %v3791, %v4127
        %v4176 = vmul.f32 %v3792, %v4128
        %v4177 = vmul.f32 %v3793, %v4129
        %v4178 = vmul.f32 %v3794, %v4130
        %v4179 = vmul.f32 %v3795, %v4131
        %v4180 = vmul.f32 %v3796, %v4132
        %v4181 = vmul.f32 %v3797, %v4133
        %v4182 = vmul.f32 %v3798, %v4134
        %v4183 = vmul.f32 %v3799, %v4135
        %v4184 = vmul.f32 %v3800, %v4136
        %v4185 = vmul.f32 %v3801, %v4137
        %v4186 = vmul.f32 %v3802, %v4138
        %v4187 = vmul.f32 %v3803, %v4139
        %v4188 = vmul.f32 %v3804, %v4140
        %v4189 = vmul.f32 %v3805, %v4141
        %v4190 = vmul.f32 %v3806, %v4142
        %v4191 = vmul.f32 %v3807, %v4143
        %v4192 = vmul.f32 %v3808, %v4144
        %v4193 = vmul.f32 %v3809, %v4145
        %v4194 = vmul.f32 %v3810, %v4146
        %v4195 = vmul.f32 %v3811, %v4147
        %v4196 = vmul.f32 %v3812, %v4148
        %v4197 = vmul.f32 %v3813, %v4149
        %v4198 = vmul.f32 %v3814, %v4150
        %v4199 = vmul.f32 %v3815, %v4151
        %v4200 = vmul.f32 %v3816, %v4152
        %v4201 = vmul.f32 %v3817, %v4153
        %v4202 = vmul.f32 %v3818, %v4154
        %v4203 = vmul.f32 %v3819, %v4155
        %v4204 = vmul.f32 %v3820, %v4156
        %v4205 = vmul.f32 %v3821, %v4157
        %v4206 = vmul.f32 %v3822, %v4158
        %v4207 = vmul.f32 %v3823, %v4159
        %v4208 = vmul.f32 %v3824, %v4160
        %v4209 = vmul.f32 %v3825, %v4161
        %v4210 = vmul.f32 %v3826, %v4162
        %v4211 = vmul.f32 %v3827, %v4163
        %v4212 = vmul.f32 %v3828, %v4164
        %v4213 = vmul.f32 %v3829, %v4165
        %v4214 = vmul.f32 %v3830, %v4166
        %v4215 = vmul.f32 %v4167, %v1041
        %v4216 = vmul.f32 %v4168, %v1041
        %v4217 = vmul.f32 %v4169, %v1041
        %v4218 = vmul.f32 %v4170, %v1041
        %v4219 = vmul.f32 %v4171, %v1041
        %v4220 = vmul.f32 %v4172, %v1041
        %v4221 = vmul.f32 %v4173, %v1041
        %v4222 = vmul.f32 %v4174, %v1041
        %v4223 = vmul.f32 %v4175, %v1041
        %v4224 = vmul.f32 %v4176, %v1041
        %v4225 = vmul.f32 %v4177, %v1041
        %v4226 = vmul.f32 %v4178, %v1041
        %v4227 = vmul.f32 %v4179, %v1041
        %v4228 = vmul.f32 %v4180, %v1041
        %v4229 = vmul.f32 %v4181, %v1041
        %v4230 = vmul.f32 %v4182, %v1041
        %v4231 = vmul.f32 %v4183, %v1041
        %v4232 = vmul.f32 %v4184, %v1041
        %v4233 = vmul.f32 %v4185, %v1041
        %v4234 = vmul.f32 %v4186, %v1041
        %v4235 = vmul.f32 %v4187, %v1041
        %v4236 = vmul.f32 %v4188, %v1041
        %v4237 = vmul.f32 %v4189, %v1041
        %v4238 = vmul.f32 %v4190, %v1041
        %v4239 = vmul.f32 %v4191, %v1041
        %v4240 = vmul.f32 %v4192, %v1041
        %v4241 = vmul.f32 %v4193, %v1041
        %v4242 = vmul.f32 %v4194, %v1041
        %v4243 = vmul.f32 %v4195, %v1041
        %v4244 = vmul.f32 %v4196, %v1041
        %v4245 = vmul.f32 %v4197, %v1041
        %v4246 = vmul.f32 %v4198, %v1041
        %v4247 = vmul.f32 %v4199, %v1041
        %v4248 = vmul.f32 %v4200, %v1041
        %v4249 = vmul.f32 %v4201, %v1041
        %v4250 = vmul.f32 %v4202, %v1041
        %v4251 = vmul.f32 %v4203, %v1041
        %v4252 = vmul.f32 %v4204, %v1041
        %v4253 = vmul.f32 %v4205, %v1041
        %v4254 = vmul.f32 %v4206, %v1041
        %v4255 = vmul.f32 %v4207, %v1041
        %v4256 = vmul.f32 %v4208, %v1041
        %v4257 = vmul.f32 %v4209, %v1041
        %v4258 = vmul.f32 %v4210, %v1041
        %v4259 = vmul.f32 %v4211, %v1041
        %v4260 = vmul.f32 %v4212, %v1041
        %v4261 = vmul.f32 %v4213, %v1041
        %v4262 = vmul.f32 %v4214, %v1041
        %v4263 = vadd.f32 %v4215, %v1095
        %v4264 = vadd.f32 %v4216, %v1095
        %v4265 = vadd.f32 %v4217, %v1095
        %v4266 = vadd.f32 %v4218, %v1095
        %v4267 = vadd.f32 %v4219, %v1095
        %v4268 = vadd.f32 %v4220, %v1095
        %v4269 = vadd.f32 %v4221, %v1095
        %v4270 = vadd.f32 %v4222, %v1095
        %v4271 = vadd.f32 %v4223, %v1095
        %v4272 = vadd.f32 %v4224, %v1095
        %v4273 = vadd.f32 %v4225, %v1095
        %v4274 = vadd.f32 %v4226, %v1095
        %v4275 = vadd.f32 %v4227, %v1095
        %v4276 = vadd.f32 %v4228, %v1095
        %v4277 = vadd.f32 %v4229, %v1095
        %v4278 = vadd.f32 %v4230, %v1095
        %v4279 = vadd.f32 %v4231, %v1095
        %v4280 = vadd.f32 %v4232, %v1095
        %v4281 = vadd.f32 %v4233, %v1095
        %v4282 = vadd.f32 %v4234, %v1095
        %v4283 = vadd.f32 %v4235, %v1095
        %v4284 = vadd.f32 %v4236, %v1095
        %v4285 = vadd.f32 %v4237, %v1095
        %v4286 = vadd.f32 %v4238, %v1095
        %v4287 = vadd.f32 %v4239, %v1095
        %v4288 = vadd.f32 %v4240, %v1095
        %v4289 = vadd.f32 %v4241, %v1095
        %v4290 = vadd.f32 %v4242, %v1095
        %v4291 = vadd.f32 %v4243, %v1095
        %v4292 = vadd.f32 %v4244, %v1095
        %v4293 = vadd.f32 %v4245, %v1095
        %v4294 = vadd.f32 %v4246, %v1095
        %v4295 = vadd.f32 %v4247, %v1095
        %v4296 = vadd.f32 %v4248, %v1095
        %v4297 = vadd.f32 %v4249, %v1095
        %v4298 = vadd.f32 %v4250, %v1095
        %v4299 = vadd.f32 %v4251, %v1095
        %v4300 = vadd.f32 %v4252, %v1095
        %v4301 = vadd.f32 %v4253, %v1095
        %v4302 = vadd.f32 %v4254, %v1095
        %v4303 = vadd.f32 %v4255, %v1095
        %v4304 = vadd.f32 %v4256, %v1095
        %v4305 = vadd.f32 %v4257, %v1095
        %v4306 = vadd.f32 %v4258, %v1095
        %v4307 = vadd.f32 %v4259, %v1095
        %v4308 = vadd.f32 %v4260, %v1095
        %v4309 = vadd.f32 %v4261, %v1095
        %v4310 = vadd.f32 %v4262, %v1095
        %v4311 = vpack.c.bf16 %v4264, %v4263
        %v4312 = vpack.c.bf16 %v4266, %v4265
        %v4313 = vpack.c.bf16 %v4268, %v4267
        %v4314 = vpack.c.bf16 %v4270, %v4269
        %v4315 = vpack.c.bf16 %v4272, %v4271
        %v4316 = vpack.c.bf16 %v4274, %v4273
        %v4317 = vpack.c.bf16 %v4276, %v4275
        %v4318 = vpack.c.bf16 %v4278, %v4277
        %v4319 = vpack.c.bf16 %v4280, %v4279
        %v4320 = vpack.c.bf16 %v4282, %v4281
        %v4321 = vpack.c.bf16 %v4284, %v4283
        %v4322 = vpack.c.bf16 %v4286, %v4285
        %v4323 = vpack.c.bf16 %v4288, %v4287
        %v4324 = vpack.c.bf16 %v4290, %v4289
        %v4325 = vpack.c.bf16 %v4292, %v4291
        %v4326 = vpack.c.bf16 %v4294, %v4293
        %v4327 = vpack.c.bf16 %v4296, %v4295
        %v4328 = vpack.c.bf16 %v4298, %v4297
        %v4329 = vpack.c.bf16 %v4300, %v4299
        %v4330 = vpack.c.bf16 %v4302, %v4301
        %v4331 = vpack.c.bf16 %v4304, %v4303
        %v4332 = vpack.c.bf16 %v4306, %v4305
        %v4333 = vpack.c.bf16 %v4308, %v4307
        %v4334 = vpack.c.bf16 %v4310, %v4309
        %s4335 = scalar_lea.vmem %s4, 16
        %v4336 = vld [vmem:[%s4335] sm:$0xf]
        %v4337 = vld [vmem:[%s4335 + $0x4] sm:$0xf]
        %v4338 = vld [vmem:[%s4335 + $0x8] sm:$0xf]
        %v4339 = vld [vmem:[%s4335 + $0xc] sm:$0xf]
        %s4340 = scalar_lea.vmem %s5, 1
        %v4341 = vld [vmem:[%s4340] sm:$0x1]
        %v4343 = vlaneseq
        %v4344 = vshrl.u32 %v4343, 7
        %v4345 = vsub.s32 0, %v4344
        %v4346 = vrot.slane %v4341, %v4345
        %v4352 = vunpack.c.l.b16 %v4336
        %v4353 = vunpack.c.l.b16 %v4337
        %v4354 = vunpack.c.l.b16 %v4338
        %v4355 = vunpack.c.l.b16 %v4339
        %v4356 = vpack.c.b16 %v4353, %v4352
        %v4357 = vpack.c.b16 %v4355, %v4354
        %v4361 = vsel %vm411, %v4311, 0
        %v4364 = vsel %vm411, %v4312, 0
        %v4367 = vsel %vm411, %v4313, 0
        %v4370 = vsel %vm411, %v4314, 0
        %v4373 = vsel %vm411, %v4315, 0
        %v4376 = vsel %vm411, %v4316, 0
        %v4379 = vsel %vm411, %v4317, 0
        %v4382 = vsel %vm411, %v4318, 0
        %v4385 = vsel %vm411, %v4319, 0
        %v4388 = vsel %vm411, %v4320, 0
        %v4391 = vsel %vm411, %v4321, 0
        %v4394 = vsel %vm411, %v4322, 0
        %v4397 = vsel %vm411, %v4323, 0
        %v4400 = vsel %vm411, %v4324, 0
        %v4403 = vsel %vm411, %v4325, 0
        %v4406 = vsel %vm411, %v4326, 0
        %v4409 = vsel %vm411, %v4327, 0
        %v4412 = vsel %vm411, %v4328, 0
        %v4415 = vsel %vm411, %v4329, 0
        %v4418 = vsel %vm411, %v4330, 0
        %v4421 = vsel %vm411, %v4331, 0
        %v4424 = vsel %vm411, %v4332, 0
        %v4427 = vsel %vm411, %v4333, 0
        %v4430 = vsel %vm411, %v4334, 0
        %4432 = vmatprep.subr.bf16.mxu0 0
        %4433 = vmatpush1.bf16.msra.mxu0 %v4356
        %4434 = vmatprep.subr.bf16.mxu0 0
        %4435 = vmatpush1.bf16.msra.mxu0 %v4357
        %4436 = vmatprep.subr.bf16.mxu0 0
        %4437 = vmatpush1.bf16.msra.mxu0 0
        %4438 = vmatprep.subr.bf16.mxu0 0
        %4439 = vmatpush1.bf16.msra.mxu0 0
        %4440 = vmatprep.subr.bf16.mxu0 0
        %4441 = vmatpush1.bf16.msra.mxu0 0
        %4442 = vmatprep.subr.bf16.mxu0 0
        %4443 = vmatpush1.bf16.msra.mxu0 0
        %4444 = vmatprep.subr.bf16.mxu0 0
        %4445 = vmatpush1.bf16.msra.mxu0 0
        %4446 = vmatprep.subr.bf16.mxu0 0
        %4447 = vmatpush1.bf16.msra.mxu0 0
        %4448 = vmatprep.subr.bf16.mxu0 0
        %4449 = vmatpush1.bf16.msra.mxu0 0
        %4450 = vmatprep.subr.bf16.mxu0 0
        %4451 = vmatpush1.bf16.msra.mxu0 0
        %4452 = vmatprep.subr.bf16.mxu0 0
        %4453 = vmatpush1.bf16.msra.mxu0 0
        %4454 = vmatprep.subr.bf16.mxu0 0
        %4455 = vmatpush1.bf16.msra.mxu0 0
        %4456 = vmatprep.subr.bf16.mxu0 0
        %4457 = vmatpush1.bf16.msra.mxu0 0
        %4458 = vmatprep.subr.bf16.mxu0 0
        %4459 = vmatpush1.bf16.msra.mxu0 0
        %4460 = vmatprep.subr.bf16.mxu0 0
        %4461 = vmatpush1.bf16.msra.mxu0 0
        %4462 = vmatprep.subr.bf16.mxu0 0
        %4463 = vmatpush1.bf16.msra.mxu0 0
        %4464 = vmatprep.mubr.bf16.mxu0 0
        %4465 = vmatmul.mubr.bf16.gmra.mrb[0].mxu0 %v4361
        %v4466 = vpop.f32.mrb[0].mxu0
        %v4467 = vadd.f32 %v4346, %v4466
        %v4468 = vpop.f32.mrb[0].mxu0
        %v4469 = vpop.f32.mrb[0].mxu0
        %v4470 = vadd.f32 %v4346, %v4469
        %v4471 = vpop.f32.mrb[0].mxu0
        %4472 = vmatprep.mubr.bf16.mxu0 0
        %4473 = vmatmul.mubr.bf16.gmra.mrb[0].mxu0 %v4364
        %v4474 = vpop.f32.mrb[0].mxu0
        %v4475 = vadd.f32 %v4346, %v4474
        %v4476 = vpop.f32.mrb[0].mxu0
        %v4477 = vpop.f32.mrb[0].mxu0
        %v4478 = vadd.f32 %v4346, %v4477
        %v4479 = vpop.f32.mrb[0].mxu0
        %4480 = vmatprep.mubr.bf16.mxu0 0
        %4481 = vmatmul.mubr.bf16.gmra.mrb[0].mxu0 %v4367
        %v4482 = vpop.f32.mrb[0].mxu0
        %v4483 = vadd.f32 %v4346, %v4482
        %v4484 = vpop.f32.mrb[0].mxu0
        %v4485 = vpop.f32.mrb[0].mxu0
        %v4486 = vadd.f32 %v4346, %v4485
        %v4487 = vpop.f32.mrb[0].mxu0
        %4488 = vmatprep.mubr.bf16.mxu0 0
        %4489 = vmatmul.mubr.bf16.gmra.mrb[0].mxu0 %v4370
        %v4490 = vpop.f32.mrb[0].mxu0
        %v4491 = vadd.f32 %v4346, %v4490
        %v4492 = vpop.f32.mrb[0].mxu0
        %v4493 = vpop.f32.mrb[0].mxu0
        %v4494 = vadd.f32 %v4346, %v4493
        %v4495 = vpop.f32.mrb[0].mxu0
        %4496 = vmatprep.mubr.bf16.mxu0 0
        %4497 = vmatmul.mubr.bf16.gmra.mrb[0].mxu0 %v4373
        %v4498 = vpop.f32.mrb[0].mxu0
        %v4499 = vadd.f32 %v4346, %v4498
        %v4500 = vpop.f32.mrb[0].mxu0
        %v4501 = vpop.f32.mrb[0].mxu0
        %v4502 = vadd.f32 %v4346, %v4501
        %v4503 = vpop.f32.mrb[0].mxu0
        %4504 = vmatprep.mubr.bf16.mxu0 0
        %4505 = vmatmul.mubr.bf16.gmra.mrb[0].mxu0 %v4376
        %v4506 = vpop.f32.mrb[0].mxu0
        %v4507 = vadd.f32 %v4346, %v4506
        %v4508 = vpop.f32.mrb[0].mxu0
        %v4509 = vpop.f32.mrb[0].mxu0
        %v4510 = vadd.f32 %v4346, %v4509
        %v4511 = vpop.f32.mrb[0].mxu0
        %4512 = vmatprep.mubr.bf16.mxu0 0
        %4513 = vmatmul.mubr.bf16.gmra.mrb[0].mxu0 %v4379
        %v4514 = vpop.f32.mrb[0].mxu0
        %v4515 = vadd.f32 %v4346, %v4514
        %v4516 = vpop.f32.mrb[0].mxu0
        %v4517 = vpop.f32.mrb[0].mxu0
        %v4518 = vadd.f32 %v4346, %v4517
        %v4519 = vpop.f32.mrb[0].mxu0
        %4520 = vmatprep.mubr.bf16.mxu0 0
        %4521 = vmatmul.mubr.bf16.gmra.mrb[0].mxu0 %v4382
        %v4522 = vpop.f32.mrb[0].mxu0
        %v4523 = vadd.f32 %v4346, %v4522
        %v4524 = vpop.f32.mrb[0].mxu0
        %v4525 = vpop.f32.mrb[0].mxu0
        %v4526 = vadd.f32 %v4346, %v4525
        %v4527 = vpop.f32.mrb[0].mxu0
        %4528 = vmatprep.mubr.bf16.mxu0 0
        %4529 = vmatmul.mubr.bf16.gmra.mrb[0].mxu0 %v4385
        %v4530 = vpop.f32.mrb[0].mxu0
        %v4531 = vadd.f32 %v4346, %v4530
        %v4532 = vpop.f32.mrb[0].mxu0
        %v4533 = vpop.f32.mrb[0].mxu0
        %v4534 = vadd.f32 %v4346, %v4533
        %v4535 = vpop.f32.mrb[0].mxu0
        %4536 = vmatprep.mubr.bf16.mxu0 0
        %4537 = vmatmul.mubr.bf16.gmra.mrb[0].mxu0 %v4388
        %v4538 = vpop.f32.mrb[0].mxu0
        %v4539 = vadd.f32 %v4346, %v4538
        %v4540 = vpop.f32.mrb[0].mxu0
        %v4541 = vpop.f32.mrb[0].mxu0
        %v4542 = vadd.f32 %v4346, %v4541
        %v4543 = vpop.f32.mrb[0].mxu0
        %4544 = vmatprep.mubr.bf16.mxu0 0
        %4545 = vmatmul.mubr.bf16.gmra.mrb[0].mxu0 %v4391
        %v4546 = vpop.f32.mrb[0].mxu0
        %v4547 = vadd.f32 %v4346, %v4546
        %v4548 = vpop.f32.mrb[0].mxu0
        %v4549 = vpop.f32.mrb[0].mxu0
        %v4550 = vadd.f32 %v4346, %v4549
        %v4551 = vpop.f32.mrb[0].mxu0
        %4552 = vmatprep.mubr.bf16.mxu0 0
        %4553 = vmatmul.mubr.bf16.gmra.mrb[0].mxu0 %v4394
        %v4554 = vpop.f32.mrb[0].mxu0
        %v4555 = vadd.f32 %v4346, %v4554
        %v4556 = vpop.f32.mrb[0].mxu0
        %v4557 = vpop.f32.mrb[0].mxu0
        %v4558 = vadd.f32 %v4346, %v4557
        %v4559 = vpop.f32.mrb[0].mxu0
        %4560 = vmatprep.mubr.bf16.mxu0 0
        %4561 = vmatmul.mubr.bf16.gmra.mrb[0].mxu0 %v4397
        %v4562 = vpop.f32.mrb[0].mxu0
        %v4563 = vadd.f32 %v4346, %v4562
        %v4564 = vpop.f32.mrb[0].mxu0
        %v4565 = vpop.f32.mrb[0].mxu0
        %v4566 = vadd.f32 %v4346, %v4565
        %v4567 = vpop.f32.mrb[0].mxu0
        %4568 = vmatprep.mubr.bf16.mxu0 0
        %4569 = vmatmul.mubr.bf16.gmra.mrb[0].mxu0 %v4400
        %v4570 = vpop.f32.mrb[0].mxu0
        %v4571 = vadd.f32 %v4346, %v4570
        %v4572 = vpop.f32.mrb[0].mxu0
        %v4573 = vpop.f32.mrb[0].mxu0
        %v4574 = vadd.f32 %v4346, %v4573
        %v4575 = vpop.f32.mrb[0].mxu0
        %4576 = vmatprep.mubr.bf16.mxu0 0
        %4577 = vmatmul.mubr.bf16.gmra.mrb[0].mxu0 %v4403
        %v4578 = vpop.f32.mrb[0].mxu0
        %v4579 = vadd.f32 %v4346, %v4578
        %v4580 = vpop.f32.mrb[0].mxu0
        %v4581 = vpop.f32.mrb[0].mxu0
        %v4582 = vadd.f32 %v4346, %v4581
        %v4583 = vpop.f32.mrb[0].mxu0
        %4584 = vmatprep.mubr.bf16.mxu0 0
        %4585 = vmatmul.mubr.bf16.gmra.mrb[0].mxu0 %v4406
        %v4586 = vpop.f32.mrb[0].mxu0
        %v4587 = vadd.f32 %v4346, %v4586
        %v4588 = vpop.f32.mrb[0].mxu0
        %v4589 = vpop.f32.mrb[0].mxu0
        %v4590 = vadd.f32 %v4346, %v4589
        %v4591 = vpop.f32.mrb[0].mxu0
        %4592 = vmatprep.mubr.bf16.mxu0 0
        %4593 = vmatmul.mubr.bf16.gmra.mrb[0].mxu0 %v4409
        %v4594 = vpop.f32.mrb[0].mxu0
        %v4595 = vadd.f32 %v4346, %v4594
        %v4596 = vpop.f32.mrb[0].mxu0
        %v4597 = vpop.f32.mrb[0].mxu0
        %v4598 = vadd.f32 %v4346, %v4597
        %v4599 = vpop.f32.mrb[0].mxu0
        %4600 = vmatprep.mubr.bf16.mxu0 0
        %4601 = vmatmul.mubr.bf16.gmra.mrb[0].mxu0 %v4412
        %v4602 = vpop.f32.mrb[0].mxu0
        %v4603 = vadd.f32 %v4346, %v4602
        %v4604 = vpop.f32.mrb[0].mxu0
        %v4605 = vpop.f32.mrb[0].mxu0
        %v4606 = vadd.f32 %v4346, %v4605
        %v4607 = vpop.f32.mrb[0].mxu0
        %4608 = vmatprep.mubr.bf16.mxu0 0
        %4609 = vmatmul.mubr.bf16.gmra.mrb[0].mxu0 %v4415
        %v4610 = vpop.f32.mrb[0].mxu0
        %v4611 = vadd.f32 %v4346, %v4610
        %v4612 = vpop.f32.mrb[0].mxu0
        %v4613 = vpop.f32.mrb[0].mxu0
        %v4614 = vadd.f32 %v4346, %v4613
        %v4615 = vpop.f32.mrb[0].mxu0
        %4616 = vmatprep.mubr.bf16.mxu0 0
        %4617 = vmatmul.mubr.bf16.gmra.mrb[0].mxu0 %v4418
        %v4618 = vpop.f32.mrb[0].mxu0
        %v4619 = vadd.f32 %v4346, %v4618
        %v4620 = vpop.f32.mrb[0].mxu0
        %v4621 = vpop.f32.mrb[0].mxu0
        %v4622 = vadd.f32 %v4346, %v4621
        %v4623 = vpop.f32.mrb[0].mxu0
        %4624 = vmatprep.mubr.bf16.mxu0 0
        %4625 = vmatmul.mubr.bf16.gmra.mrb[0].mxu0 %v4421
        %v4626 = vpop.f32.mrb[0].mxu0
        %v4627 = vadd.f32 %v4346, %v4626
        %v4628 = vpop.f32.mrb[0].mxu0
        %v4629 = vpop.f32.mrb[0].mxu0
        %v4630 = vadd.f32 %v4346, %v4629
        %v4631 = vpop.f32.mrb[0].mxu0
        %4632 = vmatprep.mubr.bf16.mxu0 0
        %4633 = vmatmul.mubr.bf16.gmra.mrb[0].mxu0 %v4424
        %v4634 = vpop.f32.mrb[0].mxu0
        %v4635 = vadd.f32 %v4346, %v4634
        %v4636 = vpop.f32.mrb[0].mxu0
        %v4637 = vpop.f32.mrb[0].mxu0
        %v4638 = vadd.f32 %v4346, %v4637
        %v4639 = vpop.f32.mrb[0].mxu0
        %4640 = vmatprep.mubr.bf16.mxu0 0
        %4641 = vmatmul.mubr.bf16.gmra.mrb[0].mxu0 %v4427
        %v4642 = vpop.f32.mrb[0].mxu0
        %v4643 = vadd.f32 %v4346, %v4642
        %v4644 = vpop.f32.mrb[0].mxu0
        %v4645 = vpop.f32.mrb[0].mxu0
        %v4646 = vadd.f32 %v4346, %v4645
        %v4647 = vpop.f32.mrb[0].mxu0
        %4648 = vmatprep.mubr.bf16.mxu0 0
        %4649 = vmatmul.mubr.bf16.gmra.mrb[0].mxu0 %v4430
        %v4650 = vpop.f32.mrb[0].mxu0
        %v4651 = vadd.f32 %v4346, %v4650
        %v4652 = vpop.f32.mrb[0].mxu0
        %v4653 = vpop.f32.mrb[0].mxu0
        %v4654 = vadd.f32 %v4346, %v4653
        %v4655 = vpop.f32.mrb[0].mxu0
        %4656 = vdwg.mxu0
        %v4657 = vpack.c.bf16 %v4470, %v4467
        %v4658 = vpack.c.bf16 %v4478, %v4475
        %v4659 = vpack.c.bf16 %v4486, %v4483
        %v4660 = vpack.c.bf16 %v4494, %v4491
        %v4661 = vpack.c.bf16 %v4502, %v4499
        %v4662 = vpack.c.bf16 %v4510, %v4507
        %v4663 = vpack.c.bf16 %v4518, %v4515
        %v4664 = vpack.c.bf16 %v4526, %v4523
        %v4665 = vpack.c.bf16 %v4534, %v4531
        %v4666 = vpack.c.bf16 %v4542, %v4539
        %v4667 = vpack.c.bf16 %v4550, %v4547
        %v4668 = vpack.c.bf16 %v4558, %v4555
        %v4669 = vpack.c.bf16 %v4566, %v4563
        %v4670 = vpack.c.bf16 %v4574, %v4571
        %v4671 = vpack.c.bf16 %v4582, %v4579
        %v4672 = vpack.c.bf16 %v4590, %v4587
        %v4673 = vpack.c.bf16 %v4598, %v4595
        %v4674 = vpack.c.bf16 %v4606, %v4603
        %v4675 = vpack.c.bf16 %v4614, %v4611
        %v4676 = vpack.c.bf16 %v4622, %v4619
        %v4677 = vpack.c.bf16 %v4630, %v4627
        %v4678 = vpack.c.bf16 %v4638, %v4635
        %v4679 = vpack.c.bf16 %v4646, %v4643
        %v4680 = vpack.c.bf16 %v4654, %v4651
        %4687 = vrot.lane.b32.xlu0 %v4657, 96
        %v4688 = vpop.permute.xlu0 %4687
        %4689 = vrot.lane.b32.xlu0 %v4658, 96
        %v4690 = vpop.permute.xlu0 %4689
        %4691 = vrot.lane.b32.xlu0 %v4659, 96
        %v4692 = vpop.permute.xlu0 %4691
        %4693 = vrot.lane.b32.xlu0 %v4660, 96
        %v4694 = vpop.permute.xlu0 %4693
        %4695 = vrot.lane.b32.xlu0 %v4661, 96
        %v4696 = vpop.permute.xlu0 %4695
        %4697 = vrot.lane.b32.xlu0 %v4662, 96
        %v4698 = vpop.permute.xlu0 %4697
        %v4700 = vsel %vm411, %v4657, 0
        %v4703 = vsel %vm411, %v4658, 0
        %v4706 = vsel %vm411, %v4659, 0
        %v4709 = vsel %vm411, %v4660, 0
        %v4712 = vsel %vm411, %v4661, 0
        %v4715 = vsel %vm411, %v4662, 0
        %v4718 = vsel %vm411, %v4688, 0
        %v4721 = vsel %vm411, %v4690, 0
        %v4724 = vsel %vm411, %v4692, 0
        %v4727 = vsel %vm411, %v4694, 0
        %v4730 = vsel %vm411, %v4696, 0
        %v4733 = vsel %vm411, %v4698, 0
        %4735 = vmatprep.subr.bf16.mxu0 0
        %4736 = vmatpush1.bf16.xpose.msra.mxu0 %v4718
        %4737 = vmatprep.subr.bf16.mxu0 0
        %4738 = vmatpush1.bf16.xpose.msra.mxu0 %v4721
        %4739 = vmatprep.subr.bf16.mxu0 0
        %4740 = vmatpush1.bf16.xpose.msra.mxu0 %v4724
        %4741 = vmatprep.subr.bf16.mxu0 0
        %4742 = vmatpush1.bf16.xpose.msra.mxu0 %v4727
        %4743 = vmatprep.subr.bf16.mxu0 0
        %4744 = vmatpush1.bf16.xpose.msra.mxu0 %v4730
        %4745 = vmatprep.subr.bf16.mxu0 0
        %4746 = vmatpush1.bf16.xpose.msra.mxu0 %v4733
        %4747 = vmatprep.subr.bf16.mxu0 0
        %4748 = vmatpush1.bf16.xpose.msra.mxu0 0
        %4749 = vmatprep.subr.bf16.mxu0 0
        %4750 = vmatpush1.bf16.xpose.msra.mxu0 0
        %4751 = vmatprep.subr.bf16.mxu0 0
        %4752 = vmatpush1.bf16.xpose.msra.mxu0 0
        %4753 = vmatprep.subr.bf16.mxu0 0
        %4754 = vmatpush1.bf16.xpose.msra.mxu0 0
        %4755 = vmatprep.subr.bf16.mxu0 0
        %4756 = vmatpush1.bf16.xpose.msra.mxu0 0
        %4757 = vmatprep.subr.bf16.mxu0 0
        %4758 = vmatpush1.bf16.xpose.msra.mxu0 0
        %4759 = vmatprep.subr.bf16.mxu0 0
        %4760 = vmatpush1.bf16.xpose.msra.mxu0 0
        %4761 = vmatprep.subr.bf16.mxu0 0
        %4762 = vmatpush1.bf16.xpose.msra.mxu0 0
        %4763 = vmatprep.subr.bf16.mxu0 0
        %4764 = vmatpush1.bf16.xpose.msra.mxu0 0
        %4765 = vmatprep.subr.bf16.mxu0 0
        %4766 = vmatpush1.bf16.xpose.msra.mxu0 0
        %4767 = vmatprep.mubr.bf16.mxu0 0
        %4768 = vmatmul.mubr.bf16.gmra.mrb[0].mxu0 %v4700
        %v4769 = vpop.f32.mrb[0].mxu0
        %v4770 = vadd.f32 %v1244, %v4769
        %v4771 = vpop.f32.mrb[0].mxu0
        %v4772 = vpop.f32.mrb[0].mxu0
        %v4773 = vadd.f32 %v1244, %v4772
        %v4774 = vpop.f32.mrb[0].mxu0
        %4775 = vmatprep.mubr.bf16.mxu0 0
        %4776 = vmatmul.mubr.bf16.gmra.mrb[0].mxu0 %v4703
        %v4777 = vpop.f32.mrb[0].mxu0
        %v4778 = vadd.f32 %v1244, %v4777
        %v4779 = vpop.f32.mrb[0].mxu0
        %v4780 = vpop.f32.mrb[0].mxu0
        %v4781 = vadd.f32 %v1244, %v4780
        %v4782 = vpop.f32.mrb[0].mxu0
        %4783 = vmatprep.mubr.bf16.mxu0 0
        %4784 = vmatmul.mubr.bf16.gmra.mrb[0].mxu0 %v4706
        %v4785 = vpop.f32.mrb[0].mxu0
        %v4786 = vadd.f32 %v1244, %v4785
        %v4787 = vpop.f32.mrb[0].mxu0
        %v4788 = vpop.f32.mrb[0].mxu0
        %v4789 = vadd.f32 %v1244, %v4788
        %v4790 = vpop.f32.mrb[0].mxu0
        %4791 = vmatprep.mubr.bf16.mxu0 0
        %4792 = vmatmul.mubr.bf16.gmra.mrb[0].mxu0 %v4709
        %v4793 = vpop.f32.mrb[0].mxu0
        %v4794 = vadd.f32 %v1244, %v4793
        %v4795 = vpop.f32.mrb[0].mxu0
        %v4796 = vpop.f32.mrb[0].mxu0
        %v4797 = vadd.f32 %v1244, %v4796
        %v4798 = vpop.f32.mrb[0].mxu0
        %4799 = vmatprep.mubr.bf16.mxu0 0
        %4800 = vmatmul.mubr.bf16.gmra.mrb[0].mxu0 %v4712
        %v4801 = vpop.f32.mrb[0].mxu0
        %v4802 = vadd.f32 %v1244, %v4801
        %v4803 = vpop.f32.mrb[0].mxu0
        %v4804 = vpop.f32.mrb[0].mxu0
        %v4805 = vadd.f32 %v1244, %v4804
        %v4806 = vpop.f32.mrb[0].mxu0
        %4807 = vmatprep.mubr.bf16.mxu0 0
        %4808 = vmatmul.mubr.bf16.gmra.mrb[0].mxu0 %v4715
        %v4809 = vpop.f32.mrb[0].mxu0
        %v4810 = vadd.f32 %v1244, %v4809
        %v4811 = vpop.f32.mrb[0].mxu0
        %v4812 = vpop.f32.mrb[0].mxu0
        %v4813 = vadd.f32 %v1244, %v4812
        %v4814 = vpop.f32.mrb[0].mxu0
        %4815 = vdwg.mxu0
        %v4816 = vsel %vm1773, %v4770, -inf
        %4817 = vmax.xlane.f32.xlu0 %v4816
        %v4818 = vpop.xlane.xlu0 %4817
        %v4819 = vsel %vm1773, %v4773, -inf
        %4820 = vmax.xlane.f32.xlu0 %v4819
        %v4821 = vpop.xlane.xlu0 %4820
        %v4822 = vsel %vm1773, %v4778, -inf
        %4823 = vmax.xlane.f32.xlu0 %v4822
        %v4824 = vpop.xlane.xlu0 %4823
        %v4825 = vsel %vm1773, %v4781, -inf
        %4826 = vmax.xlane.f32.xlu0 %v4825
        %v4827 = vpop.xlane.xlu0 %4826
        %v4828 = vsel %vm1773, %v4786, -inf
        %4829 = vmax.xlane.f32.xlu0 %v4828
        %v4830 = vpop.xlane.xlu0 %4829
        %v4831 = vsel %vm1773, %v4789, -inf
        %4832 = vmax.xlane.f32.xlu0 %v4831
        %v4833 = vpop.xlane.xlu0 %4832
        %v4834 = vsel %vm1773, %v4794, -inf
        %4835 = vmax.xlane.f32.xlu0 %v4834
        %v4836 = vpop.xlane.xlu0 %4835
        %v4837 = vsel %vm1773, %v4797, -inf
        %4838 = vmax.xlane.f32.xlu0 %v4837
        %v4839 = vpop.xlane.xlu0 %4838
        %v4840 = vsel %vm1773, %v4802, -inf
        %4841 = vmax.xlane.f32.xlu0 %v4840
        %v4842 = vpop.xlane.xlu0 %4841
        %v4843 = vsel %vm1773, %v4805, -inf
        %4844 = vmax.xlane.f32.xlu0 %v4843
        %v4845 = vpop.xlane.xlu0 %4844
        %v4846 = vsel %vm1773, %v4810, -inf
        %4847 = vmax.xlane.f32.xlu0 %v4846
        %v4848 = vpop.xlane.xlu0 %4847
        %v4849 = vsel %vm1773, %v4813, -inf
        %4850 = vmax.xlane.f32.xlu0 %v4849
        %v4851 = vpop.xlane.xlu0 %4850
        %v4852 = vsub.f32 %v4770, %v4818
        %v4853 = vsub.f32 %v4773, %v4821
        %v4854 = vsub.f32 %v4778, %v4824
        %v4855 = vsub.f32 %v4781, %v4827
        %v4856 = vsub.f32 %v4786, %v4830
        %v4857 = vsub.f32 %v4789, %v4833
        %v4858 = vsub.f32 %v4794, %v4836
        %v4859 = vsub.f32 %v4797, %v4839
        %v4860 = vsub.f32 %v4802, %v4842
        %v4861 = vsub.f32 %v4805, %v4845
        %v4862 = vsub.f32 %v4810, %v4848
        %v4863 = vsub.f32 %v4813, %v4851
        %v4864 = vmul.f32 %v4852, 1.442695
        %v4865 = vpow.pop %v4864
        %v4866 = vmul.f32 %v4853, 1.442695
        %v4867 = vpow.pop %v4866
        %v4868 = vmul.f32 %v4854, 1.442695
        %v4869 = vpow.pop %v4868
        %v4870 = vmul.f32 %v4855, 1.442695
        %v4871 = vpow.pop %v4870
        %v4872 = vmul.f32 %v4856, 1.442695
        %v4873 = vpow.pop %v4872
        %v4874 = vmul.f32 %v4857, 1.442695
        %v4875 = vpow.pop %v4874
        %v4876 = vmul.f32 %v4858, 1.442695
        %v4877 = vpow.pop %v4876
        %v4878 = vmul.f32 %v4859, 1.442695
        %v4879 = vpow.pop %v4878
        %v4880 = vmul.f32 %v4860, 1.442695
        %v4881 = vpow.pop %v4880
        %v4882 = vmul.f32 %v4861, 1.442695
        %v4883 = vpow.pop %v4882
        %v4884 = vmul.f32 %v4862, 1.442695
        %v4885 = vpow.pop %v4884
        %v4886 = vmul.f32 %v4863, 1.442695
        %v4887 = vpow.pop %v4886
        %v4888 = vsel %vm1773, %v4865, 0.0
        %4889 = vadd.xlane.f32.xlu0 %v4888
        %v4890 = vpop.xlane.xlu0 %4889
        %v4891 = vsel %vm1773, %v4867, 0.0
        %4892 = vadd.xlane.f32.xlu0 %v4891
        %v4893 = vpop.xlane.xlu0 %4892
        %v4894 = vsel %vm1773, %v4869, 0.0
        %4895 = vadd.xlane.f32.xlu0 %v4894
        %v4896 = vpop.xlane.xlu0 %4895
        %v4897 = vsel %vm1773, %v4871, 0.0
        %4898 = vadd.xlane.f32.xlu0 %v4897
        %v4899 = vpop.xlane.xlu0 %4898
        %v4900 = vsel %vm1773, %v4873, 0.0
        %4901 = vadd.xlane.f32.xlu0 %v4900
        %v4902 = vpop.xlane.xlu0 %4901
        %v4903 = vsel %vm1773, %v4875, 0.0
        %4904 = vadd.xlane.f32.xlu0 %v4903
        %v4905 = vpop.xlane.xlu0 %4904
        %v4906 = vsel %vm1773, %v4877, 0.0
        %4907 = vadd.xlane.f32.xlu0 %v4906
        %v4908 = vpop.xlane.xlu0 %4907
        %v4909 = vsel %vm1773, %v4879, 0.0
        %4910 = vadd.xlane.f32.xlu0 %v4909
        %v4911 = vpop.xlane.xlu0 %4910
        %v4912 = vsel %vm1773, %v4881, 0.0
        %4913 = vadd.xlane.f32.xlu0 %v4912
        %v4914 = vpop.xlane.xlu0 %4913
        %v4915 = vsel %vm1773, %v4883, 0.0
        %4916 = vadd.xlane.f32.xlu0 %v4915
        %v4917 = vpop.xlane.xlu0 %4916
        %v4918 = vsel %vm1773, %v4885, 0.0
        %4919 = vadd.xlane.f32.xlu0 %v4918
        %v4920 = vpop.xlane.xlu0 %4919
        %v4921 = vsel %vm1773, %v4887, 0.0
        %4922 = vadd.xlane.f32.xlu0 %v4921
        %v4923 = vpop.xlane.xlu0 %4922
        %v4924 = vrcp.pop %v4890
        %v4925 = vrcp.pop %v4893
        %v4926 = vrcp.pop %v4896
        %v4927 = vrcp.pop %v4899
        %v4928 = vrcp.pop %v4902
        %v4929 = vrcp.pop %v4905
        %v4930 = vrcp.pop %v4908
        %v4931 = vrcp.pop %v4911
        %v4932 = vrcp.pop %v4914
        %v4933 = vrcp.pop %v4917
        %v4934 = vrcp.pop %v4920
        %v4935 = vrcp.pop %v4923
        %v4936 = vmul.f32 %v4865, %v4924
        %v4937 = vmul.f32 %v4867, %v4925
        %v4938 = vmul.f32 %v4869, %v4926
        %v4939 = vmul.f32 %v4871, %v4927
        %v4940 = vmul.f32 %v4873, %v4928
        %v4941 = vmul.f32 %v4875, %v4929
        %v4942 = vmul.f32 %v4877, %v4930
        %v4943 = vmul.f32 %v4879, %v4931
        %v4944 = vmul.f32 %v4881, %v4932
        %v4945 = vmul.f32 %v4883, %v4933
        %v4946 = vmul.f32 %v4885, %v4934
        %v4947 = vmul.f32 %v4887, %v4935
        %v4948 = vpack.c.bf16 %v4937, %v4936
        %v4949 = vpack.c.bf16 %v4939, %v4938
        %v4950 = vpack.c.bf16 %v4941, %v4940
        %v4951 = vpack.c.bf16 %v4943, %v4942
        %v4952 = vpack.c.bf16 %v4945, %v4944
        %v4953 = vpack.c.bf16 %v4947, %v4946
        %4954 = vrot.lane.b32.xlu0 %v4657, 64
        %v4955 = vpop.permute.xlu0 %4954
        %4956 = vrot.lane.b32.xlu0 %v4658, 64
        %v4957 = vpop.permute.xlu0 %4956
        %4958 = vrot.lane.b32.xlu0 %v4659, 64
        %v4959 = vpop.permute.xlu0 %4958
        %4960 = vrot.lane.b32.xlu0 %v4660, 64
        %v4961 = vpop.permute.xlu0 %4960
        %4962 = vrot.lane.b32.xlu0 %v4661, 64
        %v4963 = vpop.permute.xlu0 %4962
        %4964 = vrot.lane.b32.xlu0 %v4662, 64
        %v4965 = vpop.permute.xlu0 %4964
        %v4973 = vsel %vm1773, %v4948, 0
        %v4976 = vsel %vm1773, %v4949, 0
        %v4979 = vsel %vm1773, %v4950, 0
        %v4982 = vsel %vm1773, %v4951, 0
        %v4985 = vsel %vm1773, %v4952, 0
        %v4988 = vsel %vm1773, %v4953, 0
        %4990 = vmatprep.subr.bf16.mxu0 0
        %4991 = vmatpush1.bf16.msra.mxu0 %v4955
        %4992 = vmatprep.subr.bf16.mxu0 0
        %4993 = vmatpush1.bf16.msra.mxu0 %v4957
        %4994 = vmatprep.subr.bf16.mxu0 0
        %4995 = vmatpush1.bf16.msra.mxu0 %v4959
        %4996 = vmatprep.subr.bf16.mxu0 0
        %4997 = vmatpush1.bf16.msra.mxu0 %v4961
        %4998 = vmatprep.subr.bf16.mxu0 0
        %4999 = vmatpush1.bf16.msra.mxu0 %v4963
        %5000 = vmatprep.subr.bf16.mxu0 0
        %5001 = vmatpush1.bf16.msra.mxu0 %v4965
        %5002 = vmatprep.subr.bf16.mxu0 0
        %5003 = vmatpush1.bf16.msra.mxu0 0
        %5004 = vmatprep.subr.bf16.mxu0 0
        %5005 = vmatpush1.bf16.msra.mxu0 0
        %5006 = vmatprep.subr.bf16.mxu0 0
        %5007 = vmatpush1.bf16.msra.mxu0 0
        %5008 = vmatprep.subr.bf16.mxu0 0
        %5009 = vmatpush1.bf16.msra.mxu0 0
        %5010 = vmatprep.subr.bf16.mxu0 0
        %5011 = vmatpush1.bf16.msra.mxu0 0
        %5012 = vmatprep.subr.bf16.mxu0 0
        %5013 = vmatpush1.bf16.msra.mxu0 0
        %5014 = vmatprep.subr.bf16.mxu0 0
        %5015 = vmatpush1.bf16.msra.mxu0 0
        %5016 = vmatprep.subr.bf16.mxu0 0
        %5017 = vmatpush1.bf16.msra.mxu0 0
        %5018 = vmatprep.subr.bf16.mxu0 0
        %5019 = vmatpush1.bf16.msra.mxu0 0
        %5020 = vmatprep.subr.bf16.mxu0 0
        %5021 = vmatpush1.bf16.msra.mxu0 0
        %5022 = vmatprep.mubr.bf16.mxu0 0
        %5023 = vmatmul.mubr.bf16.gmra.mrb[0].mxu0 %v4973
        %v5024 = vpop.f32.mrb[0].mxu0
        %v5025 = vadd.f32 0.0, %v5024
        %v5026 = vpop.f32.mrb[0].mxu0
        %v5027 = vpop.f32.mrb[0].mxu0
        %v5028 = vadd.f32 0.0, %v5027
        %v5029 = vpop.f32.mrb[0].mxu0
        %5030 = vmatprep.mubr.bf16.mxu0 0
        %5031 = vmatmul.mubr.bf16.gmra.mrb[0].mxu0 %v4976
        %v5032 = vpop.f32.mrb[0].mxu0
        %v5033 = vadd.f32 0.0, %v5032
        %v5034 = vpop.f32.mrb[0].mxu0
        %v5035 = vpop.f32.mrb[0].mxu0
        %v5036 = vadd.f32 0.0, %v5035
        %v5037 = vpop.f32.mrb[0].mxu0
        %5038 = vmatprep.mubr.bf16.mxu0 0
        %5039 = vmatmul.mubr.bf16.gmra.mrb[0].mxu0 %v4979
        %v5040 = vpop.f32.mrb[0].mxu0
        %v5041 = vadd.f32 0.0, %v5040
        %v5042 = vpop.f32.mrb[0].mxu0
        %v5043 = vpop.f32.mrb[0].mxu0
        %v5044 = vadd.f32 0.0, %v5043
        %v5045 = vpop.f32.mrb[0].mxu0
        %5046 = vmatprep.mubr.bf16.mxu0 0
        %5047 = vmatmul.mubr.bf16.gmra.mrb[0].mxu0 %v4982
        %v5048 = vpop.f32.mrb[0].mxu0
        %v5049 = vadd.f32 0.0, %v5048
        %v5050 = vpop.f32.mrb[0].mxu0
        %v5051 = vpop.f32.mrb[0].mxu0
        %v5052 = vadd.f32 0.0, %v5051
        %v5053 = vpop.f32.mrb[0].mxu0
        %5054 = vmatprep.mubr.bf16.mxu0 0
        %5055 = vmatmul.mubr.bf16.gmra.mrb[0].mxu0 %v4985
        %v5056 = vpop.f32.mrb[0].mxu0
        %v5057 = vadd.f32 0.0, %v5056
        %v5058 = vpop.f32.mrb[0].mxu0
        %v5059 = vpop.f32.mrb[0].mxu0
        %v5060 = vadd.f32 0.0, %v5059
        %v5061 = vpop.f32.mrb[0].mxu0
        %5062 = vmatprep.mubr.bf16.mxu0 0
        %5063 = vmatmul.mubr.bf16.gmra.mrb[0].mxu0 %v4988
        %v5064 = vpop.f32.mrb[0].mxu0
        %v5065 = vadd.f32 0.0, %v5064
        %v5066 = vpop.f32.mrb[0].mxu0
        %v5067 = vpop.f32.mrb[0].mxu0
        %v5068 = vadd.f32 0.0, %v5067
        %v5069 = vpop.f32.mrb[0].mxu0
        %5070 = vdwg.mxu0
        %5077 = vrot.lane.b32.xlu0 %v4663, 96
        %v5078 = vpop.permute.xlu0 %5077
        %5079 = vrot.lane.b32.xlu0 %v4664, 96
        %v5080 = vpop.permute.xlu0 %5079
        %5081 = vrot.lane.b32.xlu0 %v4665, 96
        %v5082 = vpop.permute.xlu0 %5081
        %5083 = vrot.lane.b32.xlu0 %v4666, 96
        %v5084 = vpop.permute.xlu0 %5083
        %5085 = vrot.lane.b32.xlu0 %v4667, 96
        %v5086 = vpop.permute.xlu0 %5085
        %5087 = vrot.lane.b32.xlu0 %v4668, 96
        %v5088 = vpop.permute.xlu0 %5087
        %v5090 = vsel %vm411, %v4663, 0
        %v5093 = vsel %vm411, %v4664, 0
        %v5096 = vsel %vm411, %v4665, 0
        %v5099 = vsel %vm411, %v4666, 0
        %v5102 = vsel %vm411, %v4667, 0
        %v5105 = vsel %vm411, %v4668, 0
        %v5108 = vsel %vm411, %v5078, 0
        %v5111 = vsel %vm411, %v5080, 0
        %v5114 = vsel %vm411, %v5082, 0
        %v5117 = vsel %vm411, %v5084, 0
        %v5120 = vsel %vm411, %v5086, 0
        %v5123 = vsel %vm411, %v5088, 0
        %5125 = vmatprep.subr.bf16.mxu0 0
        %5126 = vmatpush1.bf16.xpose.msra.mxu0 %v5108
        %5127 = vmatprep.subr.bf16.mxu0 0
        %5128 = vmatpush1.bf16.xpose.msra.mxu0 %v5111
        %5129 = vmatprep.subr.bf16.mxu0 0
        %5130 = vmatpush1.bf16.xpose.msra.mxu0 %v5114
        %5131 = vmatprep.subr.bf16.mxu0 0
        %5132 = vmatpush1.bf16.xpose.msra.mxu0 %v5117
        %5133 = vmatprep.subr.bf16.mxu0 0
        %5134 = vmatpush1.bf16.xpose.msra.mxu0 %v5120
        %5135 = vmatprep.subr.bf16.mxu0 0
        %5136 = vmatpush1.bf16.xpose.msra.mxu0 %v5123
        %5137 = vmatprep.subr.bf16.mxu0 0
        %5138 = vmatpush1.bf16.xpose.msra.mxu0 0
        %5139 = vmatprep.subr.bf16.mxu0 0
        %5140 = vmatpush1.bf16.xpose.msra.mxu0 0
        %5141 = vmatprep.subr.bf16.mxu0 0
        %5142 = vmatpush1.bf16.xpose.msra.mxu0 0
        %5143 = vmatprep.subr.bf16.mxu0 0
        %5144 = vmatpush1.bf16.xpose.msra.mxu0 0
        %5145 = vmatprep.subr.bf16.mxu0 0
        %5146 = vmatpush1.bf16.xpose.msra.mxu0 0
        %5147 = vmatprep.subr.bf16.mxu0 0
        %5148 = vmatpush1.bf16.xpose.msra.mxu0 0
        %5149 = vmatprep.subr.bf16.mxu0 0
        %5150 = vmatpush1.bf16.xpose.msra.mxu0 0
        %5151 = vmatprep.subr.bf16.mxu0 0
        %5152 = vmatpush1.bf16.xpose.msra.mxu0 0
        %5153 = vmatprep.subr.bf16.mxu0 0
        %5154 = vmatpush1.bf16.xpose.msra.mxu0 0
        %5155 = vmatprep.subr.bf16.mxu0 0
        %5156 = vmatpush1.bf16.xpose.msra.mxu0 0
        %5157 = vmatprep.mubr.bf16.mxu0 0
        %5158 = vmatmul.mubr.bf16.gmra.mrb[0].mxu0 %v5090
        %v5159 = vpop.f32.mrb[0].mxu0
        %v5160 = vadd.f32 %v1244, %v5159
        %v5161 = vpop.f32.mrb[0].mxu0
        %v5162 = vpop.f32.mrb[0].mxu0
        %v5163 = vadd.f32 %v1244, %v5162
        %v5164 = vpop.f32.mrb[0].mxu0
        %5165 = vmatprep.mubr.bf16.mxu0 0
        %5166 = vmatmul.mubr.bf16.gmra.mrb[0].mxu0 %v5093
        %v5167 = vpop.f32.mrb[0].mxu0
        %v5168 = vadd.f32 %v1244, %v5167
        %v5169 = vpop.f32.mrb[0].mxu0
        %v5170 = vpop.f32.mrb[0].mxu0
        %v5171 = vadd.f32 %v1244, %v5170
        %v5172 = vpop.f32.mrb[0].mxu0
        %5173 = vmatprep.mubr.bf16.mxu0 0
        %5174 = vmatmul.mubr.bf16.gmra.mrb[0].mxu0 %v5096
        %v5175 = vpop.f32.mrb[0].mxu0
        %v5176 = vadd.f32 %v1244, %v5175
        %v5177 = vpop.f32.mrb[0].mxu0
        %v5178 = vpop.f32.mrb[0].mxu0
        %v5179 = vadd.f32 %v1244, %v5178
        %v5180 = vpop.f32.mrb[0].mxu0
        %5181 = vmatprep.mubr.bf16.mxu0 0
        %5182 = vmatmul.mubr.bf16.gmra.mrb[0].mxu0 %v5099
        %v5183 = vpop.f32.mrb[0].mxu0
        %v5184 = vadd.f32 %v1244, %v5183
        %v5185 = vpop.f32.mrb[0].mxu0
        %v5186 = vpop.f32.mrb[0].mxu0
        %v5187 = vadd.f32 %v1244, %v5186
        %v5188 = vpop.f32.mrb[0].mxu0
        %5189 = vmatprep.mubr.bf16.mxu0 0
        %5190 = vmatmul.mubr.bf16.gmra.mrb[0].mxu0 %v5102
        %v5191 = vpop.f32.mrb[0].mxu0
        %v5192 = vadd.f32 %v1244, %v5191
        %v5193 = vpop.f32.mrb[0].mxu0
        %v5194 = vpop.f32.mrb[0].mxu0
        %v5195 = vadd.f32 %v1244, %v5194
        %v5196 = vpop.f32.mrb[0].mxu0
        %5197 = vmatprep.mubr.bf16.mxu0 0
        %5198 = vmatmul.mubr.bf16.gmra.mrb[0].mxu0 %v5105
        %v5199 = vpop.f32.mrb[0].mxu0
        %v5200 = vadd.f32 %v1244, %v5199
        %v5201 = vpop.f32.mrb[0].mxu0
        %v5202 = vpop.f32.mrb[0].mxu0
        %v5203 = vadd.f32 %v1244, %v5202
        %v5204 = vpop.f32.mrb[0].mxu0
        %5205 = vdwg.mxu0
        %v5206 = vsel %vm1773, %v5160, -inf
        %5207 = vmax.xlane.f32.xlu0 %v5206
        %v5208 = vpop.xlane.xlu0 %5207
        %v5209 = vsel %vm1773, %v5163, -inf
        %5210 = vmax.xlane.f32.xlu0 %v5209
        %v5211 = vpop.xlane.xlu0 %5210
        %v5212 = vsel %vm1773, %v5168, -inf
        %5213 = vmax.xlane.f32.xlu0 %v5212
        %v5214 = vpop.xlane.xlu0 %5213
        %v5215 = vsel %vm1773, %v5171, -inf
        %5216 = vmax.xlane.f32.xlu0 %v5215
        %v5217 = vpop.xlane.xlu0 %5216
        %v5218 = vsel %vm1773, %v5176, -inf
        %5219 = vmax.xlane.f32.xlu0 %v5218
        %v5220 = vpop.xlane.xlu0 %5219
        %v5221 = vsel %vm1773, %v5179, -inf
        %5222 = vmax.xlane.f32.xlu0 %v5221
        %v5223 = vpop.xlane.xlu0 %5222
        %v5224 = vsel %vm1773, %v5184, -inf
        %5225 = vmax.xlane.f32.xlu0 %v5224
        %v5226 = vpop.xlane.xlu0 %5225
        %v5227 = vsel %vm1773, %v5187, -inf
        %5228 = vmax.xlane.f32.xlu0 %v5227
        %v5229 = vpop.xlane.xlu0 %5228
        %v5230 = vsel %vm1773, %v5192, -inf
        %5231 = vmax.xlane.f32.xlu0 %v5230
        %v5232 = vpop.xlane.xlu0 %5231
        %v5233 = vsel %vm1773, %v5195, -inf
        %5234 = vmax.xlane.f32.xlu0 %v5233
        %v5235 = vpop.xlane.xlu0 %5234
        %v5236 = vsel %vm1773, %v5200, -inf
        %5237 = vmax.xlane.f32.xlu0 %v5236
        %v5238 = vpop.xlane.xlu0 %5237
        %v5239 = vsel %vm1773, %v5203, -inf
        %5240 = vmax.xlane.f32.xlu0 %v5239
        %v5241 = vpop.xlane.xlu0 %5240
        %v5242 = vsub.f32 %v5160, %v5208
        %v5243 = vsub.f32 %v5163, %v5211
        %v5244 = vsub.f32 %v5168, %v5214
        %v5245 = vsub.f32 %v5171, %v5217
        %v5246 = vsub.f32 %v5176, %v5220
        %v5247 = vsub.f32 %v5179, %v5223
        %v5248 = vsub.f32 %v5184, %v5226
        %v5249 = vsub.f32 %v5187, %v5229
        %v5250 = vsub.f32 %v5192, %v5232
        %v5251 = vsub.f32 %v5195, %v5235
        %v5252 = vsub.f32 %v5200, %v5238
        %v5253 = vsub.f32 %v5203, %v5241
        %v5254 = vmul.f32 %v5242, 1.442695
        %v5255 = vpow.pop %v5254
        %v5256 = vmul.f32 %v5243, 1.442695
        %v5257 = vpow.pop %v5256
        %v5258 = vmul.f32 %v5244, 1.442695
        %v5259 = vpow.pop %v5258
        %v5260 = vmul.f32 %v5245, 1.442695
        %v5261 = vpow.pop %v5260
        %v5262 = vmul.f32 %v5246, 1.442695
        %v5263 = vpow.pop %v5262
        %v5264 = vmul.f32 %v5247, 1.442695
        %v5265 = vpow.pop %v5264
        %v5266 = vmul.f32 %v5248, 1.442695
        %v5267 = vpow.pop %v5266
        %v5268 = vmul.f32 %v5249, 1.442695
        %v5269 = vpow.pop %v5268
        %v5270 = vmul.f32 %v5250, 1.442695
        %v5271 = vpow.pop %v5270
        %v5272 = vmul.f32 %v5251, 1.442695
        %v5273 = vpow.pop %v5272
        %v5274 = vmul.f32 %v5252, 1.442695
        %v5275 = vpow.pop %v5274
        %v5276 = vmul.f32 %v5253, 1.442695
        %v5277 = vpow.pop %v5276
        %v5278 = vsel %vm1773, %v5255, 0.0
        %5279 = vadd.xlane.f32.xlu0 %v5278
        %v5280 = vpop.xlane.xlu0 %5279
        %v5281 = vsel %vm1773, %v5257, 0.0
        %5282 = vadd.xlane.f32.xlu0 %v5281
        %v5283 = vpop.xlane.xlu0 %5282
        %v5284 = vsel %vm1773, %v5259, 0.0
        %5285 = vadd.xlane.f32.xlu0 %v5284
        %v5286 = vpop.xlane.xlu0 %5285
        %v5287 = vsel %vm1773, %v5261, 0.0
        %5288 = vadd.xlane.f32.xlu0 %v5287
        %v5289 = vpop.xlane.xlu0 %5288
        %v5290 = vsel %vm1773, %v5263, 0.0
        %5291 = vadd.xlane.f32.xlu0 %v5290
        %v5292 = vpop.xlane.xlu0 %5291
        %v5293 = vsel %vm1773, %v5265, 0.0
        %5294 = vadd.xlane.f32.xlu0 %v5293
        %v5295 = vpop.xlane.xlu0 %5294
        %v5296 = vsel %vm1773, %v5267, 0.0
        %5297 = vadd.xlane.f32.xlu0 %v5296
        %v5298 = vpop.xlane.xlu0 %5297
        %v5299 = vsel %vm1773, %v5269, 0.0
        %5300 = vadd.xlane.f32.xlu0 %v5299
        %v5301 = vpop.xlane.xlu0 %5300
        %v5302 = vsel %vm1773, %v5271, 0.0
        %5303 = vadd.xlane.f32.xlu0 %v5302
        %v5304 = vpop.xlane.xlu0 %5303
        %v5305 = vsel %vm1773, %v5273, 0.0
        %5306 = vadd.xlane.f32.xlu0 %v5305
        %v5307 = vpop.xlane.xlu0 %5306
        %v5308 = vsel %vm1773, %v5275, 0.0
        %5309 = vadd.xlane.f32.xlu0 %v5308
        %v5310 = vpop.xlane.xlu0 %5309
        %v5311 = vsel %vm1773, %v5277, 0.0
        %5312 = vadd.xlane.f32.xlu0 %v5311
        %v5313 = vpop.xlane.xlu0 %5312
        %v5314 = vrcp.pop %v5280
        %v5315 = vrcp.pop %v5283
        %v5316 = vrcp.pop %v5286
        %v5317 = vrcp.pop %v5289
        %v5318 = vrcp.pop %v5292
        %v5319 = vrcp.pop %v5295
        %v5320 = vrcp.pop %v5298
        %v5321 = vrcp.pop %v5301
        %v5322 = vrcp.pop %v5304
        %v5323 = vrcp.pop %v5307
        %v5324 = vrcp.pop %v5310
        %v5325 = vrcp.pop %v5313
        %v5326 = vmul.f32 %v5255, %v5314
        %v5327 = vmul.f32 %v5257, %v5315
        %v5328 = vmul.f32 %v5259, %v5316
        %v5329 = vmul.f32 %v5261, %v5317
        %v5330 = vmul.f32 %v5263, %v5318
        %v5331 = vmul.f32 %v5265, %v5319
        %v5332 = vmul.f32 %v5267, %v5320
        %v5333 = vmul.f32 %v5269, %v5321
        %v5334 = vmul.f32 %v5271, %v5322
        %v5335 = vmul.f32 %v5273, %v5323
        %v5336 = vmul.f32 %v5275, %v5324
        %v5337 = vmul.f32 %v5277, %v5325
        %v5338 = vpack.c.bf16 %v5327, %v5326
        %v5339 = vpack.c.bf16 %v5329, %v5328
        %v5340 = vpack.c.bf16 %v5331, %v5330
        %v5341 = vpack.c.bf16 %v5333, %v5332
        %v5342 = vpack.c.bf16 %v5335, %v5334
        %v5343 = vpack.c.bf16 %v5337, %v5336
        %5344 = vrot.lane.b32.xlu0 %v4663, 64
        %v5345 = vpop.permute.xlu0 %5344
        %5346 = vrot.lane.b32.xlu0 %v4664, 64
        %v5347 = vpop.permute.xlu0 %5346
        %5348 = vrot.lane.b32.xlu0 %v4665, 64
        %v5349 = vpop.permute.xlu0 %5348
        %5350 = vrot.lane.b32.xlu0 %v4666, 64
        %v5351 = vpop.permute.xlu0 %5350
        %5352 = vrot.lane.b32.xlu0 %v4667, 64
        %v5353 = vpop.permute.xlu0 %5352
        %5354 = vrot.lane.b32.xlu0 %v4668, 64
        %v5355 = vpop.permute.xlu0 %5354
        %v5363 = vsel %vm1773, %v5338, 0
        %v5366 = vsel %vm1773, %v5339, 0
        %v5369 = vsel %vm1773, %v5340, 0
        %v5372 = vsel %vm1773, %v5341, 0
        %v5375 = vsel %vm1773, %v5342, 0
        %v5378 = vsel %vm1773, %v5343, 0
        %5380 = vmatprep.subr.bf16.mxu0 0
        %5381 = vmatpush1.bf16.msra.mxu0 %v5345
        %5382 = vmatprep.subr.bf16.mxu0 0
        %5383 = vmatpush1.bf16.msra.mxu0 %v5347
        %5384 = vmatprep.subr.bf16.mxu0 0
        %5385 = vmatpush1.bf16.msra.mxu0 %v5349
        %5386 = vmatprep.subr.bf16.mxu0 0
        %5387 = vmatpush1.bf16.msra.mxu0 %v5351
        %5388 = vmatprep.subr.bf16.mxu0 0
        %5389 = vmatpush1.bf16.msra.mxu0 %v5353
        %5390 = vmatprep.subr.bf16.mxu0 0
        %5391 = vmatpush1.bf16.msra.mxu0 %v5355
        %5392 = vmatprep.subr.bf16.mxu0 0
        %5393 = vmatpush1.bf16.msra.mxu0 0
        %5394 = vmatprep.subr.bf16.mxu0 0
        %5395 = vmatpush1.bf16.msra.mxu0 0
        %5396 = vmatprep.subr.bf16.mxu0 0
        %5397 = vmatpush1.bf16.msra.mxu0 0
        %5398 = vmatprep.subr.bf16.mxu0 0
        %5399 = vmatpush1.bf16.msra.mxu0 0
        %5400 = vmatprep.subr.bf16.mxu0 0
        %5401 = vmatpush1.bf16.msra.mxu0 0
        %5402 = vmatprep.subr.bf16.mxu0 0
        %5403 = vmatpush1.bf16.msra.mxu0 0
        %5404 = vmatprep.subr.bf16.mxu0 0
        %5405 = vmatpush1.bf16.msra.mxu0 0
        %5406 = vmatprep.subr.bf16.mxu0 0
        %5407 = vmatpush1.bf16.msra.mxu0 0
        %5408 = vmatprep.subr.bf16.mxu0 0
        %5409 = vmatpush1.bf16.msra.mxu0 0
        %5410 = vmatprep.subr.bf16.mxu0 0
        %5411 = vmatpush1.bf16.msra.mxu0 0
        %5412 = vmatprep.mubr.bf16.mxu0 0
        %5413 = vmatmul.mubr.bf16.gmra.mrb[0].mxu0 %v5363
        %v5414 = vpop.f32.mrb[0].mxu0
        %v5415 = vadd.f32 0.0, %v5414
        %v5416 = vpop.f32.mrb[0].mxu0
        %v5417 = vpop.f32.mrb[0].mxu0
        %v5418 = vadd.f32 0.0, %v5417
        %v5419 = vpop.f32.mrb[0].mxu0
        %5420 = vmatprep.mubr.bf16.mxu0 0
        %5421 = vmatmul.mubr.bf16.gmra.mrb[0].mxu0 %v5366
        %v5422 = vpop.f32.mrb[0].mxu0
        %v5423 = vadd.f32 0.0, %v5422
        %v5424 = vpop.f32.mrb[0].mxu0
        %v5425 = vpop.f32.mrb[0].mxu0
        %v5426 = vadd.f32 0.0, %v5425
        %v5427 = vpop.f32.mrb[0].mxu0
        %5428 = vmatprep.mubr.bf16.mxu0 0
        %5429 = vmatmul.mubr.bf16.gmra.mrb[0].mxu0 %v5369
        %v5430 = vpop.f32.mrb[0].mxu0
        %v5431 = vadd.f32 0.0, %v5430
        %v5432 = vpop.f32.mrb[0].mxu0
        %v5433 = vpop.f32.mrb[0].mxu0
        %v5434 = vadd.f32 0.0, %v5433
        %v5435 = vpop.f32.mrb[0].mxu0
        %5436 = vmatprep.mubr.bf16.mxu0 0
        %5437 = vmatmul.mubr.bf16.gmra.mrb[0].mxu0 %v5372
        %v5438 = vpop.f32.mrb[0].mxu0
        %v5439 = vadd.f32 0.0, %v5438
        %v5440 = vpop.f32.mrb[0].mxu0
        %v5441 = vpop.f32.mrb[0].mxu0
        %v5442 = vadd.f32 0.0, %v5441
        %v5443 = vpop.f32.mrb[0].mxu0
        %5444 = vmatprep.mubr.bf16.mxu0 0
        %5445 = vmatmul.mubr.bf16.gmra.mrb[0].mxu0 %v5375
        %v5446 = vpop.f32.mrb[0].mxu0
        %v5447 = vadd.f32 0.0, %v5446
        %v5448 = vpop.f32.mrb[0].mxu0
        %v5449 = vpop.f32.mrb[0].mxu0
        %v5450 = vadd.f32 0.0, %v5449
        %v5451 = vpop.f32.mrb[0].mxu0
        %5452 = vmatprep.mubr.bf16.mxu0 0
        %5453 = vmatmul.mubr.bf16.gmra.mrb[0].mxu0 %v5378
        %v5454 = vpop.f32.mrb[0].mxu0
        %v5455 = vadd.f32 0.0, %v5454
        %v5456 = vpop.f32.mrb[0].mxu0
        %v5457 = vpop.f32.mrb[0].mxu0
        %v5458 = vadd.f32 0.0, %v5457
        %v5459 = vpop.f32.mrb[0].mxu0
        %5460 = vdwg.mxu0
        %5467 = vrot.lane.b32.xlu0 %v4669, 96
        %v5468 = vpop.permute.xlu0 %5467
        %5469 = vrot.lane.b32.xlu0 %v4670, 96
        %v5470 = vpop.permute.xlu0 %5469
        %5471 = vrot.lane.b32.xlu0 %v4671, 96
        %v5472 = vpop.permute.xlu0 %5471
        %5473 = vrot.lane.b32.xlu0 %v4672, 96
        %v5474 = vpop.permute.xlu0 %5473
        %5475 = vrot.lane.b32.xlu0 %v4673, 96
        %v5476 = vpop.permute.xlu0 %5475
        %5477 = vrot.lane.b32.xlu0 %v4674, 96
        %v5478 = vpop.permute.xlu0 %5477
        %v5480 = vsel %vm411, %v4669, 0
        %v5483 = vsel %vm411, %v4670, 0
        %v5486 = vsel %vm411, %v4671, 0
        %v5489 = vsel %vm411, %v4672, 0
        %v5492 = vsel %vm411, %v4673, 0
        %v5495 = vsel %vm411, %v4674, 0
        %v5498 = vsel %vm411, %v5468, 0
        %v5501 = vsel %vm411, %v5470, 0
        %v5504 = vsel %vm411, %v5472, 0
        %v5507 = vsel %vm411, %v5474, 0
        %v5510 = vsel %vm411, %v5476, 0
        %v5513 = vsel %vm411, %v5478, 0
        %5515 = vmatprep.subr.bf16.mxu0 0
        %5516 = vmatpush1.bf16.xpose.msra.mxu0 %v5498
        %5517 = vmatprep.subr.bf16.mxu0 0
        %5518 = vmatpush1.bf16.xpose.msra.mxu0 %v5501
        %5519 = vmatprep.subr.bf16.mxu0 0
        %5520 = vmatpush1.bf16.xpose.msra.mxu0 %v5504
        %5521 = vmatprep.subr.bf16.mxu0 0
        %5522 = vmatpush1.bf16.xpose.msra.mxu0 %v5507
        %5523 = vmatprep.subr.bf16.mxu0 0
        %5524 = vmatpush1.bf16.xpose.msra.mxu0 %v5510
        %5525 = vmatprep.subr.bf16.mxu0 0
        %5526 = vmatpush1.bf16.xpose.msra.mxu0 %v5513
        %5527 = vmatprep.subr.bf16.mxu0 0
        %5528 = vmatpush1.bf16.xpose.msra.mxu0 0
        %5529 = vmatprep.subr.bf16.mxu0 0
        %5530 = vmatpush1.bf16.xpose.msra.mxu0 0
        %5531 = vmatprep.subr.bf16.mxu0 0
        %5532 = vmatpush1.bf16.xpose.msra.mxu0 0
        %5533 = vmatprep.subr.bf16.mxu0 0
        %5534 = vmatpush1.bf16.xpose.msra.mxu0 0
        %5535 = vmatprep.subr.bf16.mxu0 0
        %5536 = vmatpush1.bf16.xpose.msra.mxu0 0
        %5537 = vmatprep.subr.bf16.mxu0 0
        %5538 = vmatpush1.bf16.xpose.msra.mxu0 0
        %5539 = vmatprep.subr.bf16.mxu0 0
        %5540 = vmatpush1.bf16.xpose.msra.mxu0 0
        %5541 = vmatprep.subr.bf16.mxu0 0
        %5542 = vmatpush1.bf16.xpose.msra.mxu0 0
        %5543 = vmatprep.subr.bf16.mxu0 0
        %5544 = vmatpush1.bf16.xpose.msra.mxu0 0
        %5545 = vmatprep.subr.bf16.mxu0 0
        %5546 = vmatpush1.bf16.xpose.msra.mxu0 0
        %5547 = vmatprep.mubr.bf16.mxu0 0
        %5548 = vmatmul.mubr.bf16.gmra.mrb[0].mxu0 %v5480
        %v5549 = vpop.f32.mrb[0].mxu0
        %v5550 = vadd.f32 %v1244, %v5549
        %v5551 = vpop.f32.mrb[0].mxu0
        %v5552 = vpop.f32.mrb[0].mxu0
        %v5553 = vadd.f32 %v1244, %v5552
        %v5554 = vpop.f32.mrb[0].mxu0
        %5555 = vmatprep.mubr.bf16.mxu0 0
        %5556 = vmatmul.mubr.bf16.gmra.mrb[0].mxu0 %v5483
        %v5557 = vpop.f32.mrb[0].mxu0
        %v5558 = vadd.f32 %v1244, %v5557
        %v5559 = vpop.f32.mrb[0].mxu0
        %v5560 = vpop.f32.mrb[0].mxu0
        %v5561 = vadd.f32 %v1244, %v5560
        %v5562 = vpop.f32.mrb[0].mxu0
        %5563 = vmatprep.mubr.bf16.mxu0 0
        %5564 = vmatmul.mubr.bf16.gmra.mrb[0].mxu0 %v5486
        %v5565 = vpop.f32.mrb[0].mxu0
        %v5566 = vadd.f32 %v1244, %v5565
        %v5567 = vpop.f32.mrb[0].mxu0
        %v5568 = vpop.f32.mrb[0].mxu0
        %v5569 = vadd.f32 %v1244, %v5568
        %v5570 = vpop.f32.mrb[0].mxu0
        %5571 = vmatprep.mubr.bf16.mxu0 0
        %5572 = vmatmul.mubr.bf16.gmra.mrb[0].mxu0 %v5489
        %v5573 = vpop.f32.mrb[0].mxu0
        %v5574 = vadd.f32 %v1244, %v5573
        %v5575 = vpop.f32.mrb[0].mxu0
        %v5576 = vpop.f32.mrb[0].mxu0
        %v5577 = vadd.f32 %v1244, %v5576
        %v5578 = vpop.f32.mrb[0].mxu0
        %5579 = vmatprep.mubr.bf16.mxu0 0
        %5580 = vmatmul.mubr.bf16.gmra.mrb[0].mxu0 %v5492
        %v5581 = vpop.f32.mrb[0].mxu0
        %v5582 = vadd.f32 %v1244, %v5581
        %v5583 = vpop.f32.mrb[0].mxu0
        %v5584 = vpop.f32.mrb[0].mxu0
        %v5585 = vadd.f32 %v1244, %v5584
        %v5586 = vpop.f32.mrb[0].mxu0
        %5587 = vmatprep.mubr.bf16.mxu0 0
        %5588 = vmatmul.mubr.bf16.gmra.mrb[0].mxu0 %v5495
        %v5589 = vpop.f32.mrb[0].mxu0
        %v5590 = vadd.f32 %v1244, %v5589
        %v5591 = vpop.f32.mrb[0].mxu0
        %v5592 = vpop.f32.mrb[0].mxu0
        %v5593 = vadd.f32 %v1244, %v5592
        %v5594 = vpop.f32.mrb[0].mxu0
        %5595 = vdwg.mxu0
        %v5596 = vsel %vm1773, %v5550, -inf
        %5597 = vmax.xlane.f32.xlu0 %v5596
        %v5598 = vpop.xlane.xlu0 %5597
        %v5599 = vsel %vm1773, %v5553, -inf
        %5600 = vmax.xlane.f32.xlu0 %v5599
        %v5601 = vpop.xlane.xlu0 %5600
        %v5602 = vsel %vm1773, %v5558, -inf
        %5603 = vmax.xlane.f32.xlu0 %v5602
        %v5604 = vpop.xlane.xlu0 %5603
        %v5605 = vsel %vm1773, %v5561, -inf
        %5606 = vmax.xlane.f32.xlu0 %v5605
        %v5607 = vpop.xlane.xlu0 %5606
        %v5608 = vsel %vm1773, %v5566, -inf
        %5609 = vmax.xlane.f32.xlu0 %v5608
        %v5610 = vpop.xlane.xlu0 %5609
        %v5611 = vsel %vm1773, %v5569, -inf
        %5612 = vmax.xlane.f32.xlu0 %v5611
        %v5613 = vpop.xlane.xlu0 %5612
        %v5614 = vsel %vm1773, %v5574, -inf
        %5615 = vmax.xlane.f32.xlu0 %v5614
        %v5616 = vpop.xlane.xlu0 %5615
        %v5617 = vsel %vm1773, %v5577, -inf
        %5618 = vmax.xlane.f32.xlu0 %v5617
        %v5619 = vpop.xlane.xlu0 %5618
        %v5620 = vsel %vm1773, %v5582, -inf
        %5621 = vmax.xlane.f32.xlu0 %v5620
        %v5622 = vpop.xlane.xlu0 %5621
        %v5623 = vsel %vm1773, %v5585, -inf
        %5624 = vmax.xlane.f32.xlu0 %v5623
        %v5625 = vpop.xlane.xlu0 %5624
        %v5626 = vsel %vm1773, %v5590, -inf
        %5627 = vmax.xlane.f32.xlu0 %v5626
        %v5628 = vpop.xlane.xlu0 %5627
        %v5629 = vsel %vm1773, %v5593, -inf
        %5630 = vmax.xlane.f32.xlu0 %v5629
        %v5631 = vpop.xlane.xlu0 %5630
        %v5632 = vsub.f32 %v5550, %v5598
        %v5633 = vsub.f32 %v5553, %v5601
        %v5634 = vsub.f32 %v5558, %v5604
        %v5635 = vsub.f32 %v5561, %v5607
        %v5636 = vsub.f32 %v5566, %v5610
        %v5637 = vsub.f32 %v5569, %v5613
        %v5638 = vsub.f32 %v5574, %v5616
        %v5639 = vsub.f32 %v5577, %v5619
        %v5640 = vsub.f32 %v5582, %v5622
        %v5641 = vsub.f32 %v5585, %v5625
        %v5642 = vsub.f32 %v5590, %v5628
        %v5643 = vsub.f32 %v5593, %v5631
        %v5644 = vmul.f32 %v5632, 1.442695
        %v5645 = vpow.pop %v5644
        %v5646 = vmul.f32 %v5633, 1.442695
        %v5647 = vpow.pop %v5646
        %v5648 = vmul.f32 %v5634, 1.442695
        %v5649 = vpow.pop %v5648
        %v5650 = vmul.f32 %v5635, 1.442695
        %v5651 = vpow.pop %v5650
        %v5652 = vmul.f32 %v5636, 1.442695
        %v5653 = vpow.pop %v5652
        %v5654 = vmul.f32 %v5637, 1.442695
        %v5655 = vpow.pop %v5654
        %v5656 = vmul.f32 %v5638, 1.442695
        %v5657 = vpow.pop %v5656
        %v5658 = vmul.f32 %v5639, 1.442695
        %v5659 = vpow.pop %v5658
        %v5660 = vmul.f32 %v5640, 1.442695
        %v5661 = vpow.pop %v5660
        %v5662 = vmul.f32 %v5641, 1.442695
        %v5663 = vpow.pop %v5662
        %v5664 = vmul.f32 %v5642, 1.442695
        %v5665 = vpow.pop %v5664
        %v5666 = vmul.f32 %v5643, 1.442695
        %v5667 = vpow.pop %v5666
        %v5668 = vsel %vm1773, %v5645, 0.0
        %5669 = vadd.xlane.f32.xlu0 %v5668
        %v5670 = vpop.xlane.xlu0 %5669
        %v5671 = vsel %vm1773, %v5647, 0.0
        %5672 = vadd.xlane.f32.xlu0 %v5671
        %v5673 = vpop.xlane.xlu0 %5672
        %v5674 = vsel %vm1773, %v5649, 0.0
        %5675 = vadd.xlane.f32.xlu0 %v5674
        %v5676 = vpop.xlane.xlu0 %5675
        %v5677 = vsel %vm1773, %v5651, 0.0
        %5678 = vadd.xlane.f32.xlu0 %v5677
        %v5679 = vpop.xlane.xlu0 %5678
        %v5680 = vsel %vm1773, %v5653, 0.0
        %5681 = vadd.xlane.f32.xlu0 %v5680
        %v5682 = vpop.xlane.xlu0 %5681
        %v5683 = vsel %vm1773, %v5655, 0.0
        %5684 = vadd.xlane.f32.xlu0 %v5683
        %v5685 = vpop.xlane.xlu0 %5684
        %v5686 = vsel %vm1773, %v5657, 0.0
        %5687 = vadd.xlane.f32.xlu0 %v5686
        %v5688 = vpop.xlane.xlu0 %5687
        %v5689 = vsel %vm1773, %v5659, 0.0
        %5690 = vadd.xlane.f32.xlu0 %v5689
        %v5691 = vpop.xlane.xlu0 %5690
        %v5692 = vsel %vm1773, %v5661, 0.0
        %5693 = vadd.xlane.f32.xlu0 %v5692
        %v5694 = vpop.xlane.xlu0 %5693
        %v5695 = vsel %vm1773, %v5663, 0.0
        %5696 = vadd.xlane.f32.xlu0 %v5695
        %v5697 = vpop.xlane.xlu0 %5696
        %v5698 = vsel %vm1773, %v5665, 0.0
        %5699 = vadd.xlane.f32.xlu0 %v5698
        %v5700 = vpop.xlane.xlu0 %5699
        %v5701 = vsel %vm1773, %v5667, 0.0
        %5702 = vadd.xlane.f32.xlu0 %v5701
        %v5703 = vpop.xlane.xlu0 %5702
        %v5704 = vrcp.pop %v5670
        %v5705 = vrcp.pop %v5673
        %v5706 = vrcp.pop %v5676
        %v5707 = vrcp.pop %v5679
        %v5708 = vrcp.pop %v5682
        %v5709 = vrcp.pop %v5685
        %v5710 = vrcp.pop %v5688
        %v5711 = vrcp.pop %v5691
        %v5712 = vrcp.pop %v5694
        %v5713 = vrcp.pop %v5697
        %v5714 = vrcp.pop %v5700
        %v5715 = vrcp.pop %v5703
        %v5716 = vmul.f32 %v5645, %v5704
        %v5717 = vmul.f32 %v5647, %v5705
        %v5718 = vmul.f32 %v5649, %v5706
        %v5719 = vmul.f32 %v5651, %v5707
        %v5720 = vmul.f32 %v5653, %v5708
        %v5721 = vmul.f32 %v5655, %v5709
        %v5722 = vmul.f32 %v5657, %v5710
        %v5723 = vmul.f32 %v5659, %v5711
        %v5724 = vmul.f32 %v5661, %v5712
        %v5725 = vmul.f32 %v5663, %v5713
        %v5726 = vmul.f32 %v5665, %v5714
        %v5727 = vmul.f32 %v5667, %v5715
        %v5728 = vpack.c.bf16 %v5717, %v5716
        %v5729 = vpack.c.bf16 %v5719, %v5718
        %v5730 = vpack.c.bf16 %v5721, %v5720
        %v5731 = vpack.c.bf16 %v5723, %v5722
        %v5732 = vpack.c.bf16 %v5725, %v5724
        %v5733 = vpack.c.bf16 %v5727, %v5726
        %5734 = vrot.lane.b32.xlu0 %v4669, 64
        %v5735 = vpop.permute.xlu0 %5734
        %5736 = vrot.lane.b32.xlu0 %v4670, 64
        %v5737 = vpop.permute.xlu0 %5736
        %5738 = vrot.lane.b32.xlu0 %v4671, 64
        %v5739 = vpop.permute.xlu0 %5738
        %5740 = vrot.lane.b32.xlu0 %v4672, 64
        %v5741 = vpop.permute.xlu0 %5740
        %5742 = vrot.lane.b32.xlu0 %v4673, 64
        %v5743 = vpop.permute.xlu0 %5742
        %5744 = vrot.lane.b32.xlu0 %v4674, 64
        %v5745 = vpop.permute.xlu0 %5744
        %v5753 = vsel %vm1773, %v5728, 0
        %v5756 = vsel %vm1773, %v5729, 0
        %v5759 = vsel %vm1773, %v5730, 0
        %v5762 = vsel %vm1773, %v5731, 0
        %v5765 = vsel %vm1773, %v5732, 0
        %v5768 = vsel %vm1773, %v5733, 0
        %5770 = vmatprep.subr.bf16.mxu0 0
        %5771 = vmatpush1.bf16.msra.mxu0 %v5735
        %5772 = vmatprep.subr.bf16.mxu0 0
        %5773 = vmatpush1.bf16.msra.mxu0 %v5737
        %5774 = vmatprep.subr.bf16.mxu0 0
        %5775 = vmatpush1.bf16.msra.mxu0 %v5739
        %5776 = vmatprep.subr.bf16.mxu0 0
        %5777 = vmatpush1.bf16.msra.mxu0 %v5741
        %5778 = vmatprep.subr.bf16.mxu0 0
        %5779 = vmatpush1.bf16.msra.mxu0 %v5743
        %5780 = vmatprep.subr.bf16.mxu0 0
        %5781 = vmatpush1.bf16.msra.mxu0 %v5745
        %5782 = vmatprep.subr.bf16.mxu0 0
        %5783 = vmatpush1.bf16.msra.mxu0 0
        %5784 = vmatprep.subr.bf16.mxu0 0
        %5785 = vmatpush1.bf16.msra.mxu0 0
        %5786 = vmatprep.subr.bf16.mxu0 0
        %5787 = vmatpush1.bf16.msra.mxu0 0
        %5788 = vmatprep.subr.bf16.mxu0 0
        %5789 = vmatpush1.bf16.msra.mxu0 0
        %5790 = vmatprep.subr.bf16.mxu0 0
        %5791 = vmatpush1.bf16.msra.mxu0 0
        %5792 = vmatprep.subr.bf16.mxu0 0
        %5793 = vmatpush1.bf16.msra.mxu0 0
        %5794 = vmatprep.subr.bf16.mxu0 0
        %5795 = vmatpush1.bf16.msra.mxu0 0
        %5796 = vmatprep.subr.bf16.mxu0 0
        %5797 = vmatpush1.bf16.msra.mxu0 0
        %5798 = vmatprep.subr.bf16.mxu0 0
        %5799 = vmatpush1.bf16.msra.mxu0 0
        %5800 = vmatprep.subr.bf16.mxu0 0
        %5801 = vmatpush1.bf16.msra.mxu0 0
        %5802 = vmatprep.mubr.bf16.mxu0 0
        %5803 = vmatmul.mubr.bf16.gmra.mrb[0].mxu0 %v5753
        %v5804 = vpop.f32.mrb[0].mxu0
        %v5805 = vadd.f32 0.0, %v5804
        %v5806 = vpop.f32.mrb[0].mxu0
        %v5807 = vpop.f32.mrb[0].mxu0
        %v5808 = vadd.f32 0.0, %v5807
        %v5809 = vpop.f32.mrb[0].mxu0
        %5810 = vmatprep.mubr.bf16.mxu0 0
        %5811 = vmatmul.mubr.bf16.gmra.mrb[0].mxu0 %v5756
        %v5812 = vpop.f32.mrb[0].mxu0
        %v5813 = vadd.f32 0.0, %v5812
        %v5814 = vpop.f32.mrb[0].mxu0
        %v5815 = vpop.f32.mrb[0].mxu0
        %v5816 = vadd.f32 0.0, %v5815
        %v5817 = vpop.f32.mrb[0].mxu0
        %5818 = vmatprep.mubr.bf16.mxu0 0
        %5819 = vmatmul.mubr.bf16.gmra.mrb[0].mxu0 %v5759
        %v5820 = vpop.f32.mrb[0].mxu0
        %v5821 = vadd.f32 0.0, %v5820
        %v5822 = vpop.f32.mrb[0].mxu0
        %v5823 = vpop.f32.mrb[0].mxu0
        %v5824 = vadd.f32 0.0, %v5823
        %v5825 = vpop.f32.mrb[0].mxu0
        %5826 = vmatprep.mubr.bf16.mxu0 0
        %5827 = vmatmul.mubr.bf16.gmra.mrb[0].mxu0 %v5762
        %v5828 = vpop.f32.mrb[0].mxu0
        %v5829 = vadd.f32 0.0, %v5828
        %v5830 = vpop.f32.mrb[0].mxu0
        %v5831 = vpop.f32.mrb[0].mxu0
        %v5832 = vadd.f32 0.0, %v5831
        %v5833 = vpop.f32.mrb[0].mxu0
        %5834 = vmatprep.mubr.bf16.mxu0 0
        %5835 = vmatmul.mubr.bf16.gmra.mrb[0].mxu0 %v5765
        %v5836 = vpop.f32.mrb[0].mxu0
        %v5837 = vadd.f32 0.0, %v5836
        %v5838 = vpop.f32.mrb[0].mxu0
        %v5839 = vpop.f32.mrb[0].mxu0
        %v5840 = vadd.f32 0.0, %v5839
        %v5841 = vpop.f32.mrb[0].mxu0
        %5842 = vmatprep.mubr.bf16.mxu0 0
        %5843 = vmatmul.mubr.bf16.gmra.mrb[0].mxu0 %v5768
        %v5844 = vpop.f32.mrb[0].mxu0
        %v5845 = vadd.f32 0.0, %v5844
        %v5846 = vpop.f32.mrb[0].mxu0
        %v5847 = vpop.f32.mrb[0].mxu0
        %v5848 = vadd.f32 0.0, %v5847
        %v5849 = vpop.f32.mrb[0].mxu0
        %5850 = vdwg.mxu0
        %5857 = vrot.lane.b32.xlu0 %v4675, 96
        %v5858 = vpop.permute.xlu0 %5857
        %5859 = vrot.lane.b32.xlu0 %v4676, 96
        %v5860 = vpop.permute.xlu0 %5859
        %5861 = vrot.lane.b32.xlu0 %v4677, 96
        %v5862 = vpop.permute.xlu0 %5861
        %5863 = vrot.lane.b32.xlu0 %v4678, 96
        %v5864 = vpop.permute.xlu0 %5863
        %5865 = vrot.lane.b32.xlu0 %v4679, 96
        %v5866 = vpop.permute.xlu0 %5865
        %5867 = vrot.lane.b32.xlu0 %v4680, 96
        %v5868 = vpop.permute.xlu0 %5867
        %v5870 = vsel %vm411, %v4675, 0
        %v5873 = vsel %vm411, %v4676, 0
        %v5876 = vsel %vm411, %v4677, 0
        %v5879 = vsel %vm411, %v4678, 0
        %v5882 = vsel %vm411, %v4679, 0
        %v5885 = vsel %vm411, %v4680, 0
        %v5888 = vsel %vm411, %v5858, 0
        %v5891 = vsel %vm411, %v5860, 0
        %v5894 = vsel %vm411, %v5862, 0
        %v5897 = vsel %vm411, %v5864, 0
        %v5900 = vsel %vm411, %v5866, 0
        %v5903 = vsel %vm411, %v5868, 0
        %5905 = vmatprep.subr.bf16.mxu0 0
        %5906 = vmatpush1.bf16.xpose.msra.mxu0 %v5888
        %5907 = vmatprep.subr.bf16.mxu0 0
        %5908 = vmatpush1.bf16.xpose.msra.mxu0 %v5891
        %5909 = vmatprep.subr.bf16.mxu0 0
        %5910 = vmatpush1.bf16.xpose.msra.mxu0 %v5894
        %5911 = vmatprep.subr.bf16.mxu0 0
        %5912 = vmatpush1.bf16.xpose.msra.mxu0 %v5897
        %5913 = vmatprep.subr.bf16.mxu0 0
        %5914 = vmatpush1.bf16.xpose.msra.mxu0 %v5900
        %5915 = vmatprep.subr.bf16.mxu0 0
        %5916 = vmatpush1.bf16.xpose.msra.mxu0 %v5903
        %5917 = vmatprep.subr.bf16.mxu0 0
        %5918 = vmatpush1.bf16.xpose.msra.mxu0 0
        %5919 = vmatprep.subr.bf16.mxu0 0
        %5920 = vmatpush1.bf16.xpose.msra.mxu0 0
        %5921 = vmatprep.subr.bf16.mxu0 0
        %5922 = vmatpush1.bf16.xpose.msra.mxu0 0
        %5923 = vmatprep.subr.bf16.mxu0 0
        %5924 = vmatpush1.bf16.xpose.msra.mxu0 0
        %5925 = vmatprep.subr.bf16.mxu0 0
        %5926 = vmatpush1.bf16.xpose.msra.mxu0 0
        %5927 = vmatprep.subr.bf16.mxu0 0
        %5928 = vmatpush1.bf16.xpose.msra.mxu0 0
        %5929 = vmatprep.subr.bf16.mxu0 0
        %5930 = vmatpush1.bf16.xpose.msra.mxu0 0
        %5931 = vmatprep.subr.bf16.mxu0 0
        %5932 = vmatpush1.bf16.xpose.msra.mxu0 0
        %5933 = vmatprep.subr.bf16.mxu0 0
        %5934 = vmatpush1.bf16.xpose.msra.mxu0 0
        %5935 = vmatprep.subr.bf16.mxu0 0
        %5936 = vmatpush1.bf16.xpose.msra.mxu0 0
        %5937 = vmatprep.mubr.bf16.mxu0 0
        %5938 = vmatmul.mubr.bf16.gmra.mrb[0].mxu0 %v5870
        %v5939 = vpop.f32.mrb[0].mxu0
        %v5940 = vadd.f32 %v1244, %v5939
        %v5941 = vpop.f32.mrb[0].mxu0
        %v5942 = vpop.f32.mrb[0].mxu0
        %v5943 = vadd.f32 %v1244, %v5942
        %v5944 = vpop.f32.mrb[0].mxu0
        %5945 = vmatprep.mubr.bf16.mxu0 0
        %5946 = vmatmul.mubr.bf16.gmra.mrb[0].mxu0 %v5873
        %v5947 = vpop.f32.mrb[0].mxu0
        %v5948 = vadd.f32 %v1244, %v5947
        %v5949 = vpop.f32.mrb[0].mxu0
        %v5950 = vpop.f32.mrb[0].mxu0
        %v5951 = vadd.f32 %v1244, %v5950
        %v5952 = vpop.f32.mrb[0].mxu0
        %5953 = vmatprep.mubr.bf16.mxu0 0
        %5954 = vmatmul.mubr.bf16.gmra.mrb[0].mxu0 %v5876
        %v5955 = vpop.f32.mrb[0].mxu0
        %v5956 = vadd.f32 %v1244, %v5955
        %v5957 = vpop.f32.mrb[0].mxu0
        %v5958 = vpop.f32.mrb[0].mxu0
        %v5959 = vadd.f32 %v1244, %v5958
        %v5960 = vpop.f32.mrb[0].mxu0
        %5961 = vmatprep.mubr.bf16.mxu0 0
        %5962 = vmatmul.mubr.bf16.gmra.mrb[0].mxu0 %v5879
        %v5963 = vpop.f32.mrb[0].mxu0
        %v5964 = vadd.f32 %v1244, %v5963
        %v5965 = vpop.f32.mrb[0].mxu0
        %v5966 = vpop.f32.mrb[0].mxu0
        %v5967 = vadd.f32 %v1244, %v5966
        %v5968 = vpop.f32.mrb[0].mxu0
        %5969 = vmatprep.mubr.bf16.mxu0 0
        %5970 = vmatmul.mubr.bf16.gmra.mrb[0].mxu0 %v5882
        %v5971 = vpop.f32.mrb[0].mxu0
        %v5972 = vadd.f32 %v1244, %v5971
        %v5973 = vpop.f32.mrb[0].mxu0
        %v5974 = vpop.f32.mrb[0].mxu0
        %v5975 = vadd.f32 %v1244, %v5974
        %v5976 = vpop.f32.mrb[0].mxu0
        %5977 = vmatprep.mubr.bf16.mxu0 0
        %5978 = vmatmul.mubr.bf16.gmra.mrb[0].mxu0 %v5885
        %v5979 = vpop.f32.mrb[0].mxu0
        %v5980 = vadd.f32 %v1244, %v5979
        %v5981 = vpop.f32.mrb[0].mxu0
        %v5982 = vpop.f32.mrb[0].mxu0
        %v5983 = vadd.f32 %v1244, %v5982
        %v5984 = vpop.f32.mrb[0].mxu0
        %5985 = vdwg.mxu0
        %v5986 = vsel %vm1773, %v5940, -inf
        %5987 = vmax.xlane.f32.xlu0 %v5986
        %v5988 = vpop.xlane.xlu0 %5987
        %v5989 = vsel %vm1773, %v5943, -inf
        %5990 = vmax.xlane.f32.xlu0 %v5989
        %v5991 = vpop.xlane.xlu0 %5990
        %v5992 = vsel %vm1773, %v5948, -inf
        %5993 = vmax.xlane.f32.xlu0 %v5992
        %v5994 = vpop.xlane.xlu0 %5993
        %v5995 = vsel %vm1773, %v5951, -inf
        %5996 = vmax.xlane.f32.xlu0 %v5995
        %v5997 = vpop.xlane.xlu0 %5996
        %v5998 = vsel %vm1773, %v5956, -inf
        %5999 = vmax.xlane.f32.xlu0 %v5998
        %v6000 = vpop.xlane.xlu0 %5999
        %v6001 = vsel %vm1773, %v5959, -inf
        %6002 = vmax.xlane.f32.xlu0 %v6001
        %v6003 = vpop.xlane.xlu0 %6002
        %v6004 = vsel %vm1773, %v5964, -inf
        %6005 = vmax.xlane.f32.xlu0 %v6004
        %v6006 = vpop.xlane.xlu0 %6005
        %v6007 = vsel %vm1773, %v5967, -inf
        %6008 = vmax.xlane.f32.xlu0 %v6007
        %v6009 = vpop.xlane.xlu0 %6008
        %v6010 = vsel %vm1773, %v5972, -inf
        %6011 = vmax.xlane.f32.xlu0 %v6010
        %v6012 = vpop.xlane.xlu0 %6011
        %v6013 = vsel %vm1773, %v5975, -inf
        %6014 = vmax.xlane.f32.xlu0 %v6013
        %v6015 = vpop.xlane.xlu0 %6014
        %v6016 = vsel %vm1773, %v5980, -inf
        %6017 = vmax.xlane.f32.xlu0 %v6016
        %v6018 = vpop.xlane.xlu0 %6017
        %v6019 = vsel %vm1773, %v5983, -inf
        %6020 = vmax.xlane.f32.xlu0 %v6019
        %v6021 = vpop.xlane.xlu0 %6020
        %v6022 = vsub.f32 %v5940, %v5988
        %v6023 = vsub.f32 %v5943, %v5991
        %v6024 = vsub.f32 %v5948, %v5994
        %v6025 = vsub.f32 %v5951, %v5997
        %v6026 = vsub.f32 %v5956, %v6000
        %v6027 = vsub.f32 %v5959, %v6003
        %v6028 = vsub.f32 %v5964, %v6006
        %v6029 = vsub.f32 %v5967, %v6009
        %v6030 = vsub.f32 %v5972, %v6012
        %v6031 = vsub.f32 %v5975, %v6015
        %v6032 = vsub.f32 %v5980, %v6018
        %v6033 = vsub.f32 %v5983, %v6021
        %v6034 = vmul.f32 %v6022, 1.442695
        %v6035 = vpow.pop %v6034
        %v6036 = vmul.f32 %v6023, 1.442695
        %v6037 = vpow.pop %v6036
        %v6038 = vmul.f32 %v6024, 1.442695
        %v6039 = vpow.pop %v6038
        %v6040 = vmul.f32 %v6025, 1.442695
        %v6041 = vpow.pop %v6040
        %v6042 = vmul.f32 %v6026, 1.442695
        %v6043 = vpow.pop %v6042
        %v6044 = vmul.f32 %v6027, 1.442695
        %v6045 = vpow.pop %v6044
        %v6046 = vmul.f32 %v6028, 1.442695
        %v6047 = vpow.pop %v6046
        %v6048 = vmul.f32 %v6029, 1.442695
        %v6049 = vpow.pop %v6048
        %v6050 = vmul.f32 %v6030, 1.442695
        %v6051 = vpow.pop %v6050
        %v6052 = vmul.f32 %v6031, 1.442695
        %v6053 = vpow.pop %v6052
        %v6054 = vmul.f32 %v6032, 1.442695
        %v6055 = vpow.pop %v6054
        %v6056 = vmul.f32 %v6033, 1.442695
        %v6057 = vpow.pop %v6056
        %v6058 = vsel %vm1773, %v6035, 0.0
        %6059 = vadd.xlane.f32.xlu0 %v6058
        %v6060 = vpop.xlane.xlu0 %6059
        %v6061 = vsel %vm1773, %v6037, 0.0
        %6062 = vadd.xlane.f32.xlu0 %v6061
        %v6063 = vpop.xlane.xlu0 %6062
        %v6064 = vsel %vm1773, %v6039, 0.0
        %6065 = vadd.xlane.f32.xlu0 %v6064
        %v6066 = vpop.xlane.xlu0 %6065
        %v6067 = vsel %vm1773, %v6041, 0.0
        %6068 = vadd.xlane.f32.xlu0 %v6067
        %v6069 = vpop.xlane.xlu0 %6068
        %v6070 = vsel %vm1773, %v6043, 0.0
        %6071 = vadd.xlane.f32.xlu0 %v6070
        %v6072 = vpop.xlane.xlu0 %6071
        %v6073 = vsel %vm1773, %v6045, 0.0
        %6074 = vadd.xlane.f32.xlu0 %v6073
        %v6075 = vpop.xlane.xlu0 %6074
        %v6076 = vsel %vm1773, %v6047, 0.0
        %6077 = vadd.xlane.f32.xlu0 %v6076
        %v6078 = vpop.xlane.xlu0 %6077
        %v6079 = vsel %vm1773, %v6049, 0.0
        %6080 = vadd.xlane.f32.xlu0 %v6079
        %v6081 = vpop.xlane.xlu0 %6080
        %v6082 = vsel %vm1773, %v6051, 0.0
        %6083 = vadd.xlane.f32.xlu0 %v6082
        %v6084 = vpop.xlane.xlu0 %6083
        %v6085 = vsel %vm1773, %v6053, 0.0
        %6086 = vadd.xlane.f32.xlu0 %v6085
        %v6087 = vpop.xlane.xlu0 %6086
        %v6088 = vsel %vm1773, %v6055, 0.0
        %6089 = vadd.xlane.f32.xlu0 %v6088
        %v6090 = vpop.xlane.xlu0 %6089
        %v6091 = vsel %vm1773, %v6057, 0.0
        %6092 = vadd.xlane.f32.xlu0 %v6091
        %v6093 = vpop.xlane.xlu0 %6092
        %v6094 = vrcp.pop %v6060
        %v6095 = vrcp.pop %v6063
        %v6096 = vrcp.pop %v6066
        %v6097 = vrcp.pop %v6069
        %v6098 = vrcp.pop %v6072
        %v6099 = vrcp.pop %v6075
        %v6100 = vrcp.pop %v6078
        %v6101 = vrcp.pop %v6081
        %v6102 = vrcp.pop %v6084
        %v6103 = vrcp.pop %v6087
        %v6104 = vrcp.pop %v6090
        %v6105 = vrcp.pop %v6093
        %v6106 = vmul.f32 %v6035, %v6094
        %v6107 = vmul.f32 %v6037, %v6095
        %v6108 = vmul.f32 %v6039, %v6096
        %v6109 = vmul.f32 %v6041, %v6097
        %v6110 = vmul.f32 %v6043, %v6098
        %v6111 = vmul.f32 %v6045, %v6099
        %v6112 = vmul.f32 %v6047, %v6100
        %v6113 = vmul.f32 %v6049, %v6101
        %v6114 = vmul.f32 %v6051, %v6102
        %v6115 = vmul.f32 %v6053, %v6103
        %v6116 = vmul.f32 %v6055, %v6104
        %v6117 = vmul.f32 %v6057, %v6105
        %v6118 = vpack.c.bf16 %v6107, %v6106
        %v6119 = vpack.c.bf16 %v6109, %v6108
        %v6120 = vpack.c.bf16 %v6111, %v6110
        %v6121 = vpack.c.bf16 %v6113, %v6112
        %v6122 = vpack.c.bf16 %v6115, %v6114
        %v6123 = vpack.c.bf16 %v6117, %v6116
        %6124 = vrot.lane.b32.xlu0 %v4675, 64
        %v6125 = vpop.permute.xlu0 %6124
        %6126 = vrot.lane.b32.xlu0 %v4676, 64
        %v6127 = vpop.permute.xlu0 %6126
        %6128 = vrot.lane.b32.xlu0 %v4677, 64
        %v6129 = vpop.permute.xlu0 %6128
        %6130 = vrot.lane.b32.xlu0 %v4678, 64
        %v6131 = vpop.permute.xlu0 %6130
        %6132 = vrot.lane.b32.xlu0 %v4679, 64
        %v6133 = vpop.permute.xlu0 %6132
        %6134 = vrot.lane.b32.xlu0 %v4680, 64
        %v6135 = vpop.permute.xlu0 %6134
        %v6143 = vsel %vm1773, %v6118, 0
        %v6146 = vsel %vm1773, %v6119, 0
        %v6149 = vsel %vm1773, %v6120, 0
        %v6152 = vsel %vm1773, %v6121, 0
        %v6155 = vsel %vm1773, %v6122, 0
        %v6158 = vsel %vm1773, %v6123, 0
        %6160 = vmatprep.subr.bf16.mxu0 0
        %6161 = vmatpush1.bf16.msra.mxu0 %v6125
        %6162 = vmatprep.subr.bf16.mxu0 0
        %6163 = vmatpush1.bf16.msra.mxu0 %v6127
        %6164 = vmatprep.subr.bf16.mxu0 0
        %6165 = vmatpush1.bf16.msra.mxu0 %v6129
        %6166 = vmatprep.subr.bf16.mxu0 0
        %6167 = vmatpush1.bf16.msra.mxu0 %v6131
        %6168 = vmatprep.subr.bf16.mxu0 0
        %6169 = vmatpush1.bf16.msra.mxu0 %v6133
        %6170 = vmatprep.subr.bf16.mxu0 0
        %6171 = vmatpush1.bf16.msra.mxu0 %v6135
        %6172 = vmatprep.subr.bf16.mxu0 0
        %6173 = vmatpush1.bf16.msra.mxu0 0
        %6174 = vmatprep.subr.bf16.mxu0 0
        %6175 = vmatpush1.bf16.msra.mxu0 0
        %6176 = vmatprep.subr.bf16.mxu0 0
        %6177 = vmatpush1.bf16.msra.mxu0 0
        %6178 = vmatprep.subr.bf16.mxu0 0
        %6179 = vmatpush1.bf16.msra.mxu0 0
        %6180 = vmatprep.subr.bf16.mxu0 0
        %6181 = vmatpush1.bf16.msra.mxu0 0
        %6182 = vmatprep.subr.bf16.mxu0 0
        %6183 = vmatpush1.bf16.msra.mxu0 0
        %6184 = vmatprep.subr.bf16.mxu0 0
        %6185 = vmatpush1.bf16.msra.mxu0 0
        %6186 = vmatprep.subr.bf16.mxu0 0
        %6187 = vmatpush1.bf16.msra.mxu0 0
        %6188 = vmatprep.subr.bf16.mxu0 0
        %6189 = vmatpush1.bf16.msra.mxu0 0
        %6190 = vmatprep.subr.bf16.mxu0 0
        %6191 = vmatpush1.bf16.msra.mxu0 0
        %6192 = vmatprep.mubr.bf16.mxu0 0
        %6193 = vmatmul.mubr.bf16.gmra.mrb[0].mxu0 %v6143
        %v6194 = vpop.f32.mrb[0].mxu0
        %v6195 = vadd.f32 0.0, %v6194
        %v6196 = vpop.f32.mrb[0].mxu0
        %v6197 = vpop.f32.mrb[0].mxu0
        %v6198 = vadd.f32 0.0, %v6197
        %v6199 = vpop.f32.mrb[0].mxu0
        %6200 = vmatprep.mubr.bf16.mxu0 0
        %6201 = vmatmul.mubr.bf16.gmra.mrb[0].mxu0 %v6146
        %v6202 = vpop.f32.mrb[0].mxu0
        %v6203 = vadd.f32 0.0, %v6202
        %v6204 = vpop.f32.mrb[0].mxu0
        %v6205 = vpop.f32.mrb[0].mxu0
        %v6206 = vadd.f32 0.0, %v6205
        %v6207 = vpop.f32.mrb[0].mxu0
        %6208 = vmatprep.mubr.bf16.mxu0 0
        %6209 = vmatmul.mubr.bf16.gmra.mrb[0].mxu0 %v6149
        %v6210 = vpop.f32.mrb[0].mxu0
        %v6211 = vadd.f32 0.0, %v6210
        %v6212 = vpop.f32.mrb[0].mxu0
        %v6213 = vpop.f32.mrb[0].mxu0
        %v6214 = vadd.f32 0.0, %v6213
        %v6215 = vpop.f32.mrb[0].mxu0
        %6216 = vmatprep.mubr.bf16.mxu0 0
        %6217 = vmatmul.mubr.bf16.gmra.mrb[0].mxu0 %v6152
        %v6218 = vpop.f32.mrb[0].mxu0
        %v6219 = vadd.f32 0.0, %v6218
        %v6220 = vpop.f32.mrb[0].mxu0
        %v6221 = vpop.f32.mrb[0].mxu0
        %v6222 = vadd.f32 0.0, %v6221
        %v6223 = vpop.f32.mrb[0].mxu0
        %6224 = vmatprep.mubr.bf16.mxu0 0
        %6225 = vmatmul.mubr.bf16.gmra.mrb[0].mxu0 %v6155
        %v6226 = vpop.f32.mrb[0].mxu0
        %v6227 = vadd.f32 0.0, %v6226
        %v6228 = vpop.f32.mrb[0].mxu0
        %v6229 = vpop.f32.mrb[0].mxu0
        %v6230 = vadd.f32 0.0, %v6229
        %v6231 = vpop.f32.mrb[0].mxu0
        %6232 = vmatprep.mubr.bf16.mxu0 0
        %6233 = vmatmul.mubr.bf16.gmra.mrb[0].mxu0 %v6158
        %v6234 = vpop.f32.mrb[0].mxu0
        %v6235 = vadd.f32 0.0, %v6234
        %v6236 = vpop.f32.mrb[0].mxu0
        %v6237 = vpop.f32.mrb[0].mxu0
        %v6238 = vadd.f32 0.0, %v6237
        %v6239 = vpop.f32.mrb[0].mxu0
        %6240 = vdwg.mxu0
        %v6241 = vpack.c.bf16 %v5028, %v5025
        %v6242 = vpack.c.bf16 %v5036, %v5033
        %v6243 = vpack.c.bf16 %v5044, %v5041
        %v6244 = vpack.c.bf16 %v5052, %v5049
        %v6245 = vpack.c.bf16 %v5060, %v5057
        %v6246 = vpack.c.bf16 %v5068, %v5065
        %v6247 = vpack.c.bf16 %v5418, %v5415
        %v6248 = vpack.c.bf16 %v5426, %v5423
        %v6249 = vpack.c.bf16 %v5434, %v5431
        %v6250 = vpack.c.bf16 %v5442, %v5439
        %v6251 = vpack.c.bf16 %v5450, %v5447
        %v6252 = vpack.c.bf16 %v5458, %v5455
        %v6253 = vpack.c.bf16 %v5808, %v5805
        %v6254 = vpack.c.bf16 %v5816, %v5813
        %v6255 = vpack.c.bf16 %v5824, %v5821
        %v6256 = vpack.c.bf16 %v5832, %v5829
        %v6257 = vpack.c.bf16 %v5840, %v5837
        %v6258 = vpack.c.bf16 %v5848, %v5845
        %v6259 = vpack.c.bf16 %v6198, %v6195
        %v6260 = vpack.c.bf16 %v6206, %v6203
        %v6261 = vpack.c.bf16 %v6214, %v6211
        %v6262 = vpack.c.bf16 %v6222, %v6219
        %v6263 = vpack.c.bf16 %v6230, %v6227
        %v6264 = vpack.c.bf16 %v6238, %v6235
        %s6265 = scalar_lea.vmem %s6, 16
        %v6266 = vld [vmem:[%s6265] sm:$0xf]
        %v6267 = vld [vmem:[%s6265 + $0x4] sm:$0xf]
        %v6268 = vld [vmem:[%s6265 + $0x8] sm:$0xf]
        %v6269 = vld [vmem:[%s6265 + $0xc] sm:$0xf]
        %s6270 = scalar_lea.vmem %s7, 1
        %v6271 = vld [vmem:[%s6270] sm:$0x1]
        %v6273 = vlaneseq
        %v6274 = vshrl.u32 %v6273, 7
        %v6275 = vsub.s32 0, %v6274
        %v6276 = vrot.slane %v6271, %v6275
        %v6282 = vunpack.c.l.b16 %v6266
        %v6283 = vunpack.c.l.b16 %v6267
        %v6284 = vunpack.c.l.b16 %v6268
        %v6285 = vunpack.c.l.b16 %v6269
        %v6286 = vpack.c.b16 %v6283, %v6282
        %v6287 = vpack.c.b16 %v6285, %v6284
        %v6291 = vsel %vm411, %v6241, 0
        %v6294 = vsel %vm411, %v6242, 0
        %v6297 = vsel %vm411, %v6243, 0
        %v6300 = vsel %vm411, %v6244, 0
        %v6303 = vsel %vm411, %v6245, 0
        %v6306 = vsel %vm411, %v6246, 0
        %v6309 = vsel %vm411, %v6247, 0
        %v6312 = vsel %vm411, %v6248, 0
        %v6315 = vsel %vm411, %v6249, 0
        %v6318 = vsel %vm411, %v6250, 0
        %v6321 = vsel %vm411, %v6251, 0
        %v6324 = vsel %vm411, %v6252, 0
        %v6327 = vsel %vm411, %v6253, 0
        %v6330 = vsel %vm411, %v6254, 0
        %v6333 = vsel %vm411, %v6255, 0
        %v6336 = vsel %vm411, %v6256, 0
        %v6339 = vsel %vm411, %v6257, 0
        %v6342 = vsel %vm411, %v6258, 0
        %v6345 = vsel %vm411, %v6259, 0
        %v6348 = vsel %vm411, %v6260, 0
        %v6351 = vsel %vm411, %v6261, 0
        %v6354 = vsel %vm411, %v6262, 0
        %v6357 = vsel %vm411, %v6263, 0
        %v6360 = vsel %vm411, %v6264, 0
        %6362 = vmatprep.subr.bf16.mxu0 0
        %6363 = vmatpush1.bf16.msra.mxu0 %v6286
        %6364 = vmatprep.subr.bf16.mxu0 0
        %6365 = vmatpush1.bf16.msra.mxu0 %v6287
        %6366 = vmatprep.subr.bf16.mxu0 0
        %6367 = vmatpush1.bf16.msra.mxu0 0
        %6368 = vmatprep.subr.bf16.mxu0 0
        %6369 = vmatpush1.bf16.msra.mxu0 0
        %6370 = vmatprep.subr.bf16.mxu0 0
        %6371 = vmatpush1.bf16.msra.mxu0 0
        %6372 = vmatprep.subr.bf16.mxu0 0
        %6373 = vmatpush1.bf16.msra.mxu0 0
        %6374 = vmatprep.subr.bf16.mxu0 0
        %6375 = vmatpush1.bf16.msra.mxu0 0
        %6376 = vmatprep.subr.bf16.mxu0 0
        %6377 = vmatpush1.bf16.msra.mxu0 0
        %6378 = vmatprep.subr.bf16.mxu0 0
        %6379 = vmatpush1.bf16.msra.mxu0 0
        %6380 = vmatprep.subr.bf16.mxu0 0
        %6381 = vmatpush1.bf16.msra.mxu0 0
        %6382 = vmatprep.subr.bf16.mxu0 0
        %6383 = vmatpush1.bf16.msra.mxu0 0
        %6384 = vmatprep.subr.bf16.mxu0 0
        %6385 = vmatpush1.bf16.msra.mxu0 0
        %6386 = vmatprep.subr.bf16.mxu0 0
        %6387 = vmatpush1.bf16.msra.mxu0 0
        %6388 = vmatprep.subr.bf16.mxu0 0
        %6389 = vmatpush1.bf16.msra.mxu0 0
        %6390 = vmatprep.subr.bf16.mxu0 0
        %6391 = vmatpush1.bf16.msra.mxu0 0
        %6392 = vmatprep.subr.bf16.mxu0 0
        %6393 = vmatpush1.bf16.msra.mxu0 0
        %6394 = vmatprep.mubr.bf16.mxu0 0
        %6395 = vmatmul.mubr.bf16.gmra.mrb[0].mxu0 %v6291
        %v6396 = vpop.f32.mrb[0].mxu0
        %v6397 = vadd.f32 %v6276, %v6396
        %v6398 = vpop.f32.mrb[0].mxu0
        %v6399 = vpop.f32.mrb[0].mxu0
        %v6400 = vadd.f32 %v6276, %v6399
        %v6401 = vpop.f32.mrb[0].mxu0
        %6402 = vmatprep.mubr.bf16.mxu0 0
        %6403 = vmatmul.mubr.bf16.gmra.mrb[0].mxu0 %v6294
        %v6404 = vpop.f32.mrb[0].mxu0
        %v6405 = vadd.f32 %v6276, %v6404
        %v6406 = vpop.f32.mrb[0].mxu0
        %v6407 = vpop.f32.mrb[0].mxu0
        %v6408 = vadd.f32 %v6276, %v6407
        %v6409 = vpop.f32.mrb[0].mxu0
        %6410 = vmatprep.mubr.bf16.mxu0 0
        %6411 = vmatmul.mubr.bf16.gmra.mrb[0].mxu0 %v6297
        %v6412 = vpop.f32.mrb[0].mxu0
        %v6413 = vadd.f32 %v6276, %v6412
        %v6414 = vpop.f32.mrb[0].mxu0
        %v6415 = vpop.f32.mrb[0].mxu0
        %v6416 = vadd.f32 %v6276, %v6415
        %v6417 = vpop.f32.mrb[0].mxu0
        %6418 = vmatprep.mubr.bf16.mxu0 0
        %6419 = vmatmul.mubr.bf16.gmra.mrb[0].mxu0 %v6300
        %v6420 = vpop.f32.mrb[0].mxu0
        %v6421 = vadd.f32 %v6276, %v6420
        %v6422 = vpop.f32.mrb[0].mxu0
        %v6423 = vpop.f32.mrb[0].mxu0
        %v6424 = vadd.f32 %v6276, %v6423
        %v6425 = vpop.f32.mrb[0].mxu0
        %6426 = vmatprep.mubr.bf16.mxu0 0
        %6427 = vmatmul.mubr.bf16.gmra.mrb[0].mxu0 %v6303
        %v6428 = vpop.f32.mrb[0].mxu0
        %v6429 = vadd.f32 %v6276, %v6428
        %v6430 = vpop.f32.mrb[0].mxu0
        %v6431 = vpop.f32.mrb[0].mxu0
        %v6432 = vadd.f32 %v6276, %v6431
        %v6433 = vpop.f32.mrb[0].mxu0
        %6434 = vmatprep.mubr.bf16.mxu0 0
        %6435 = vmatmul.mubr.bf16.gmra.mrb[0].mxu0 %v6306
        %v6436 = vpop.f32.mrb[0].mxu0
        %v6437 = vadd.f32 %v6276, %v6436
        %v6438 = vpop.f32.mrb[0].mxu0
        %v6439 = vpop.f32.mrb[0].mxu0
        %v6440 = vadd.f32 %v6276, %v6439
        %v6441 = vpop.f32.mrb[0].mxu0
        %6442 = vmatprep.mubr.bf16.mxu0 0
        %6443 = vmatmul.mubr.bf16.gmra.mrb[0].mxu0 %v6309
        %v6444 = vpop.f32.mrb[0].mxu0
        %v6445 = vadd.f32 %v6276, %v6444
        %v6446 = vpop.f32.mrb[0].mxu0
        %v6447 = vpop.f32.mrb[0].mxu0
        %v6448 = vadd.f32 %v6276, %v6447
        %v6449 = vpop.f32.mrb[0].mxu0
        %6450 = vmatprep.mubr.bf16.mxu0 0
        %6451 = vmatmul.mubr.bf16.gmra.mrb[0].mxu0 %v6312
        %v6452 = vpop.f32.mrb[0].mxu0
        %v6453 = vadd.f32 %v6276, %v6452
        %v6454 = vpop.f32.mrb[0].mxu0
        %v6455 = vpop.f32.mrb[0].mxu0
        %v6456 = vadd.f32 %v6276, %v6455
        %v6457 = vpop.f32.mrb[0].mxu0
        %6458 = vmatprep.mubr.bf16.mxu0 0
        %6459 = vmatmul.mubr.bf16.gmra.mrb[0].mxu0 %v6315
        %v6460 = vpop.f32.mrb[0].mxu0
        %v6461 = vadd.f32 %v6276, %v6460
        %v6462 = vpop.f32.mrb[0].mxu0
        %v6463 = vpop.f32.mrb[0].mxu0
        %v6464 = vadd.f32 %v6276, %v6463
        %v6465 = vpop.f32.mrb[0].mxu0
        %6466 = vmatprep.mubr.bf16.mxu0 0
        %6467 = vmatmul.mubr.bf16.gmra.mrb[0].mxu0 %v6318
        %v6468 = vpop.f32.mrb[0].mxu0
        %v6469 = vadd.f32 %v6276, %v6468
        %v6470 = vpop.f32.mrb[0].mxu0
        %v6471 = vpop.f32.mrb[0].mxu0
        %v6472 = vadd.f32 %v6276, %v6471
        %v6473 = vpop.f32.mrb[0].mxu0
        %6474 = vmatprep.mubr.bf16.mxu0 0
        %6475 = vmatmul.mubr.bf16.gmra.mrb[0].mxu0 %v6321
        %v6476 = vpop.f32.mrb[0].mxu0
        %v6477 = vadd.f32 %v6276, %v6476
        %v6478 = vpop.f32.mrb[0].mxu0
        %v6479 = vpop.f32.mrb[0].mxu0
        %v6480 = vadd.f32 %v6276, %v6479
        %v6481 = vpop.f32.mrb[0].mxu0
        %6482 = vmatprep.mubr.bf16.mxu0 0
        %6483 = vmatmul.mubr.bf16.gmra.mrb[0].mxu0 %v6324
        %v6484 = vpop.f32.mrb[0].mxu0
        %v6485 = vadd.f32 %v6276, %v6484
        %v6486 = vpop.f32.mrb[0].mxu0
        %v6487 = vpop.f32.mrb[0].mxu0
        %v6488 = vadd.f32 %v6276, %v6487
        %v6489 = vpop.f32.mrb[0].mxu0
        %6490 = vmatprep.mubr.bf16.mxu0 0
        %6491 = vmatmul.mubr.bf16.gmra.mrb[0].mxu0 %v6327
        %v6492 = vpop.f32.mrb[0].mxu0
        %v6493 = vadd.f32 %v6276, %v6492
        %v6494 = vpop.f32.mrb[0].mxu0
        %v6495 = vpop.f32.mrb[0].mxu0
        %v6496 = vadd.f32 %v6276, %v6495
        %v6497 = vpop.f32.mrb[0].mxu0
        %6498 = vmatprep.mubr.bf16.mxu0 0
        %6499 = vmatmul.mubr.bf16.gmra.mrb[0].mxu0 %v6330
        %v6500 = vpop.f32.mrb[0].mxu0
        %v6501 = vadd.f32 %v6276, %v6500
        %v6502 = vpop.f32.mrb[0].mxu0
        %v6503 = vpop.f32.mrb[0].mxu0
        %v6504 = vadd.f32 %v6276, %v6503
        %v6505 = vpop.f32.mrb[0].mxu0
        %6506 = vmatprep.mubr.bf16.mxu0 0
        %6507 = vmatmul.mubr.bf16.gmra.mrb[0].mxu0 %v6333
        %v6508 = vpop.f32.mrb[0].mxu0
        %v6509 = vadd.f32 %v6276, %v6508
        %v6510 = vpop.f32.mrb[0].mxu0
        %v6511 = vpop.f32.mrb[0].mxu0
        %v6512 = vadd.f32 %v6276, %v6511
        %v6513 = vpop.f32.mrb[0].mxu0
        %6514 = vmatprep.mubr.bf16.mxu0 0
        %6515 = vmatmul.mubr.bf16.gmra.mrb[0].mxu0 %v6336
        %v6516 = vpop.f32.mrb[0].mxu0
        %v6517 = vadd.f32 %v6276, %v6516
        %v6518 = vpop.f32.mrb[0].mxu0
        %v6519 = vpop.f32.mrb[0].mxu0
        %v6520 = vadd.f32 %v6276, %v6519
        %v6521 = vpop.f32.mrb[0].mxu0
        %6522 = vmatprep.mubr.bf16.mxu0 0
        %6523 = vmatmul.mubr.bf16.gmra.mrb[0].mxu0 %v6339
        %v6524 = vpop.f32.mrb[0].mxu0
        %v6525 = vadd.f32 %v6276, %v6524
        %v6526 = vpop.f32.mrb[0].mxu0
        %v6527 = vpop.f32.mrb[0].mxu0
        %v6528 = vadd.f32 %v6276, %v6527
        %v6529 = vpop.f32.mrb[0].mxu0
        %6530 = vmatprep.mubr.bf16.mxu0 0
        %6531 = vmatmul.mubr.bf16.gmra.mrb[0].mxu0 %v6342
        %v6532 = vpop.f32.mrb[0].mxu0
        %v6533 = vadd.f32 %v6276, %v6532
        %v6534 = vpop.f32.mrb[0].mxu0
        %v6535 = vpop.f32.mrb[0].mxu0
        %v6536 = vadd.f32 %v6276, %v6535
        %v6537 = vpop.f32.mrb[0].mxu0
        %6538 = vmatprep.mubr.bf16.mxu0 0
        %6539 = vmatmul.mubr.bf16.gmra.mrb[0].mxu0 %v6345
        %v6540 = vpop.f32.mrb[0].mxu0
        %v6541 = vadd.f32 %v6276, %v6540
        %v6542 = vpop.f32.mrb[0].mxu0
        %v6543 = vpop.f32.mrb[0].mxu0
        %v6544 = vadd.f32 %v6276, %v6543
        %v6545 = vpop.f32.mrb[0].mxu0
        %6546 = vmatprep.mubr.bf16.mxu0 0
        %6547 = vmatmul.mubr.bf16.gmra.mrb[0].mxu0 %v6348
        %v6548 = vpop.f32.mrb[0].mxu0
        %v6549 = vadd.f32 %v6276, %v6548
        %v6550 = vpop.f32.mrb[0].mxu0
        %v6551 = vpop.f32.mrb[0].mxu0
        %v6552 = vadd.f32 %v6276, %v6551
        %v6553 = vpop.f32.mrb[0].mxu0
        %6554 = vmatprep.mubr.bf16.mxu0 0
        %6555 = vmatmul.mubr.bf16.gmra.mrb[0].mxu0 %v6351
        %v6556 = vpop.f32.mrb[0].mxu0
        %v6557 = vadd.f32 %v6276, %v6556
        %v6558 = vpop.f32.mrb[0].mxu0
        %v6559 = vpop.f32.mrb[0].mxu0
        %v6560 = vadd.f32 %v6276, %v6559
        %v6561 = vpop.f32.mrb[0].mxu0
        %6562 = vmatprep.mubr.bf16.mxu0 0
        %6563 = vmatmul.mubr.bf16.gmra.mrb[0].mxu0 %v6354
        %v6564 = vpop.f32.mrb[0].mxu0
        %v6565 = vadd.f32 %v6276, %v6564
        %v6566 = vpop.f32.mrb[0].mxu0
        %v6567 = vpop.f32.mrb[0].mxu0
        %v6568 = vadd.f32 %v6276, %v6567
        %v6569 = vpop.f32.mrb[0].mxu0
        %6570 = vmatprep.mubr.bf16.mxu0 0
        %6571 = vmatmul.mubr.bf16.gmra.mrb[0].mxu0 %v6357
        %v6572 = vpop.f32.mrb[0].mxu0
        %v6573 = vadd.f32 %v6276, %v6572
        %v6574 = vpop.f32.mrb[0].mxu0
        %v6575 = vpop.f32.mrb[0].mxu0
        %v6576 = vadd.f32 %v6276, %v6575
        %v6577 = vpop.f32.mrb[0].mxu0
        %6578 = vmatprep.mubr.bf16.mxu0 0
        %6579 = vmatmul.mubr.bf16.gmra.mrb[0].mxu0 %v6360
        %v6580 = vpop.f32.mrb[0].mxu0
        %v6581 = vadd.f32 %v6276, %v6580
        %v6582 = vpop.f32.mrb[0].mxu0
        %v6583 = vpop.f32.mrb[0].mxu0
        %v6584 = vadd.f32 %v6276, %v6583
        %v6585 = vpop.f32.mrb[0].mxu0
        %6586 = vdwg.mxu0
        %v6587 = vadd.f32 %v4263, %v6397
        %v6588 = vadd.f32 %v4264, %v6400
        %v6589 = vadd.f32 %v4265, %v6405
        %v6590 = vadd.f32 %v4266, %v6408
        %v6591 = vadd.f32 %v4267, %v6413
        %v6592 = vadd.f32 %v4268, %v6416
        %v6593 = vadd.f32 %v4269, %v6421
        %v6594 = vadd.f32 %v4270, %v6424
        %v6595 = vadd.f32 %v4271, %v6429
        %v6596 = vadd.f32 %v4272, %v6432
        %v6597 = vadd.f32 %v4273, %v6437
        %v6598 = vadd.f32 %v4274, %v6440
        %v6599 = vadd.f32 %v4275, %v6445
        %v6600 = vadd.f32 %v4276, %v6448
        %v6601 = vadd.f32 %v4277, %v6453
        %v6602 = vadd.f32 %v4278, %v6456
        %v6603 = vadd.f32 %v4279, %v6461
        %v6604 = vadd.f32 %v4280, %v6464
        %v6605 = vadd.f32 %v4281, %v6469
        %v6606 = vadd.f32 %v4282, %v6472
        %v6607 = vadd.f32 %v4283, %v6477
        %v6608 = vadd.f32 %v4284, %v6480
        %v6609 = vadd.f32 %v4285, %v6485
        %v6610 = vadd.f32 %v4286, %v6488
        %v6611 = vadd.f32 %v4287, %v6493
        %v6612 = vadd.f32 %v4288, %v6496
        %v6613 = vadd.f32 %v4289, %v6501
        %v6614 = vadd.f32 %v4290, %v6504
        %v6615 = vadd.f32 %v4291, %v6509
        %v6616 = vadd.f32 %v4292, %v6512
        %v6617 = vadd.f32 %v4293, %v6517
        %v6618 = vadd.f32 %v4294, %v6520
        %v6619 = vadd.f32 %v4295, %v6525
        %v6620 = vadd.f32 %v4296, %v6528
        %v6621 = vadd.f32 %v4297, %v6533
        %v6622 = vadd.f32 %v4298, %v6536
        %v6623 = vadd.f32 %v4299, %v6541
        %v6624 = vadd.f32 %v4300, %v6544
        %v6625 = vadd.f32 %v4301, %v6549
        %v6626 = vadd.f32 %v4302, %v6552
        %v6627 = vadd.f32 %v4303, %v6557
        %v6628 = vadd.f32 %v4304, %v6560
        %v6629 = vadd.f32 %v4305, %v6565
        %v6630 = vadd.f32 %v4306, %v6568
        %v6631 = vadd.f32 %v4307, %v6573
        %v6632 = vadd.f32 %v4308, %v6576
        %v6633 = vadd.f32 %v4309, %v6581
        %v6634 = vadd.f32 %v4310, %v6584
        %v6635 = vsel %vm411, %v6587, 0.0
        %6636 = vadd.xlane.f32.xlu0 %v6635
        %v6637 = vpop.xlane.xlu0 %6636
        %v6638 = vsel %vm411, %v6588, 0.0
        %6639 = vadd.xlane.f32.xlu0 %v6638
        %v6640 = vpop.xlane.xlu0 %6639
        %v6641 = vsel %vm411, %v6589, 0.0
        %6642 = vadd.xlane.f32.xlu0 %v6641
        %v6643 = vpop.xlane.xlu0 %6642
        %v6644 = vsel %vm411, %v6590, 0.0
        %6645 = vadd.xlane.f32.xlu0 %v6644
        %v6646 = vpop.xlane.xlu0 %6645
        %v6647 = vsel %vm411, %v6591, 0.0
        %6648 = vadd.xlane.f32.xlu0 %v6647
        %v6649 = vpop.xlane.xlu0 %6648
        %v6650 = vsel %vm411, %v6592, 0.0
        %6651 = vadd.xlane.f32.xlu0 %v6650
        %v6652 = vpop.xlane.xlu0 %6651
        %v6653 = vsel %vm411, %v6593, 0.0
        %6654 = vadd.xlane.f32.xlu0 %v6653
        %v6655 = vpop.xlane.xlu0 %6654
        %v6656 = vsel %vm411, %v6594, 0.0
        %6657 = vadd.xlane.f32.xlu0 %v6656
        %v6658 = vpop.xlane.xlu0 %6657
        %v6659 = vsel %vm411, %v6595, 0.0
        %6660 = vadd.xlane.f32.xlu0 %v6659
        %v6661 = vpop.xlane.xlu0 %6660
        %v6662 = vsel %vm411, %v6596, 0.0
        %6663 = vadd.xlane.f32.xlu0 %v6662
        %v6664 = vpop.xlane.xlu0 %6663
        %v6665 = vsel %vm411, %v6597, 0.0
        %6666 = vadd.xlane.f32.xlu0 %v6665
        %v6667 = vpop.xlane.xlu0 %6666
        %v6668 = vsel %vm411, %v6598, 0.0
        %6669 = vadd.xlane.f32.xlu0 %v6668
        %v6670 = vpop.xlane.xlu0 %6669
        %v6671 = vsel %vm411, %v6599, 0.0
        %6672 = vadd.xlane.f32.xlu0 %v6671
        %v6673 = vpop.xlane.xlu0 %6672
        %v6674 = vsel %vm411, %v6600, 0.0
        %6675 = vadd.xlane.f32.xlu0 %v6674
        %v6676 = vpop.xlane.xlu0 %6675
        %v6677 = vsel %vm411, %v6601, 0.0
        %6678 = vadd.xlane.f32.xlu0 %v6677
        %v6679 = vpop.xlane.xlu0 %6678
        %v6680 = vsel %vm411, %v6602, 0.0
        %6681 = vadd.xlane.f32.xlu0 %v6680
        %v6682 = vpop.xlane.xlu0 %6681
        %v6683 = vsel %vm411, %v6603, 0.0
        %6684 = vadd.xlane.f32.xlu0 %v6683
        %v6685 = vpop.xlane.xlu0 %6684
        %v6686 = vsel %vm411, %v6604, 0.0
        %6687 = vadd.xlane.f32.xlu0 %v6686
        %v6688 = vpop.xlane.xlu0 %6687
        %v6689 = vsel %vm411, %v6605, 0.0
        %6690 = vadd.xlane.f32.xlu0 %v6689
        %v6691 = vpop.xlane.xlu0 %6690
        %v6692 = vsel %vm411, %v6606, 0.0
        %6693 = vadd.xlane.f32.xlu0 %v6692
        %v6694 = vpop.xlane.xlu0 %6693
        %v6695 = vsel %vm411, %v6607, 0.0
        %6696 = vadd.xlane.f32.xlu0 %v6695
        %v6697 = vpop.xlane.xlu0 %6696
        %v6698 = vsel %vm411, %v6608, 0.0
        %6699 = vadd.xlane.f32.xlu0 %v6698
        %v6700 = vpop.xlane.xlu0 %6699
        %v6701 = vsel %vm411, %v6609, 0.0
        %6702 = vadd.xlane.f32.xlu0 %v6701
        %v6703 = vpop.xlane.xlu0 %6702
        %v6704 = vsel %vm411, %v6610, 0.0
        %6705 = vadd.xlane.f32.xlu0 %v6704
        %v6706 = vpop.xlane.xlu0 %6705
        %v6707 = vsel %vm411, %v6611, 0.0
        %6708 = vadd.xlane.f32.xlu0 %v6707
        %v6709 = vpop.xlane.xlu0 %6708
        %v6710 = vsel %vm411, %v6612, 0.0
        %6711 = vadd.xlane.f32.xlu0 %v6710
        %v6712 = vpop.xlane.xlu0 %6711
        %v6713 = vsel %vm411, %v6613, 0.0
        %6714 = vadd.xlane.f32.xlu0 %v6713
        %v6715 = vpop.xlane.xlu0 %6714
        %v6716 = vsel %vm411, %v6614, 0.0
        %6717 = vadd.xlane.f32.xlu0 %v6716
        %v6718 = vpop.xlane.xlu0 %6717
        %v6719 = vsel %vm411, %v6615, 0.0
        %6720 = vadd.xlane.f32.xlu0 %v6719
        %v6721 = vpop.xlane.xlu0 %6720
        %v6722 = vsel %vm411, %v6616, 0.0
        %6723 = vadd.xlane.f32.xlu0 %v6722
        %v6724 = vpop.xlane.xlu0 %6723
        %v6725 = vsel %vm411, %v6617, 0.0
        %6726 = vadd.xlane.f32.xlu0 %v6725
        %v6727 = vpop.xlane.xlu0 %6726
        %v6728 = vsel %vm411, %v6618, 0.0
        %6729 = vadd.xlane.f32.xlu0 %v6728
        %v6730 = vpop.xlane.xlu0 %6729
        %v6731 = vsel %vm411, %v6619, 0.0
        %6732 = vadd.xlane.f32.xlu0 %v6731
        %v6733 = vpop.xlane.xlu0 %6732
        %v6734 = vsel %vm411, %v6620, 0.0
        %6735 = vadd.xlane.f32.xlu0 %v6734
        %v6736 = vpop.xlane.xlu0 %6735
        %v6737 = vsel %vm411, %v6621, 0.0
        %6738 = vadd.xlane.f32.xlu0 %v6737
        %v6739 = vpop.xlane.xlu0 %6738
        %v6740 = vsel %vm411, %v6622, 0.0
        %6741 = vadd.xlane.f32.xlu0 %v6740
        %v6742 = vpop.xlane.xlu0 %6741
        %v6743 = vsel %vm411, %v6623, 0.0
        %6744 = vadd.xlane.f32.xlu0 %v6743
        %v6745 = vpop.xlane.xlu0 %6744
        %v6746 = vsel %vm411, %v6624, 0.0
        %6747 = vadd.xlane.f32.xlu0 %v6746
        %v6748 = vpop.xlane.xlu0 %6747
        %v6749 = vsel %vm411, %v6625, 0.0
        %6750 = vadd.xlane.f32.xlu0 %v6749
        %v6751 = vpop.xlane.xlu0 %6750
        %v6752 = vsel %vm411, %v6626, 0.0
        %6753 = vadd.xlane.f32.xlu0 %v6752
        %v6754 = vpop.xlane.xlu0 %6753
        %v6755 = vsel %vm411, %v6627, 0.0
        %6756 = vadd.xlane.f32.xlu0 %v6755
        %v6757 = vpop.xlane.xlu0 %6756
        %v6758 = vsel %vm411, %v6628, 0.0
        %6759 = vadd.xlane.f32.xlu0 %v6758
        %v6760 = vpop.xlane.xlu0 %6759
        %v6761 = vsel %vm411, %v6629, 0.0
        %6762 = vadd.xlane.f32.xlu0 %v6761
        %v6763 = vpop.xlane.xlu0 %6762
        %v6764 = vsel %vm411, %v6630, 0.0
        %6765 = vadd.xlane.f32.xlu0 %v6764
        %v6766 = vpop.xlane.xlu0 %6765
        %v6767 = vsel %vm411, %v6631, 0.0
        %6768 = vadd.xlane.f32.xlu0 %v6767
        %v6769 = vpop.xlane.xlu0 %6768
        %v6770 = vsel %vm411, %v6632, 0.0
        %6771 = vadd.xlane.f32.xlu0 %v6770
        %v6772 = vpop.xlane.xlu0 %6771
        %v6773 = vsel %vm411, %v6633, 0.0
        %6774 = vadd.xlane.f32.xlu0 %v6773
        %v6775 = vpop.xlane.xlu0 %6774
        %v6776 = vsel %vm411, %v6634, 0.0
        %6777 = vadd.xlane.f32.xlu0 %v6776
        %v6778 = vpop.xlane.xlu0 %6777
        %v6779 = vmul.f32 %v6637, %v556
        %v6780 = vmul.f32 %v6640, %v556
        %v6781 = vmul.f32 %v6643, %v556
        %v6782 = vmul.f32 %v6646, %v556
        %v6783 = vmul.f32 %v6649, %v556
        %v6784 = vmul.f32 %v6652, %v556
        %v6785 = vmul.f32 %v6655, %v556
        %v6786 = vmul.f32 %v6658, %v556
        %v6787 = vmul.f32 %v6661, %v556
        %v6788 = vmul.f32 %v6664, %v556
        %v6789 = vmul.f32 %v6667, %v556
        %v6790 = vmul.f32 %v6670, %v556
        %v6791 = vmul.f32 %v6673, %v556
        %v6792 = vmul.f32 %v6676, %v556
        %v6793 = vmul.f32 %v6679, %v556
        %v6794 = vmul.f32 %v6682, %v556
        %v6795 = vmul.f32 %v6685, %v556
        %v6796 = vmul.f32 %v6688, %v556
        %v6797 = vmul.f32 %v6691, %v556
        %v6798 = vmul.f32 %v6694, %v556
        %v6799 = vmul.f32 %v6697, %v556
        %v6800 = vmul.f32 %v6700, %v556
        %v6801 = vmul.f32 %v6703, %v556
        %v6802 = vmul.f32 %v6706, %v556
        %v6803 = vmul.f32 %v6709, %v556
        %v6804 = vmul.f32 %v6712, %v556
        %v6805 = vmul.f32 %v6715, %v556
        %v6806 = vmul.f32 %v6718, %v556
        %v6807 = vmul.f32 %v6721, %v556
        %v6808 = vmul.f32 %v6724, %v556
        %v6809 = vmul.f32 %v6727, %v556
        %v6810 = vmul.f32 %v6730, %v556
        %v6811 = vmul.f32 %v6733, %v556
        %v6812 = vmul.f32 %v6736, %v556
        %v6813 = vmul.f32 %v6739, %v556
        %v6814 = vmul.f32 %v6742, %v556
        %v6815 = vmul.f32 %v6745, %v556
        %v6816 = vmul.f32 %v6748, %v556
        %v6817 = vmul.f32 %v6751, %v556
        %v6818 = vmul.f32 %v6754, %v556
        %v6819 = vmul.f32 %v6757, %v556
        %v6820 = vmul.f32 %v6760, %v556
        %v6821 = vmul.f32 %v6763, %v556
        %v6822 = vmul.f32 %v6766, %v556
        %v6823 = vmul.f32 %v6769, %v556
        %v6824 = vmul.f32 %v6772, %v556
        %v6825 = vmul.f32 %v6775, %v556
        %v6826 = vmul.f32 %v6778, %v556
        %v6827 = vsub.f32 %v6587, %v6779
        %v6828 = vsub.f32 %v6588, %v6780
        %v6829 = vsub.f32 %v6589, %v6781
        %v6830 = vsub.f32 %v6590, %v6782
        %v6831 = vsub.f32 %v6591, %v6783
        %v6832 = vsub.f32 %v6592, %v6784
        %v6833 = vsub.f32 %v6593, %v6785
        %v6834 = vsub.f32 %v6594, %v6786
        %v6835 = vsub.f32 %v6595, %v6787
        %v6836 = vsub.f32 %v6596, %v6788
        %v6837 = vsub.f32 %v6597, %v6789
        %v6838 = vsub.f32 %v6598, %v6790
        %v6839 = vsub.f32 %v6599, %v6791
        %v6840 = vsub.f32 %v6600, %v6792
        %v6841 = vsub.f32 %v6601, %v6793
        %v6842 = vsub.f32 %v6602, %v6794
        %v6843 = vsub.f32 %v6603, %v6795
        %v6844 = vsub.f32 %v6604, %v6796
        %v6845 = vsub.f32 %v6605, %v6797
        %v6846 = vsub.f32 %v6606, %v6798
        %v6847 = vsub.f32 %v6607, %v6799
        %v6848 = vsub.f32 %v6608, %v6800
        %v6849 = vsub.f32 %v6609, %v6801
        %v6850 = vsub.f32 %v6610, %v6802
        %v6851 = vsub.f32 %v6611, %v6803
        %v6852 = vsub.f32 %v6612, %v6804
        %v6853 = vsub.f32 %v6613, %v6805
        %v6854 = vsub.f32 %v6614, %v6806
        %v6855 = vsub.f32 %v6615, %v6807
        %v6856 = vsub.f32 %v6616, %v6808
        %v6857 = vsub.f32 %v6617, %v6809
        %v6858 = vsub.f32 %v6618, %v6810
        %v6859 = vsub.f32 %v6619, %v6811
        %v6860 = vsub.f32 %v6620, %v6812
        %v6861 = vsub.f32 %v6621, %v6813
        %v6862 = vsub.f32 %v6622, %v6814
        %v6863 = vsub.f32 %v6623, %v6815
        %v6864 = vsub.f32 %v6624, %v6816
        %v6865 = vsub.f32 %v6625, %v6817
        %v6866 = vsub.f32 %v6626, %v6818
        %v6867 = vsub.f32 %v6627, %v6819
        %v6868 = vsub.f32 %v6628, %v6820
        %v6869 = vsub.f32 %v6629, %v6821
        %v6870 = vsub.f32 %v6630, %v6822
        %v6871 = vsub.f32 %v6631, %v6823
        %v6872 = vsub.f32 %v6632, %v6824
        %v6873 = vsub.f32 %v6633, %v6825
        %v6874 = vsub.f32 %v6634, %v6826
        %v6875 = vmul.f32 %v6827, %v6827
        %v6876 = vmul.f32 %v6828, %v6828
        %v6877 = vmul.f32 %v6829, %v6829
        %v6878 = vmul.f32 %v6830, %v6830
        %v6879 = vmul.f32 %v6831, %v6831
        %v6880 = vmul.f32 %v6832, %v6832
        %v6881 = vmul.f32 %v6833, %v6833
        %v6882 = vmul.f32 %v6834, %v6834
        %v6883 = vmul.f32 %v6835, %v6835
        %v6884 = vmul.f32 %v6836, %v6836
        %v6885 = vmul.f32 %v6837, %v6837
        %v6886 = vmul.f32 %v6838, %v6838
        %v6887 = vmul.f32 %v6839, %v6839
        %v6888 = vmul.f32 %v6840, %v6840
        %v6889 = vmul.f32 %v6841, %v6841
        %v6890 = vmul.f32 %v6842, %v6842
        %v6891 = vmul.f32 %v6843, %v6843
        %v6892 = vmul.f32 %v6844, %v6844
        %v6893 = vmul.f32 %v6845, %v6845
        %v6894 = vmul.f32 %v6846, %v6846
        %v6895 = vmul.f32 %v6847, %v6847
        %v6896 = vmul.f32 %v6848, %v6848
        %v6897 = vmul.f32 %v6849, %v6849
        %v6898 = vmul.f32 %v6850, %v6850
        %v6899 = vmul.f32 %v6851, %v6851
        %v6900 = vmul.f32 %v6852, %v6852
        %v6901 = vmul.f32 %v6853, %v6853
        %v6902 = vmul.f32 %v6854, %v6854
        %v6903 = vmul.f32 %v6855, %v6855
        %v6904 = vmul.f32 %v6856, %v6856
        %v6905 = vmul.f32 %v6857, %v6857
        %v6906 = vmul.f32 %v6858, %v6858
        %v6907 = vmul.f32 %v6859, %v6859
        %v6908 = vmul.f32 %v6860, %v6860
        %v6909 = vmul.f32 %v6861, %v6861
        %v6910 = vmul.f32 %v6862, %v6862
        %v6911 = vmul.f32 %v6863, %v6863
        %v6912 = vmul.f32 %v6864, %v6864
        %v6913 = vmul.f32 %v6865, %v6865
        %v6914 = vmul.f32 %v6866, %v6866
        %v6915 = vmul.f32 %v6867, %v6867
        %v6916 = vmul.f32 %v6868, %v6868
        %v6917 = vmul.f32 %v6869, %v6869
        %v6918 = vmul.f32 %v6870, %v6870
        %v6919 = vmul.f32 %v6871, %v6871
        %v6920 = vmul.f32 %v6872, %v6872
        %v6921 = vmul.f32 %v6873, %v6873
        %v6922 = vmul.f32 %v6874, %v6874
        %v6923 = vsel %vm411, %v6875, 0.0
        %6924 = vadd.xlane.f32.xlu0 %v6923
        %v6925 = vpop.xlane.xlu0 %6924
        %v6926 = vsel %vm411, %v6876, 0.0
        %6927 = vadd.xlane.f32.xlu0 %v6926
        %v6928 = vpop.xlane.xlu0 %6927
        %v6929 = vsel %vm411, %v6877, 0.0
        %6930 = vadd.xlane.f32.xlu0 %v6929
        %v6931 = vpop.xlane.xlu0 %6930
        %v6932 = vsel %vm411, %v6878, 0.0
        %6933 = vadd.xlane.f32.xlu0 %v6932
        %v6934 = vpop.xlane.xlu0 %6933
        %v6935 = vsel %vm411, %v6879, 0.0
        %6936 = vadd.xlane.f32.xlu0 %v6935
        %v6937 = vpop.xlane.xlu0 %6936
        %v6938 = vsel %vm411, %v6880, 0.0
        %6939 = vadd.xlane.f32.xlu0 %v6938
        %v6940 = vpop.xlane.xlu0 %6939
        %v6941 = vsel %vm411, %v6881, 0.0
        %6942 = vadd.xlane.f32.xlu0 %v6941
        %v6943 = vpop.xlane.xlu0 %6942
        %v6944 = vsel %vm411, %v6882, 0.0
        %6945 = vadd.xlane.f32.xlu0 %v6944
        %v6946 = vpop.xlane.xlu0 %6945
        %v6947 = vsel %vm411, %v6883, 0.0
        %6948 = vadd.xlane.f32.xlu0 %v6947
        %v6949 = vpop.xlane.xlu0 %6948
        %v6950 = vsel %vm411, %v6884, 0.0
        %6951 = vadd.xlane.f32.xlu0 %v6950
        %v6952 = vpop.xlane.xlu0 %6951
        %v6953 = vsel %vm411, %v6885, 0.0
        %6954 = vadd.xlane.f32.xlu0 %v6953
        %v6955 = vpop.xlane.xlu0 %6954
        %v6956 = vsel %vm411, %v6886, 0.0
        %6957 = vadd.xlane.f32.xlu0 %v6956
        %v6958 = vpop.xlane.xlu0 %6957
        %v6959 = vsel %vm411, %v6887, 0.0
        %6960 = vadd.xlane.f32.xlu0 %v6959
        %v6961 = vpop.xlane.xlu0 %6960
        %v6962 = vsel %vm411, %v6888, 0.0
        %6963 = vadd.xlane.f32.xlu0 %v6962
        %v6964 = vpop.xlane.xlu0 %6963
        %v6965 = vsel %vm411, %v6889, 0.0
        %6966 = vadd.xlane.f32.xlu0 %v6965
        %v6967 = vpop.xlane.xlu0 %6966
        %v6968 = vsel %vm411, %v6890, 0.0
        %6969 = vadd.xlane.f32.xlu0 %v6968
        %v6970 = vpop.xlane.xlu0 %6969
        %v6971 = vsel %vm411, %v6891, 0.0
        %6972 = vadd.xlane.f32.xlu0 %v6971
        %v6973 = vpop.xlane.xlu0 %6972
        %v6974 = vsel %vm411, %v6892, 0.0
        %6975 = vadd.xlane.f32.xlu0 %v6974
        %v6976 = vpop.xlane.xlu0 %6975
        %v6977 = vsel %vm411, %v6893, 0.0
        %6978 = vadd.xlane.f32.xlu0 %v6977
        %v6979 = vpop.xlane.xlu0 %6978
        %v6980 = vsel %vm411, %v6894, 0.0
        %6981 = vadd.xlane.f32.xlu0 %v6980
        %v6982 = vpop.xlane.xlu0 %6981
        %v6983 = vsel %vm411, %v6895, 0.0
        %6984 = vadd.xlane.f32.xlu0 %v6983
        %v6985 = vpop.xlane.xlu0 %6984
        %v6986 = vsel %vm411, %v6896, 0.0
        %6987 = vadd.xlane.f32.xlu0 %v6986
        %v6988 = vpop.xlane.xlu0 %6987
        %v6989 = vsel %vm411, %v6897, 0.0
        %6990 = vadd.xlane.f32.xlu0 %v6989
        %v6991 = vpop.xlane.xlu0 %6990
        %v6992 = vsel %vm411, %v6898, 0.0
        %6993 = vadd.xlane.f32.xlu0 %v6992
        %v6994 = vpop.xlane.xlu0 %6993
        %v6995 = vsel %vm411, %v6899, 0.0
        %6996 = vadd.xlane.f32.xlu0 %v6995
        %v6997 = vpop.xlane.xlu0 %6996
        %v6998 = vsel %vm411, %v6900, 0.0
        %6999 = vadd.xlane.f32.xlu0 %v6998
        %v7000 = vpop.xlane.xlu0 %6999
        %v7001 = vsel %vm411, %v6901, 0.0
        %7002 = vadd.xlane.f32.xlu0 %v7001
        %v7003 = vpop.xlane.xlu0 %7002
        %v7004 = vsel %vm411, %v6902, 0.0
        %7005 = vadd.xlane.f32.xlu0 %v7004
        %v7006 = vpop.xlane.xlu0 %7005
        %v7007 = vsel %vm411, %v6903, 0.0
        %7008 = vadd.xlane.f32.xlu0 %v7007
        %v7009 = vpop.xlane.xlu0 %7008
        %v7010 = vsel %vm411, %v6904, 0.0
        %7011 = vadd.xlane.f32.xlu0 %v7010
        %v7012 = vpop.xlane.xlu0 %7011
        %v7013 = vsel %vm411, %v6905, 0.0
        %7014 = vadd.xlane.f32.xlu0 %v7013
        %v7015 = vpop.xlane.xlu0 %7014
        %v7016 = vsel %vm411, %v6906, 0.0
        %7017 = vadd.xlane.f32.xlu0 %v7016
        %v7018 = vpop.xlane.xlu0 %7017
        %v7019 = vsel %vm411, %v6907, 0.0
        %7020 = vadd.xlane.f32.xlu0 %v7019
        %v7021 = vpop.xlane.xlu0 %7020
        %v7022 = vsel %vm411, %v6908, 0.0
        %7023 = vadd.xlane.f32.xlu0 %v7022
        %v7024 = vpop.xlane.xlu0 %7023
        %v7025 = vsel %vm411, %v6909, 0.0
        %7026 = vadd.xlane.f32.xlu0 %v7025
        %v7027 = vpop.xlane.xlu0 %7026
        %v7028 = vsel %vm411, %v6910, 0.0
        %7029 = vadd.xlane.f32.xlu0 %v7028
        %v7030 = vpop.xlane.xlu0 %7029
        %v7031 = vsel %vm411, %v6911, 0.0
        %7032 = vadd.xlane.f32.xlu0 %v7031
        %v7033 = vpop.xlane.xlu0 %7032
        %v7034 = vsel %vm411, %v6912, 0.0
        %7035 = vadd.xlane.f32.xlu0 %v7034
        %v7036 = vpop.xlane.xlu0 %7035
        %v7037 = vsel %vm411, %v6913, 0.0
        %7038 = vadd.xlane.f32.xlu0 %v7037
        %v7039 = vpop.xlane.xlu0 %7038
        %v7040 = vsel %vm411, %v6914, 0.0
        %7041 = vadd.xlane.f32.xlu0 %v7040
        %v7042 = vpop.xlane.xlu0 %7041
        %v7043 = vsel %vm411, %v6915, 0.0
        %7044 = vadd.xlane.f32.xlu0 %v7043
        %v7045 = vpop.xlane.xlu0 %7044
        %v7046 = vsel %vm411, %v6916, 0.0
        %7047 = vadd.xlane.f32.xlu0 %v7046
        %v7048 = vpop.xlane.xlu0 %7047
        %v7049 = vsel %vm411, %v6917, 0.0
        %7050 = vadd.xlane.f32.xlu0 %v7049
        %v7051 = vpop.xlane.xlu0 %7050
        %v7052 = vsel %vm411, %v6918, 0.0
        %7053 = vadd.xlane.f32.xlu0 %v7052
        %v7054 = vpop.xlane.xlu0 %7053
        %v7055 = vsel %vm411, %v6919, 0.0
        %7056 = vadd.xlane.f32.xlu0 %v7055
        %v7057 = vpop.xlane.xlu0 %7056
        %v7058 = vsel %vm411, %v6920, 0.0
        %7059 = vadd.xlane.f32.xlu0 %v7058
        %v7060 = vpop.xlane.xlu0 %7059
        %v7061 = vsel %vm411, %v6921, 0.0
        %7062 = vadd.xlane.f32.xlu0 %v7061
        %v7063 = vpop.xlane.xlu0 %7062
        %v7064 = vsel %vm411, %v6922, 0.0
        %7065 = vadd.xlane.f32.xlu0 %v7064
        %v7066 = vpop.xlane.xlu0 %7065
        %v7067 = vmul.f32 %v6925, %v556
        %v7068 = vmul.f32 %v6928, %v556
        %v7069 = vmul.f32 %v6931, %v556
        %v7070 = vmul.f32 %v6934, %v556
        %v7071 = vmul.f32 %v6937, %v556
        %v7072 = vmul.f32 %v6940, %v556
        %v7073 = vmul.f32 %v6943, %v556
        %v7074 = vmul.f32 %v6946, %v556
        %v7075 = vmul.f32 %v6949, %v556
        %v7076 = vmul.f32 %v6952, %v556
        %v7077 = vmul.f32 %v6955, %v556
        %v7078 = vmul.f32 %v6958, %v556
        %v7079 = vmul.f32 %v6961, %v556
        %v7080 = vmul.f32 %v6964, %v556
        %v7081 = vmul.f32 %v6967, %v556
        %v7082 = vmul.f32 %v6970, %v556
        %v7083 = vmul.f32 %v6973, %v556
        %v7084 = vmul.f32 %v6976, %v556
        %v7085 = vmul.f32 %v6979, %v556
        %v7086 = vmul.f32 %v6982, %v556
        %v7087 = vmul.f32 %v6985, %v556
        %v7088 = vmul.f32 %v6988, %v556
        %v7089 = vmul.f32 %v6991, %v556
        %v7090 = vmul.f32 %v6994, %v556
        %v7091 = vmul.f32 %v6997, %v556
        %v7092 = vmul.f32 %v7000, %v556
        %v7093 = vmul.f32 %v7003, %v556
        %v7094 = vmul.f32 %v7006, %v556
        %v7095 = vmul.f32 %v7009, %v556
        %v7096 = vmul.f32 %v7012, %v556
        %v7097 = vmul.f32 %v7015, %v556
        %v7098 = vmul.f32 %v7018, %v556
        %v7099 = vmul.f32 %v7021, %v556
        %v7100 = vmul.f32 %v7024, %v556
        %v7101 = vmul.f32 %v7027, %v556
        %v7102 = vmul.f32 %v7030, %v556
        %v7103 = vmul.f32 %v7033, %v556
        %v7104 = vmul.f32 %v7036, %v556
        %v7105 = vmul.f32 %v7039, %v556
        %v7106 = vmul.f32 %v7042, %v556
        %v7107 = vmul.f32 %v7045, %v556
        %v7108 = vmul.f32 %v7048, %v556
        %v7109 = vmul.f32 %v7051, %v556
        %v7110 = vmul.f32 %v7054, %v556
        %v7111 = vmul.f32 %v7057, %v556
        %v7112 = vmul.f32 %v7060, %v556
        %v7113 = vmul.f32 %v7063, %v556
        %v7114 = vmul.f32 %v7066, %v556
        %v7115 = vadd.f32 %v7067, 1e-05
        %v7116 = vadd.f32 %v7068, 1e-05
        %v7117 = vadd.f32 %v7069, 1e-05
        %v7118 = vadd.f32 %v7070, 1e-05
        %v7119 = vadd.f32 %v7071, 1e-05
        %v7120 = vadd.f32 %v7072, 1e-05
        %v7121 = vadd.f32 %v7073, 1e-05
        %v7122 = vadd.f32 %v7074, 1e-05
        %v7123 = vadd.f32 %v7075, 1e-05
        %v7124 = vadd.f32 %v7076, 1e-05
        %v7125 = vadd.f32 %v7077, 1e-05
        %v7126 = vadd.f32 %v7078, 1e-05
        %v7127 = vadd.f32 %v7079, 1e-05
        %v7128 = vadd.f32 %v7080, 1e-05
        %v7129 = vadd.f32 %v7081, 1e-05
        %v7130 = vadd.f32 %v7082, 1e-05
        %v7131 = vadd.f32 %v7083, 1e-05
        %v7132 = vadd.f32 %v7084, 1e-05
        %v7133 = vadd.f32 %v7085, 1e-05
        %v7134 = vadd.f32 %v7086, 1e-05
        %v7135 = vadd.f32 %v7087, 1e-05
        %v7136 = vadd.f32 %v7088, 1e-05
        %v7137 = vadd.f32 %v7089, 1e-05
        %v7138 = vadd.f32 %v7090, 1e-05
        %v7139 = vadd.f32 %v7091, 1e-05
        %v7140 = vadd.f32 %v7092, 1e-05
        %v7141 = vadd.f32 %v7093, 1e-05
        %v7142 = vadd.f32 %v7094, 1e-05
        %v7143 = vadd.f32 %v7095, 1e-05
        %v7144 = vadd.f32 %v7096, 1e-05
        %v7145 = vadd.f32 %v7097, 1e-05
        %v7146 = vadd.f32 %v7098, 1e-05
        %v7147 = vadd.f32 %v7099, 1e-05
        %v7148 = vadd.f32 %v7100, 1e-05
        %v7149 = vadd.f32 %v7101, 1e-05
        %v7150 = vadd.f32 %v7102, 1e-05
        %v7151 = vadd.f32 %v7103, 1e-05
        %v7152 = vadd.f32 %v7104, 1e-05
        %v7153 = vadd.f32 %v7105, 1e-05
        %v7154 = vadd.f32 %v7106, 1e-05
        %v7155 = vadd.f32 %v7107, 1e-05
        %v7156 = vadd.f32 %v7108, 1e-05
        %v7157 = vadd.f32 %v7109, 1e-05
        %v7158 = vadd.f32 %v7110, 1e-05
        %v7159 = vadd.f32 %v7111, 1e-05
        %v7160 = vadd.f32 %v7112, 1e-05
        %v7161 = vadd.f32 %v7113, 1e-05
        %v7162 = vadd.f32 %v7114, 1e-05
        %v7163 = vrsqrt.pop %v7115
        %v7164 = vrsqrt.pop %v7116
        %v7165 = vrsqrt.pop %v7117
        %v7166 = vrsqrt.pop %v7118
        %v7167 = vrsqrt.pop %v7119
        %v7168 = vrsqrt.pop %v7120
        %v7169 = vrsqrt.pop %v7121
        %v7170 = vrsqrt.pop %v7122
        %v7171 = vrsqrt.pop %v7123
        %v7172 = vrsqrt.pop %v7124
        %v7173 = vrsqrt.pop %v7125
        %v7174 = vrsqrt.pop %v7126
        %v7175 = vrsqrt.pop %v7127
        %v7176 = vrsqrt.pop %v7128
        %v7177 = vrsqrt.pop %v7129
        %v7178 = vrsqrt.pop %v7130
        %v7179 = vrsqrt.pop %v7131
        %v7180 = vrsqrt.pop %v7132
        %v7181 = vrsqrt.pop %v7133
        %v7182 = vrsqrt.pop %v7134
        %v7183 = vrsqrt.pop %v7135
        %v7184 = vrsqrt.pop %v7136
        %v7185 = vrsqrt.pop %v7137
        %v7186 = vrsqrt.pop %v7138
        %v7187 = vrsqrt.pop %v7139
        %v7188 = vrsqrt.pop %v7140
        %v7189 = vrsqrt.pop %v7141
        %v7190 = vrsqrt.pop %v7142
        %v7191 = vrsqrt.pop %v7143
        %v7192 = vrsqrt.pop %v7144
        %v7193 = vrsqrt.pop %v7145
        %v7194 = vrsqrt.pop %v7146
        %v7195 = vrsqrt.pop %v7147
        %v7196 = vrsqrt.pop %v7148
        %v7197 = vrsqrt.pop %v7149
        %v7198 = vrsqrt.pop %v7150
        %v7199 = vrsqrt.pop %v7151
        %v7200 = vrsqrt.pop %v7152
        %v7201 = vrsqrt.pop %v7153
        %v7202 = vrsqrt.pop %v7154
        %v7203 = vrsqrt.pop %v7155
        %v7204 = vrsqrt.pop %v7156
        %v7205 = vrsqrt.pop %v7157
        %v7206 = vrsqrt.pop %v7158
        %v7207 = vrsqrt.pop %v7159
        %v7208 = vrsqrt.pop %v7160
        %v7209 = vrsqrt.pop %v7161
        %v7210 = vrsqrt.pop %v7162
        %v7211 = vmul.f32 %v6827, %v7163
        %v7212 = vmul.f32 %v6828, %v7164
        %v7213 = vmul.f32 %v6829, %v7165
        %v7214 = vmul.f32 %v6830, %v7166
        %v7215 = vmul.f32 %v6831, %v7167
        %v7216 = vmul.f32 %v6832, %v7168
        %v7217 = vmul.f32 %v6833, %v7169
        %v7218 = vmul.f32 %v6834, %v7170
        %v7219 = vmul.f32 %v6835, %v7171
        %v7220 = vmul.f32 %v6836, %v7172
        %v7221 = vmul.f32 %v6837, %v7173
        %v7222 = vmul.f32 %v6838, %v7174
        %v7223 = vmul.f32 %v6839, %v7175
        %v7224 = vmul.f32 %v6840, %v7176
        %v7225 = vmul.f32 %v6841, %v7177
        %v7226 = vmul.f32 %v6842, %v7178
        %v7227 = vmul.f32 %v6843, %v7179
        %v7228 = vmul.f32 %v6844, %v7180
        %v7229 = vmul.f32 %v6845, %v7181
        %v7230 = vmul.f32 %v6846, %v7182
        %v7231 = vmul.f32 %v6847, %v7183
        %v7232 = vmul.f32 %v6848, %v7184
        %v7233 = vmul.f32 %v6849, %v7185
        %v7234 = vmul.f32 %v6850, %v7186
        %v7235 = vmul.f32 %v6851, %v7187
        %v7236 = vmul.f32 %v6852, %v7188
        %v7237 = vmul.f32 %v6853, %v7189
        %v7238 = vmul.f32 %v6854, %v7190
        %v7239 = vmul.f32 %v6855, %v7191
        %v7240 = vmul.f32 %v6856, %v7192
        %v7241 = vmul.f32 %v6857, %v7193
        %v7242 = vmul.f32 %v6858, %v7194
        %v7243 = vmul.f32 %v6859, %v7195
        %v7244 = vmul.f32 %v6860, %v7196
        %v7245 = vmul.f32 %v6861, %v7197
        %v7246 = vmul.f32 %v6862, %v7198
        %v7247 = vmul.f32 %v6863, %v7199
        %v7248 = vmul.f32 %v6864, %v7200
        %v7249 = vmul.f32 %v6865, %v7201
        %v7250 = vmul.f32 %v6866, %v7202
        %v7251 = vmul.f32 %v6867, %v7203
        %v7252 = vmul.f32 %v6868, %v7204
        %v7253 = vmul.f32 %v6869, %v7205
        %v7254 = vmul.f32 %v6870, %v7206
        %v7255 = vmul.f32 %v6871, %v7207
        %v7256 = vmul.f32 %v6872, %v7208
        %v7257 = vmul.f32 %v6873, %v7209
        %v7258 = vmul.f32 %v6874, %v7210
        %v7259 = vmul.f32 %v7211, %v1041
        %v7260 = vmul.f32 %v7212, %v1041
        %v7261 = vmul.f32 %v7213, %v1041
        %v7262 = vmul.f32 %v7214, %v1041
        %v7263 = vmul.f32 %v7215, %v1041
        %v7264 = vmul.f32 %v7216, %v1041
        %v7265 = vmul.f32 %v7217, %v1041
        %v7266 = vmul.f32 %v7218, %v1041
        %v7267 = vmul.f32 %v7219, %v1041
        %v7268 = vmul.f32 %v7220, %v1041
        %v7269 = vmul.f32 %v7221, %v1041
        %v7270 = vmul.f32 %v7222, %v1041
        %v7271 = vmul.f32 %v7223, %v1041
        %v7272 = vmul.f32 %v7224, %v1041
        %v7273 = vmul.f32 %v7225, %v1041
        %v7274 = vmul.f32 %v7226, %v1041
        %v7275 = vmul.f32 %v7227, %v1041
        %v7276 = vmul.f32 %v7228, %v1041
        %v7277 = vmul.f32 %v7229, %v1041
        %v7278 = vmul.f32 %v7230, %v1041
        %v7279 = vmul.f32 %v7231, %v1041
        %v7280 = vmul.f32 %v7232, %v1041
        %v7281 = vmul.f32 %v7233, %v1041
        %v7282 = vmul.f32 %v7234, %v1041
        %v7283 = vmul.f32 %v7235, %v1041
        %v7284 = vmul.f32 %v7236, %v1041
        %v7285 = vmul.f32 %v7237, %v1041
        %v7286 = vmul.f32 %v7238, %v1041
        %v7287 = vmul.f32 %v7239, %v1041
        %v7288 = vmul.f32 %v7240, %v1041
        %v7289 = vmul.f32 %v7241, %v1041
        %v7290 = vmul.f32 %v7242, %v1041
        %v7291 = vmul.f32 %v7243, %v1041
        %v7292 = vmul.f32 %v7244, %v1041
        %v7293 = vmul.f32 %v7245, %v1041
        %v7294 = vmul.f32 %v7246, %v1041
        %v7295 = vmul.f32 %v7247, %v1041
        %v7296 = vmul.f32 %v7248, %v1041
        %v7297 = vmul.f32 %v7249, %v1041
        %v7298 = vmul.f32 %v7250, %v1041
        %v7299 = vmul.f32 %v7251, %v1041
        %v7300 = vmul.f32 %v7252, %v1041
        %v7301 = vmul.f32 %v7253, %v1041
        %v7302 = vmul.f32 %v7254, %v1041
        %v7303 = vmul.f32 %v7255, %v1041
        %v7304 = vmul.f32 %v7256, %v1041
        %v7305 = vmul.f32 %v7257, %v1041
        %v7306 = vmul.f32 %v7258, %v1041
        %v7307 = vadd.f32 %v7259, %v1095
        %v7308 = vadd.f32 %v7260, %v1095
        %v7309 = vadd.f32 %v7261, %v1095
        %v7310 = vadd.f32 %v7262, %v1095
        %v7311 = vadd.f32 %v7263, %v1095
        %v7312 = vadd.f32 %v7264, %v1095
        %v7313 = vadd.f32 %v7265, %v1095
        %v7314 = vadd.f32 %v7266, %v1095
        %v7315 = vadd.f32 %v7267, %v1095
        %v7316 = vadd.f32 %v7268, %v1095
        %v7317 = vadd.f32 %v7269, %v1095
        %v7318 = vadd.f32 %v7270, %v1095
        %v7319 = vadd.f32 %v7271, %v1095
        %v7320 = vadd.f32 %v7272, %v1095
        %v7321 = vadd.f32 %v7273, %v1095
        %v7322 = vadd.f32 %v7274, %v1095
        %v7323 = vadd.f32 %v7275, %v1095
        %v7324 = vadd.f32 %v7276, %v1095
        %v7325 = vadd.f32 %v7277, %v1095
        %v7326 = vadd.f32 %v7278, %v1095
        %v7327 = vadd.f32 %v7279, %v1095
        %v7328 = vadd.f32 %v7280, %v1095
        %v7329 = vadd.f32 %v7281, %v1095
        %v7330 = vadd.f32 %v7282, %v1095
        %v7331 = vadd.f32 %v7283, %v1095
        %v7332 = vadd.f32 %v7284, %v1095
        %v7333 = vadd.f32 %v7285, %v1095
        %v7334 = vadd.f32 %v7286, %v1095
        %v7335 = vadd.f32 %v7287, %v1095
        %v7336 = vadd.f32 %v7288, %v1095
        %v7337 = vadd.f32 %v7289, %v1095
        %v7338 = vadd.f32 %v7290, %v1095
        %v7339 = vadd.f32 %v7291, %v1095
        %v7340 = vadd.f32 %v7292, %v1095
        %v7341 = vadd.f32 %v7293, %v1095
        %v7342 = vadd.f32 %v7294, %v1095
        %v7343 = vadd.f32 %v7295, %v1095
        %v7344 = vadd.f32 %v7296, %v1095
        %v7345 = vadd.f32 %v7297, %v1095
        %v7346 = vadd.f32 %v7298, %v1095
        %v7347 = vadd.f32 %v7299, %v1095
        %v7348 = vadd.f32 %v7300, %v1095
        %v7349 = vadd.f32 %v7301, %v1095
        %v7350 = vadd.f32 %v7302, %v1095
        %v7351 = vadd.f32 %v7303, %v1095
        %v7352 = vadd.f32 %v7304, %v1095
        %v7353 = vadd.f32 %v7305, %v1095
        %v7354 = vadd.f32 %v7306, %v1095
        %v7355 = vsel %vm1258, 1, 0
        %v7356 = vsel %vm1259, 1, 0
        %v7357 = vsel %vm1260, 1, 0
        %v7358 = vsel %vm1261, 1, 0
        %v7359 = vsel %vm1262, 1, 0
        %v7360 = vsel %vm1263, 1, 0
        %v7361 = vsel %vm1264, 1, 0
        %v7362 = vsel %vm1265, 1, 0
        %v7363 = vsel %vm1266, 1, 0
        %v7364 = vsel %vm1267, 1, 0
        %v7365 = vsel %vm1268, 1, 0
        %v7366 = vsel %vm1269, 1, 0
        %vm7367 = vcmp.eq.s32.totalorder %v7355, 1
        %vm7368 = vcmp.eq.s32.totalorder %v7356, 1
        %vm7369 = vcmp.eq.s32.totalorder %v7357, 1
        %vm7370 = vcmp.eq.s32.totalorder %v7358, 1
        %vm7371 = vcmp.eq.s32.totalorder %v7359, 1
        %vm7372 = vcmp.eq.s32.totalorder %v7360, 1
        %vm7373 = vcmp.eq.s32.totalorder %v7361, 1
        %vm7374 = vcmp.eq.s32.totalorder %v7362, 1
        %vm7375 = vcmp.eq.s32.totalorder %v7363, 1
        %vm7376 = vcmp.eq.s32.totalorder %v7364, 1
        %vm7377 = vcmp.eq.s32.totalorder %v7365, 1
        %vm7378 = vcmp.eq.s32.totalorder %v7366, 1
        %v7379 = vsel %vm7367, %v7307, -1e+30
        %v7380 = vsel %vm7368, %v7308, -1e+30
        %v7381 = vsel %vm7369, %v7309, -1e+30
        %v7382 = vsel %vm7370, %v7310, -1e+30
        %v7383 = vsel %vm7371, %v7311, -1e+30
        %v7384 = vsel %vm7372, %v7312, -1e+30
        %v7385 = vsel %vm7373, %v7313, -1e+30
        %v7386 = vsel %vm7374, %v7314, -1e+30
        %v7387 = vsel %vm7375, %v7315, -1e+30
        %v7388 = vsel %vm7376, %v7316, -1e+30
        %v7389 = vsel %vm7377, %v7317, -1e+30
        %v7390 = vsel %vm7378, %v7318, -1e+30
        %v7391 = vsel %vm411, %v7379, -inf
        %v7392 = vsel %vm411, %v7380, -inf
        %v7393 = vsel %vm411, %v7381, -inf
        %v7394 = vsel %vm411, %v7382, -inf
        %v7395 = vsel %vm411, %v7383, -inf
        %v7396 = vmax.f32 %v7391, %v7395
        %v7397 = vsel %vm411, %v7384, -inf
        %v7398 = vmax.f32 %v7392, %v7397
        %v7399 = vsel %vm411, %v7385, -inf
        %v7400 = vmax.f32 %v7393, %v7399
        %v7401 = vsel %vm411, %v7386, -inf
        %v7402 = vmax.f32 %v7394, %v7401
        %v7403 = vsel %vm411, %v7387, -inf
        %v7404 = vmax.f32 %v7396, %v7403
        %v7405 = vsel %vm411, %v7388, -inf
        %v7406 = vmax.f32 %v7398, %v7405
        %v7407 = vsel %vm411, %v7389, -inf
        %v7408 = vmax.f32 %v7400, %v7407
        %v7409 = vsel %vm411, %v7390, -inf
        %v7410 = vmax.f32 %v7402, %v7409
        %v7411 = vmax.f32 %v7404, %v7406
        %v7412 = vmax.f32 %v7408, %v7410
        %v7413 = vmax.f32 %v7411, %v7412
        %v7414 = vrot.slane %v7413, 4
        %v7415 = vmax.f32 %v7413, %v7414
        %v7416 = vrot.slane %v7415, 2
        %v7417 = vmax.f32 %v7415, %v7416
        %v7418 = vrot.slane %v7417, 1
        %v7419 = vmax.f32 %v7417, %v7418
        %v7420 = vsel %vm7367, %v7319, -1e+30
        %v7421 = vsel %vm7368, %v7320, -1e+30
        %v7422 = vsel %vm7369, %v7321, -1e+30
        %v7423 = vsel %vm7370, %v7322, -1e+30
        %v7424 = vsel %vm7371, %v7323, -1e+30
        %v7425 = vsel %vm7372, %v7324, -1e+30
        %v7426 = vsel %vm7373, %v7325, -1e+30
        %v7427 = vsel %vm7374, %v7326, -1e+30
        %v7428 = vsel %vm7375, %v7327, -1e+30
        %v7429 = vsel %vm7376, %v7328, -1e+30
        %v7430 = vsel %vm7377, %v7329, -1e+30
        %v7431 = vsel %vm7378, %v7330, -1e+30
        %v7432 = vsel %vm411, %v7420, -inf
        %v7433 = vsel %vm411, %v7421, -inf
        %v7434 = vsel %vm411, %v7422, -inf
        %v7435 = vsel %vm411, %v7423, -inf
        %v7436 = vsel %vm411, %v7424, -inf
        %v7437 = vmax.f32 %v7432, %v7436
        %v7438 = vsel %vm411, %v7425, -inf
        %v7439 = vmax.f32 %v7433, %v7438
        %v7440 = vsel %vm411, %v7426, -inf
        %v7441 = vmax.f32 %v7434, %v7440
        %v7442 = vsel %vm411, %v7427, -inf
        %v7443 = vmax.f32 %v7435, %v7442
        %v7444 = vsel %vm411, %v7428, -inf
        %v7445 = vmax.f32 %v7437, %v7444
        %v7446 = vsel %vm411, %v7429, -inf
        %v7447 = vmax.f32 %v7439, %v7446
        %v7448 = vsel %vm411, %v7430, -inf
        %v7449 = vmax.f32 %v7441, %v7448
        %v7450 = vsel %vm411, %v7431, -inf
        %v7451 = vmax.f32 %v7443, %v7450
        %v7452 = vmax.f32 %v7445, %v7447
        %v7453 = vmax.f32 %v7449, %v7451
        %v7454 = vmax.f32 %v7452, %v7453
        %v7455 = vrot.slane %v7454, 4
        %v7456 = vmax.f32 %v7454, %v7455
        %v7457 = vrot.slane %v7456, 2
        %v7458 = vmax.f32 %v7456, %v7457
        %v7459 = vrot.slane %v7458, 1
        %v7460 = vmax.f32 %v7458, %v7459
        %v7461 = vsel %vm7367, %v7331, -1e+30
        %v7462 = vsel %vm7368, %v7332, -1e+30
        %v7463 = vsel %vm7369, %v7333, -1e+30
        %v7464 = vsel %vm7370, %v7334, -1e+30
        %v7465 = vsel %vm7371, %v7335, -1e+30
        %v7466 = vsel %vm7372, %v7336, -1e+30
        %v7467 = vsel %vm7373, %v7337, -1e+30
        %v7468 = vsel %vm7374, %v7338, -1e+30
        %v7469 = vsel %vm7375, %v7339, -1e+30
        %v7470 = vsel %vm7376, %v7340, -1e+30
        %v7471 = vsel %vm7377, %v7341, -1e+30
        %v7472 = vsel %vm7378, %v7342, -1e+30
        %v7473 = vsel %vm411, %v7461, -inf
        %v7474 = vsel %vm411, %v7462, -inf
        %v7475 = vsel %vm411, %v7463, -inf
        %v7476 = vsel %vm411, %v7464, -inf
        %v7477 = vsel %vm411, %v7465, -inf
        %v7478 = vmax.f32 %v7473, %v7477
        %v7479 = vsel %vm411, %v7466, -inf
        %v7480 = vmax.f32 %v7474, %v7479
        %v7481 = vsel %vm411, %v7467, -inf
        %v7482 = vmax.f32 %v7475, %v7481
        %v7483 = vsel %vm411, %v7468, -inf
        %v7484 = vmax.f32 %v7476, %v7483
        %v7485 = vsel %vm411, %v7469, -inf
        %v7486 = vmax.f32 %v7478, %v7485
        %v7487 = vsel %vm411, %v7470, -inf
        %v7488 = vmax.f32 %v7480, %v7487
        %v7489 = vsel %vm411, %v7471, -inf
        %v7490 = vmax.f32 %v7482, %v7489
        %v7491 = vsel %vm411, %v7472, -inf
        %v7492 = vmax.f32 %v7484, %v7491
        %v7493 = vmax.f32 %v7486, %v7488
        %v7494 = vmax.f32 %v7490, %v7492
        %v7495 = vmax.f32 %v7493, %v7494
        %v7496 = vrot.slane %v7495, 4
        %v7497 = vmax.f32 %v7495, %v7496
        %v7498 = vrot.slane %v7497, 2
        %v7499 = vmax.f32 %v7497, %v7498
        %v7500 = vrot.slane %v7499, 1
        %v7501 = vmax.f32 %v7499, %v7500
        %v7502 = vsel %vm7367, %v7343, -1e+30
        %v7503 = vsel %vm7368, %v7344, -1e+30
        %v7504 = vsel %vm7369, %v7345, -1e+30
        %v7505 = vsel %vm7370, %v7346, -1e+30
        %v7506 = vsel %vm7371, %v7347, -1e+30
        %v7507 = vsel %vm7372, %v7348, -1e+30
        %v7508 = vsel %vm7373, %v7349, -1e+30
        %v7509 = vsel %vm7374, %v7350, -1e+30
        %v7510 = vsel %vm7375, %v7351, -1e+30
        %v7511 = vsel %vm7376, %v7352, -1e+30
        %v7512 = vsel %vm7377, %v7353, -1e+30
        %v7513 = vsel %vm7378, %v7354, -1e+30
        %v7514 = vsel %vm411, %v7502, -inf
        %v7515 = vsel %vm411, %v7503, -inf
        %v7516 = vsel %vm411, %v7504, -inf
        %v7517 = vsel %vm411, %v7505, -inf
        %v7518 = vsel %vm411, %v7506, -inf
        %v7519 = vmax.f32 %v7514, %v7518
        %v7520 = vsel %vm411, %v7507, -inf
        %v7521 = vmax.f32 %v7515, %v7520
        %v7522 = vsel %vm411, %v7508, -inf
        %v7523 = vmax.f32 %v7516, %v7522
        %v7524 = vsel %vm411, %v7509, -inf
        %v7525 = vmax.f32 %v7517, %v7524
        %v7526 = vsel %vm411, %v7510, -inf
        %v7527 = vmax.f32 %v7519, %v7526
        %v7528 = vsel %vm411, %v7511, -inf
        %v7529 = vmax.f32 %v7521, %v7528
        %v7530 = vsel %vm411, %v7512, -inf
        %v7531 = vmax.f32 %v7523, %v7530
        %v7532 = vsel %vm411, %v7513, -inf
        %v7533 = vmax.f32 %v7525, %v7532
        %v7534 = vmax.f32 %v7527, %v7529
        %v7535 = vmax.f32 %v7531, %v7533
        %v7536 = vmax.f32 %v7534, %v7535
        %v7537 = vrot.slane %v7536, 4
        %v7538 = vmax.f32 %v7536, %v7537
        %v7539 = vrot.slane %v7538, 2
        %v7540 = vmax.f32 %v7538, %v7539
        %v7541 = vrot.slane %v7540, 1
        %v7542 = vmax.f32 %v7540, %v7541
        %vm7543 = vcmask 1040384
        %v7544 = vsel %vm7543, %v7419, %v7460
        %vm7545 = vcmask 1041408
        %v7546 = vsel %vm7545, %v7544, %v7501
        %vm7547 = vcmask 1042432
        %v7548 = vsel %vm7547, %v7546, %v7542
        %v7549 = vld [vmem:[%s8] sm:$0xff]
        %v7550 = vld [vmem:[%s8 + $0x8] sm:$0xff]
        %v7551 = vld [vmem:[%s8 + $0x10] sm:$0xff]
        %v7552 = vld [vmem:[%s8 + $0x18] sm:$0xff]
        %v7553 = vld [vmem:[%s9] sm:$0x1]
        %v7555 = vlaneseq
        %v7556 = vshrl.u32 %v7555, 7
        %v7557 = vsub.s32 0, %v7556
        %v7558 = vrot.slane %v7553, %v7557
        %v7561 = vsel %vm411, %v7548, 0
        %7563 = vmatprep.subr.mxu0 0.0
        %7564 = vmatpush1.msra.mxu0 %v7549
        %7565 = vmatprep.subr.mxu0 0.0
        %7566 = vmatpush1.msra.mxu0 %v7550
        %7567 = vmatprep.subr.mxu0 0.0
        %7568 = vmatpush1.msra.mxu0 %v7551
        %7569 = vmatprep.subr.mxu0 0.0
        %7570 = vmatpush1.msra.mxu0 %v7552
        %7571 = vmatprep.subr.mxu0 0.0
        %7572 = vmatpush1.msra.mxu0 0.0
        %7573 = vmatprep.subr.mxu0 0.0
        %7574 = vmatpush1.msra.mxu0 0.0
        %7575 = vmatprep.subr.mxu0 0.0
        %7576 = vmatpush1.msra.mxu0 0.0
        %7577 = vmatprep.subr.mxu0 0.0
        %7578 = vmatpush1.msra.mxu0 0.0
        %7579 = vmatprep.subr.mxu0 0.0
        %7580 = vmatpush1.msra.mxu0 0.0
        %7581 = vmatprep.subr.mxu0 0.0
        %7582 = vmatpush1.msra.mxu0 0.0
        %7583 = vmatprep.subr.mxu0 0.0
        %7584 = vmatpush1.msra.mxu0 0.0
        %7585 = vmatprep.subr.mxu0 0.0
        %7586 = vmatpush1.msra.mxu0 0.0
        %7587 = vmatprep.subr.mxu0 0.0
        %7588 = vmatpush1.msra.mxu0 0.0
        %7589 = vmatprep.subr.mxu0 0.0
        %7590 = vmatpush1.msra.mxu0 0.0
        %7591 = vmatprep.subr.mxu0 0.0
        %7592 = vmatpush1.msra.mxu0 0.0
        %7593 = vmatprep.subr.mxu0 0.0
        %7594 = vmatpush1.msra.mxu0 0.0
        %7595 = vmatprep.subr.mxu0 0.0
        %7596 = vmatpush1.msra.mxu0 0.0
        %7597 = vmatprep.subr.mxu0 0.0
        %7598 = vmatpush1.msra.mxu0 0.0
        %7599 = vmatprep.subr.mxu0 0.0
        %7600 = vmatpush1.msra.mxu0 0.0
        %7601 = vmatprep.subr.mxu0 0.0
        %7602 = vmatpush1.msra.mxu0 0.0
        %7603 = vmatprep.subr.mxu0 0.0
        %7604 = vmatpush1.msra.mxu0 0.0
        %7605 = vmatprep.subr.mxu0 0.0
        %7606 = vmatpush1.msra.mxu0 0.0
        %7607 = vmatprep.subr.mxu0 0.0
        %7608 = vmatpush1.msra.mxu0 0.0
        %7609 = vmatprep.subr.mxu0 0.0
        %7610 = vmatpush1.msra.mxu0 0.0
        %7611 = vmatprep.subr.mxu0 0.0
        %7612 = vmatpush1.msra.mxu0 0.0
        %7613 = vmatprep.subr.mxu0 0.0
        %7614 = vmatpush1.msra.mxu0 0.0
        %7615 = vmatprep.subr.mxu0 0.0
        %7616 = vmatpush1.msra.mxu0 0.0
        %7617 = vmatprep.subr.mxu0 0.0
        %7618 = vmatpush1.msra.mxu0 0.0
        %7619 = vmatprep.subr.mxu0 0.0
        %7620 = vmatpush1.msra.mxu0 0.0
        %7621 = vmatprep.subr.mxu0 0.0
        %7622 = vmatpush1.msra.mxu0 0.0
        %7623 = vmatprep.subr.mxu0 0.0
        %7624 = vmatpush1.msra.mxu0 0.0
        %7625 = vmatprep.subr.mxu0 0.0
        %7626 = vmatpush1.msra.mxu0 0.0
        %7627 = vmatprep.mubr.f32.mxu0 0.0
        %7628 = vmatmul.mubr.f32.gmra.mrb[0].mxu0 %v7561
        %v7629 = vpop.f32.mrb[0].mxu0
        %v7630 = vadd.f32 %v7558, %v7629
        %v7631 = vpop.f32.mrb[0].mxu0
        %7632 = vdwg.mxu0
        %vm7633 = vcmask 1043456
        %v7634 = vsel %vm7633, %v7630, -inf
        %7635 = vmax.xlane.f32.xlu0 %v7634
        %v7636 = vpop.xlane.xlu0 %7635
        %v7637 = vsub.f32 %v7630, %v7636
        %v7638 = vmul.f32 %v7637, 1.442695
        %v7639 = vpow.pop %v7638
        %v7640 = vsel %vm7633, %v7639, 0.0
        %7641 = vadd.xlane.f32.xlu0 %v7640
        %v7642 = vpop.xlane.xlu0 %7641
        %v7643 = vrcp.pop %v7642
        %v7644 = vmul.f32 %v7639, %v7643
        %7645 = vst [vmem:[%s353] sm:$0xf] %v7644
        %s7646 = sand.u32 %s247, 1
        %s7647 = scalar_lea.sflag [#allocation3], %s7646
        %s7648 = sand.u32 %s247, 1
        %s7649 = smul.addr %s7648, 4
        %s7650 = scalar_lea.vmem [#allocation2], %s7649
        // Predicated region
        $region61: #{tpu_custom_call.1} parent=59 // pred_check
          %p7651 = pneg %p257
        $region62: #{tpu_custom_call.1} parent=59 // pred_check_branch
          %7653 = sbr.rel (%p7651) target = $region64
        $region63: #{tpu_custom_call.1} parent=59 // pred_region
          %s7655 = ssub.s32 64, 64
          %7656 = vsyncadd %s7647, %s7655
          %s7657 = smul.addr %s24, 64
          %s7658 = scalar_lea.hbm %s10, %s7657
          %s7660 = sshll.u32 %s7650, 4
          %s7661 = int_to_ptr.vmem [resolvable:$true] %s7660
          %7663 = dma.vmem_to_hbm [thread:$0]  %s7661, 64, %s7658, %s7647
        $region64: #{tpu_custom_call.1} parent=59 // pred_fallthru
          _
      $region60: #{tpu_custom_call.1} parent=5 // pred_fallthru
        _
      %p7664 = scmp.le.s32.totalorder 2, %s19
      // Predicated region
      $region65: #{tpu_custom_call.1} parent=5 // pred_check
        %p7665 = pneg %p7664
      $region66: #{tpu_custom_call.1} parent=5 // pred_check_branch
        %7667 = sbr.rel (%p7665) target = $region68
      $region67: #{tpu_custom_call.1} parent=5 // pred_region
        %s7668 = ssub.s32 %s19, 2
        // Predicated region
        $region69: #{tpu_custom_call.1} parent=67 // pred_check
          %p7669 = pneg %p263
        $region70: #{tpu_custom_call.1} parent=67 // pred_check_branch
          %7671 = sbr.rel (%p7669) target = $region72
        $region71: #{tpu_custom_call.1} parent=67 // pred_region
          %s7672 = sand.u32 %s248, 1
          %s7673 = scalar_lea.sflag [#allocation3], %s7672
          %s7674 = sand.u32 %s248, 1
          %s7675 = smul.addr %s7674, 4
          %s7676 = scalar_lea.vmem [#allocation2], %s7675
          %7677 = dma.done %s7673, 64
        $region72: #{tpu_custom_call.1} parent=67 // pred_fallthru
          _
      $region68: #{tpu_custom_call.1} parent=5 // pred_fallthru
        _
    $region6: #{tpu_custom_call.1} parent=1 // loop_footer
      %s23 = sadd.s32 1, %s19
    $region7: #{tpu_custom_call.1} parent=1 // loop_footer_branch
      %18 = sbr.rel target = $region3
    $region8: #{tpu_custom_call.1} parent=1 // loop_exit
      _
    %7678 = vsyncpa [#allocation3], 1
    %s7679 = scalar_lea.sflag [#allocation3], 1
    %7680 = vsyncpa %s7679, 1

</llo_original>
